<compile_context>
chip_gen: v7x
topology: tpu7x:2x2x1
jax: 0.10.0
libtpu: 0.0.40
codegen_flags: <defaults>
</compile_context>

<pallas_src>
import functools

import numpy as np
import jax
import jax.numpy as jnp
from jax.experimental import pallas as pl
from jax.experimental.pallas import tpu as pltpu

VMEM_LIMIT = 32 * 1024 * 1024  # raised scoped-VMEM budget (v5e default is 16 MiB)


def _round_up(x, m):
    return ((x + m - 1) // m) * m


def _cparams(n_parallel_axes):
    return pltpu.CompilerParams(
        dimension_semantics=("parallel",) * n_parallel_axes,
        vmem_limit_bytes=VMEM_LIMIT)


# ----------------------------------------------------------------------------
# Kernels
# ----------------------------------------------------------------------------
def _mm_bias_kernel(x_ref, w_ref, b_ref, o_ref, *, relu):
    """(TM,K)@(K,N) on the MXU (bf16 in, f32 acc) + bias, optional ReLU."""
    acc = jnp.dot(x_ref[...], w_ref[...],
                  preferred_element_type=jnp.float32) + b_ref[...]
    if relu:
        acc = jnp.maximum(acc, 0.0)
    o_ref[...] = acc.astype(o_ref.dtype)


def _conv_taps_kernel(*refs, n_inputs, taps, relu):
    """3x3 conv as 9 shifted-slab matmuls accumulated in f32 (no im2col).

    refs = (input refs... , w_ref (9,Cin,Cout), b_ref (1,Cout), o_ref (1,Q,Cout))
    taps = static tuple of (src_input, row_offset, tap_index).
    """
    w_ref = refs[n_inputs]
    b_ref = refs[n_inputs + 1]
    o_ref = refs[n_inputs + 2]
    q, cout = o_ref.shape[1], o_ref.shape[2]
    xs = [refs[i][0] for i in range(n_inputs)]          # each (rows, Cin) bf16
    acc = jnp.zeros((q, cout), jnp.float32)
    for src, off, ti in taps:
        acc = acc + jnp.dot(xs[src][off:off + q, :], w_ref[ti],
                            preferred_element_type=jnp.float32)
    acc = acc + b_ref[...]
    if relu:
        acc = jnp.maximum(acc, 0.0)
    o_ref[0] = acc.astype(o_ref.dtype)


def _ppm_kernel(feat_ref, pool_ref, bil_ref, wemb_ref, efeat_ref, o_ref):
    """Fused pyramid pooling: pool -> 1x1 conv -> bilinear -> concat, one slab."""
    feat = feat_ref[0]                                               # (P, Cin)
    # pass-through branch placed at channels [4*Cb, 4*Cb+Cin) via embed matmul
    acc = jnp.dot(feat, efeat_ref[...], preferred_element_type=jnp.float32)
    for i in range(pool_ref.shape[0]):
        pooled = jnp.dot(pool_ref[i], feat, preferred_element_type=jnp.float32)
        conv = jnp.dot(pooled.astype(jnp.bfloat16), wemb_ref[i],
                       preferred_element_type=jnp.float32)
        acc = acc + jnp.dot(bil_ref[i], conv.astype(jnp.bfloat16),
                            preferred_element_type=jnp.float32)
    o_ref[0] = acc.astype(o_ref.dtype)


def _spatial_matmul_kernel(k_ref, x_ref, o_ref):
    """out_flat = K @ x_flat : H- and W-resize fused into one matmul per image."""
    o_ref[0] = jnp.dot(k_ref[...], x_ref[0],
                       preferred_element_type=jnp.float32).astype(o_ref.dtype)


# ----------------------------------------------------------------------------
# Spatial matrices (precomputed once per shape)
# ----------------------------------------------------------------------------
def _bilinear_matrix_np(in_size, out_size):
    """PyTorch F.interpolate(mode='bilinear', align_corners=False) weights."""
    dst = np.arange(out_size, dtype=np.float64)
    src = (dst + 0.5) * (in_size / out_size) - 0.5
    src = np.clip(src, 0.0, in_size - 1)
    lo = np.floor(src).astype(np.int64)
    hi = np.minimum(lo + 1, in_size - 1)
    w_hi = (src - lo).astype(np.float32)
    w_lo = 1.0 - w_hi
    M = np.zeros((out_size, in_size), np.float32)
    M[np.arange(out_size), lo] += w_lo
    M[np.arange(out_size), hi] += w_hi
    return M


def _adaptive_pool_matrix_np(in_size, out_size):
    """PyTorch AdaptiveAvgPool2d bin weights."""
    M = np.zeros((out_size, in_size), np.float32)
    for o in range(out_size):
        start = (o * in_size) // out_size
        end = -(-((o + 1) * in_size) // out_size)          # ceil
        M[o, start:end] = 1.0 / (end - start)
    return M


@functools.lru_cache(maxsize=None)
def _bilinear_kron(hin, win, hout, wout):
    k = np.kron(_bilinear_matrix_np(hin, hout), _bilinear_matrix_np(win, wout))
    return jnp.asarray(k, dtype=jnp.bfloat16)


@functools.lru_cache(maxsize=None)
def _ppm_spatial_mats(fh, fw, sizes=(1, 2, 3, 6)):
    smax = max(s * s for s in sizes)
    P = fh * fw
    pool = np.zeros((len(sizes), smax, P), np.float32)
    bil = np.zeros((len(sizes), P, smax), np.float32)
    for i, s in enumerate(sizes):
        pool[i, :s * s, :] = np.kron(_adaptive_pool_matrix_np(fh, s),
                                     _adaptive_pool_matrix_np(fw, s))
        bil[i, :, :s * s] = np.kron(_bilinear_matrix_np(s, fh),
                                    _bilinear_matrix_np(s, fw))
    return (jnp.asarray(pool, jnp.bfloat16), jnp.asarray(bil, jnp.bfloat16))


# ----------------------------------------------------------------------------
# Op wrappers (all NHWC, bf16 activations between kernels)
# ----------------------------------------------------------------------------
def matmul_bias(x, w, bias, relu=False, tm=256, out_dtype=jnp.bfloat16):
    """M-tiled (M,K)@(K,N) + bias (+ReLU).  Grid over M tiles => pipelined DMA
    and TensorCore sharding.  For production M pick tm in 512..2048 subject to
    2*(tm*K + tm*N)*2B (double-buffered bf16) staying well under VMEM_LIMIT."""
    M, K = x.shape
    N = w.shape[1]
    x = x.astype(jnp.bfloat16)
    w = w.astype(jnp.bfloat16)
    bias = bias.reshape(1, N).astype(jnp.float32)
    tm_eff = int(min(tm, _round_up(M, 8)))
    Mp = _round_up(M, tm_eff)
    if Mp != M:
        x = jnp.pad(x, ((0, Mp - M), (0, 0)))
    out = pl.pallas_call(
        functools.partial(_mm_bias_kernel, relu=relu),
        out_shape=jax.ShapeDtypeStruct((Mp, N), out_dtype),
        grid=(Mp // tm_eff,),
        in_specs=[pl.BlockSpec((tm_eff, K), lambda i: (i, 0)),
                  pl.BlockSpec((K, N), lambda i: (0, 0)),
                  pl.BlockSpec((1, N), lambda i: (0, 0))],
        out_specs=pl.BlockSpec((tm_eff, N), lambda i: (i, 0)),
        compiler_params=_cparams(1),
    )(x, w, bias)
    return out[:M] if Mp != M else out


def conv3x3_bn_relu(x, w9, shift, stride=1, relu=True):
    """NHWC 3x3 conv (pad=1, stride 1 or 2) with folded-BN affine and ReLU."""
    n, h, w, c = x.shape
    cout = w9.shape[-1]
    xp = jnp.pad(x, ((0, 0), (1, 1), (1, 1), (0, 0)))

    if stride == 1:
        ho, wo = h, w
        wcols = w + 2
        rows = (h + 2) * wcols + 2
        xf = jnp.pad(xp.reshape(n, (h + 2) * wcols, c), ((0, 0), (0, 2), (0, 0)))
        inputs = (xf,)
        taps = tuple((0, dh * wcols + dw, 3 * dh + dw)
                     for dh in range(3) for dw in range(3))
    elif stride == 2:
        ho, wo = h // 2, w // 2
        wcols = wo + 1
        rows = (ho + 1) * wcols + 1
        phases = []
        for rp in range(2):            # even/odd rows
            for cp in range(2):        # even/odd cols
                ph = xp[:, rp::2, cp::2, :].reshape(n, (ho + 1) * wcols, c)
                phases.append(jnp.pad(ph, ((0, 0), (0, 1), (0, 0))))
        inputs = tuple(phases)
        taps = tuple(((dh % 2) * 2 + (dw % 2),
                      (1 if dh == 2 else 0) * wcols + (1 if dw == 2 else 0),
                      3 * dh + dw)
                     for dh in range(3) for dw in range(3))
    else:
        raise ValueError("stride must be 1 or 2")

    q = ho * wcols
    n_in = len(inputs)
    kernel = functools.partial(_conv_taps_kernel,
                               n_inputs=n_in, taps=taps, relu=relu)
    in_specs = [pl.BlockSpec((1, rows, c), lambda i: (i, 0, 0))
                for _ in range(n_in)]
    in_specs += [pl.BlockSpec((9, c, cout), lambda i: (0, 0, 0)),
                 pl.BlockSpec((1, cout), lambda i: (0, 0))]
    out = pl.pallas_call(
        kernel,
        out_shape=jax.ShapeDtypeStruct((n, q, cout), jnp.bfloat16),
        grid=(n,),
        in_specs=in_specs,
        out_specs=pl.BlockSpec((1, q, cout), lambda i: (i, 0, 0)),
        compiler_params=_cparams(1),
    )(*inputs, w9, shift)
    return out.reshape(n, ho, wcols, cout)[:, :, :wo, :]


def ppm_fused(feat, wemb, efeat):
    """Fused PyramidPoolingModule: one kernel, lane-dense 64-wide output."""
    n, fh, fw, cin = feat.shape
    P = fh * fw
    cout = efeat.shape[1]
    pool, bil = _ppm_spatial_mats(fh, fw)
    out = pl.pallas_call(
        _ppm_kernel,
        out_shape=jax.ShapeDtypeStruct((n, P, cout), jnp.bfloat16),
        grid=(n,),
        in_specs=[pl.BlockSpec((1, P, cin), lambda i: (i, 0, 0)),
                  pl.BlockSpec(pool.shape, lambda i: (0, 0, 0)),
                  pl.BlockSpec(bil.shape, lambda i: (0, 0, 0)),
                  pl.BlockSpec(wemb.shape, lambda i: (0, 0, 0)),
                  pl.BlockSpec(efeat.shape, lambda i: (0, 0))],
        out_specs=pl.BlockSpec((1, P, cout), lambda i: (i, 0, 0)),
        compiler_params=_cparams(1),
    )(feat.reshape(n, P, cin), pool, bil, wemb, efeat)
    return out.reshape(n, fh, fw, cout)


def bilinear_resize(x, hout, wout, out_dtype=jnp.bfloat16):
    """Bilinear (align_corners=False) resize; H and W passes fused per image."""
    n, hin, win, c = x.shape
    K = _bilinear_kron(hin, win, hout, wout)            # (hout*wout, hin*win)
    pout, pin = K.shape
    out = pl.pallas_call(
        _spatial_matmul_kernel,
        out_shape=jax.ShapeDtypeStruct((n, pout, c), out_dtype),
        grid=(n,),
        in_specs=[pl.BlockSpec((pout, pin), lambda i: (0, 0)),
                  pl.BlockSpec((1, pin, c), lambda i: (i, 0, 0))],
        out_specs=pl.BlockSpec((1, pout, c), lambda i: (i, 0, 0)),
        compiler_params=_cparams(1),
    )(K, x.reshape(n, pin, c))
    return out.reshape(n, hout, wout, c)


# ----------------------------------------------------------------------------
# Parameter construction (deterministic, synthetic; BN folded offline)
# ----------------------------------------------------------------------------
def _conv_w(key, cout, cin, k):
    fan_in = cin * k * k
    return jax.random.normal(key, (cout, cin, k, k), jnp.float32) / np.sqrt(fan_in)


def _bn_params(key, c):
    k1, k2, k3, k4 = jax.random.split(key, 4)
    gamma = 1.0 + 0.1 * jax.random.normal(k1, (c,), jnp.float32)
    beta = 0.1 * jax.random.normal(k2, (c,), jnp.float32)
    mean = 0.1 * jax.random.normal(k3, (c,), jnp.float32)
    var = 1.0 + 0.1 * jax.random.uniform(k4, (c,), jnp.float32)
    return gamma, beta, mean, var


def _fold_bn(bn, bias=None, eps=1e-5):
    gamma, beta, mean, var = bn
    scale = gamma / jnp.sqrt(var + eps)
    b = bias if bias is not None else jnp.zeros_like(mean)
    shift = (b - mean) * scale + beta
    return scale, shift


def _fold_conv3x3(w, scale, shift):
    """torch (Cout,Cin,3,3) conv weight with BN scale folded -> (9,Cin,Cout)."""
    w9 = jnp.transpose(w, (2, 3, 1, 0)).reshape(9, w.shape[1], w.shape[0])
    w9 = (w9 * scale[None, None, :]).astype(jnp.bfloat16)
    return w9, shift.reshape(1, -1).astype(jnp.float32)


def init_params(key, n_classes):
    # scaled-down channel plan: extractor 3->16 (aux) ->32 (feat);
    # PPM in=32, 4 branches of 8 -> concat 64; up1 64->16; up2 16->8; cls 8->n_classes
    ks = jax.random.split(key, 20)
    p = {}
    # extractor stand-in (Conv2dBatchNormRelu, stride 2 each)
    w = _conv_w(ks[0], 16, 3, 3)
    sc, sh = _fold_bn(_bn_params(ks[1], 16))
    p["ext1_w9"], p["ext1_sh"] = _fold_conv3x3(w, sc, sh)
    w = _conv_w(ks[2], 32, 16, 3)
    sc, sh = _fold_bn(_bn_params(ks[3], 32))
    p["ext2_w9"], p["ext2_sh"] = _fold_conv3x3(w, sc, sh)
    # pyramid pooling: four 1x1 convs 32->8 (bias=False), embedded into a
    # single (4, 32, 64) weight that writes the concat slab directly.
    cin, cb = 32, 8
    cout = 4 * cb + cin
    wemb = np.zeros((4, cin, cout), np.float32)
    for i in range(4):
        wi = np.asarray(_conv_w(ks[4 + i], cb, cin, 1)).reshape(cb, cin).T
        wemb[i, :, i * cb:(i + 1) * cb] = wi
    efeat = np.zeros((cin, cout), np.float32)
    efeat[np.arange(cin), 4 * cb + np.arange(cin)] = 1.0
    p["ppm_wemb"] = jnp.asarray(wemb, jnp.bfloat16)
    p["ppm_efeat"] = jnp.asarray(efeat, jnp.bfloat16)
    # upsample1: 3x3 conv (bias=True) + BN + ReLU, 64 -> 16
    w = _conv_w(ks[8], 16, 64, 3)
    b = 0.05 * jax.random.normal(ks[9], (16,), jnp.float32)
    sc, sh = _fold_bn(_bn_params(ks[10], 16), bias=b)
    p["up1_w9"], p["up1_sh"] = _fold_conv3x3(w, sc, sh)
    # upsample2: 16 -> 8
    w = _conv_w(ks[11], 8, 16, 3)
    b = 0.05 * jax.random.normal(ks[12], (8,), jnp.float32)
    sc, sh = _fold_bn(_bn_params(ks[13], 8), bias=b)
    p["up2_w9"], p["up2_sh"] = _fold_conv3x3(w, sc, sh)
    # classifier: 1x1 conv with bias, 8 -> n_classes
    wc = _conv_w(ks[14], n_classes, 8, 1)
    p["cls_w"] = jnp.asarray(wc.reshape(n_classes, 8).T, jnp.bfloat16)
    p["cls_b"] = (0.05 * jax.random.normal(ks[15], (n_classes,),
                                           jnp.float32)).reshape(1, -1)
    return p


# ----------------------------------------------------------------------------
# pspnet_pure forward (eval mode)
# ----------------------------------------------------------------------------
def pspnet_forward(x, p):
    n, _, h_in, w_in = x.shape
    x = jnp.transpose(x, (0, 2, 3, 1)).astype(jnp.bfloat16)   # NCHW -> NHWC once

    # --- extractor stand-in: (aux, features) ---
    aux = conv3x3_bn_relu(x, p["ext1_w9"], p["ext1_sh"], stride=2)    # H/2, 16ch
    feat = conv3x3_bn_relu(aux, p["ext2_w9"], p["ext2_sh"], stride=2)  # H/4, 32ch
    fh, fw = feat.shape[1], feat.shape[2]

    # --- fused PyramidPoolingModule -> (n, fh, fw, 64) ---
    out = ppm_fused(feat, p["ppm_wemb"], p["ppm_efeat"])

    # --- UpSample 1 (conv+BN+ReLU, bilinear x2); Dropout2d == identity (eval) ---
    out = conv3x3_bn_relu(out, p["up1_w9"], p["up1_sh"], stride=1)
    out = bilinear_resize(out, 2 * fh, 2 * fw)

    # --- UpSample 2; Dropout2d == identity (eval) ---
    out = conv3x3_bn_relu(out, p["up2_w9"], p["up2_sh"], stride=1)
    out = bilinear_resize(out, 4 * fh, 4 * fw)

    # --- classifier (1x1 conv + bias) via the M-tiled matmul kernel ---
    nb, hc, wc, cc = out.shape
    cls = matmul_bias(out.reshape(nb * hc * wc, cc), p["cls_w"], p["cls_b"])
    cls = cls.reshape(nb, hc, wc, -1)

    # --- final bilinear resize to the input resolution ---
    out = bilinear_resize(cls, h_in, w_in, out_dtype=jnp.float32)
    return jnp.transpose(out, (0, 3, 1, 2))                    # NHWC -> NCHW


# ----------------------------------------------------------------------------
if __name__ == "__main__":
    key = jax.random.PRNGKey(0)
    k_x, k_p = jax.random.split(key)

    n_classes = 5
    x = jax.random.normal(k_x, (2, 3, 16, 16), jnp.float32)    # NCHW input
    params = init_params(k_p, n_classes)

    fwd = jax.jit(pspnet_forward)
    out = fwd(x, params)
    out = jax.block_until_ready(out)

    assert out.shape == (2, n_classes, 16, 16), out.shape
    assert out.dtype == jnp.float32
    assert bool(jnp.all(jnp.isfinite(out)))
    print("KERNEL_OK")
</pallas_src>

<mosaic_0001>
module attributes {stable_mosaic.version = 11 : i64} {
  func.func @_conv_taps_kernel(%arg0: i32, %arg1: memref<1x82x3xbf16, #tpu.memory_space<vmem>>, %arg2: memref<1x82x3xbf16, #tpu.memory_space<vmem>>, %arg3: memref<1x82x3xbf16, #tpu.memory_space<vmem>>, %arg4: memref<1x82x3xbf16, #tpu.memory_space<vmem>>, %arg5: memref<9x3x16xbf16, #tpu.memory_space<vmem>>, %arg6: memref<1x16xf32, #tpu.memory_space<vmem>>, %arg7: memref<1x72x16xbf16, #tpu.memory_space<vmem>>) attributes {dimension_semantics = [#tpu.dimension_semantics<parallel>], iteration_bounds = array<i64: 2>, scalar_prefetch = 0 : i64, scratch_operands = 0 : i64, tpu.core_type = #tpu.core_type<tc>, window_params = [{transform_indices = @transform_0, window_bounds = array<i64: 1, 82, 3>}, {transform_indices = @transform_1, window_bounds = array<i64: 1, 82, 3>}, {transform_indices = @transform_2, window_bounds = array<i64: 1, 82, 3>}, {transform_indices = @transform_3, window_bounds = array<i64: 1, 82, 3>}, {pipeline_mode = #tpu.pipeline_mode<synchronous>, transform_indices = @transform_4, window_bounds = array<i64: 9, 3, 16>}, {pipeline_mode = #tpu.pipeline_mode<synchronous>, transform_indices = @transform_5, window_bounds = array<i64: 1, 16>}, {transform_indices = @transform_6, window_bounds = array<i64: 1, 72, 16>}]} {
    %c0 = arith.constant 0 : index
    %c0_0 = arith.constant 0 : index
    %c0_1 = arith.constant 0 : index
    %0 = vector.load %arg1[%c0, %c0_0, %c0_1] : memref<1x82x3xbf16, #tpu.memory_space<vmem>>, vector<1x82x3xbf16>
    %1 = vector.shape_cast %0 : vector<1x82x3xbf16> to vector<82x3xbf16>
    %c0_2 = arith.constant 0 : index
    %c0_3 = arith.constant 0 : index
    %c0_4 = arith.constant 0 : index
    %2 = vector.load %arg2[%c0_2, %c0_3, %c0_4] : memref<1x82x3xbf16, #tpu.memory_space<vmem>>, vector<1x82x3xbf16>
    %3 = vector.shape_cast %2 : vector<1x82x3xbf16> to vector<82x3xbf16>
    %c0_5 = arith.constant 0 : index
    %c0_6 = arith.constant 0 : index
    %c0_7 = arith.constant 0 : index
    %4 = vector.load %arg3[%c0_5, %c0_6, %c0_7] : memref<1x82x3xbf16, #tpu.memory_space<vmem>>, vector<1x82x3xbf16>
    %5 = vector.shape_cast %4 : vector<1x82x3xbf16> to vector<82x3xbf16>
    %c0_8 = arith.constant 0 : index
    %c0_9 = arith.constant 0 : index
    %c0_10 = arith.constant 0 : index
    %6 = vector.load %arg4[%c0_8, %c0_9, %c0_10] : memref<1x82x3xbf16, #tpu.memory_space<vmem>>, vector<1x82x3xbf16>
    %7 = vector.shape_cast %6 : vector<1x82x3xbf16> to vector<82x3xbf16>
    %cst = arith.constant 0.000000e+00 : f32
    %8 = vector.broadcast %cst : f32 to vector<72x16xf32>
    %9 = vector.extract_strided_slice %1 {offsets = [0, 0], sizes = [72, 3], strides = [1, 1]} : vector<82x3xbf16> to vector<72x3xbf16>
    %c0_11 = arith.constant 0 : index
    %c0_12 = arith.constant 0 : index
    %c0_13 = arith.constant 0 : index
    %10 = vector.load %arg5[%c0_11, %c0_12, %c0_13] : memref<9x3x16xbf16, #tpu.memory_space<vmem>>, vector<1x3x16xbf16>
    %11 = vector.shape_cast %10 : vector<1x3x16xbf16> to vector<3x16xbf16>
    %cst_14 = arith.constant dense<0.000000e+00> : vector<72x16xf32>
    %12 = tpu.matmul %9, %11, %cst_14 {dimension_numbers = #tpu.dot_dimension_numbers<[1], [0], [0], [1], [0, 0, 1, 1], [], []>} : vector<72x3xbf16>, vector<3x16xbf16>, vector<72x16xf32> -> vector<72x16xf32>
    %13 = arith.addf %8, %12 : vector<72x16xf32>
    %14 = vector.extract_strided_slice %3 {offsets = [0, 0], sizes = [72, 3], strides = [1, 1]} : vector<82x3xbf16> to vector<72x3xbf16>
    %c1 = arith.constant 1 : index
    %c0_15 = arith.constant 0 : index
    %c0_16 = arith.constant 0 : index
    %15 = vector.load %arg5[%c1, %c0_15, %c0_16] : memref<9x3x16xbf16, #tpu.memory_space<vmem>>, vector<1x3x16xbf16>
    %16 = vector.shape_cast %15 : vector<1x3x16xbf16> to vector<3x16xbf16>
    %cst_17 = arith.constant dense<0.000000e+00> : vector<72x16xf32>
    %17 = tpu.matmul %14, %16, %cst_17 {dimension_numbers = #tpu.dot_dimension_numbers<[1], [0], [0], [1], [0, 0, 1, 1], [], []>} : vector<72x3xbf16>, vector<3x16xbf16>, vector<72x16xf32> -> vector<72x16xf32>
    %18 = arith.addf %13, %17 : vector<72x16xf32>
    %19 = vector.extract_strided_slice %1 {offsets = [1, 0], sizes = [72, 3], strides = [1, 1]} : vector<82x3xbf16> to vector<72x3xbf16>
    %c2 = arith.constant 2 : index
    %c0_18 = arith.constant 0 : index
    %c0_19 = arith.constant 0 : index
    %20 = vector.load %arg5[%c2, %c0_18, %c0_19] : memref<9x3x16xbf16, #tpu.memory_space<vmem>>, vector<1x3x16xbf16>
    %21 = vector.shape_cast %20 : vector<1x3x16xbf16> to vector<3x16xbf16>
    %cst_20 = arith.constant dense<0.000000e+00> : vector<72x16xf32>
    %22 = tpu.matmul %19, %21, %cst_20 {dimension_numbers = #tpu.dot_dimension_numbers<[1], [0], [0], [1], [0, 0, 1, 1], [], []>} : vector<72x3xbf16>, vector<3x16xbf16>, vector<72x16xf32> -> vector<72x16xf32>
    %23 = arith.addf %18, %22 : vector<72x16xf32>
    %24 = vector.extract_strided_slice %5 {offsets = [0, 0], sizes = [72, 3], strides = [1, 1]} : vector<82x3xbf16> to vector<72x3xbf16>
    %c3 = arith.constant 3 : index
    %c0_21 = arith.constant 0 : index
    %c0_22 = arith.constant 0 : index
    %25 = vector.load %arg5[%c3, %c0_21, %c0_22] : memref<9x3x16xbf16, #tpu.memory_space<vmem>>, vector<1x3x16xbf16>
    %26 = vector.shape_cast %25 : vector<1x3x16xbf16> to vector<3x16xbf16>
    %cst_23 = arith.constant dense<0.000000e+00> : vector<72x16xf32>
    %27 = tpu.matmul %24, %26, %cst_23 {dimension_numbers = #tpu.dot_dimension_numbers<[1], [0], [0], [1], [0, 0, 1, 1], [], []>} : vector<72x3xbf16>, vector<3x16xbf16>, vector<72x16xf32> -> vector<72x16xf32>
    %28 = arith.addf %23, %27 : vector<72x16xf32>
    %29 = vector.extract_strided_slice %7 {offsets = [0, 0], sizes = [72, 3], strides = [1, 1]} : vector<82x3xbf16> to vector<72x3xbf16>
    %c4 = arith.constant 4 : index
    %c0_24 = arith.constant 0 : index
    %c0_25 = arith.constant 0 : index
    %30 = vector.load %arg5[%c4, %c0_24, %c0_25] : memref<9x3x16xbf16, #tpu.memory_space<vmem>>, vector<1x3x16xbf16>
    %31 = vector.shape_cast %30 : vector<1x3x16xbf16> to vector<3x16xbf16>
    %cst_26 = arith.constant dense<0.000000e+00> : vector<72x16xf32>
    %32 = tpu.matmul %29, %31, %cst_26 {dimension_numbers = #tpu.dot_dimension_numbers<[1], [0], [0], [1], [0, 0, 1, 1], [], []>} : vector<72x3xbf16>, vector<3x16xbf16>, vector<72x16xf32> -> vector<72x16xf32>
    %33 = arith.addf %28, %32 : vector<72x16xf32>
    %34 = vector.extract_strided_slice %5 {offsets = [1, 0], sizes = [72, 3], strides = [1, 1]} : vector<82x3xbf16> to vector<72x3xbf16>
    %c5 = arith.constant 5 : index
    %c0_27 = arith.constant 0 : index
    %c0_28 = arith.constant 0 : index
    %35 = vector.load %arg5[%c5, %c0_27, %c0_28] : memref<9x3x16xbf16, #tpu.memory_space<vmem>>, vector<1x3x16xbf16>
    %36 = vector.shape_cast %35 : vector<1x3x16xbf16> to vector<3x16xbf16>
    %cst_29 = arith.constant dense<0.000000e+00> : vector<72x16xf32>
    %37 = tpu.matmul %34, %36, %cst_29 {dimension_numbers = #tpu.dot_dimension_numbers<[1], [0], [0], [1], [0, 0, 1, 1], [], []>} : vector<72x3xbf16>, vector<3x16xbf16>, vector<72x16xf32> -> vector<72x16xf32>
    %38 = arith.addf %33, %37 : vector<72x16xf32>
    %39 = vector.extract_strided_slice %1 {offsets = [9, 0], sizes = [72, 3], strides = [1, 1]} : vector<82x3xbf16> to vector<72x3xbf16>
    %c6 = arith.constant 6 : index
    %c0_30 = arith.constant 0 : index
    %c0_31 = arith.constant 0 : index
    %40 = vector.load %arg5[%c6, %c0_30, %c0_31] : memref<9x3x16xbf16, #tpu.memory_space<vmem>>, vector<1x3x16xbf16>
    %41 = vector.shape_cast %40 : vector<1x3x16xbf16> to vector<3x16xbf16>
    %cst_32 = arith.constant dense<0.000000e+00> : vector<72x16xf32>
    %42 = tpu.matmul %39, %41, %cst_32 {dimension_numbers = #tpu.dot_dimension_numbers<[1], [0], [0], [1], [0, 0, 1, 1], [], []>} : vector<72x3xbf16>, vector<3x16xbf16>, vector<72x16xf32> -> vector<72x16xf32>
    %43 = arith.addf %38, %42 : vector<72x16xf32>
    %44 = vector.extract_strided_slice %3 {offsets = [9, 0], sizes = [72, 3], strides = [1, 1]} : vector<82x3xbf16> to vector<72x3xbf16>
    %c7 = arith.constant 7 : index
    %c0_33 = arith.constant 0 : index
    %c0_34 = arith.constant 0 : index
    %45 = vector.load %arg5[%c7, %c0_33, %c0_34] : memref<9x3x16xbf16, #tpu.memory_space<vmem>>, vector<1x3x16xbf16>
    %46 = vector.shape_cast %45 : vector<1x3x16xbf16> to vector<3x16xbf16>
    %cst_35 = arith.constant dense<0.000000e+00> : vector<72x16xf32>
    %47 = tpu.matmul %44, %46, %cst_35 {dimension_numbers = #tpu.dot_dimension_numbers<[1], [0], [0], [1], [0, 0, 1, 1], [], []>} : vector<72x3xbf16>, vector<3x16xbf16>, vector<72x16xf32> -> vector<72x16xf32>
    %48 = arith.addf %43, %47 : vector<72x16xf32>
    %49 = vector.extract_strided_slice %1 {offsets = [10, 0], sizes = [72, 3], strides = [1, 1]} : vector<82x3xbf16> to vector<72x3xbf16>
    %c8 = arith.constant 8 : index
    %c0_36 = arith.constant 0 : index
    %c0_37 = arith.constant 0 : index
    %50 = vector.load %arg5[%c8, %c0_36, %c0_37] : memref<9x3x16xbf16, #tpu.memory_space<vmem>>, vector<1x3x16xbf16>
    %51 = vector.shape_cast %50 : vector<1x3x16xbf16> to vector<3x16xbf16>
    %cst_38 = arith.constant dense<0.000000e+00> : vector<72x16xf32>
    %52 = tpu.matmul %49, %51, %cst_38 {dimension_numbers = #tpu.dot_dimension_numbers<[1], [0], [0], [1], [0, 0, 1, 1], [], []>} : vector<72x3xbf16>, vector<3x16xbf16>, vector<72x16xf32> -> vector<72x16xf32>
    %53 = arith.addf %48, %52 : vector<72x16xf32>
    %c0_39 = arith.constant 0 : index
    %c0_40 = arith.constant 0 : index
    %54 = vector.load %arg6[%c0_39, %c0_40] : memref<1x16xf32, #tpu.memory_space<vmem>>, vector<1x16xf32>
    %55 = vector.broadcast %54 : vector<1x16xf32> to vector<72x16xf32>
    %56 = arith.addf %53, %55 : vector<72x16xf32>
    %cst_41 = arith.constant 0.000000e+00 : f32
    %57 = vector.broadcast %cst_41 : f32 to vector<72x16xf32>
    %58 = arith.maximumf %56, %57 : vector<72x16xf32>
    %59 = arith.truncf %58 : vector<72x16xf32> to vector<72x16xbf16>
    %c0_42 = arith.constant 0 : index
    %c0_43 = arith.constant 0 : index
    %c0_44 = arith.constant 0 : index
    %60 = vector.load %arg7[%c0_42, %c0_43, %c0_44] : memref<1x72x16xbf16, #tpu.memory_space<vmem>>, vector<1x72x16xbf16>
    %61 = vector.shape_cast %60 : vector<1x72x16xbf16> to vector<72x16xbf16>
    %62 = vector.shape_cast %59 : vector<72x16xbf16> to vector<1x72x16xbf16>
    tpu.vector_store %arg7[%c0_42, %c0_43, %c0_44], %62 {strides = array<i32>} : memref<1x72x16xbf16, #tpu.memory_space<vmem>>, vector<1x72x16xbf16>,
    return
  }
  func.func @transform_0(%arg0: i32) -> (i32, i32, i32) {
    %c0_i32 = arith.constant 0 : i32
    %c0_i32_0 = arith.constant 0 : i32
    %c0_i32_1 = arith.constant 0 : i32
    return %arg0, %c0_i32, %c0_i32_0 : i32, i32, i32
  }
  func.func @transform_1(%arg0: i32) -> (i32, i32, i32) {
    %c0_i32 = arith.constant 0 : i32
    %c0_i32_0 = arith.constant 0 : i32
    %c0_i32_1 = arith.constant 0 : i32
    return %arg0, %c0_i32, %c0_i32_0 : i32, i32, i32
  }
  func.func @transform_2(%arg0: i32) -> (i32, i32, i32) {
    %c0_i32 = arith.constant 0 : i32
    %c0_i32_0 = arith.constant 0 : i32
    %c0_i32_1 = arith.constant 0 : i32
    return %arg0, %c0_i32, %c0_i32_0 : i32, i32, i32
  }
  func.func @transform_3(%arg0: i32) -> (i32, i32, i32) {
    %c0_i32 = arith.constant 0 : i32
    %c0_i32_0 = arith.constant 0 : i32
    %c0_i32_1 = arith.constant 0 : i32
    return %arg0, %c0_i32, %c0_i32_0 : i32, i32, i32
  }
  func.func @transform_4(%arg0: i32) -> (i32, i32, i32) {
    %c0_i32 = arith.constant 0 : i32
    %c0_i32_0 = arith.constant 0 : i32
    %c0_i32_1 = arith.constant 0 : i32
    %c0_i32_2 = arith.constant 0 : i32
    return %c0_i32, %c0_i32_0, %c0_i32_1 : i32, i32, i32
  }
  func.func @transform_5(%arg0: i32) -> (i32, i32) {
    %c0_i32 = arith.constant 0 : i32
    %c0_i32_0 = arith.constant 0 : i32
    %c0_i32_1 = arith.constant 0 : i32
    return %c0_i32, %c0_i32_0 : i32, i32
  }
  func.func @transform_6(%arg0: i32) -> (i32, i32, i32) {
    %c0_i32 = arith.constant 0 : i32
    %c0_i32_0 = arith.constant 0 : i32
    %c0_i32_1 = arith.constant 0 : i32
    return %arg0, %c0_i32, %c0_i32_0 : i32, i32, i32
  }
}

module attributes {stable_mosaic.version = 11 : i64} {
  func.func @_conv_taps_kernel(%arg0: i32, %arg1: memref<1x26x16xbf16, #tpu.memory_space<vmem>>, %arg2: memref<1x26x16xbf16, #tpu.memory_space<vmem>>, %arg3: memref<1x26x16xbf16, #tpu.memory_space<vmem>>, %arg4: memref<1x26x16xbf16, #tpu.memory_space<vmem>>, %arg5: memref<9x16x32xbf16, #tpu.memory_space<vmem>>, %arg6: memref<1x32xf32, #tpu.memory_space<vmem>>, %arg7: memref<1x20x32xbf16, #tpu.memory_space<vmem>>) attributes {dimension_semantics = [#tpu.dimension_semantics<parallel>], iteration_bounds = array<i64: 2>, scalar_prefetch = 0 : i64, scratch_operands = 0 : i64, tpu.core_type = #tpu.core_type<tc>, window_params = [{transform_indices = @transform_0, window_bounds = array<i64: 1, 26, 16>}, {transform_indices = @transform_1, window_bounds = array<i64: 1, 26, 16>}, {transform_indices = @transform_2, window_bounds = array<i64: 1, 26, 16>}, {transform_indices = @transform_3, window_bounds = array<i64: 1, 26, 16>}, {pipeline_mode = #tpu.pipeline_mode<synchronous>, transform_indices = @transform_4, window_bounds = array<i64: 9, 16, 32>}, {pipeline_mode = #tpu.pipeline_mode<synchronous>, transform_indices = @transform_5, window_bounds = array<i64: 1, 32>}, {transform_indices = @transform_6, window_bounds = array<i64: 1, 20, 32>}]} {
    %c0 = arith.constant 0 : index
    %c0_0 = arith.constant 0 : index
    %c0_1 = arith.constant 0 : index
    %0 = vector.load %arg1[%c0, %c0_0, %c0_1] : memref<1x26x16xbf16, #tpu.memory_space<vmem>>, vector<1x26x16xbf16>
    %1 = vector.shape_cast %0 : vector<1x26x16xbf16> to vector<26x16xbf16>
    %c0_2 = arith.constant 0 : index
    %c0_3 = arith.constant 0 : index
    %c0_4 = arith.constant 0 : index
    %2 = vector.load %arg2[%c0_2, %c0_3, %c0_4] : memref<1x26x16xbf16, #tpu.memory_space<vmem>>, vector<1x26x16xbf16>
    %3 = vector.shape_cast %2 : vector<1x26x16xbf16> to vector<26x16xbf16>
    %c0_5 = arith.constant 0 : index
    %c0_6 = arith.constant 0 : index
    %c0_7 = arith.constant 0 : index
    %4 = vector.load %arg3[%c0_5, %c0_6, %c0_7] : memref<1x26x16xbf16, #tpu.memory_space<vmem>>, vector<1x26x16xbf16>
    %5 = vector.shape_cast %4 : vector<1x26x16xbf16> to vector<26x16xbf16>
    %c0_8 = arith.constant 0 : index
    %c0_9 = arith.constant 0 : index
    %c0_10 = arith.constant 0 : index
    %6 = vector.load %arg4[%c0_8, %c0_9, %c0_10] : memref<1x26x16xbf16, #tpu.memory_space<vmem>>, vector<1x26x16xbf16>
    %7 = vector.shape_cast %6 : vector<1x26x16xbf16> to vector<26x16xbf16>
    %cst = arith.constant 0.000000e+00 : f32
    %8 = vector.broadcast %cst : f32 to vector<20x32xf32>
    %9 = vector.extract_strided_slice %1 {offsets = [0, 0], sizes = [20, 16], strides = [1, 1]} : vector<26x16xbf16> to vector<20x16xbf16>
    %c0_11 = arith.constant 0 : index
    %c0_12 = arith.constant 0 : index
    %c0_13 = arith.constant 0 : index
    %10 = vector.load %arg5[%c0_11, %c0_12, %c0_13] : memref<9x16x32xbf16, #tpu.memory_space<vmem>>, vector<1x16x32xbf16>
    %11 = vector.shape_cast %10 : vector<1x16x32xbf16> to vector<16x32xbf16>
    %cst_14 = arith.constant dense<0.000000e+00> : vector<20x32xf32>
    %12 = tpu.matmul %9, %11, %cst_14 {dimension_numbers = #tpu.dot_dimension_numbers<[1], [0], [0], [1], [0, 0, 1, 1], [], []>} : vector<20x16xbf16>, vector<16x32xbf16>, vector<20x32xf32> -> vector<20x32xf32>
    %13 = arith.addf %8, %12 : vector<20x32xf32>
    %14 = vector.extract_strided_slice %3 {offsets = [0, 0], sizes = [20, 16], strides = [1, 1]} : vector<26x16xbf16> to vector<20x16xbf16>
    %c1 = arith.constant 1 : index
    %c0_15 = arith.constant 0 : index
    %c0_16 = arith.constant 0 : index
    %15 = vector.load %arg5[%c1, %c0_15, %c0_16] : memref<9x16x32xbf16, #tpu.memory_space<vmem>>, vector<1x16x32xbf16>
    %16 = vector.shape_cast %15 : vector<1x16x32xbf16> to vector<16x32xbf16>
    %cst_17 = arith.constant dense<0.000000e+00> : vector<20x32xf32>
    %17 = tpu.matmul %14, %16, %cst_17 {dimension_numbers = #tpu.dot_dimension_numbers<[1], [0], [0], [1], [0, 0, 1, 1], [], []>} : vector<20x16xbf16>, vector<16x32xbf16>, vector<20x32xf32> -> vector<20x32xf32>
    %18 = arith.addf %13, %17 : vector<20x32xf32>
    %19 = vector.extract_strided_slice %1 {offsets = [1, 0], sizes = [20, 16], strides = [1, 1]} : vector<26x16xbf16> to vector<20x16xbf16>
    %c2 = arith.constant 2 : index
    %c0_18 = arith.constant 0 : index
    %c0_19 = arith.constant 0 : index
    %20 = vector.load %arg5[%c2, %c0_18, %c0_19] : memref<9x16x32xbf16, #tpu.memory_space<vmem>>, vector<1x16x32xbf16>
    %21 = vector.shape_cast %20 : vector<1x16x32xbf16> to vector<16x32xbf16>
    %cst_20 = arith.constant dense<0.000000e+00> : vector<20x32xf32>
    %22 = tpu.matmul %19, %21, %cst_20 {dimension_numbers = #tpu.dot_dimension_numbers<[1], [0], [0], [1], [0, 0, 1, 1], [], []>} : vector<20x16xbf16>, vector<16x32xbf16>, vector<20x32xf32> -> vector<20x32xf32>
    %23 = arith.addf %18, %22 : vector<20x32xf32>
    %24 = vector.extract_strided_slice %5 {offsets = [0, 0], sizes = [20, 16], strides = [1, 1]} : vector<26x16xbf16> to vector<20x16xbf16>
    %c3 = arith.constant 3 : index
    %c0_21 = arith.constant 0 : index
    %c0_22 = arith.constant 0 : index
    %25 = vector.load %arg5[%c3, %c0_21, %c0_22] : memref<9x16x32xbf16, #tpu.memory_space<vmem>>, vector<1x16x32xbf16>
    %26 = vector.shape_cast %25 : vector<1x16x32xbf16> to vector<16x32xbf16>
    %cst_23 = arith.constant dense<0.000000e+00> : vector<20x32xf32>
    %27 = tpu.matmul %24, %26, %cst_23 {dimension_numbers = #tpu.dot_dimension_numbers<[1], [0], [0], [1], [0, 0, 1, 1], [], []>} : vector<20x16xbf16>, vector<16x32xbf16>, vector<20x32xf32> -> vector<20x32xf32>
    %28 = arith.addf %23, %27 : vector<20x32xf32>
    %29 = vector.extract_strided_slice %7 {offsets = [0, 0], sizes = [20, 16], strides = [1, 1]} : vector<26x16xbf16> to vector<20x16xbf16>
    %c4 = arith.constant 4 : index
    %c0_24 = arith.constant 0 : index
    %c0_25 = arith.constant 0 : index
    %30 = vector.load %arg5[%c4, %c0_24, %c0_25] : memref<9x16x32xbf16, #tpu.memory_space<vmem>>, vector<1x16x32xbf16>
    %31 = vector.shape_cast %30 : vector<1x16x32xbf16> to vector<16x32xbf16>
    %cst_26 = arith.constant dense<0.000000e+00> : vector<20x32xf32>
    %32 = tpu.matmul %29, %31, %cst_26 {dimension_numbers = #tpu.dot_dimension_numbers<[1], [0], [0], [1], [0, 0, 1, 1], [], []>} : vector<20x16xbf16>, vector<16x32xbf16>, vector<20x32xf32> -> vector<20x32xf32>
    %33 = arith.addf %28, %32 : vector<20x32xf32>
    %34 = vector.extract_strided_slice %5 {offsets = [1, 0], sizes = [20, 16], strides = [1, 1]} : vector<26x16xbf16> to vector<20x16xbf16>
    %c5 = arith.constant 5 : index
    %c0_27 = arith.constant 0 : index
    %c0_28 = arith.constant 0 : index
    %35 = vector.load %arg5[%c5, %c0_27, %c0_28] : memref<9x16x32xbf16, #tpu.memory_space<vmem>>, vector<1x16x32xbf16>
    %36 = vector.shape_cast %35 : vector<1x16x32xbf16> to vector<16x32xbf16>
    %cst_29 = arith.constant dense<0.000000e+00> : vector<20x32xf32>
    %37 = tpu.matmul %34, %36, %cst_29 {dimension_numbers = #tpu.dot_dimension_numbers<[1], [0], [0], [1], [0, 0, 1, 1], [], []>} : vector<20x16xbf16>, vector<16x32xbf16>, vector<20x32xf32> -> vector<20x32xf32>
    %38 = arith.addf %33, %37 : vector<20x32xf32>
    %39 = vector.extract_strided_slice %1 {offsets = [5, 0], sizes = [20, 16], strides = [1, 1]} : vector<26x16xbf16> to vector<20x16xbf16>
    %c6 = arith.constant 6 : index
    %c0_30 = arith.constant 0 : index
    %c0_31 = arith.constant 0 : index
    %40 = vector.load %arg5[%c6, %c0_30, %c0_31] : memref<9x16x32xbf16, #tpu.memory_space<vmem>>, vector<1x16x32xbf16>
    %41 = vector.shape_cast %40 : vector<1x16x32xbf16> to vector<16x32xbf16>
    %cst_32 = arith.constant dense<0.000000e+00> : vector<20x32xf32>
    %42 = tpu.matmul %39, %41, %cst_32 {dimension_numbers = #tpu.dot_dimension_numbers<[1], [0], [0], [1], [0, 0, 1, 1], [], []>} : vector<20x16xbf16>, vector<16x32xbf16>, vector<20x32xf32> -> vector<20x32xf32>
    %43 = arith.addf %38, %42 : vector<20x32xf32>
    %44 = vector.extract_strided_slice %3 {offsets = [5, 0], sizes = [20, 16], strides = [1, 1]} : vector<26x16xbf16> to vector<20x16xbf16>
    %c7 = arith.constant 7 : index
    %c0_33 = arith.constant 0 : index
    %c0_34 = arith.constant 0 : index
    %45 = vector.load %arg5[%c7, %c0_33, %c0_34] : memref<9x16x32xbf16, #tpu.memory_space<vmem>>, vector<1x16x32xbf16>
    %46 = vector.shape_cast %45 : vector<1x16x32xbf16> to vector<16x32xbf16>
    %cst_35 = arith.constant dense<0.000000e+00> : vector<20x32xf32>
    %47 = tpu.matmul %44, %46, %cst_35 {dimension_numbers = #tpu.dot_dimension_numbers<[1], [0], [0], [1], [0, 0, 1, 1], [], []>} : vector<20x16xbf16>, vector<16x32xbf16>, vector<20x32xf32> -> vector<20x32xf32>
    %48 = arith.addf %43, %47 : vector<20x32xf32>
    %49 = vector.extract_strided_slice %1 {offsets = [6, 0], sizes = [20, 16], strides = [1, 1]} : vector<26x16xbf16> to vector<20x16xbf16>
    %c8 = arith.constant 8 : index
    %c0_36 = arith.constant 0 : index
    %c0_37 = arith.constant 0 : index
    %50 = vector.load %arg5[%c8, %c0_36, %c0_37] : memref<9x16x32xbf16, #tpu.memory_space<vmem>>, vector<1x16x32xbf16>
    %51 = vector.shape_cast %50 : vector<1x16x32xbf16> to vector<16x32xbf16>
    %cst_38 = arith.constant dense<0.000000e+00> : vector<20x32xf32>
    %52 = tpu.matmul %49, %51, %cst_38 {dimension_numbers = #tpu.dot_dimension_numbers<[1], [0], [0], [1], [0, 0, 1, 1], [], []>} : vector<20x16xbf16>, vector<16x32xbf16>, vector<20x32xf32> -> vector<20x32xf32>
    %53 = arith.addf %48, %52 : vector<20x32xf32>
    %c0_39 = arith.constant 0 : index
    %c0_40 = arith.constant 0 : index
    %54 = vector.load %arg6[%c0_39, %c0_40] : memref<1x32xf32, #tpu.memory_space<vmem>>, vector<1x32xf32>
    %55 = vector.broadcast %54 : vector<1x32xf32> to vector<20x32xf32>
    %56 = arith.addf %53, %55 : vector<20x32xf32>
    %cst_41 = arith.constant 0.000000e+00 : f32
    %57 = vector.broadcast %cst_41 : f32 to vector<20x32xf32>
    %58 = arith.maximumf %56, %57 : vector<20x32xf32>
    %59 = arith.truncf %58 : vector<20x32xf32> to vector<20x32xbf16>
    %c0_42 = arith.constant 0 : index
    %c0_43 = arith.constant 0 : index
    %c0_44 = arith.constant 0 : index
    %60 = vector.load %arg7[%c0_42, %c0_43, %c0_44] : memref<1x20x32xbf16, #tpu.memory_space<vmem>>, vector<1x20x32xbf16>
    %61 = vector.shape_cast %60 : vector<1x20x32xbf16> to vector<20x32xbf16>
    %62 = vector.shape_cast %59 : vector<20x32xbf16> to vector<1x20x32xbf16>
    tpu.vector_store %arg7[%c0_42, %c0_43, %c0_44], %62 {strides = array<i32>} : memref<1x20x32xbf16, #tpu.memory_space<vmem>>, vector<1x20x32xbf16>,
    return
  }
  func.func @transform_0(%arg0: i32) -> (i32, i32, i32) {
    %c0_i32 = arith.constant 0 : i32
    %c0_i32_0 = arith.constant 0 : i32
    %c0_i32_1 = arith.constant 0 : i32
    return %arg0, %c0_i32, %c0_i32_0 : i32, i32, i32
  }
  func.func @transform_1(%arg0: i32) -> (i32, i32, i32) {
    %c0_i32 = arith.constant 0 : i32
    %c0_i32_0 = arith.constant 0 : i32
    %c0_i32_1 = arith.constant 0 : i32
    return %arg0, %c0_i32, %c0_i32_0 : i32, i32, i32
  }
  func.func @transform_2(%arg0: i32) -> (i32, i32, i32) {
    %c0_i32 = arith.constant 0 : i32
    %c0_i32_0 = arith.constant 0 : i32
    %c0_i32_1 = arith.constant 0 : i32
    return %arg0, %c0_i32, %c0_i32_0 : i32, i32, i32
  }
  func.func @transform_3(%arg0: i32) -> (i32, i32, i32) {
    %c0_i32 = arith.constant 0 : i32
    %c0_i32_0 = arith.constant 0 : i32
    %c0_i32_1 = arith.constant 0 : i32
    return %arg0, %c0_i32, %c0_i32_0 : i32, i32, i32
  }
  func.func @transform_4(%arg0: i32) -> (i32, i32, i32) {
    %c0_i32 = arith.constant 0 : i32
    %c0_i32_0 = arith.constant 0 : i32
    %c0_i32_1 = arith.constant 0 : i32
    %c0_i32_2 = arith.constant 0 : i32
    return %c0_i32, %c0_i32_0, %c0_i32_1 : i32, i32, i32
  }
  func.func @transform_5(%arg0: i32) -> (i32, i32) {
    %c0_i32 = arith.constant 0 : i32
    %c0_i32_0 = arith.constant 0 : i32
    %c0_i32_1 = arith.constant 0 : i32
    return %c0_i32, %c0_i32_0 : i32, i32
  }
  func.func @transform_6(%arg0: i32) -> (i32, i32, i32) {
    %c0_i32 = arith.constant 0 : i32
    %c0_i32_0 = arith.constant 0 : i32
    %c0_i32_1 = arith.constant 0 : i32
    return %arg0, %c0_i32, %c0_i32_0 : i32, i32, i32
  }
}

module attributes {stable_mosaic.version = 11 : i64} {
  func.func @_ppm_kernel(%arg0: i32, %arg1: memref<1x16x32xbf16, #tpu.memory_space<vmem>>, %arg2: memref<4x36x16xbf16, #tpu.memory_space<vmem>>, %arg3: memref<4x16x36xbf16, #tpu.memory_space<vmem>>, %arg4: memref<4x32x64xbf16, #tpu.memory_space<vmem>>, %arg5: memref<32x64xbf16, #tpu.memory_space<vmem>>, %arg6: memref<1x16x64xbf16, #tpu.memory_space<vmem>>) attributes {dimension_semantics = [#tpu.dimension_semantics<parallel>], iteration_bounds = array<i64: 2>, scalar_prefetch = 0 : i64, scratch_operands = 0 : i64, tpu.core_type = #tpu.core_type<tc>, window_params = [{transform_indices = @transform_0, window_bounds = array<i64: 1, 16, 32>}, {pipeline_mode = #tpu.pipeline_mode<synchronous>, transform_indices = @transform_1, window_bounds = array<i64: 4, 36, 16>}, {pipeline_mode = #tpu.pipeline_mode<synchronous>, transform_indices = @transform_2, window_bounds = array<i64: 4, 16, 36>}, {pipeline_mode = #tpu.pipeline_mode<synchronous>, transform_indices = @transform_3, window_bounds = array<i64: 4, 32, 64>}, {pipeline_mode = #tpu.pipeline_mode<synchronous>, transform_indices = @transform_4, window_bounds = array<i64: 32, 64>}, {transform_indices = @transform_5, window_bounds = array<i64: 1, 16, 64>}]} {
    %c0 = arith.constant 0 : index
    %c0_0 = arith.constant 0 : index
    %c0_1 = arith.constant 0 : index
    %0 = vector.load %arg1[%c0, %c0_0, %c0_1] : memref<1x16x32xbf16, #tpu.memory_space<vmem>>, vector<1x16x32xbf16>
    %1 = vector.shape_cast %0 : vector<1x16x32xbf16> to vector<16x32xbf16>
    %c0_2 = arith.constant 0 : index
    %c0_3 = arith.constant 0 : index
    %2 = vector.load %arg5[%c0_2, %c0_3] : memref<32x64xbf16, #tpu.memory_space<vmem>>, vector<32x64xbf16>
    %cst = arith.constant dense<0.000000e+00> : vector<16x64xf32>
    %3 = tpu.matmul %1, %2, %cst {dimension_numbers = #tpu.dot_dimension_numbers<[1], [0], [0], [1], [0, 0, 1, 1], [], []>} : vector<16x32xbf16>, vector<32x64xbf16>, vector<16x64xf32> -> vector<16x64xf32>
    %c0_4 = arith.constant 0 : index
    %c0_5 = arith.constant 0 : index
    %c0_6 = arith.constant 0 : index
    %4 = vector.load %arg2[%c0_4, %c0_5, %c0_6] : memref<4x36x16xbf16, #tpu.memory_space<vmem>>, vector<1x36x16xbf16>
    %5 = vector.shape_cast %4 : vector<1x36x16xbf16> to vector<36x16xbf16>
    %cst_7 = arith.constant dense<0.000000e+00> : vector<36x32xf32>
    %6 = tpu.matmul %5, %1, %cst_7 {dimension_numbers = #tpu.dot_dimension_numbers<[1], [0], [0], [1], [0, 0, 1, 1], [], []>} : vector<36x16xbf16>, vector<16x32xbf16>, vector<36x32xf32> -> vector<36x32xf32>
    %7 = arith.truncf %6 : vector<36x32xf32> to vector<36x32xbf16>
    %c0_8 = arith.constant 0 : index
    %c0_9 = arith.constant 0 : index
    %c0_10 = arith.constant 0 : index
    %8 = vector.load %arg4[%c0_8, %c0_9, %c0_10] : memref<4x32x64xbf16, #tpu.memory_space<vmem>>, vector<1x32x64xbf16>
    %9 = vector.shape_cast %8 : vector<1x32x64xbf16> to vector<32x64xbf16>
    %cst_11 = arith.constant dense<0.000000e+00> : vector<36x64xf32>
    %10 = tpu.matmul %7, %9, %cst_11 {dimension_numbers = #tpu.dot_dimension_numbers<[1], [0], [0], [1], [0, 0, 1, 1], [], []>} : vector<36x32xbf16>, vector<32x64xbf16>, vector<36x64xf32> -> vector<36x64xf32>
    %c0_12 = arith.constant 0 : index
    %c0_13 = arith.constant 0 : index
    %c0_14 = arith.constant 0 : index
    %11 = vector.load %arg3[%c0_12, %c0_13, %c0_14] : memref<4x16x36xbf16, #tpu.memory_space<vmem>>, vector<1x16x36xbf16>
    %12 = vector.shape_cast %11 : vector<1x16x36xbf16> to vector<16x36xbf16>
    %13 = arith.truncf %10 : vector<36x64xf32> to vector<36x64xbf16>
    %cst_15 = arith.constant dense<0.000000e+00> : vector<16x64xf32>
    %14 = tpu.matmul %12, %13, %cst_15 {dimension_numbers = #tpu.dot_dimension_numbers<[1], [0], [0], [1], [0, 0, 1, 1], [], []>} : vector<16x36xbf16>, vector<36x64xbf16>, vector<16x64xf32> -> vector<16x64xf32>
    %15 = arith.addf %3, %14 : vector<16x64xf32>
    %c1 = arith.constant 1 : index
    %c0_16 = arith.constant 0 : index
    %c0_17 = arith.constant 0 : index
    %16 = vector.load %arg2[%c1, %c0_16, %c0_17] : memref<4x36x16xbf16, #tpu.memory_space<vmem>>, vector<1x36x16xbf16>
    %17 = vector.shape_cast %16 : vector<1x36x16xbf16> to vector<36x16xbf16>
    %cst_18 = arith.constant dense<0.000000e+00> : vector<36x32xf32>
    %18 = tpu.matmul %17, %1, %cst_18 {dimension_numbers = #tpu.dot_dimension_numbers<[1], [0], [0], [1], [0, 0, 1, 1], [], []>} : vector<36x16xbf16>, vector<16x32xbf16>, vector<36x32xf32> -> vector<36x32xf32>
    %19 = arith.truncf %18 : vector<36x32xf32> to vector<36x32xbf16>
    %c1_19 = arith.constant 1 : index
    %c0_20 = arith.constant 0 : index
    %c0_21 = arith.constant 0 : index
    %20 = vector.load %arg4[%c1_19, %c0_20, %c0_21] : memref<4x32x64xbf16, #tpu.memory_space<vmem>>, vector<1x32x64xbf16>
    %21 = vector.shape_cast %20 : vector<1x32x64xbf16> to vector<32x64xbf16>
    %cst_22 = arith.constant dense<0.000000e+00> : vector<36x64xf32>
    %22 = tpu.matmul %19, %21, %cst_22 {dimension_numbers = #tpu.dot_dimension_numbers<[1], [0], [0], [1], [0, 0, 1, 1], [], []>} : vector<36x32xbf16>, vector<32x64xbf16>, vector<36x64xf32> -> vector<36x64xf32>
    %c1_23 = arith.constant 1 : index
    %c0_24 = arith.constant 0 : index
    %c0_25 = arith.constant 0 : index
    %23 = vector.load %arg3[%c1_23, %c0_24, %c0_25] : memref<4x16x36xbf16, #tpu.memory_space<vmem>>, vector<1x16x36xbf16>
    %24 = vector.shape_cast %23 : vector<1x16x36xbf16> to vector<16x36xbf16>
    %25 = arith.truncf %22 : vector<36x64xf32> to vector<36x64xbf16>
    %cst_26 = arith.constant dense<0.000000e+00> : vector<16x64xf32>
    %26 = tpu.matmul %24, %25, %cst_26 {dimension_numbers = #tpu.dot_dimension_numbers<[1], [0], [0], [1], [0, 0, 1, 1], [], []>} : vector<16x36xbf16>, vector<36x64xbf16>, vector<16x64xf32> -> vector<16x64xf32>
    %27 = arith.addf %15, %26 : vector<16x64xf32>
    %c2 = arith.constant 2 : index
    %c0_27 = arith.constant 0 : index
    %c0_28 = arith.constant 0 : index
    %28 = vector.load %arg2[%c2, %c0_27, %c0_28] : memref<4x36x16xbf16, #tpu.memory_space<vmem>>, vector<1x36x16xbf16>
    %29 = vector.shape_cast %28 : vector<1x36x16xbf16> to vector<36x16xbf16>
    %cst_29 = arith.constant dense<0.000000e+00> : vector<36x32xf32>
    %30 = tpu.matmul %29, %1, %cst_29 {dimension_numbers = #tpu.dot_dimension_numbers<[1], [0], [0], [1], [0, 0, 1, 1], [], []>} : vector<36x16xbf16>, vector<16x32xbf16>, vector<36x32xf32> -> vector<36x32xf32>
    %31 = arith.truncf %30 : vector<36x32xf32> to vector<36x32xbf16>
    %c2_30 = arith.constant 2 : index
    %c0_31 = arith.constant 0 : index
    %c0_32 = arith.constant 0 : index
    %32 = vector.load %arg4[%c2_30, %c0_31, %c0_32] : memref<4x32x64xbf16, #tpu.memory_space<vmem>>, vector<1x32x64xbf16>
    %33 = vector.shape_cast %32 : vector<1x32x64xbf16> to vector<32x64xbf16>
    %cst_33 = arith.constant dense<0.000000e+00> : vector<36x64xf32>
    %34 = tpu.matmul %31, %33, %cst_33 {dimension_numbers = #tpu.dot_dimension_numbers<[1], [0], [0], [1], [0, 0, 1, 1], [], []>} : vector<36x32xbf16>, vector<32x64xbf16>, vector<36x64xf32> -> vector<36x64xf32>
    %c2_34 = arith.constant 2 : index
    %c0_35 = arith.constant 0 : index
    %c0_36 = arith.constant 0 : index
    %35 = vector.load %arg3[%c2_34, %c0_35, %c0_36] : memref<4x16x36xbf16, #tpu.memory_space<vmem>>, vector<1x16x36xbf16>
    %36 = vector.shape_cast %35 : vector<1x16x36xbf16> to vector<16x36xbf16>
    %37 = arith.truncf %34 : vector<36x64xf32> to vector<36x64xbf16>
    %cst_37 = arith.constant dense<0.000000e+00> : vector<16x64xf32>
    %38 = tpu.matmul %36, %37, %cst_37 {dimension_numbers = #tpu.dot_dimension_numbers<[1], [0], [0], [1], [0, 0, 1, 1], [], []>} : vector<16x36xbf16>, vector<36x64xbf16>, vector<16x64xf32> -> vector<16x64xf32>
    %39 = arith.addf %27, %38 : vector<16x64xf32>
    %c3 = arith.constant 3 : index
    %c0_38 = arith.constant 0 : index
    %c0_39 = arith.constant 0 : index
    %40 = vector.load %arg2[%c3, %c0_38, %c0_39] : memref<4x36x16xbf16, #tpu.memory_space<vmem>>, vector<1x36x16xbf16>
    %41 = vector.shape_cast %40 : vector<1x36x16xbf16> to vector<36x16xbf16>
    %cst_40 = arith.constant dense<0.000000e+00> : vector<36x32xf32>
    %42 = tpu.matmul %41, %1, %cst_40 {dimension_numbers = #tpu.dot_dimension_numbers<[1], [0], [0], [1], [0, 0, 1, 1], [], []>} : vector<36x16xbf16>, vector<16x32xbf16>, vector<36x32xf32> -> vector<36x32xf32>
    %43 = arith.truncf %42 : vector<36x32xf32> to vector<36x32xbf16>
    %c3_41 = arith.constant 3 : index
    %c0_42 = arith.constant 0 : index
    %c0_43 = arith.constant 0 : index
    %44 = vector.load %arg4[%c3_41, %c0_42, %c0_43] : memref<4x32x64xbf16, #tpu.memory_space<vmem>>, vector<1x32x64xbf16>
    %45 = vector.shape_cast %44 : vector<1x32x64xbf16> to vector<32x64xbf16>
    %cst_44 = arith.constant dense<0.000000e+00> : vector<36x64xf32>
    %46 = tpu.matmul %43, %45, %cst_44 {dimension_numbers = #tpu.dot_dimension_numbers<[1], [0], [0], [1], [0, 0, 1, 1], [], []>} : vector<36x32xbf16>, vector<32x64xbf16>, vector<36x64xf32> -> vector<36x64xf32>
    %c3_45 = arith.constant 3 : index
    %c0_46 = arith.constant 0 : index
    %c0_47 = arith.constant 0 : index
    %47 = vector.load %arg3[%c3_45, %c0_46, %c0_47] : memref<4x16x36xbf16, #tpu.memory_space<vmem>>, vector<1x16x36xbf16>
    %48 = vector.shape_cast %47 : vector<1x16x36xbf16> to vector<16x36xbf16>
    %49 = arith.truncf %46 : vector<36x64xf32> to vector<36x64xbf16>
    %cst_48 = arith.constant dense<0.000000e+00> : vector<16x64xf32>
    %50 = tpu.matmul %48, %49, %cst_48 {dimension_numbers = #tpu.dot_dimension_numbers<[1], [0], [0], [1], [0, 0, 1, 1], [], []>} : vector<16x36xbf16>, vector<36x64xbf16>, vector<16x64xf32> -> vector<16x64xf32>
    %51 = arith.addf %39, %50 : vector<16x64xf32>
    %52 = arith.truncf %51 : vector<16x64xf32> to vector<16x64xbf16>
    %c0_49 = arith.constant 0 : index
    %c0_50 = arith.constant 0 : index
    %c0_51 = arith.constant 0 : index
    %53 = vector.load %arg6[%c0_49, %c0_50, %c0_51] : memref<1x16x64xbf16, #tpu.memory_space<vmem>>, vector<1x16x64xbf16>
    %54 = vector.shape_cast %53 : vector<1x16x64xbf16> to vector<16x64xbf16>
    %55 = vector.shape_cast %52 : vector<16x64xbf16> to vector<1x16x64xbf16>
    tpu.vector_store %arg6[%c0_49, %c0_50, %c0_51], %55 {strides = array<i32>} : memref<1x16x64xbf16, #tpu.memory_space<vmem>>, vector<1x16x64xbf16>,
    return
  }
  func.func @transform_0(%arg0: i32) -> (i32, i32, i32) {
    %c0_i32 = arith.constant 0 : i32
    %c0_i32_0 = arith.constant 0 : i32
    %c0_i32_1 = arith.constant 0 : i32
    return %arg0, %c0_i32, %c0_i32_0 : i32, i32, i32
  }
  func.func @transform_1(%arg0: i32) -> (i32, i32, i32) {
    %c0_i32 = arith.constant 0 : i32
    %c0_i32_0 = arith.constant 0 : i32
    %c0_i32_1 = arith.constant 0 : i32
    %c0_i32_2 = arith.constant 0 : i32
    return %c0_i32, %c0_i32_0, %c0_i32_1 : i32, i32, i32
  }
  func.func @transform_2(%arg0: i32) -> (i32, i32, i32) {
    %c0_i32 = arith.constant 0 : i32
    %c0_i32_0 = arith.constant 0 : i32
    %c0_i32_1 = arith.constant 0 : i32
    %c0_i32_2 = arith.constant 0 : i32
    return %c0_i32, %c0_i32_0, %c0_i32_1 : i32, i32, i32
  }
  func.func @transform_3(%arg0: i32) -> (i32, i32, i32) {
    %c0_i32 = arith.constant 0 : i32
    %c0_i32_0 = arith.constant 0 : i32
    %c0_i32_1 = arith.constant 0 : i32
    %c0_i32_2 = arith.constant 0 : i32
    return %c0_i32, %c0_i32_0, %c0_i32_1 : i32, i32, i32
  }
  func.func @transform_4(%arg0: i32) -> (i32, i32) {
    %c0_i32 = arith.constant 0 : i32
    %c0_i32_0 = arith.constant 0 : i32
    %c0_i32_1 = arith.constant 0 : i32
    return %c0_i32, %c0_i32_0 : i32, i32
  }
  func.func @transform_5(%arg0: i32) -> (i32, i32, i32) {
    %c0_i32 = arith.constant 0 : i32
    %c0_i32_0 = arith.constant 0 : i32
    %c0_i32_1 = arith.constant 0 : i32
    return %arg0, %c0_i32, %c0_i32_0 : i32, i32, i32
  }
}

module attributes {stable_mosaic.version = 11 : i64} {
  func.func @_conv_taps_kernel(%arg0: i32, %arg1: memref<1x38x64xbf16, #tpu.memory_space<vmem>>, %arg2: memref<9x64x16xbf16, #tpu.memory_space<vmem>>, %arg3: memref<1x16xf32, #tpu.memory_space<vmem>>, %arg4: memref<1x24x16xbf16, #tpu.memory_space<vmem>>) attributes {dimension_semantics = [#tpu.dimension_semantics<parallel>], iteration_bounds = array<i64: 2>, scalar_prefetch = 0 : i64, scratch_operands = 0 : i64, tpu.core_type = #tpu.core_type<tc>, window_params = [{transform_indices = @transform_0, window_bounds = array<i64: 1, 38, 64>}, {pipeline_mode = #tpu.pipeline_mode<synchronous>, transform_indices = @transform_1, window_bounds = array<i64: 9, 64, 16>}, {pipeline_mode = #tpu.pipeline_mode<synchronous>, transform_indices = @transform_2, window_bounds = array<i64: 1, 16>}, {transform_indices = @transform_3, window_bounds = array<i64: 1, 24, 16>}]} {
    %c0 = arith.constant 0 : index
    %c0_0 = arith.constant 0 : index
    %c0_1 = arith.constant 0 : index
    %0 = vector.load %arg1[%c0, %c0_0, %c0_1] : memref<1x38x64xbf16, #tpu.memory_space<vmem>>, vector<1x38x64xbf16>
    %1 = vector.shape_cast %0 : vector<1x38x64xbf16> to vector<38x64xbf16>
    %cst = arith.constant 0.000000e+00 : f32
    %2 = vector.broadcast %cst : f32 to vector<24x16xf32>
    %3 = vector.extract_strided_slice %1 {offsets = [0, 0], sizes = [24, 64], strides = [1, 1]} : vector<38x64xbf16> to vector<24x64xbf16>
    %c0_2 = arith.constant 0 : index
    %c0_3 = arith.constant 0 : index
    %c0_4 = arith.constant 0 : index
    %4 = vector.load %arg2[%c0_2, %c0_3, %c0_4] : memref<9x64x16xbf16, #tpu.memory_space<vmem>>, vector<1x64x16xbf16>
    %5 = vector.shape_cast %4 : vector<1x64x16xbf16> to vector<64x16xbf16>
    %cst_5 = arith.constant dense<0.000000e+00> : vector<24x16xf32>
    %6 = tpu.matmul %3, %5, %cst_5 {dimension_numbers = #tpu.dot_dimension_numbers<[1], [0], [0], [1], [0, 0, 1, 1], [], []>} : vector<24x64xbf16>, vector<64x16xbf16>, vector<24x16xf32> -> vector<24x16xf32>
    %7 = arith.addf %2, %6 : vector<24x16xf32>
    %8 = vector.extract_strided_slice %1 {offsets = [1, 0], sizes = [24, 64], strides = [1, 1]} : vector<38x64xbf16> to vector<24x64xbf16>
    %c1 = arith.constant 1 : index
    %c0_6 = arith.constant 0 : index
    %c0_7 = arith.constant 0 : index
    %9 = vector.load %arg2[%c1, %c0_6, %c0_7] : memref<9x64x16xbf16, #tpu.memory_space<vmem>>, vector<1x64x16xbf16>
    %10 = vector.shape_cast %9 : vector<1x64x16xbf16> to vector<64x16xbf16>
    %cst_8 = arith.constant dense<0.000000e+00> : vector<24x16xf32>
    %11 = tpu.matmul %8, %10, %cst_8 {dimension_numbers = #tpu.dot_dimension_numbers<[1], [0], [0], [1], [0, 0, 1, 1], [], []>} : vector<24x64xbf16>, vector<64x16xbf16>, vector<24x16xf32> -> vector<24x16xf32>
    %12 = arith.addf %7, %11 : vector<24x16xf32>
    %13 = vector.extract_strided_slice %1 {offsets = [2, 0], sizes = [24, 64], strides = [1, 1]} : vector<38x64xbf16> to vector<24x64xbf16>
    %c2 = arith.constant 2 : index
    %c0_9 = arith.constant 0 : index
    %c0_10 = arith.constant 0 : index
    %14 = vector.load %arg2[%c2, %c0_9, %c0_10] : memref<9x64x16xbf16, #tpu.memory_space<vmem>>, vector<1x64x16xbf16>
    %15 = vector.shape_cast %14 : vector<1x64x16xbf16> to vector<64x16xbf16>
    %cst_11 = arith.constant dense<0.000000e+00> : vector<24x16xf32>
    %16 = tpu.matmul %13, %15, %cst_11 {dimension_numbers = #tpu.dot_dimension_numbers<[1], [0], [0], [1], [0, 0, 1, 1], [], []>} : vector<24x64xbf16>, vector<64x16xbf16>, vector<24x16xf32> -> vector<24x16xf32>
    %17 = arith.addf %12, %16 : vector<24x16xf32>
    %18 = vector.extract_strided_slice %1 {offsets = [6, 0], sizes = [24, 64], strides = [1, 1]} : vector<38x64xbf16> to vector<24x64xbf16>
    %c3 = arith.constant 3 : index
    %c0_12 = arith.constant 0 : index
    %c0_13 = arith.constant 0 : index
    %19 = vector.load %arg2[%c3, %c0_12, %c0_13] : memref<9x64x16xbf16, #tpu.memory_space<vmem>>, vector<1x64x16xbf16>
    %20 = vector.shape_cast %19 : vector<1x64x16xbf16> to vector<64x16xbf16>
    %cst_14 = arith.constant dense<0.000000e+00> : vector<24x16xf32>
    %21 = tpu.matmul %18, %20, %cst_14 {dimension_numbers = #tpu.dot_dimension_numbers<[1], [0], [0], [1], [0, 0, 1, 1], [], []>} : vector<24x64xbf16>, vector<64x16xbf16>, vector<24x16xf32> -> vector<24x16xf32>
    %22 = arith.addf %17, %21 : vector<24x16xf32>
    %23 = vector.extract_strided_slice %1 {offsets = [7, 0], sizes = [24, 64], strides = [1, 1]} : vector<38x64xbf16> to vector<24x64xbf16>
    %c4 = arith.constant 4 : index
    %c0_15 = arith.constant 0 : index
    %c0_16 = arith.constant 0 : index
    %24 = vector.load %arg2[%c4, %c0_15, %c0_16] : memref<9x64x16xbf16, #tpu.memory_space<vmem>>, vector<1x64x16xbf16>
    %25 = vector.shape_cast %24 : vector<1x64x16xbf16> to vector<64x16xbf16>
    %cst_17 = arith.constant dense<0.000000e+00> : vector<24x16xf32>
    %26 = tpu.matmul %23, %25, %cst_17 {dimension_numbers = #tpu.dot_dimension_numbers<[1], [0], [0], [1], [0, 0, 1, 1], [], []>} : vector<24x64xbf16>, vector<64x16xbf16>, vector<24x16xf32> -> vector<24x16xf32>
    %27 = arith.addf %22, %26 : vector<24x16xf32>
    %28 = vector.extract_strided_slice %1 {offsets = [8, 0], sizes = [24, 64], strides = [1, 1]} : vector<38x64xbf16> to vector<24x64xbf16>
    %c5 = arith.constant 5 : index
    %c0_18 = arith.constant 0 : index
    %c0_19 = arith.constant 0 : index
    %29 = vector.load %arg2[%c5, %c0_18, %c0_19] : memref<9x64x16xbf16, #tpu.memory_space<vmem>>, vector<1x64x16xbf16>
    %30 = vector.shape_cast %29 : vector<1x64x16xbf16> to vector<64x16xbf16>
    %cst_20 = arith.constant dense<0.000000e+00> : vector<24x16xf32>
    %31 = tpu.matmul %28, %30, %cst_20 {dimension_numbers = #tpu.dot_dimension_numbers<[1], [0], [0], [1], [0, 0, 1, 1], [], []>} : vector<24x64xbf16>, vector<64x16xbf16>, vector<24x16xf32> -> vector<24x16xf32>
    %32 = arith.addf %27, %31 : vector<24x16xf32>
    %33 = vector.extract_strided_slice %1 {offsets = [12, 0], sizes = [24, 64], strides = [1, 1]} : vector<38x64xbf16> to vector<24x64xbf16>
    %c6 = arith.constant 6 : index
    %c0_21 = arith.constant 0 : index
    %c0_22 = arith.constant 0 : index
    %34 = vector.load %arg2[%c6, %c0_21, %c0_22] : memref<9x64x16xbf16, #tpu.memory_space<vmem>>, vector<1x64x16xbf16>
    %35 = vector.shape_cast %34 : vector<1x64x16xbf16> to vector<64x16xbf16>
    %cst_23 = arith.constant dense<0.000000e+00> : vector<24x16xf32>
    %36 = tpu.matmul %33, %35, %cst_23 {dimension_numbers = #tpu.dot_dimension_numbers<[1], [0], [0], [1], [0, 0, 1, 1], [], []>} : vector<24x64xbf16>, vector<64x16xbf16>, vector<24x16xf32> -> vector<24x16xf32>
    %37 = arith.addf %32, %36 : vector<24x16xf32>
    %38 = vector.extract_strided_slice %1 {offsets = [13, 0], sizes = [24, 64], strides = [1, 1]} : vector<38x64xbf16> to vector<24x64xbf16>
    %c7 = arith.constant 7 : index
    %c0_24 = arith.constant 0 : index
    %c0_25 = arith.constant 0 : index
    %39 = vector.load %arg2[%c7, %c0_24, %c0_25] : memref<9x64x16xbf16, #tpu.memory_space<vmem>>, vector<1x64x16xbf16>
    %40 = vector.shape_cast %39 : vector<1x64x16xbf16> to vector<64x16xbf16>
    %cst_26 = arith.constant dense<0.000000e+00> : vector<24x16xf32>
    %41 = tpu.matmul %38, %40, %cst_26 {dimension_numbers = #tpu.dot_dimension_numbers<[1], [0], [0], [1], [0, 0, 1, 1], [], []>} : vector<24x64xbf16>, vector<64x16xbf16>, vector<24x16xf32> -> vector<24x16xf32>
    %42 = arith.addf %37, %41 : vector<24x16xf32>
    %43 = vector.extract_strided_slice %1 {offsets = [14, 0], sizes = [24, 64], strides = [1, 1]} : vector<38x64xbf16> to vector<24x64xbf16>
    %c8 = arith.constant 8 : index
    %c0_27 = arith.constant 0 : index
    %c0_28 = arith.constant 0 : index
    %44 = vector.load %arg2[%c8, %c0_27, %c0_28] : memref<9x64x16xbf16, #tpu.memory_space<vmem>>, vector<1x64x16xbf16>
    %45 = vector.shape_cast %44 : vector<1x64x16xbf16> to vector<64x16xbf16>
    %cst_29 = arith.constant dense<0.000000e+00> : vector<24x16xf32>
    %46 = tpu.matmul %43, %45, %cst_29 {dimension_numbers = #tpu.dot_dimension_numbers<[1], [0], [0], [1], [0, 0, 1, 1], [], []>} : vector<24x64xbf16>, vector<64x16xbf16>, vector<24x16xf32> -> vector<24x16xf32>
    %47 = arith.addf %42, %46 : vector<24x16xf32>
    %c0_30 = arith.constant 0 : index
    %c0_31 = arith.constant 0 : index
    %48 = vector.load %arg3[%c0_30, %c0_31] : memref<1x16xf32, #tpu.memory_space<vmem>>, vector<1x16xf32>
    %49 = vector.broadcast %48 : vector<1x16xf32> to vector<24x16xf32>
    %50 = arith.addf %47, %49 : vector<24x16xf32>
    %cst_32 = arith.constant 0.000000e+00 : f32
    %51 = vector.broadcast %cst_32 : f32 to vector<24x16xf32>
    %52 = arith.maximumf %50, %51 : vector<24x16xf32>
    %53 = arith.truncf %52 : vector<24x16xf32> to vector<24x16xbf16>
    %c0_33 = arith.constant 0 : index
    %c0_34 = arith.constant 0 : index
    %c0_35 = arith.constant 0 : index
    %54 = vector.load %arg4[%c0_33, %c0_34, %c0_35] : memref<1x24x16xbf16, #tpu.memory_space<vmem>>, vector<1x24x16xbf16>
    %55 = vector.shape_cast %54 : vector<1x24x16xbf16> to vector<24x16xbf16>
    %56 = vector.shape_cast %53 : vector<24x16xbf16> to vector<1x24x16xbf16>
    tpu.vector_store %arg4[%c0_33, %c0_34, %c0_35], %56 {strides = array<i32>} : memref<1x24x16xbf16, #tpu.memory_space<vmem>>, vector<1x24x16xbf16>,
    return
  }
  func.func @transform_0(%arg0: i32) -> (i32, i32, i32) {
    %c0_i32 = arith.constant 0 : i32
    %c0_i32_0 = arith.constant 0 : i32
    %c0_i32_1 = arith.constant 0 : i32
    return %arg0, %c0_i32, %c0_i32_0 : i32, i32, i32
  }
  func.func @transform_1(%arg0: i32) -> (i32, i32, i32) {
    %c0_i32 = arith.constant 0 : i32
    %c0_i32_0 = arith.constant 0 : i32
    %c0_i32_1 = arith.constant 0 : i32
    %c0_i32_2 = arith.constant 0 : i32
    return %c0_i32, %c0_i32_0, %c0_i32_1 : i32, i32, i32
  }
  func.func @transform_2(%arg0: i32) -> (i32, i32) {
    %c0_i32 = arith.constant 0 : i32
    %c0_i32_0 = arith.constant 0 : i32
    %c0_i32_1 = arith.constant 0 : i32
    return %c0_i32, %c0_i32_0 : i32, i32
  }
  func.func @transform_3(%arg0: i32) -> (i32, i32, i32) {
    %c0_i32 = arith.constant 0 : i32
    %c0_i32_0 = arith.constant 0 : i32
    %c0_i32_1 = arith.constant 0 : i32
    return %arg0, %c0_i32, %c0_i32_0 : i32, i32, i32
  }
}

module attributes {stable_mosaic.version = 11 : i64} {
  func.func @_spatial_matmul_kernel(%arg0: i32, %arg1: memref<64x16xbf16, #tpu.memory_space<vmem>>, %arg2: memref<1x16x16xbf16, #tpu.memory_space<vmem>>, %arg3: memref<1x64x16xbf16, #tpu.memory_space<vmem>>) attributes {dimension_semantics = [#tpu.dimension_semantics<parallel>], iteration_bounds = array<i64: 2>, scalar_prefetch = 0 : i64, scratch_operands = 0 : i64, tpu.core_type = #tpu.core_type<tc>, window_params = [{pipeline_mode = #tpu.pipeline_mode<synchronous>, transform_indices = @transform_0, window_bounds = array<i64: 64, 16>}, {transform_indices = @transform_1, window_bounds = array<i64: 1, 16, 16>}, {transform_indices = @transform_2, window_bounds = array<i64: 1, 64, 16>}]} {
    %c0 = arith.constant 0 : index
    %c0_0 = arith.constant 0 : index
    %0 = vector.load %arg1[%c0, %c0_0] : memref<64x16xbf16, #tpu.memory_space<vmem>>, vector<64x16xbf16>
    %c0_1 = arith.constant 0 : index
    %c0_2 = arith.constant 0 : index
    %c0_3 = arith.constant 0 : index
    %1 = vector.load %arg2[%c0_1, %c0_2, %c0_3] : memref<1x16x16xbf16, #tpu.memory_space<vmem>>, vector<1x16x16xbf16>
    %2 = vector.shape_cast %1 : vector<1x16x16xbf16> to vector<16x16xbf16>
    %cst = arith.constant dense<0.000000e+00> : vector<64x16xf32>
    %3 = tpu.matmul %0, %2, %cst {dimension_numbers = #tpu.dot_dimension_numbers<[1], [0], [0], [1], [0, 0, 1, 1], [], []>} : vector<64x16xbf16>, vector<16x16xbf16>, vector<64x16xf32> -> vector<64x16xf32>
    %4 = arith.truncf %3 : vector<64x16xf32> to vector<64x16xbf16>
    %c0_4 = arith.constant 0 : index
    %c0_5 = arith.constant 0 : index
    %c0_6 = arith.constant 0 : index
    %5 = vector.load %arg3[%c0_4, %c0_5, %c0_6] : memref<1x64x16xbf16, #tpu.memory_space<vmem>>, vector<1x64x16xbf16>
    %6 = vector.shape_cast %5 : vector<1x64x16xbf16> to vector<64x16xbf16>
    %7 = vector.shape_cast %4 : vector<64x16xbf16> to vector<1x64x16xbf16>
    tpu.vector_store %arg3[%c0_4, %c0_5, %c0_6], %7 {strides = array<i32>} : memref<1x64x16xbf16, #tpu.memory_space<vmem>>, vector<1x64x16xbf16>,
    return
  }
  func.func @transform_0(%arg0: i32) -> (i32, i32) {
    %c0_i32 = arith.constant 0 : i32
    %c0_i32_0 = arith.constant 0 : i32
    %c0_i32_1 = arith.constant 0 : i32
    return %c0_i32, %c0_i32_0 : i32, i32
  }
  func.func @transform_1(%arg0: i32) -> (i32, i32, i32) {
    %c0_i32 = arith.constant 0 : i32
    %c0_i32_0 = arith.constant 0 : i32
    %c0_i32_1 = arith.constant 0 : i32
    return %arg0, %c0_i32, %c0_i32_0 : i32, i32, i32
  }
  func.func @transform_2(%arg0: i32) -> (i32, i32, i32) {
    %c0_i32 = arith.constant 0 : i32
    %c0_i32_0 = arith.constant 0 : i32
    %c0_i32_1 = arith.constant 0 : i32
    return %arg0, %c0_i32, %c0_i32_0 : i32, i32, i32
  }
}

module attributes {stable_mosaic.version = 11 : i64} {
  func.func @_conv_taps_kernel(%arg0: i32, %arg1: memref<1x102x16xbf16, #tpu.memory_space<vmem>>, %arg2: memref<9x16x8xbf16, #tpu.memory_space<vmem>>, %arg3: memref<1x8xf32, #tpu.memory_space<vmem>>, %arg4: memref<1x80x8xbf16, #tpu.memory_space<vmem>>) attributes {dimension_semantics = [#tpu.dimension_semantics<parallel>], iteration_bounds = array<i64: 2>, scalar_prefetch = 0 : i64, scratch_operands = 0 : i64, tpu.core_type = #tpu.core_type<tc>, window_params = [{transform_indices = @transform_0, window_bounds = array<i64: 1, 102, 16>}, {pipeline_mode = #tpu.pipeline_mode<synchronous>, transform_indices = @transform_1, window_bounds = array<i64: 9, 16, 8>}, {pipeline_mode = #tpu.pipeline_mode<synchronous>, transform_indices = @transform_2, window_bounds = array<i64: 1, 8>}, {transform_indices = @transform_3, window_bounds = array<i64: 1, 80, 8>}]} {
    %c0 = arith.constant 0 : index
    %c0_0 = arith.constant 0 : index
    %c0_1 = arith.constant 0 : index
    %0 = vector.load %arg1[%c0, %c0_0, %c0_1] : memref<1x102x16xbf16, #tpu.memory_space<vmem>>, vector<1x102x16xbf16>
    %1 = vector.shape_cast %0 : vector<1x102x16xbf16> to vector<102x16xbf16>
    %cst = arith.constant 0.000000e+00 : f32
    %2 = vector.broadcast %cst : f32 to vector<80x8xf32>
    %3 = vector.extract_strided_slice %1 {offsets = [0, 0], sizes = [80, 16], strides = [1, 1]} : vector<102x16xbf16> to vector<80x16xbf16>
    %c0_2 = arith.constant 0 : index
    %c0_3 = arith.constant 0 : index
    %c0_4 = arith.constant 0 : index
    %4 = vector.load %arg2[%c0_2, %c0_3, %c0_4] : memref<9x16x8xbf16, #tpu.memory_space<vmem>>, vector<1x16x8xbf16>
    %5 = vector.shape_cast %4 : vector<1x16x8xbf16> to vector<16x8xbf16>
    %cst_5 = arith.constant dense<0.000000e+00> : vector<80x8xf32>
    %6 = tpu.matmul %3, %5, %cst_5 {dimension_numbers = #tpu.dot_dimension_numbers<[1], [0], [0], [1], [0, 0, 1, 1], [], []>} : vector<80x16xbf16>, vector<16x8xbf16>, vector<80x8xf32> -> vector<80x8xf32>
    %7 = arith.addf %2, %6 : vector<80x8xf32>
    %8 = vector.extract_strided_slice %1 {offsets = [1, 0], sizes = [80, 16], strides = [1, 1]} : vector<102x16xbf16> to vector<80x16xbf16>
    %c1 = arith.constant 1 : index
    %c0_6 = arith.constant 0 : index
    %c0_7 = arith.constant 0 : index
    %9 = vector.load %arg2[%c1, %c0_6, %c0_7] : memref<9x16x8xbf16, #tpu.memory_space<vmem>>, vector<1x16x8xbf16>
    %10 = vector.shape_cast %9 : vector<1x16x8xbf16> to vector<16x8xbf16>
    %cst_8 = arith.constant dense<0.000000e+00> : vector<80x8xf32>
    %11 = tpu.matmul %8, %10, %cst_8 {dimension_numbers = #tpu.dot_dimension_numbers<[1], [0], [0], [1], [0, 0, 1, 1], [], []>} : vector<80x16xbf16>, vector<16x8xbf16>, vector<80x8xf32> -> vector<80x8xf32>
    %12 = arith.addf %7, %11 : vector<80x8xf32>
    %13 = vector.extract_strided_slice %1 {offsets = [2, 0], sizes = [80, 16], strides = [1, 1]} : vector<102x16xbf16> to vector<80x16xbf16>
    %c2 = arith.constant 2 : index
    %c0_9 = arith.constant 0 : index
    %c0_10 = arith.constant 0 : index
    %14 = vector.load %arg2[%c2, %c0_9, %c0_10] : memref<9x16x8xbf16, #tpu.memory_space<vmem>>, vector<1x16x8xbf16>
    %15 = vector.shape_cast %14 : vector<1x16x8xbf16> to vector<16x8xbf16>
    %cst_11 = arith.constant dense<0.000000e+00> : vector<80x8xf32>
    %16 = tpu.matmul %13, %15, %cst_11 {dimension_numbers = #tpu.dot_dimension_numbers<[1], [0], [0], [1], [0, 0, 1, 1], [], []>} : vector<80x16xbf16>, vector<16x8xbf16>, vector<80x8xf32> -> vector<80x8xf32>
    %17 = arith.addf %12, %16 : vector<80x8xf32>
    %18 = vector.extract_strided_slice %1 {offsets = [10, 0], sizes = [80, 16], strides = [1, 1]} : vector<102x16xbf16> to vector<80x16xbf16>
    %c3 = arith.constant 3 : index
    %c0_12 = arith.constant 0 : index
    %c0_13 = arith.constant 0 : index
    %19 = vector.load %arg2[%c3, %c0_12, %c0_13] : memref<9x16x8xbf16, #tpu.memory_space<vmem>>, vector<1x16x8xbf16>
    %20 = vector.shape_cast %19 : vector<1x16x8xbf16> to vector<16x8xbf16>
    %cst_14 = arith.constant dense<0.000000e+00> : vector<80x8xf32>
    %21 = tpu.matmul %18, %20, %cst_14 {dimension_numbers = #tpu.dot_dimension_numbers<[1], [0], [0], [1], [0, 0, 1, 1], [], []>} : vector<80x16xbf16>, vector<16x8xbf16>, vector<80x8xf32> -> vector<80x8xf32>
    %22 = arith.addf %17, %21 : vector<80x8xf32>
    %23 = vector.extract_strided_slice %1 {offsets = [11, 0], sizes = [80, 16], strides = [1, 1]} : vector<102x16xbf16> to vector<80x16xbf16>
    %c4 = arith.constant 4 : index
    %c0_15 = arith.constant 0 : index
    %c0_16 = arith.constant 0 : index
    %24 = vector.load %arg2[%c4, %c0_15, %c0_16] : memref<9x16x8xbf16, #tpu.memory_space<vmem>>, vector<1x16x8xbf16>
    %25 = vector.shape_cast %24 : vector<1x16x8xbf16> to vector<16x8xbf16>
    %cst_17 = arith.constant dense<0.000000e+00> : vector<80x8xf32>
    %26 = tpu.matmul %23, %25, %cst_17 {dimension_numbers = #tpu.dot_dimension_numbers<[1], [0], [0], [1], [0, 0, 1, 1], [], []>} : vector<80x16xbf16>, vector<16x8xbf16>, vector<80x8xf32> -> vector<80x8xf32>
    %27 = arith.addf %22, %26 : vector<80x8xf32>
    %28 = vector.extract_strided_slice %1 {offsets = [12, 0], sizes = [80, 16], strides = [1, 1]} : vector<102x16xbf16> to vector<80x16xbf16>
    %c5 = arith.constant 5 : index
    %c0_18 = arith.constant 0 : index
    %c0_19 = arith.constant 0 : index
    %29 = vector.load %arg2[%c5, %c0_18, %c0_19] : memref<9x16x8xbf16, #tpu.memory_space<vmem>>, vector<1x16x8xbf16>
    %30 = vector.shape_cast %29 : vector<1x16x8xbf16> to vector<16x8xbf16>
    %cst_20 = arith.constant dense<0.000000e+00> : vector<80x8xf32>
    %31 = tpu.matmul %28, %30, %cst_20 {dimension_numbers = #tpu.dot_dimension_numbers<[1], [0], [0], [1], [0, 0, 1, 1], [], []>} : vector<80x16xbf16>, vector<16x8xbf16>, vector<80x8xf32> -> vector<80x8xf32>
    %32 = arith.addf %27, %31 : vector<80x8xf32>
    %33 = vector.extract_strided_slice %1 {offsets = [20, 0], sizes = [80, 16], strides = [1, 1]} : vector<102x16xbf16> to vector<80x16xbf16>
    %c6 = arith.constant 6 : index
    %c0_21 = arith.constant 0 : index
    %c0_22 = arith.constant 0 : index
    %34 = vector.load %arg2[%c6, %c0_21, %c0_22] : memref<9x16x8xbf16, #tpu.memory_space<vmem>>, vector<1x16x8xbf16>
    %35 = vector.shape_cast %34 : vector<1x16x8xbf16> to vector<16x8xbf16>
    %cst_23 = arith.constant dense<0.000000e+00> : vector<80x8xf32>
    %36 = tpu.matmul %33, %35, %cst_23 {dimension_numbers = #tpu.dot_dimension_numbers<[1], [0], [0], [1], [0, 0, 1, 1], [], []>} : vector<80x16xbf16>, vector<16x8xbf16>, vector<80x8xf32> -> vector<80x8xf32>
    %37 = arith.addf %32, %36 : vector<80x8xf32>
    %38 = vector.extract_strided_slice %1 {offsets = [21, 0], sizes = [80, 16], strides = [1, 1]} : vector<102x16xbf16> to vector<80x16xbf16>
    %c7 = arith.constant 7 : index
    %c0_24 = arith.constant 0 : index
    %c0_25 = arith.constant 0 : index
    %39 = vector.load %arg2[%c7, %c0_24, %c0_25] : memref<9x16x8xbf16, #tpu.memory_space<vmem>>, vector<1x16x8xbf16>
    %40 = vector.shape_cast %39 : vector<1x16x8xbf16> to vector<16x8xbf16>
    %cst_26 = arith.constant dense<0.000000e+00> : vector<80x8xf32>
    %41 = tpu.matmul %38, %40, %cst_26 {dimension_numbers = #tpu.dot_dimension_numbers<[1], [0], [0], [1], [0, 0, 1, 1], [], []>} : vector<80x16xbf16>, vector<16x8xbf16>, vector<80x8xf32> -> vector<80x8xf32>
    %42 = arith.addf %37, %41 : vector<80x8xf32>
    %43 = vector.extract_strided_slice %1 {offsets = [22, 0], sizes = [80, 16], strides = [1, 1]} : vector<102x16xbf16> to vector<80x16xbf16>
    %c8 = arith.constant 8 : index
    %c0_27 = arith.constant 0 : index
    %c0_28 = arith.constant 0 : index
    %44 = vector.load %arg2[%c8, %c0_27, %c0_28] : memref<9x16x8xbf16, #tpu.memory_space<vmem>>, vector<1x16x8xbf16>
    %45 = vector.shape_cast %44 : vector<1x16x8xbf16> to vector<16x8xbf16>
    %cst_29 = arith.constant dense<0.000000e+00> : vector<80x8xf32>
    %46 = tpu.matmul %43, %45, %cst_29 {dimension_numbers = #tpu.dot_dimension_numbers<[1], [0], [0], [1], [0, 0, 1, 1], [], []>} : vector<80x16xbf16>, vector<16x8xbf16>, vector<80x8xf32> -> vector<80x8xf32>
    %47 = arith.addf %42, %46 : vector<80x8xf32>
    %c0_30 = arith.constant 0 : index
    %c0_31 = arith.constant 0 : index
    %48 = vector.load %arg3[%c0_30, %c0_31] : memref<1x8xf32, #tpu.memory_space<vmem>>, vector<1x8xf32>
    %49 = vector.broadcast %48 : vector<1x8xf32> to vector<80x8xf32>
    %50 = arith.addf %47, %49 : vector<80x8xf32>
    %cst_32 = arith.constant 0.000000e+00 : f32
    %51 = vector.broadcast %cst_32 : f32 to vector<80x8xf32>
    %52 = arith.maximumf %50, %51 : vector<80x8xf32>
    %53 = arith.truncf %52 : vector<80x8xf32> to vector<80x8xbf16>
    %c0_33 = arith.constant 0 : index
    %c0_34 = arith.constant 0 : index
    %c0_35 = arith.constant 0 : index
    %54 = vector.load %arg4[%c0_33, %c0_34, %c0_35] : memref<1x80x8xbf16, #tpu.memory_space<vmem>>, vector<1x80x8xbf16>
    %55 = vector.shape_cast %54 : vector<1x80x8xbf16> to vector<80x8xbf16>
    %56 = vector.shape_cast %53 : vector<80x8xbf16> to vector<1x80x8xbf16>
    tpu.vector_store %arg4[%c0_33, %c0_34, %c0_35], %56 {strides = array<i32>} : memref<1x80x8xbf16, #tpu.memory_space<vmem>>, vector<1x80x8xbf16>,
    return
  }
  func.func @transform_0(%arg0: i32) -> (i32, i32, i32) {
    %c0_i32 = arith.constant 0 : i32
    %c0_i32_0 = arith.constant 0 : i32
    %c0_i32_1 = arith.constant 0 : i32
    return %arg0, %c0_i32, %c0_i32_0 : i32, i32, i32
  }
  func.func @transform_1(%arg0: i32) -> (i32, i32, i32) {
    %c0_i32 = arith.constant 0 : i32
    %c0_i32_0 = arith.constant 0 : i32
    %c0_i32_1 = arith.constant 0 : i32
    %c0_i32_2 = arith.constant 0 : i32
    return %c0_i32, %c0_i32_0, %c0_i32_1 : i32, i32, i32
  }
  func.func @transform_2(%arg0: i32) -> (i32, i32) {
    %c0_i32 = arith.constant 0 : i32
    %c0_i32_0 = arith.constant 0 : i32
    %c0_i32_1 = arith.constant 0 : i32
    return %c0_i32, %c0_i32_0 : i32, i32
  }
  func.func @transform_3(%arg0: i32) -> (i32, i32, i32) {
    %c0_i32 = arith.constant 0 : i32
    %c0_i32_0 = arith.constant 0 : i32
    %c0_i32_1 = arith.constant 0 : i32
    return %arg0, %c0_i32, %c0_i32_0 : i32, i32, i32
  }
}

module attributes {stable_mosaic.version = 11 : i64} {
  func.func @_spatial_matmul_kernel(%arg0: i32, %arg1: memref<256x64xbf16, #tpu.memory_space<vmem>>, %arg2: memref<1x64x8xbf16, #tpu.memory_space<vmem>>, %arg3: memref<1x256x8xbf16, #tpu.memory_space<vmem>>) attributes {dimension_semantics = [#tpu.dimension_semantics<parallel>], iteration_bounds = array<i64: 2>, scalar_prefetch = 0 : i64, scratch_operands = 0 : i64, tpu.core_type = #tpu.core_type<tc>, window_params = [{pipeline_mode = #tpu.pipeline_mode<synchronous>, transform_indices = @transform_0, window_bounds = array<i64: 256, 64>}, {transform_indices = @transform_1, window_bounds = array<i64: 1, 64, 8>}, {transform_indices = @transform_2, window_bounds = array<i64: 1, 256, 8>}]} {
    %c0 = arith.constant 0 : index
    %c0_0 = arith.constant 0 : index
    %0 = vector.load %arg1[%c0, %c0_0] : memref<256x64xbf16, #tpu.memory_space<vmem>>, vector<256x64xbf16>
    %c0_1 = arith.constant 0 : index
    %c0_2 = arith.constant 0 : index
    %c0_3 = arith.constant 0 : index
    %1 = vector.load %arg2[%c0_1, %c0_2, %c0_3] : memref<1x64x8xbf16, #tpu.memory_space<vmem>>, vector<1x64x8xbf16>
    %2 = vector.shape_cast %1 : vector<1x64x8xbf16> to vector<64x8xbf16>
    %cst = arith.constant dense<0.000000e+00> : vector<256x8xf32>
    %3 = tpu.matmul %0, %2, %cst {dimension_numbers = #tpu.dot_dimension_numbers<[1], [0], [0], [1], [0, 0, 1, 1], [], []>} : vector<256x64xbf16>, vector<64x8xbf16>, vector<256x8xf32> -> vector<256x8xf32>
    %4 = arith.truncf %3 : vector<256x8xf32> to vector<256x8xbf16>
    %c0_4 = arith.constant 0 : index
    %c0_5 = arith.constant 0 : index
    %c0_6 = arith.constant 0 : index
    %5 = vector.load %arg3[%c0_4, %c0_5, %c0_6] : memref<1x256x8xbf16, #tpu.memory_space<vmem>>, vector<1x256x8xbf16>
    %6 = vector.shape_cast %5 : vector<1x256x8xbf16> to vector<256x8xbf16>
    %7 = vector.shape_cast %4 : vector<256x8xbf16> to vector<1x256x8xbf16>
    tpu.vector_store %arg3[%c0_4, %c0_5, %c0_6], %7 {strides = array<i32>} : memref<1x256x8xbf16, #tpu.memory_space<vmem>>, vector<1x256x8xbf16>,
    return
  }
  func.func @transform_0(%arg0: i32) -> (i32, i32) {
    %c0_i32 = arith.constant 0 : i32
    %c0_i32_0 = arith.constant 0 : i32
    %c0_i32_1 = arith.constant 0 : i32
    return %c0_i32, %c0_i32_0 : i32, i32
  }
  func.func @transform_1(%arg0: i32) -> (i32, i32, i32) {
    %c0_i32 = arith.constant 0 : i32
    %c0_i32_0 = arith.constant 0 : i32
    %c0_i32_1 = arith.constant 0 : i32
    return %arg0, %c0_i32, %c0_i32_0 : i32, i32, i32
  }
  func.func @transform_2(%arg0: i32) -> (i32, i32, i32) {
    %c0_i32 = arith.constant 0 : i32
    %c0_i32_0 = arith.constant 0 : i32
    %c0_i32_1 = arith.constant 0 : i32
    return %arg0, %c0_i32, %c0_i32_0 : i32, i32, i32
  }
}

module attributes {stable_mosaic.version = 11 : i64} {
  func.func @_mm_bias_kernel(%arg0: i32, %arg1: memref<256x8xbf16, #tpu.memory_space<vmem>>, %arg2: memref<8x5xbf16, #tpu.memory_space<vmem>>, %arg3: memref<1x5xf32, #tpu.memory_space<vmem>>, %arg4: memref<256x5xbf16, #tpu.memory_space<vmem>>) attributes {dimension_semantics = [#tpu.dimension_semantics<parallel>], iteration_bounds = array<i64: 2>, scalar_prefetch = 0 : i64, scratch_operands = 0 : i64, tpu.core_type = #tpu.core_type<tc>, window_params = [{transform_indices = @transform_0, window_bounds = array<i64: 256, 8>}, {pipeline_mode = #tpu.pipeline_mode<synchronous>, transform_indices = @transform_1, window_bounds = array<i64: 8, 5>}, {pipeline_mode = #tpu.pipeline_mode<synchronous>, transform_indices = @transform_2, window_bounds = array<i64: 1, 5>}, {transform_indices = @transform_3, window_bounds = array<i64: 256, 5>}]} {
    %c0 = arith.constant 0 : index
    %c0_0 = arith.constant 0 : index
    %0 = vector.load %arg1[%c0, %c0_0] : memref<256x8xbf16, #tpu.memory_space<vmem>>, vector<256x8xbf16>
    %c0_1 = arith.constant 0 : index
    %c0_2 = arith.constant 0 : index
    %1 = vector.load %arg2[%c0_1, %c0_2] : memref<8x5xbf16, #tpu.memory_space<vmem>>, vector<8x5xbf16>
    %cst = arith.constant dense<0.000000e+00> : vector<256x5xf32>
    %2 = tpu.matmul %0, %1, %cst {dimension_numbers = #tpu.dot_dimension_numbers<[1], [0], [0], [1], [0, 0, 1, 1], [], []>} : vector<256x8xbf16>, vector<8x5xbf16>, vector<256x5xf32> -> vector<256x5xf32>
    %c0_3 = arith.constant 0 : index
    %c0_4 = arith.constant 0 : index
    %3 = vector.load %arg3[%c0_3, %c0_4] : memref<1x5xf32, #tpu.memory_space<vmem>>, vector<1x5xf32>
    %4 = vector.broadcast %3 : vector<1x5xf32> to vector<256x5xf32>
    %5 = arith.addf %2, %4 : vector<256x5xf32>
    %6 = arith.truncf %5 : vector<256x5xf32> to vector<256x5xbf16>
    %c0_5 = arith.constant 0 : index
    %c0_6 = arith.constant 0 : index
    %7 = vector.load %arg4[%c0_5, %c0_6] : memref<256x5xbf16, #tpu.memory_space<vmem>>, vector<256x5xbf16>
    tpu.vector_store %arg4[%c0_5, %c0_6], %6 {strides = array<i32>} : memref<256x5xbf16, #tpu.memory_space<vmem>>, vector<256x5xbf16>,
    return
  }
  func.func @transform_0(%arg0: i32) -> (i32, i32) {
    %c0_i32 = arith.constant 0 : i32
    %c0_i32_0 = arith.constant 0 : i32
    return %arg0, %c0_i32 : i32, i32
  }
  func.func @transform_1(%arg0: i32) -> (i32, i32) {
    %c0_i32 = arith.constant 0 : i32
    %c0_i32_0 = arith.constant 0 : i32
    %c0_i32_1 = arith.constant 0 : i32
    return %c0_i32, %c0_i32_0 : i32, i32
  }
  func.func @transform_2(%arg0: i32) -> (i32, i32) {
    %c0_i32 = arith.constant 0 : i32
    %c0_i32_0 = arith.constant 0 : i32
    %c0_i32_1 = arith.constant 0 : i32
    return %c0_i32, %c0_i32_0 : i32, i32
  }
  func.func @transform_3(%arg0: i32) -> (i32, i32) {
    %c0_i32 = arith.constant 0 : i32
    %c0_i32_0 = arith.constant 0 : i32
    return %arg0, %c0_i32 : i32, i32
  }
}

module attributes {stable_mosaic.version = 11 : i64} {
  func.func @_spatial_matmul_kernel(%arg0: i32, %arg1: memref<256x256xbf16, #tpu.memory_space<vmem>>, %arg2: memref<1x256x5xbf16, #tpu.memory_space<vmem>>, %arg3: memref<1x256x5xf32, #tpu.memory_space<vmem>>) attributes {dimension_semantics = [#tpu.dimension_semantics<parallel>], iteration_bounds = array<i64: 2>, scalar_prefetch = 0 : i64, scratch_operands = 0 : i64, tpu.core_type = #tpu.core_type<tc>, window_params = [{pipeline_mode = #tpu.pipeline_mode<synchronous>, transform_indices = @transform_0, window_bounds = array<i64: 256, 256>}, {transform_indices = @transform_1, window_bounds = array<i64: 1, 256, 5>}, {transform_indices = @transform_2, window_bounds = array<i64: 1, 256, 5>}]} {
    %c0 = arith.constant 0 : index
    %c0_0 = arith.constant 0 : index
    %0 = vector.load %arg1[%c0, %c0_0] : memref<256x256xbf16, #tpu.memory_space<vmem>>, vector<256x256xbf16>
    %c0_1 = arith.constant 0 : index
    %c0_2 = arith.constant 0 : index
    %c0_3 = arith.constant 0 : index
    %1 = vector.load %arg2[%c0_1, %c0_2, %c0_3] : memref<1x256x5xbf16, #tpu.memory_space<vmem>>, vector<1x256x5xbf16>
    %2 = vector.shape_cast %1 : vector<1x256x5xbf16> to vector<256x5xbf16>
    %cst = arith.constant dense<0.000000e+00> : vector<256x5xf32>
    %3 = tpu.matmul %0, %2, %cst {dimension_numbers = #tpu.dot_dimension_numbers<[1], [0], [0], [1], [0, 0, 1, 1], [], []>} : vector<256x256xbf16>, vector<256x5xbf16>, vector<256x5xf32> -> vector<256x5xf32>
    %c0_4 = arith.constant 0 : index
    %c0_5 = arith.constant 0 : index
    %c0_6 = arith.constant 0 : index
    %4 = vector.load %arg3[%c0_4, %c0_5, %c0_6] : memref<1x256x5xf32, #tpu.memory_space<vmem>>, vector<1x256x5xf32>
    %5 = vector.shape_cast %4 : vector<1x256x5xf32> to vector<256x5xf32>
    %6 = vector.shape_cast %3 : vector<256x5xf32> to vector<1x256x5xf32>
    tpu.vector_store %arg3[%c0_4, %c0_5, %c0_6], %6 {strides = array<i32>} : memref<1x256x5xf32, #tpu.memory_space<vmem>>, vector<1x256x5xf32>,
    return
  }
  func.func @transform_0(%arg0: i32) -> (i32, i32) {
    %c0_i32 = arith.constant 0 : i32
    %c0_i32_0 = arith.constant 0 : i32
    %c0_i32_1 = arith.constant 0 : i32
    return %c0_i32, %c0_i32_0 : i32, i32
  }
  func.func @transform_1(%arg0: i32) -> (i32, i32, i32) {
    %c0_i32 = arith.constant 0 : i32
    %c0_i32_0 = arith.constant 0 : i32
    %c0_i32_1 = arith.constant 0 : i32
    return %arg0, %c0_i32, %c0_i32_0 : i32, i32, i32
  }
  func.func @transform_2(%arg0: i32) -> (i32, i32, i32) {
    %c0_i32 = arith.constant 0 : i32
    %c0_i32_0 = arith.constant 0 : i32
    %c0_i32_1 = arith.constant 0 : i32
    return %arg0, %c0_i32, %c0_i32_0 : i32, i32, i32
  }
}

</mosaic_0001>

<llo_original>
// kernel: pspnet_forward.10
$region0: #{pspnet_forward.10}
  #allocation0 [shape = 'u32[]', space=smem, size = 0x4, offset = 0x4, fixed_abs, tag = 'smem constant byte address 0x4 - core index']
  #allocation1 [shape = 'u32[144,128]{1,0:T(1,128)}', space=vmem, size = 0x12000, scoped, tag = 'internal scratch']
  %s0 = inlined_call_operand.vmem [shape: bf16[2,26,16], index: 0, kind: input, shape index: {}]
  %s1 = inlined_call_operand.vmem [shape: bf16[2,26,16], index: 1, kind: input, shape index: {}]
  %s2 = inlined_call_operand.vmem [shape: bf16[2,26,16], index: 2, kind: input, shape index: {}]
  %s3 = inlined_call_operand.vmem [shape: bf16[2,26,16], index: 3, kind: input, shape index: {}]
  %s4 = inlined_call_operand.vmem [shape: bf16[9,16,32], index: 4, kind: input, shape index: {}]
  %s5 = inlined_call_operand.vmem [shape: f32[1,32], index: 5, kind: input, shape index: {}]
  %s6 = inlined_call_operand.vmem [shape: bf16[2,20,32], index: 6, kind: output, shape index: {}]
  %s7 = sld [smem:[#allocation0]]
  $region57: #{pspnet_forward.10} parent=0
    _
  %s9 = ssub.s32 1, %s7
  %s10 = scalar_select 0, %s9, %s7
  loop: start=0, step=1, limit=4
  $region2: #{pspnet_forward.10} parent=0 // loop_pre_header
    _
  $region3: #{pspnet_forward.10} parent=0 // loop_header
    %s12 = sphi 0, %s16
    %p13 = scmp.ge.s32.totalorder %s12, 4
    %s22 = sphi 0, %s24
    %s25 = sphi 0, %s22
    %s26 = sphi 0, %s25
    %s42 = sphi 0, %s26
    %s48 = sphi 0, %s50
    %s51 = sphi 0, %s48
    %s52 = sphi 0, %s51
    %s68 = sphi 0, %s52
    %s74 = sphi 0, %s76
    %s77 = sphi 0, %s74
    %s78 = sphi 0, %s77
    %s94 = sphi 0, %s78
    %s100 = sphi 0, %s102
    %s103 = sphi 0, %s100
    %s104 = sphi 0, %s103
    %s120 = sphi 0, %s104
    %s124 = sphi 0, %s124
    %s126 = sphi 0, %s124
    %s127 = sphi 0, %s126
    %s141 = sphi 0, %s127
    %s145 = sphi 0, %s145
    %s147 = sphi 0, %s145
    %s148 = sphi 0, %s147
    %s162 = sphi 0, %s148
    %s168 = sphi 0, %s170
    %s171 = sphi 0, %s168
    %s172 = sphi 0, %s171
    %s188 = sphi 0, %s172
  $region4: #{pspnet_forward.10} parent=0 // loop_header_branch
    %15 = sbr.rel (%p13) target = $region8
  $region5: #{pspnet_forward.10} parent=0 // loop_body
    %s17 = ssub.s32 %s12, 1
    %s18 = ssub.s32 %s12, 2
    %s19 = sadd.s32 %s12, 1
    %s20 = ssub.s32 %s12, %s19
    %p21 = scmp.eq.s32.totalorder %s20, 0
    %s23 = sadd.s32 %s22, 1
    %s24 = scalar_select %p21, %s22, %s23
    %p27 = pneg %p21
    %p28 = scmp.eq.s32.totalorder %s12, 1
    %p29 = por %p27, %p28
    %p30 = scmp.ne.s32.totalorder %s22, %s25
    %p31 = scmp.eq.s32.totalorder %s12, 0
    %p32 = por %p30, %p31
    %p33 = scmp.ne.s32.totalorder %s22, %s25
    %p34 = scmp.eq.s32.totalorder %s17, 1
    %p35 = por %p33, %p34
    %p36 = scmp.ne.s32.totalorder %s25, %s26
    %p37 = scmp.eq.s32.totalorder %s17, 0
    %p38 = por %p36, %p37
    %p39 = scmp.ne.s32.totalorder %s25, %s26
    %p40 = scmp.eq.s32.totalorder %s18, 1
    %p41 = por %p39, %p40
    %p43 = scmp.ne.s32.totalorder %s26, %s42
    %p44 = scmp.eq.s32.totalorder %s18, 0
    %p45 = por %p43, %p44
    %s46 = ssub.s32 %s12, %s19
    %p47 = scmp.eq.s32.totalorder %s46, 0
    %s49 = sadd.s32 %s48, 1
    %s50 = scalar_select %p47, %s48, %s49
    %p53 = pneg %p47
    %p54 = scmp.eq.s32.totalorder %s12, 1
    %p55 = por %p53, %p54
    %p56 = scmp.ne.s32.totalorder %s48, %s51
    %p57 = scmp.eq.s32.totalorder %s12, 0
    %p58 = por %p56, %p57
    %p59 = scmp.ne.s32.totalorder %s48, %s51
    %p60 = scmp.eq.s32.totalorder %s17, 1
    %p61 = por %p59, %p60
    %p62 = scmp.ne.s32.totalorder %s51, %s52
    %p63 = scmp.eq.s32.totalorder %s17, 0
    %p64 = por %p62, %p63
    %p65 = scmp.ne.s32.totalorder %s51, %s52
    %p66 = scmp.eq.s32.totalorder %s18, 1
    %p67 = por %p65, %p66
    %p69 = scmp.ne.s32.totalorder %s52, %s68
    %p70 = scmp.eq.s32.totalorder %s18, 0
    %p71 = por %p69, %p70
    %s72 = ssub.s32 %s12, %s19
    %p73 = scmp.eq.s32.totalorder %s72, 0
    %s75 = sadd.s32 %s74, 1
    %s76 = scalar_select %p73, %s74, %s75
    %p79 = pneg %p73
    %p80 = scmp.eq.s32.totalorder %s12, 1
    %p81 = por %p79, %p80
    %p82 = scmp.ne.s32.totalorder %s74, %s77
    %p83 = scmp.eq.s32.totalorder %s12, 0
    %p84 = por %p82, %p83
    %p85 = scmp.ne.s32.totalorder %s74, %s77
    %p86 = scmp.eq.s32.totalorder %s17, 1
    %p87 = por %p85, %p86
    %p88 = scmp.ne.s32.totalorder %s77, %s78
    %p89 = scmp.eq.s32.totalorder %s17, 0
    %p90 = por %p88, %p89
    %p91 = scmp.ne.s32.totalorder %s77, %s78
    %p92 = scmp.eq.s32.totalorder %s18, 1
    %p93 = por %p91, %p92
    %p95 = scmp.ne.s32.totalorder %s78, %s94
    %p96 = scmp.eq.s32.totalorder %s18, 0
    %p97 = por %p95, %p96
    %s98 = ssub.s32 %s12, %s19
    %p99 = scmp.eq.s32.totalorder %s98, 0
    %s101 = sadd.s32 %s100, 1
    %s102 = scalar_select %p99, %s100, %s101
    %p105 = pneg %p99
    %p106 = scmp.eq.s32.totalorder %s12, 1
    %p107 = por %p105, %p106
    %p108 = scmp.ne.s32.totalorder %s100, %s103
    %p109 = scmp.eq.s32.totalorder %s12, 0
    %p110 = por %p108, %p109
    %p111 = scmp.ne.s32.totalorder %s100, %s103
    %p112 = scmp.eq.s32.totalorder %s17, 1
    %p113 = por %p111, %p112
    %p114 = scmp.ne.s32.totalorder %s103, %s104
    %p115 = scmp.eq.s32.totalorder %s17, 0
    %p116 = por %p114, %p115
    %p117 = scmp.ne.s32.totalorder %s103, %s104
    %p118 = scmp.eq.s32.totalorder %s18, 1
    %p119 = por %p117, %p118
    %p121 = scmp.ne.s32.totalorder %s104, %s120
    %p122 = scmp.eq.s32.totalorder %s18, 0
    %p123 = por %p121, %p122
    %s125 = sadd.s32 %s124, 1
    %p128 = scmp.eq.s32.totalorder %s12, 1
    %p129 = scmp.ne.s32.totalorder %s124, %s126
    %p130 = scmp.eq.s32.totalorder %s12, 0
    %p131 = por %p129, %p130
    %p132 = scmp.ne.s32.totalorder %s124, %s126
    %p133 = scmp.eq.s32.totalorder %s17, 1
    %p134 = por %p132, %p133
    %p135 = scmp.ne.s32.totalorder %s126, %s127
    %p136 = scmp.eq.s32.totalorder %s17, 0
    %p137 = por %p135, %p136
    %p138 = scmp.ne.s32.totalorder %s126, %s127
    %p139 = scmp.eq.s32.totalorder %s18, 1
    %p140 = por %p138, %p139
    %p142 = scmp.ne.s32.totalorder %s127, %s141
    %p143 = scmp.eq.s32.totalorder %s18, 0
    %p144 = por %p142, %p143
    %s146 = sadd.s32 %s145, 1
    %p149 = scmp.eq.s32.totalorder %s12, 1
    %p150 = scmp.ne.s32.totalorder %s145, %s147
    %p151 = scmp.eq.s32.totalorder %s12, 0
    %p152 = por %p150, %p151
    %p153 = scmp.ne.s32.totalorder %s145, %s147
    %p154 = scmp.eq.s32.totalorder %s17, 1
    %p155 = por %p153, %p154
    %p156 = scmp.ne.s32.totalorder %s147, %s148
    %p157 = scmp.eq.s32.totalorder %s17, 0
    %p158 = por %p156, %p157
    %p159 = scmp.ne.s32.totalorder %s147, %s148
    %p160 = scmp.eq.s32.totalorder %s18, 1
    %p161 = por %p159, %p160
    %p163 = scmp.ne.s32.totalorder %s148, %s162
    %p164 = scmp.eq.s32.totalorder %s18, 0
    %p165 = por %p163, %p164
    %s166 = ssub.s32 %s12, %s19
    %p167 = scmp.eq.s32.totalorder %s166, 0
    %s169 = sadd.s32 %s168, 1
    %s170 = scalar_select %p167, %s168, %s169
    %p173 = pneg %p167
    %p174 = scmp.eq.s32.totalorder %s12, 1
    %p175 = por %p173, %p174
    %p176 = scmp.ne.s32.totalorder %s168, %s171
    %p177 = scmp.eq.s32.totalorder %s12, 0
    %p178 = por %p176, %p177
    %p179 = scmp.ne.s32.totalorder %s168, %s171
    %p180 = scmp.eq.s32.totalorder %s17, 1
    %p181 = por %p179, %p180
    %p182 = scmp.ne.s32.totalorder %s171, %s172
    %p183 = scmp.eq.s32.totalorder %s17, 0
    %p184 = por %p182, %p183
    %p185 = scmp.ne.s32.totalorder %s171, %s172
    %p186 = scmp.eq.s32.totalorder %s18, 1
    %p187 = por %p185, %p186
    %p189 = scmp.ne.s32.totalorder %s172, %s188
    %p190 = scmp.eq.s32.totalorder %s18, 0
    %p191 = por %p189, %p190
    %p192 = scmp.le.s32.totalorder 1, %s12
    %p193 = scmp.lt.s32.totalorder %s12, 3
    %p194 = pnand %p192, %p193
    %p195 = pneg %p194
    // Predicated region
    $region9: #{pspnet_forward.10} parent=5 // pred_check
      _
    $region10: #{pspnet_forward.10} parent=5 // pred_check_branch
      %197 = sbr.rel (%p194) target = $region12
    $region11: #{pspnet_forward.10} parent=5 // pred_region
      %s198 = ssub.s32 %s12, 1
      // Predicated region
      $region13: #{pspnet_forward.10} parent=11 // pred_check
        %p199 = pneg %p137
      $region14: #{pspnet_forward.10} parent=11 // pred_check_branch
        %201 = sbr.rel (%p199) target = $region16
      $region15: #{pspnet_forward.10} parent=11 // pred_region
        _
      $region16: #{pspnet_forward.10} parent=11 // pred_fallthru
        _
      // Predicated region
      $region17: #{pspnet_forward.10} parent=11 // pred_check
        %p202 = pneg %p158
      $region18: #{pspnet_forward.10} parent=11 // pred_check_branch
        %204 = sbr.rel (%p202) target = $region20
      $region19: #{pspnet_forward.10} parent=11 // pred_region
        _
      $region20: #{pspnet_forward.10} parent=11 // pred_fallthru
        _
    $region12: #{pspnet_forward.10} parent=5 // pred_fallthru
      _
    %p205 = scmp.lt.s32.totalorder %s12, 2
    // Predicated region
    $region21: #{pspnet_forward.10} parent=5 // pred_check
      %p206 = pneg %p205
    $region22: #{pspnet_forward.10} parent=5 // pred_check_branch
      %208 = sbr.rel (%p206) target = $region24
    $region23: #{pspnet_forward.10} parent=5 // pred_region
      // Predicated region
      $region25: #{pspnet_forward.10} parent=23 // pred_check
        %p209 = pneg %p32
      $region26: #{pspnet_forward.10} parent=23 // pred_check_branch
        %211 = sbr.rel (%p209) target = $region28
      $region27: #{pspnet_forward.10} parent=23 // pred_region
        %p212 = scmp.lt.s32.totalorder %s12, 1
        %s213 = scalar_select %p212, %s12, 1
        %s214 = smul.addr %s213, 4
        %s215 = smul.addr %s214, 4
        %s216 = scalar_lea.vmem %s0, %s215
      $region28: #{pspnet_forward.10} parent=23 // pred_fallthru
        _
      // Predicated region
      $region29: #{pspnet_forward.10} parent=23 // pred_check
        %p217 = pneg %p58
      $region30: #{pspnet_forward.10} parent=23 // pred_check_branch
        %219 = sbr.rel (%p217) target = $region32
      $region31: #{pspnet_forward.10} parent=23 // pred_region
        %p220 = scmp.lt.s32.totalorder %s12, 1
        %s221 = scalar_select %p220, %s12, 1
        %s222 = smul.addr %s221, 4
        %s223 = smul.addr %s222, 4
        %s224 = scalar_lea.vmem %s1, %s223
      $region32: #{pspnet_forward.10} parent=23 // pred_fallthru
        _
      // Predicated region
      $region33: #{pspnet_forward.10} parent=23 // pred_check
        %p225 = pneg %p84
      $region34: #{pspnet_forward.10} parent=23 // pred_check_branch
        %227 = sbr.rel (%p225) target = $region36
      $region35: #{pspnet_forward.10} parent=23 // pred_region
        %p228 = scmp.lt.s32.totalorder %s12, 1
        %s229 = scalar_select %p228, %s12, 1
        %s230 = smul.addr %s229, 4
        %s231 = smul.addr %s230, 4
        %s232 = scalar_lea.vmem %s2, %s231
      $region36: #{pspnet_forward.10} parent=23 // pred_fallthru
        _
      // Predicated region
      $region37: #{pspnet_forward.10} parent=23 // pred_check
        %p233 = pneg %p110
      $region38: #{pspnet_forward.10} parent=23 // pred_check_branch
        %235 = sbr.rel (%p233) target = $region40
      $region39: #{pspnet_forward.10} parent=23 // pred_region
        %p236 = scmp.lt.s32.totalorder %s12, 1
        %s237 = scalar_select %p236, %s12, 1
        %s238 = smul.addr %s237, 4
        %s239 = smul.addr %s238, 4
        %s240 = scalar_lea.vmem %s3, %s239
      $region40: #{pspnet_forward.10} parent=23 // pred_fallthru
        _
    $region24: #{pspnet_forward.10} parent=5 // pred_fallthru
      _
    %p241 = scmp.le.s32.totalorder 1, %s12
    %p242 = scmp.lt.s32.totalorder %s12, 3
    %p243 = pnand %p241, %p242
    %p244 = pneg %p243
    // Predicated region
    $region41: #{pspnet_forward.10} parent=5 // pred_check
      _
    $region42: #{pspnet_forward.10} parent=5 // pred_check_branch
      %246 = sbr.rel (%p243) target = $region44
    $region43: #{pspnet_forward.10} parent=5 // pred_region
      %s247 = ssub.s32 %s12, 1
      %p248 = scmp.lt.s32.totalorder %s17, 1
      %s249 = scalar_select %p248, %s17, 1
      %s250 = smul.addr %s249, 4
      %s251 = smul.addr %s250, 4
      %s252 = scalar_lea.vmem %s0, %s251
      %p253 = pneg %p38
      %p254 = pneg %p35
      %p255 = scmp.lt.s32.totalorder %s17, 1
      %s256 = scalar_select %p255, %s17, 1
      %s257 = smul.addr %s256, 4
      %s258 = smul.addr %s257, 4
      %s259 = scalar_lea.vmem %s1, %s258
      %p260 = pneg %p64
      %p261 = pneg %p61
      %p262 = scmp.lt.s32.totalorder %s17, 1
      %s263 = scalar_select %p262, %s17, 1
      %s264 = smul.addr %s263, 4
      %s265 = smul.addr %s264, 4
      %s266 = scalar_lea.vmem %s2, %s265
      %p267 = pneg %p90
      %p268 = pneg %p87
      %p269 = scmp.lt.s32.totalorder %s17, 1
      %s270 = scalar_select %p269, %s17, 1
      %s271 = smul.addr %s270, 4
      %s272 = smul.addr %s271, 4
      %s273 = scalar_lea.vmem %s3, %s272
      %p274 = pneg %p116
      %p275 = pneg %p113
      %p276 = pneg %p137
      %p277 = pneg %p134
      %p278 = pneg %p158
      %p279 = pneg %p155
      %p280 = pneg %p184
      %p281 = pneg %p181
      %p282 = scmp.lt.s32.totalorder %s17, 1
      %s283 = scalar_select %p282, %s17, 1
      %s284 = smul.addr %s283, 3
      %s285 = smul.addr %s284, 4
      %s286 = scalar_lea.vmem %s6, %s285
      %p287 = scmp.lt.s32.totalorder %s17, 1
      %s288 = scalar_select %p287, %s17, 1
      %s289 = smul.addr %s288, 4
      %s290 = smul.addr %s289, 4
      %s291 = scalar_lea.vmem %s0, %s290
      %p292 = scmp.lt.s32.totalorder %s17, 1
      %s293 = scalar_select %p292, %s17, 1
      %s294 = smul.addr %s293, 4
      %s295 = smul.addr %s294, 4
      %s296 = scalar_lea.vmem %s1, %s295
      %p297 = scmp.lt.s32.totalorder %s17, 1
      %s298 = scalar_select %p297, %s17, 1
      %s299 = smul.addr %s298, 4
      %s300 = smul.addr %s299, 4
      %s301 = scalar_lea.vmem %s2, %s300
      %p302 = scmp.lt.s32.totalorder %s17, 1
      %s303 = scalar_select %p302, %s17, 1
      %s304 = smul.addr %s303, 4
      %s305 = smul.addr %s304, 4
      %s306 = scalar_lea.vmem %s3, %s305
      %p307 = scmp.lt.s32.totalorder %s17, 1
      %s308 = scalar_select %p307, %s17, 1
      %s309 = smul.addr %s308, 3
      %s310 = smul.addr %s309, 4
      %s311 = scalar_lea.vmem %s6, %s310
      %v313 = vld [vmem:[%s291] sm:$0xf]
      %v314 = vld [vmem:[%s291 + $0x4] sm:$0xf]
      %v315 = vld [vmem:[%s291 + $0x8] sm:$0xf]
      %v316 = vld [vmem:[%s291 + $0xc] sm:$0x1]
      %v317 = vld [vmem:[%s296] sm:$0xf]
      %v318 = vld [vmem:[%s296 + $0x4] sm:$0xf]
      %v319 = vld [vmem:[%s296 + $0x8] sm:$0xf]
      %v320 = vld [vmem:[%s296 + $0xc] sm:$0x1]
      %v321 = vld [vmem:[%s301] sm:$0xf]
      %v322 = vld [vmem:[%s301 + $0x4] sm:$0xf]
      %v323 = vld [vmem:[%s301 + $0x8] sm:$0xf]
      %v324 = vld [vmem:[%s306] sm:$0xf]
      %v325 = vld [vmem:[%s306 + $0x4] sm:$0xf]
      %v326 = vld [vmem:[%s306 + $0x8] sm:$0xf]
      %v327 = vld [vmem:[%s4] sm:$0xf]
      %v328 = vld [vmem:[%s4 + $0x4] sm:$0xf]
      %s329 = scalar_lea.vmem %s4, 8
      %v330 = vld [vmem:[%s329] sm:$0xf]
      %v331 = vld [vmem:[%s329 + $0x4] sm:$0xf]
      %v335 = vunpack.c.l.b16 %v317
      %v336 = vunpack.c.l.b16 %v318
      %v337 = vunpack.c.l.b16 %v319
      %v338 = vpack.c.b16 %v336, %v335
      %v339 = vpack.c.b16 %v337, %v337
      %v342 = vunpack.c.l.b16 %v330
      %v343 = vunpack.c.l.b16 %v331
      %v344 = vpack.c.b16 %v343, %v342
      %vm346 = vcmask 130048
      %v348 = vsel %vm346, %v338, 0
      %v351 = vsel %vm346, %v339, 0
      %353 = vmatprep.subr.bf16.mxu0 0
      %354 = vmatpush1.bf16.msra.mxu0 %v344
      %355 = vmatprep.subr.bf16.mxu0 0
      %356 = vmatpush1.bf16.msra.mxu0 0
      %357 = vmatprep.subr.bf16.mxu0 0
      %358 = vmatpush1.bf16.msra.mxu0 0
      %359 = vmatprep.subr.bf16.mxu0 0
      %360 = vmatpush1.bf16.msra.mxu0 0
      %361 = vmatprep.subr.bf16.mxu0 0
      %362 = vmatpush1.bf16.msra.mxu0 0
      %363 = vmatprep.subr.bf16.mxu0 0
      %364 = vmatpush1.bf16.msra.mxu0 0
      %365 = vmatprep.subr.bf16.mxu0 0
      %366 = vmatpush1.bf16.msra.mxu0 0
      %367 = vmatprep.subr.bf16.mxu0 0
      %368 = vmatpush1.bf16.msra.mxu0 0
      %369 = vmatprep.subr.bf16.mxu0 0
      %370 = vmatpush1.bf16.msra.mxu0 0
      %371 = vmatprep.subr.bf16.mxu0 0
      %372 = vmatpush1.bf16.msra.mxu0 0
      %373 = vmatprep.subr.bf16.mxu0 0
      %374 = vmatpush1.bf16.msra.mxu0 0
      %375 = vmatprep.subr.bf16.mxu0 0
      %376 = vmatpush1.bf16.msra.mxu0 0
      %377 = vmatprep.subr.bf16.mxu0 0
      %378 = vmatpush1.bf16.msra.mxu0 0
      %379 = vmatprep.subr.bf16.mxu0 0
      %380 = vmatpush1.bf16.msra.mxu0 0
      %381 = vmatprep.subr.bf16.mxu0 0
      %382 = vmatpush1.bf16.msra.mxu0 0
      %383 = vmatprep.subr.bf16.mxu0 0
      %384 = vmatpush1.bf16.msra.mxu0 0
      %385 = vmatprep.mubr.bf16.mxu0 0
      %386 = vmatmul.mubr.bf16.gmra.mrb[0].mxu0 %v348
      %v387 = vpop.f32.mrb[0].mxu0
      %v388 = vadd.f32 0.0, %v387
      %v389 = vpop.f32.mrb[0].mxu0
      %v390 = vpop.f32.mrb[0].mxu0
      %v391 = vadd.f32 0.0, %v390
      %v392 = vpop.f32.mrb[0].mxu0
      %393 = vmatprep.mubr.bf16.mxu0 0
      %394 = vmatmul.mubr.bf16.gmra.mrb[0].mxu0 %v351
      %v395 = vpop.f32.mrb[0].mxu0
      %v396 = vadd.f32 0.0, %v395
      %v397 = vpop.f32.mrb[0].mxu0
      %v398 = vpop.f32.mrb[0].mxu0
      %v399 = vpop.f32.mrb[0].mxu0
      %400 = vdwg.mxu0
      %v404 = vunpack.c.l.b16 %v313
      %v405 = vunpack.c.l.b16 %v314
      %v406 = vunpack.c.l.b16 %v315
      %v407 = vpack.c.b16 %v405, %v404
      %v408 = vpack.c.b16 %v406, %v406
      %v411 = vunpack.c.l.b16 %v327
      %v412 = vunpack.c.l.b16 %v328
      %v413 = vpack.c.b16 %v412, %v411
      %v416 = vsel %vm346, %v407, 0
      %v419 = vsel %vm346, %v408, 0
      %421 = vmatprep.subr.bf16.mxu0 0
      %422 = vmatpush1.bf16.msra.mxu0 %v413
      %423 = vmatprep.subr.bf16.mxu0 0
      %424 = vmatpush1.bf16.msra.mxu0 0
      %425 = vmatprep.subr.bf16.mxu0 0
      %426 = vmatpush1.bf16.msra.mxu0 0
      %427 = vmatprep.subr.bf16.mxu0 0
      %428 = vmatpush1.bf16.msra.mxu0 0
      %429 = vmatprep.subr.bf16.mxu0 0
      %430 = vmatpush1.bf16.msra.mxu0 0
      %431 = vmatprep.subr.bf16.mxu0 0
      %432 = vmatpush1.bf16.msra.mxu0 0
      %433 = vmatprep.subr.bf16.mxu0 0
      %434 = vmatpush1.bf16.msra.mxu0 0
      %435 = vmatprep.subr.bf16.mxu0 0
      %436 = vmatpush1.bf16.msra.mxu0 0
      %437 = vmatprep.subr.bf16.mxu0 0
      %438 = vmatpush1.bf16.msra.mxu0 0
      %439 = vmatprep.subr.bf16.mxu0 0
      %440 = vmatpush1.bf16.msra.mxu0 0
      %441 = vmatprep.subr.bf16.mxu0 0
      %442 = vmatpush1.bf16.msra.mxu0 0
      %443 = vmatprep.subr.bf16.mxu0 0
      %444 = vmatpush1.bf16.msra.mxu0 0
      %445 = vmatprep.subr.bf16.mxu0 0
      %446 = vmatpush1.bf16.msra.mxu0 0
      %447 = vmatprep.subr.bf16.mxu0 0
      %448 = vmatpush1.bf16.msra.mxu0 0
      %449 = vmatprep.subr.bf16.mxu0 0
      %450 = vmatpush1.bf16.msra.mxu0 0
      %451 = vmatprep.subr.bf16.mxu0 0
      %452 = vmatpush1.bf16.msra.mxu0 0
      %453 = vmatprep.mubr.bf16.mxu0 0
      %454 = vmatmul.mubr.bf16.gmra.mrb[0].mxu0 %v416
      %v455 = vpop.f32.mrb[0].mxu0
      %v456 = vadd.f32 %v388, %v455
      %v457 = vpop.f32.mrb[0].mxu0
      %v458 = vpop.f32.mrb[0].mxu0
      %v459 = vadd.f32 %v391, %v458
      %v460 = vpop.f32.mrb[0].mxu0
      %461 = vmatprep.mubr.bf16.mxu0 0
      %462 = vmatmul.mubr.bf16.gmra.mrb[0].mxu0 %v419
      %v463 = vpop.f32.mrb[0].mxu0
      %v464 = vadd.f32 %v396, %v463
      %v465 = vpop.f32.mrb[0].mxu0
      %v466 = vpop.f32.mrb[0].mxu0
      %v467 = vpop.f32.mrb[0].mxu0
      %468 = vdwg.mxu0
      %s469 = scalar_lea.vmem %s4, 16
      %v470 = vld [vmem:[%s469] sm:$0xf]
      %v471 = vld [vmem:[%s469 + $0x4] sm:$0xf]
      %vm472 = vsmask.f32 7424
      %v473 = vshrl.u32 %v407, 16
      %v475 = vshll.u32 %v407, 16
      %v477 = vrot.slane %v475, 1
      %v478 = vor.u32 %v473, %v477
      %v479 = vshll.u32 %v408, 16
      %v481 = vrot.slane %v479, 1
      %v482 = vsel %vm472, %v478, %v481
      %v483 = vshrl.u32 %v408, 16
      %v485 = vor.u32 %v483, %v481
      %v488 = vunpack.c.l.b16 %v470
      %v489 = vunpack.c.l.b16 %v471
      %v490 = vpack.c.b16 %v489, %v488
      %v493 = vsel %vm346, %v482, 0
      %v496 = vsel %vm346, %v485, 0
      %498 = vmatprep.subr.bf16.mxu0 0
      %499 = vmatpush1.bf16.msra.mxu0 %v490
      %500 = vmatprep.subr.bf16.mxu0 0
      %501 = vmatpush1.bf16.msra.mxu0 0
      %502 = vmatprep.subr.bf16.mxu0 0
      %503 = vmatpush1.bf16.msra.mxu0 0
      %504 = vmatprep.subr.bf16.mxu0 0
      %505 = vmatpush1.bf16.msra.mxu0 0
      %506 = vmatprep.subr.bf16.mxu0 0
      %507 = vmatpush1.bf16.msra.mxu0 0
      %508 = vmatprep.subr.bf16.mxu0 0
      %509 = vmatpush1.bf16.msra.mxu0 0
      %510 = vmatprep.subr.bf16.mxu0 0
      %511 = vmatpush1.bf16.msra.mxu0 0
      %512 = vmatprep.subr.bf16.mxu0 0
      %513 = vmatpush1.bf16.msra.mxu0 0
      %514 = vmatprep.subr.bf16.mxu0 0
      %515 = vmatpush1.bf16.msra.mxu0 0
      %516 = vmatprep.subr.bf16.mxu0 0
      %517 = vmatpush1.bf16.msra.mxu0 0
      %518 = vmatprep.subr.bf16.mxu0 0
      %519 = vmatpush1.bf16.msra.mxu0 0
      %520 = vmatprep.subr.bf16.mxu0 0
      %521 = vmatpush1.bf16.msra.mxu0 0
      %522 = vmatprep.subr.bf16.mxu0 0
      %523 = vmatpush1.bf16.msra.mxu0 0
      %524 = vmatprep.subr.bf16.mxu0 0
      %525 = vmatpush1.bf16.msra.mxu0 0
      %526 = vmatprep.subr.bf16.mxu0 0
      %527 = vmatpush1.bf16.msra.mxu0 0
      %528 = vmatprep.subr.bf16.mxu0 0
      %529 = vmatpush1.bf16.msra.mxu0 0
      %530 = vmatprep.mubr.bf16.mxu0 0
      %531 = vmatmul.mubr.bf16.gmra.mrb[0].mxu0 %v493
      %v532 = vpop.f32.mrb[0].mxu0
      %v533 = vadd.f32 0.0, %v532
      %v534 = vpop.f32.mrb[0].mxu0
      %v535 = vpop.f32.mrb[0].mxu0
      %v536 = vadd.f32 0.0, %v535
      %v537 = vpop.f32.mrb[0].mxu0
      %538 = vmatprep.mubr.bf16.mxu0 0
      %539 = vmatmul.mubr.bf16.gmra.mrb[0].mxu0 %v496
      %v540 = vpop.f32.mrb[0].mxu0
      %v541 = vadd.f32 0.0, %v540
      %v542 = vpop.f32.mrb[0].mxu0
      %v543 = vpop.f32.mrb[0].mxu0
      %v544 = vpop.f32.mrb[0].mxu0
      %545 = vdwg.mxu0
      %v546 = vadd.f32 %v456, %v533
      %v547 = vadd.f32 %v459, %v536
      %v548 = vadd.f32 %v464, %v541
      %s549 = scalar_lea.vmem %s4, 24
      %v550 = vld [vmem:[%s549] sm:$0xf]
      %v551 = vld [vmem:[%s549 + $0x4] sm:$0xf]
      %v555 = vunpack.c.l.b16 %v321
      %v556 = vunpack.c.l.b16 %v322
      %v557 = vunpack.c.l.b16 %v323
      %v558 = vpack.c.b16 %v556, %v555
      %v559 = vpack.c.b16 %v557, %v557
      %v562 = vunpack.c.l.b16 %v550
      %v563 = vunpack.c.l.b16 %v551
      %v564 = vpack.c.b16 %v563, %v562
      %v567 = vsel %vm346, %v558, 0
      %v570 = vsel %vm346, %v559, 0
      %572 = vmatprep.subr.bf16.mxu0 0
      %573 = vmatpush1.bf16.msra.mxu0 %v564
      %574 = vmatprep.subr.bf16.mxu0 0
      %575 = vmatpush1.bf16.msra.mxu0 0
      %576 = vmatprep.subr.bf16.mxu0 0
      %577 = vmatpush1.bf16.msra.mxu0 0
      %578 = vmatprep.subr.bf16.mxu0 0
      %579 = vmatpush1.bf16.msra.mxu0 0
      %580 = vmatprep.subr.bf16.mxu0 0
      %581 = vmatpush1.bf16.msra.mxu0 0
      %582 = vmatprep.subr.bf16.mxu0 0
      %583 = vmatpush1.bf16.msra.mxu0 0
      %584 = vmatprep.subr.bf16.mxu0 0
      %585 = vmatpush1.bf16.msra.mxu0 0
      %586 = vmatprep.subr.bf16.mxu0 0
      %587 = vmatpush1.bf16.msra.mxu0 0
      %588 = vmatprep.subr.bf16.mxu0 0
      %589 = vmatpush1.bf16.msra.mxu0 0
      %590 = vmatprep.subr.bf16.mxu0 0
      %591 = vmatpush1.bf16.msra.mxu0 0
      %592 = vmatprep.subr.bf16.mxu0 0
      %593 = vmatpush1.bf16.msra.mxu0 0
      %594 = vmatprep.subr.bf16.mxu0 0
      %595 = vmatpush1.bf16.msra.mxu0 0
      %596 = vmatprep.subr.bf16.mxu0 0
      %597 = vmatpush1.bf16.msra.mxu0 0
      %598 = vmatprep.subr.bf16.mxu0 0
      %599 = vmatpush1.bf16.msra.mxu0 0
      %600 = vmatprep.subr.bf16.mxu0 0
      %601 = vmatpush1.bf16.msra.mxu0 0
      %602 = vmatprep.subr.bf16.mxu0 0
      %603 = vmatpush1.bf16.msra.mxu0 0
      %604 = vmatprep.mubr.bf16.mxu0 0
      %605 = vmatmul.mubr.bf16.gmra.mrb[0].mxu0 %v567
      %v606 = vpop.f32.mrb[0].mxu0
      %v607 = vadd.f32 0.0, %v606
      %v608 = vpop.f32.mrb[0].mxu0
      %v609 = vpop.f32.mrb[0].mxu0
      %v610 = vadd.f32 0.0, %v609
      %v611 = vpop.f32.mrb[0].mxu0
      %612 = vmatprep.mubr.bf16.mxu0 0
      %613 = vmatmul.mubr.bf16.gmra.mrb[0].mxu0 %v570
      %v614 = vpop.f32.mrb[0].mxu0
      %v615 = vadd.f32 0.0, %v614
      %v616 = vpop.f32.mrb[0].mxu0
      %v617 = vpop.f32.mrb[0].mxu0
      %v618 = vpop.f32.mrb[0].mxu0
      %619 = vdwg.mxu0
      %v620 = vadd.f32 %v546, %v607
      %v621 = vadd.f32 %v547, %v610
      %v622 = vadd.f32 %v548, %v615
      %s623 = scalar_lea.vmem %s4, 32
      %v624 = vld [vmem:[%s623] sm:$0xf]
      %v625 = vld [vmem:[%s623 + $0x4] sm:$0xf]
      %v629 = vunpack.c.l.b16 %v324
      %v630 = vunpack.c.l.b16 %v325
      %v631 = vunpack.c.l.b16 %v326
      %v632 = vpack.c.b16 %v630, %v629
      %v633 = vpack.c.b16 %v631, %v631
      %v636 = vunpack.c.l.b16 %v624
      %v637 = vunpack.c.l.b16 %v625
      %v638 = vpack.c.b16 %v637, %v636
      %v641 = vsel %vm346, %v632, 0
      %v644 = vsel %vm346, %v633, 0
      %646 = vmatprep.subr.bf16.mxu0 0
      %647 = vmatpush1.bf16.msra.mxu0 %v638
      %648 = vmatprep.subr.bf16.mxu0 0
      %649 = vmatpush1.bf16.msra.mxu0 0
      %650 = vmatprep.subr.bf16.mxu0 0
      %651 = vmatpush1.bf16.msra.mxu0 0
      %652 = vmatprep.subr.bf16.mxu0 0
      %653 = vmatpush1.bf16.msra.mxu0 0
      %654 = vmatprep.subr.bf16.mxu0 0
      %655 = vmatpush1.bf16.msra.mxu0 0
      %656 = vmatprep.subr.bf16.mxu0 0
      %657 = vmatpush1.bf16.msra.mxu0 0
      %658 = vmatprep.subr.bf16.mxu0 0
      %659 = vmatpush1.bf16.msra.mxu0 0
      %660 = vmatprep.subr.bf16.mxu0 0
      %661 = vmatpush1.bf16.msra.mxu0 0
      %662 = vmatprep.subr.bf16.mxu0 0
      %663 = vmatpush1.bf16.msra.mxu0 0
      %664 = vmatprep.subr.bf16.mxu0 0
      %665 = vmatpush1.bf16.msra.mxu0 0
      %666 = vmatprep.subr.bf16.mxu0 0
      %667 = vmatpush1.bf16.msra.mxu0 0
      %668 = vmatprep.subr.bf16.mxu0 0
      %669 = vmatpush1.bf16.msra.mxu0 0
      %670 = vmatprep.subr.bf16.mxu0 0
      %671 = vmatpush1.bf16.msra.mxu0 0
      %672 = vmatprep.subr.bf16.mxu0 0
      %673 = vmatpush1.bf16.msra.mxu0 0
      %674 = vmatprep.subr.bf16.mxu0 0
      %675 = vmatpush1.bf16.msra.mxu0 0
      %676 = vmatprep.subr.bf16.mxu0 0
      %677 = vmatpush1.bf16.msra.mxu0 0
      %678 = vmatprep.mubr.bf16.mxu0 0
      %679 = vmatmul.mubr.bf16.gmra.mrb[0].mxu0 %v641
      %v680 = vpop.f32.mrb[0].mxu0
      %v681 = vadd.f32 0.0, %v680
      %v682 = vpop.f32.mrb[0].mxu0
      %v683 = vpop.f32.mrb[0].mxu0
      %v684 = vadd.f32 0.0, %v683
      %v685 = vpop.f32.mrb[0].mxu0
      %686 = vmatprep.mubr.bf16.mxu0 0
      %687 = vmatmul.mubr.bf16.gmra.mrb[0].mxu0 %v644
      %v688 = vpop.f32.mrb[0].mxu0
      %v689 = vadd.f32 0.0, %v688
      %v690 = vpop.f32.mrb[0].mxu0
      %v691 = vpop.f32.mrb[0].mxu0
      %v692 = vpop.f32.mrb[0].mxu0
      %693 = vdwg.mxu0
      %v694 = vadd.f32 %v620, %v681
      %v695 = vadd.f32 %v621, %v684
      %v696 = vadd.f32 %v622, %v689
      %s697 = scalar_lea.vmem %s4, 40
      %v698 = vld [vmem:[%s697] sm:$0xf]
      %v699 = vld [vmem:[%s697 + $0x4] sm:$0xf]
      %v700 = vshrl.u32 %v558, 16
      %v702 = vshll.u32 %v558, 16
      %v704 = vrot.slane %v702, 1
      %v705 = vor.u32 %v700, %v704
      %v706 = vshll.u32 %v559, 16
      %v708 = vrot.slane %v706, 1
      %v709 = vsel %vm472, %v705, %v708
      %v710 = vshrl.u32 %v559, 16
      %v712 = vor.u32 %v710, %v708
      %v715 = vunpack.c.l.b16 %v698
      %v716 = vunpack.c.l.b16 %v699
      %v717 = vpack.c.b16 %v716, %v715
      %v720 = vsel %vm346, %v709, 0
      %v723 = vsel %vm346, %v712, 0
      %725 = vmatprep.subr.bf16.mxu0 0
      %726 = vmatpush1.bf16.msra.mxu0 %v717
      %727 = vmatprep.subr.bf16.mxu0 0
      %728 = vmatpush1.bf16.msra.mxu0 0
      %729 = vmatprep.subr.bf16.mxu0 0
      %730 = vmatpush1.bf16.msra.mxu0 0
      %731 = vmatprep.subr.bf16.mxu0 0
      %732 = vmatpush1.bf16.msra.mxu0 0
      %733 = vmatprep.subr.bf16.mxu0 0
      %734 = vmatpush1.bf16.msra.mxu0 0
      %735 = vmatprep.subr.bf16.mxu0 0
      %736 = vmatpush1.bf16.msra.mxu0 0
      %737 = vmatprep.subr.bf16.mxu0 0
      %738 = vmatpush1.bf16.msra.mxu0 0
      %739 = vmatprep.subr.bf16.mxu0 0
      %740 = vmatpush1.bf16.msra.mxu0 0
      %741 = vmatprep.subr.bf16.mxu0 0
      %742 = vmatpush1.bf16.msra.mxu0 0
      %743 = vmatprep.subr.bf16.mxu0 0
      %744 = vmatpush1.bf16.msra.mxu0 0
      %745 = vmatprep.subr.bf16.mxu0 0
      %746 = vmatpush1.bf16.msra.mxu0 0
      %747 = vmatprep.subr.bf16.mxu0 0
      %748 = vmatpush1.bf16.msra.mxu0 0
      %749 = vmatprep.subr.bf16.mxu0 0
      %750 = vmatpush1.bf16.msra.mxu0 0
      %751 = vmatprep.subr.bf16.mxu0 0
      %752 = vmatpush1.bf16.msra.mxu0 0
      %753 = vmatprep.subr.bf16.mxu0 0
      %754 = vmatpush1.bf16.msra.mxu0 0
      %755 = vmatprep.subr.bf16.mxu0 0
      %756 = vmatpush1.bf16.msra.mxu0 0
      %757 = vmatprep.mubr.bf16.mxu0 0
      %758 = vmatmul.mubr.bf16.gmra.mrb[0].mxu0 %v720
      %v759 = vpop.f32.mrb[0].mxu0
      %v760 = vadd.f32 0.0, %v759
      %v761 = vpop.f32.mrb[0].mxu0
      %v762 = vpop.f32.mrb[0].mxu0
      %v763 = vadd.f32 0.0, %v762
      %v764 = vpop.f32.mrb[0].mxu0
      %765 = vmatprep.mubr.bf16.mxu0 0
      %766 = vmatmul.mubr.bf16.gmra.mrb[0].mxu0 %v723
      %v767 = vpop.f32.mrb[0].mxu0
      %v768 = vadd.f32 0.0, %v767
      %v769 = vpop.f32.mrb[0].mxu0
      %v770 = vpop.f32.mrb[0].mxu0
      %v771 = vpop.f32.mrb[0].mxu0
      %772 = vdwg.mxu0
      %v773 = vadd.f32 %v694, %v760
      %v774 = vadd.f32 %v695, %v763
      %v775 = vadd.f32 %v696, %v768
      %s776 = scalar_lea.vmem %s4, 48
      %v777 = vld [vmem:[%s776] sm:$0xf]
      %v778 = vld [vmem:[%s776 + $0x4] sm:$0xf]
      %v780 = vunpack.c.l.b16 %v316
      %v781 = vpack.c.b16 %v780, %v406
      %vm782 = vsmask.f32 5376
      %v783 = vrot.slane %v473, 2
      %v784 = vrot.slane %v475, 3
      %v785 = vor.u32 %v783, %v784
      %v787 = vshrl.u32 %v781, 16
      %v789 = vrot.slane %v787, 2
      %v790 = vshll.u32 %v781, 16
      %v792 = vrot.slane %v790, 3
      %v793 = vor.u32 %v789, %v792
      %v794 = vsel %vm782, %v785, %v793
      %v797 = vunpack.c.l.b16 %v777
      %v798 = vunpack.c.l.b16 %v778
      %v799 = vpack.c.b16 %v798, %v797
      %v802 = vsel %vm346, %v794, 0
      %v805 = vsel %vm346, %v793, 0
      %807 = vmatprep.subr.bf16.mxu0 0
      %808 = vmatpush1.bf16.msra.mxu0 %v799
      %809 = vmatprep.subr.bf16.mxu0 0
      %810 = vmatpush1.bf16.msra.mxu0 0
      %811 = vmatprep.subr.bf16.mxu0 0
      %812 = vmatpush1.bf16.msra.mxu0 0
      %813 = vmatprep.subr.bf16.mxu0 0
      %814 = vmatpush1.bf16.msra.mxu0 0
      %815 = vmatprep.subr.bf16.mxu0 0
      %816 = vmatpush1.bf16.msra.mxu0 0
      %817 = vmatprep.subr.bf16.mxu0 0
      %818 = vmatpush1.bf16.msra.mxu0 0
      %819 = vmatprep.subr.bf16.mxu0 0
      %820 = vmatpush1.bf16.msra.mxu0 0
      %821 = vmatprep.subr.bf16.mxu0 0
      %822 = vmatpush1.bf16.msra.mxu0 0
      %823 = vmatprep.subr.bf16.mxu0 0
      %824 = vmatpush1.bf16.msra.mxu0 0
      %825 = vmatprep.subr.bf16.mxu0 0
      %826 = vmatpush1.bf16.msra.mxu0 0
      %827 = vmatprep.subr.bf16.mxu0 0
      %828 = vmatpush1.bf16.msra.mxu0 0
      %829 = vmatprep.subr.bf16.mxu0 0
      %830 = vmatpush1.bf16.msra.mxu0 0
      %831 = vmatprep.subr.bf16.mxu0 0
      %832 = vmatpush1.bf16.msra.mxu0 0
      %833 = vmatprep.subr.bf16.mxu0 0
      %834 = vmatpush1.bf16.msra.mxu0 0
      %835 = vmatprep.subr.bf16.mxu0 0
      %836 = vmatpush1.bf16.msra.mxu0 0
      %837 = vmatprep.subr.bf16.mxu0 0
      %838 = vmatpush1.bf16.msra.mxu0 0
      %839 = vmatprep.mubr.bf16.mxu0 0
      %840 = vmatmul.mubr.bf16.gmra.mrb[0].mxu0 %v802
      %v841 = vpop.f32.mrb[0].mxu0
      %v842 = vadd.f32 0.0, %v841
      %v843 = vpop.f32.mrb[0].mxu0
      %v844 = vpop.f32.mrb[0].mxu0
      %v845 = vadd.f32 0.0, %v844
      %v846 = vpop.f32.mrb[0].mxu0
      %847 = vmatprep.mubr.bf16.mxu0 0
      %848 = vmatmul.mubr.bf16.gmra.mrb[0].mxu0 %v805
      %v849 = vpop.f32.mrb[0].mxu0
      %v850 = vadd.f32 0.0, %v849
      %v851 = vpop.f32.mrb[0].mxu0
      %v852 = vpop.f32.mrb[0].mxu0
      %v853 = vpop.f32.mrb[0].mxu0
      %854 = vdwg.mxu0
      %v855 = vadd.f32 %v773, %v842
      %v856 = vadd.f32 %v774, %v845
      %v857 = vadd.f32 %v775, %v850
      %s858 = scalar_lea.vmem %s4, 56
      %v859 = vld [vmem:[%s858] sm:$0xf]
      %v860 = vld [vmem:[%s858 + $0x4] sm:$0xf]
      %v862 = vunpack.c.l.b16 %v320
      %v863 = vpack.c.b16 %v862, %v337
      %v864 = vshrl.u32 %v338, 16
      %v866 = vrot.slane %v864, 2
      %v867 = vshll.u32 %v338, 16
      %v869 = vrot.slane %v867, 3
      %v870 = vor.u32 %v866, %v869
      %v872 = vshrl.u32 %v863, 16
      %v874 = vrot.slane %v872, 2
      %v875 = vshll.u32 %v863, 16
      %v877 = vrot.slane %v875, 3
      %v878 = vor.u32 %v874, %v877
      %v879 = vsel %vm782, %v870, %v878
      %v882 = vunpack.c.l.b16 %v859
      %v883 = vunpack.c.l.b16 %v860
      %v884 = vpack.c.b16 %v883, %v882
      %v887 = vsel %vm346, %v879, 0
      %v890 = vsel %vm346, %v878, 0
      %892 = vmatprep.subr.bf16.mxu0 0
      %893 = vmatpush1.bf16.msra.mxu0 %v884
      %894 = vmatprep.subr.bf16.mxu0 0
      %895 = vmatpush1.bf16.msra.mxu0 0
      %896 = vmatprep.subr.bf16.mxu0 0
      %897 = vmatpush1.bf16.msra.mxu0 0
      %898 = vmatprep.subr.bf16.mxu0 0
      %899 = vmatpush1.bf16.msra.mxu0 0
      %900 = vmatprep.subr.bf16.mxu0 0
      %901 = vmatpush1.bf16.msra.mxu0 0
      %902 = vmatprep.subr.bf16.mxu0 0
      %903 = vmatpush1.bf16.msra.mxu0 0
      %904 = vmatprep.subr.bf16.mxu0 0
      %905 = vmatpush1.bf16.msra.mxu0 0
      %906 = vmatprep.subr.bf16.mxu0 0
      %907 = vmatpush1.bf16.msra.mxu0 0
      %908 = vmatprep.subr.bf16.mxu0 0
      %909 = vmatpush1.bf16.msra.mxu0 0
      %910 = vmatprep.subr.bf16.mxu0 0
      %911 = vmatpush1.bf16.msra.mxu0 0
      %912 = vmatprep.subr.bf16.mxu0 0
      %913 = vmatpush1.bf16.msra.mxu0 0
      %914 = vmatprep.subr.bf16.mxu0 0
      %915 = vmatpush1.bf16.msra.mxu0 0
      %916 = vmatprep.subr.bf16.mxu0 0
      %917 = vmatpush1.bf16.msra.mxu0 0
      %918 = vmatprep.subr.bf16.mxu0 0
      %919 = vmatpush1.bf16.msra.mxu0 0
      %920 = vmatprep.subr.bf16.mxu0 0
      %921 = vmatpush1.bf16.msra.mxu0 0
      %922 = vmatprep.subr.bf16.mxu0 0
      %923 = vmatpush1.bf16.msra.mxu0 0
      %924 = vmatprep.mubr.bf16.mxu0 0
      %925 = vmatmul.mubr.bf16.gmra.mrb[0].mxu0 %v887
      %v926 = vpop.f32.mrb[0].mxu0
      %v927 = vadd.f32 0.0, %v926
      %v928 = vpop.f32.mrb[0].mxu0
      %v929 = vpop.f32.mrb[0].mxu0
      %v930 = vadd.f32 0.0, %v929
      %v931 = vpop.f32.mrb[0].mxu0
      %932 = vmatprep.mubr.bf16.mxu0 0
      %933 = vmatmul.mubr.bf16.gmra.mrb[0].mxu0 %v890
      %v934 = vpop.f32.mrb[0].mxu0
      %v935 = vadd.f32 0.0, %v934
      %v936 = vpop.f32.mrb[0].mxu0
      %v937 = vpop.f32.mrb[0].mxu0
      %v938 = vpop.f32.mrb[0].mxu0
      %939 = vdwg.mxu0
      %v940 = vadd.f32 %v855, %v927
      %v941 = vadd.f32 %v856, %v930
      %v942 = vadd.f32 %v857, %v935
      %s943 = scalar_lea.vmem %s4, 64
      %v944 = vld [vmem:[%s943] sm:$0xf]
      %v945 = vld [vmem:[%s943 + $0x4] sm:$0xf]
      %vm946 = vcmask 1044480
      %v947 = vrot.slane %v407, 3
      %v948 = vrot.slane %v781, 3
      %v949 = vsel %vm946, %v947, %v948
      %v952 = vunpack.c.l.b16 %v944
      %v953 = vunpack.c.l.b16 %v945
      %v954 = vpack.c.b16 %v953, %v952
      %v957 = vsel %vm346, %v949, 0
      %v960 = vsel %vm346, %v948, 0
      %962 = vmatprep.subr.bf16.mxu0 0
      %963 = vmatpush1.bf16.msra.mxu0 %v954
      %964 = vmatprep.subr.bf16.mxu0 0
      %965 = vmatpush1.bf16.msra.mxu0 0
      %966 = vmatprep.subr.bf16.mxu0 0
      %967 = vmatpush1.bf16.msra.mxu0 0
      %968 = vmatprep.subr.bf16.mxu0 0
      %969 = vmatpush1.bf16.msra.mxu0 0
      %970 = vmatprep.subr.bf16.mxu0 0
      %971 = vmatpush1.bf16.msra.mxu0 0
      %972 = vmatprep.subr.bf16.mxu0 0
      %973 = vmatpush1.bf16.msra.mxu0 0
      %974 = vmatprep.subr.bf16.mxu0 0
      %975 = vmatpush1.bf16.msra.mxu0 0
      %976 = vmatprep.subr.bf16.mxu0 0
      %977 = vmatpush1.bf16.msra.mxu0 0
      %978 = vmatprep.subr.bf16.mxu0 0
      %979 = vmatpush1.bf16.msra.mxu0 0
      %980 = vmatprep.subr.bf16.mxu0 0
      %981 = vmatpush1.bf16.msra.mxu0 0
      %982 = vmatprep.subr.bf16.mxu0 0
      %983 = vmatpush1.bf16.msra.mxu0 0
      %984 = vmatprep.subr.bf16.mxu0 0
      %985 = vmatpush1.bf16.msra.mxu0 0
      %986 = vmatprep.subr.bf16.mxu0 0
      %987 = vmatpush1.bf16.msra.mxu0 0
      %988 = vmatprep.subr.bf16.mxu0 0
      %989 = vmatpush1.bf16.msra.mxu0 0
      %990 = vmatprep.subr.bf16.mxu0 0
      %991 = vmatpush1.bf16.msra.mxu0 0
      %992 = vmatprep.subr.bf16.mxu0 0
      %993 = vmatpush1.bf16.msra.mxu0 0
      %994 = vmatprep.mubr.bf16.mxu0 0
      %995 = vmatmul.mubr.bf16.gmra.mrb[0].mxu0 %v957
      %v996 = vpop.f32.mrb[0].mxu0
      %v997 = vadd.f32 0.0, %v996
      %v998 = vpop.f32.mrb[0].mxu0
      %v999 = vpop.f32.mrb[0].mxu0
      %v1000 = vadd.f32 0.0, %v999
      %v1001 = vpop.f32.mrb[0].mxu0
      %1002 = vmatprep.mubr.bf16.mxu0 0
      %1003 = vmatmul.mubr.bf16.gmra.mrb[0].mxu0 %v960
      %v1004 = vpop.f32.mrb[0].mxu0
      %v1005 = vadd.f32 0.0, %v1004
      %v1006 = vpop.f32.mrb[0].mxu0
      %v1007 = vpop.f32.mrb[0].mxu0
      %v1008 = vpop.f32.mrb[0].mxu0
      %1009 = vdwg.mxu0
      %v1010 = vadd.f32 %v940, %v997
      %v1011 = vadd.f32 %v941, %v1000
      %v1012 = vadd.f32 %v942, %v1005
      %v1013 = vld [vmem:[%s5] sm:$0x1]
      %v1015 = vlaneseq
      %v1016 = vshrl.u32 %v1015, 7
      %v1017 = vsub.s32 0, %v1016
      %v1018 = vrot.slane %v1013, %v1017
      %v1020 = vadd.f32 %v1010, %v1018
      %v1021 = vadd.f32 %v1011, %v1018
      %v1022 = vadd.f32 %v1012, %v1018
      %v1023 = vmax.f32 %v1020, 0.0
      %v1024 = vmax.f32 %v1021, 0.0
      %v1025 = vmax.f32 %v1022, 0.0
      %v1026 = vpack.c.bf16 %v1024, %v1023
      %v1027 = vpack.c.bf16 %v1025, %v1025
      %v1030 = vunpack.c.l.b16 %v1026
      %v1031 = vunpack.c.h.b16 %v1026
      %v1032 = vunpack.c.l.b16 %v1027
      %v1033 = vpack.c.b16 %v1030, %v1030
      %v1034 = vpack.c.b16 %v1031, %v1031
      %v1035 = vpack.c.b16 %v1032, %v1032
      %vm1039 = vcmask 257024
      %1040 = vst.msk [vmem:[%s311] sm:$0xf] %vm1039, %v1033
      %1041 = vst.msk [vmem:[%s311 + $0x4] sm:$0xf] %vm1039, %v1034
      %vm1042 = vcmask 254976
      %1043 = vst.msk [vmem:[%s311 + $0x8] sm:$0x3] %vm1042, %v1035
      %p1044 = scmp.lt.s32.totalorder %s17, 1
      %s1045 = scalar_select %p1044, %s17, 1
      %s1046 = smul.addr %s1045, 3
      %s1047 = smul.addr %s1046, 4
      %s1048 = scalar_lea.vmem %s6, %s1047
      // Predicated region
      $region45: #{pspnet_forward.10} parent=43 // pred_check
        %p1049 = pneg %p181
      $region46: #{pspnet_forward.10} parent=43 // pred_check_branch
        %1051 = sbr.rel (%p1049) target = $region48
      $region47: #{pspnet_forward.10} parent=43 // pred_region
        _
      $region48: #{pspnet_forward.10} parent=43 // pred_fallthru
        _
    $region44: #{pspnet_forward.10} parent=5 // pred_fallthru
      _
    %p1052 = scmp.le.s32.totalorder 2, %s12
    // Predicated region
    $region49: #{pspnet_forward.10} parent=5 // pred_check
      %p1053 = pneg %p1052
    $region50: #{pspnet_forward.10} parent=5 // pred_check_branch
      %1055 = sbr.rel (%p1053) target = $region52
    $region51: #{pspnet_forward.10} parent=5 // pred_region
      %s1056 = ssub.s32 %s12, 2
      // Predicated region
      $region53: #{pspnet_forward.10} parent=51 // pred_check
        %p1057 = pneg %p187
      $region54: #{pspnet_forward.10} parent=51 // pred_check_branch
        %1059 = sbr.rel (%p1057) target = $region56
      $region55: #{pspnet_forward.10} parent=51 // pred_region
        %p1060 = scmp.lt.s32.totalorder %s18, 1
        %s1061 = scalar_select %p1060, %s18, 1
        %s1062 = smul.addr %s1061, 3
        %s1063 = smul.addr %s1062, 4
        %s1064 = scalar_lea.vmem %s6, %s1063
      $region56: #{pspnet_forward.10} parent=51 // pred_fallthru
        _
    $region52: #{pspnet_forward.10} parent=5 // pred_fallthru
      _
  $region6: #{pspnet_forward.10} parent=0 // loop_footer
    %s16 = sadd.s32 1, %s12
  $region7: #{pspnet_forward.10} parent=0 // loop_footer_branch
    %11 = sbr.rel target = $region3
  $region8: #{pspnet_forward.10} parent=0 // loop_exit
    _

// kernel: pspnet_forward.9
$region0: #{pspnet_forward.9}
  #allocation0 [shape = 'u32[]', space=smem, size = 0x4, offset = 0x4, fixed_abs, tag = 'smem constant byte address 0x4 - core index']
  #allocation1 [shape = 'u32[144,128]{1,0:T(1,128)}', space=vmem, size = 0x12000, scoped, tag = 'internal scratch']
  %s0 = inlined_call_operand.vmem [shape: bf16[2,82,3], index: 0, kind: input, shape index: {}]
  %s1 = inlined_call_operand.vmem [shape: bf16[2,82,3], index: 1, kind: input, shape index: {}]
  %s2 = inlined_call_operand.vmem [shape: bf16[2,82,3], index: 2, kind: input, shape index: {}]
  %s3 = inlined_call_operand.vmem [shape: bf16[2,82,3], index: 3, kind: input, shape index: {}]
  %s4 = inlined_call_operand.vmem [shape: bf16[9,3,16], index: 4, kind: input, shape index: {}]
  %s5 = inlined_call_operand.vmem [shape: f32[1,16], index: 5, kind: input, shape index: {}]
  %s6 = inlined_call_operand.vmem [shape: bf16[2,72,16], index: 6, kind: output, shape index: {}]
  %s7 = sld [smem:[#allocation0]]
  $region57: #{pspnet_forward.9} parent=0
    _
  %s9 = ssub.s32 1, %s7
  %s10 = scalar_select 0, %s9, %s7
  loop: start=0, step=1, limit=4
  $region2: #{pspnet_forward.9} parent=0 // loop_pre_header
    _
  $region3: #{pspnet_forward.9} parent=0 // loop_header
    %s12 = sphi 0, %s16
    %p13 = scmp.ge.s32.totalorder %s12, 4
    %s22 = sphi 0, %s24
    %s25 = sphi 0, %s22
    %s26 = sphi 0, %s25
    %s42 = sphi 0, %s26
    %s48 = sphi 0, %s50
    %s51 = sphi 0, %s48
    %s52 = sphi 0, %s51
    %s68 = sphi 0, %s52
    %s74 = sphi 0, %s76
    %s77 = sphi 0, %s74
    %s78 = sphi 0, %s77
    %s94 = sphi 0, %s78
    %s100 = sphi 0, %s102
    %s103 = sphi 0, %s100
    %s104 = sphi 0, %s103
    %s120 = sphi 0, %s104
    %s124 = sphi 0, %s124
    %s126 = sphi 0, %s124
    %s127 = sphi 0, %s126
    %s141 = sphi 0, %s127
    %s145 = sphi 0, %s145
    %s147 = sphi 0, %s145
    %s148 = sphi 0, %s147
    %s162 = sphi 0, %s148
    %s168 = sphi 0, %s170
    %s171 = sphi 0, %s168
    %s172 = sphi 0, %s171
    %s188 = sphi 0, %s172
  $region4: #{pspnet_forward.9} parent=0 // loop_header_branch
    %15 = sbr.rel (%p13) target = $region8
  $region5: #{pspnet_forward.9} parent=0 // loop_body
    %s17 = ssub.s32 %s12, 1
    %s18 = ssub.s32 %s12, 2
    %s19 = sadd.s32 %s12, 1
    %s20 = ssub.s32 %s12, %s19
    %p21 = scmp.eq.s32.totalorder %s20, 0
    %s23 = sadd.s32 %s22, 1
    %s24 = scalar_select %p21, %s22, %s23
    %p27 = pneg %p21
    %p28 = scmp.eq.s32.totalorder %s12, 1
    %p29 = por %p27, %p28
    %p30 = scmp.ne.s32.totalorder %s22, %s25
    %p31 = scmp.eq.s32.totalorder %s12, 0
    %p32 = por %p30, %p31
    %p33 = scmp.ne.s32.totalorder %s22, %s25
    %p34 = scmp.eq.s32.totalorder %s17, 1
    %p35 = por %p33, %p34
    %p36 = scmp.ne.s32.totalorder %s25, %s26
    %p37 = scmp.eq.s32.totalorder %s17, 0
    %p38 = por %p36, %p37
    %p39 = scmp.ne.s32.totalorder %s25, %s26
    %p40 = scmp.eq.s32.totalorder %s18, 1
    %p41 = por %p39, %p40
    %p43 = scmp.ne.s32.totalorder %s26, %s42
    %p44 = scmp.eq.s32.totalorder %s18, 0
    %p45 = por %p43, %p44
    %s46 = ssub.s32 %s12, %s19
    %p47 = scmp.eq.s32.totalorder %s46, 0
    %s49 = sadd.s32 %s48, 1
    %s50 = scalar_select %p47, %s48, %s49
    %p53 = pneg %p47
    %p54 = scmp.eq.s32.totalorder %s12, 1
    %p55 = por %p53, %p54
    %p56 = scmp.ne.s32.totalorder %s48, %s51
    %p57 = scmp.eq.s32.totalorder %s12, 0
    %p58 = por %p56, %p57
    %p59 = scmp.ne.s32.totalorder %s48, %s51
    %p60 = scmp.eq.s32.totalorder %s17, 1
    %p61 = por %p59, %p60
    %p62 = scmp.ne.s32.totalorder %s51, %s52
    %p63 = scmp.eq.s32.totalorder %s17, 0
    %p64 = por %p62, %p63
    %p65 = scmp.ne.s32.totalorder %s51, %s52
    %p66 = scmp.eq.s32.totalorder %s18, 1
    %p67 = por %p65, %p66
    %p69 = scmp.ne.s32.totalorder %s52, %s68
    %p70 = scmp.eq.s32.totalorder %s18, 0
    %p71 = por %p69, %p70
    %s72 = ssub.s32 %s12, %s19
    %p73 = scmp.eq.s32.totalorder %s72, 0
    %s75 = sadd.s32 %s74, 1
    %s76 = scalar_select %p73, %s74, %s75
    %p79 = pneg %p73
    %p80 = scmp.eq.s32.totalorder %s12, 1
    %p81 = por %p79, %p80
    %p82 = scmp.ne.s32.totalorder %s74, %s77
    %p83 = scmp.eq.s32.totalorder %s12, 0
    %p84 = por %p82, %p83
    %p85 = scmp.ne.s32.totalorder %s74, %s77
    %p86 = scmp.eq.s32.totalorder %s17, 1
    %p87 = por %p85, %p86
    %p88 = scmp.ne.s32.totalorder %s77, %s78
    %p89 = scmp.eq.s32.totalorder %s17, 0
    %p90 = por %p88, %p89
    %p91 = scmp.ne.s32.totalorder %s77, %s78
    %p92 = scmp.eq.s32.totalorder %s18, 1
    %p93 = por %p91, %p92
    %p95 = scmp.ne.s32.totalorder %s78, %s94
    %p96 = scmp.eq.s32.totalorder %s18, 0
    %p97 = por %p95, %p96
    %s98 = ssub.s32 %s12, %s19
    %p99 = scmp.eq.s32.totalorder %s98, 0
    %s101 = sadd.s32 %s100, 1
    %s102 = scalar_select %p99, %s100, %s101
    %p105 = pneg %p99
    %p106 = scmp.eq.s32.totalorder %s12, 1
    %p107 = por %p105, %p106
    %p108 = scmp.ne.s32.totalorder %s100, %s103
    %p109 = scmp.eq.s32.totalorder %s12, 0
    %p110 = por %p108, %p109
    %p111 = scmp.ne.s32.totalorder %s100, %s103
    %p112 = scmp.eq.s32.totalorder %s17, 1
    %p113 = por %p111, %p112
    %p114 = scmp.ne.s32.totalorder %s103, %s104
    %p115 = scmp.eq.s32.totalorder %s17, 0
    %p116 = por %p114, %p115
    %p117 = scmp.ne.s32.totalorder %s103, %s104
    %p118 = scmp.eq.s32.totalorder %s18, 1
    %p119 = por %p117, %p118
    %p121 = scmp.ne.s32.totalorder %s104, %s120
    %p122 = scmp.eq.s32.totalorder %s18, 0
    %p123 = por %p121, %p122
    %s125 = sadd.s32 %s124, 1
    %p128 = scmp.eq.s32.totalorder %s12, 1
    %p129 = scmp.ne.s32.totalorder %s124, %s126
    %p130 = scmp.eq.s32.totalorder %s12, 0
    %p131 = por %p129, %p130
    %p132 = scmp.ne.s32.totalorder %s124, %s126
    %p133 = scmp.eq.s32.totalorder %s17, 1
    %p134 = por %p132, %p133
    %p135 = scmp.ne.s32.totalorder %s126, %s127
    %p136 = scmp.eq.s32.totalorder %s17, 0
    %p137 = por %p135, %p136
    %p138 = scmp.ne.s32.totalorder %s126, %s127
    %p139 = scmp.eq.s32.totalorder %s18, 1
    %p140 = por %p138, %p139
    %p142 = scmp.ne.s32.totalorder %s127, %s141
    %p143 = scmp.eq.s32.totalorder %s18, 0
    %p144 = por %p142, %p143
    %s146 = sadd.s32 %s145, 1
    %p149 = scmp.eq.s32.totalorder %s12, 1
    %p150 = scmp.ne.s32.totalorder %s145, %s147
    %p151 = scmp.eq.s32.totalorder %s12, 0
    %p152 = por %p150, %p151
    %p153 = scmp.ne.s32.totalorder %s145, %s147
    %p154 = scmp.eq.s32.totalorder %s17, 1
    %p155 = por %p153, %p154
    %p156 = scmp.ne.s32.totalorder %s147, %s148
    %p157 = scmp.eq.s32.totalorder %s17, 0
    %p158 = por %p156, %p157
    %p159 = scmp.ne.s32.totalorder %s147, %s148
    %p160 = scmp.eq.s32.totalorder %s18, 1
    %p161 = por %p159, %p160
    %p163 = scmp.ne.s32.totalorder %s148, %s162
    %p164 = scmp.eq.s32.totalorder %s18, 0
    %p165 = por %p163, %p164
    %s166 = ssub.s32 %s12, %s19
    %p167 = scmp.eq.s32.totalorder %s166, 0
    %s169 = sadd.s32 %s168, 1
    %s170 = scalar_select %p167, %s168, %s169
    %p173 = pneg %p167
    %p174 = scmp.eq.s32.totalorder %s12, 1
    %p175 = por %p173, %p174
    %p176 = scmp.ne.s32.totalorder %s168, %s171
    %p177 = scmp.eq.s32.totalorder %s12, 0
    %p178 = por %p176, %p177
    %p179 = scmp.ne.s32.totalorder %s168, %s171
    %p180 = scmp.eq.s32.totalorder %s17, 1
    %p181 = por %p179, %p180
    %p182 = scmp.ne.s32.totalorder %s171, %s172
    %p183 = scmp.eq.s32.totalorder %s17, 0
    %p184 = por %p182, %p183
    %p185 = scmp.ne.s32.totalorder %s171, %s172
    %p186 = scmp.eq.s32.totalorder %s18, 1
    %p187 = por %p185, %p186
    %p189 = scmp.ne.s32.totalorder %s172, %s188
    %p190 = scmp.eq.s32.totalorder %s18, 0
    %p191 = por %p189, %p190
    %p192 = scmp.le.s32.totalorder 1, %s12
    %p193 = scmp.lt.s32.totalorder %s12, 3
    %p194 = pnand %p192, %p193
    %p195 = pneg %p194
    // Predicated region
    $region9: #{pspnet_forward.9} parent=5 // pred_check
      _
    $region10: #{pspnet_forward.9} parent=5 // pred_check_branch
      %197 = sbr.rel (%p194) target = $region12
    $region11: #{pspnet_forward.9} parent=5 // pred_region
      %s198 = ssub.s32 %s12, 1
      // Predicated region
      $region13: #{pspnet_forward.9} parent=11 // pred_check
        %p199 = pneg %p137
      $region14: #{pspnet_forward.9} parent=11 // pred_check_branch
        %201 = sbr.rel (%p199) target = $region16
      $region15: #{pspnet_forward.9} parent=11 // pred_region
        _
      $region16: #{pspnet_forward.9} parent=11 // pred_fallthru
        _
      // Predicated region
      $region17: #{pspnet_forward.9} parent=11 // pred_check
        %p202 = pneg %p158
      $region18: #{pspnet_forward.9} parent=11 // pred_check_branch
        %204 = sbr.rel (%p202) target = $region20
      $region19: #{pspnet_forward.9} parent=11 // pred_region
        _
      $region20: #{pspnet_forward.9} parent=11 // pred_fallthru
        _
    $region12: #{pspnet_forward.9} parent=5 // pred_fallthru
      _
    %p205 = scmp.lt.s32.totalorder %s12, 2
    // Predicated region
    $region21: #{pspnet_forward.9} parent=5 // pred_check
      %p206 = pneg %p205
    $region22: #{pspnet_forward.9} parent=5 // pred_check_branch
      %208 = sbr.rel (%p206) target = $region24
    $region23: #{pspnet_forward.9} parent=5 // pred_region
      // Predicated region
      $region25: #{pspnet_forward.9} parent=23 // pred_check
        %p209 = pneg %p32
      $region26: #{pspnet_forward.9} parent=23 // pred_check_branch
        %211 = sbr.rel (%p209) target = $region28
      $region27: #{pspnet_forward.9} parent=23 // pred_region
        %p212 = scmp.lt.s32.totalorder %s12, 1
        %s213 = scalar_select %p212, %s12, 1
        %s214 = smul.addr %s213, 11
        %s215 = smul.addr %s214, 4
        %s216 = scalar_lea.vmem %s0, %s215
      $region28: #{pspnet_forward.9} parent=23 // pred_fallthru
        _
      // Predicated region
      $region29: #{pspnet_forward.9} parent=23 // pred_check
        %p217 = pneg %p58
      $region30: #{pspnet_forward.9} parent=23 // pred_check_branch
        %219 = sbr.rel (%p217) target = $region32
      $region31: #{pspnet_forward.9} parent=23 // pred_region
        %p220 = scmp.lt.s32.totalorder %s12, 1
        %s221 = scalar_select %p220, %s12, 1
        %s222 = smul.addr %s221, 11
        %s223 = smul.addr %s222, 4
        %s224 = scalar_lea.vmem %s1, %s223
      $region32: #{pspnet_forward.9} parent=23 // pred_fallthru
        _
      // Predicated region
      $region33: #{pspnet_forward.9} parent=23 // pred_check
        %p225 = pneg %p84
      $region34: #{pspnet_forward.9} parent=23 // pred_check_branch
        %227 = sbr.rel (%p225) target = $region36
      $region35: #{pspnet_forward.9} parent=23 // pred_region
        %p228 = scmp.lt.s32.totalorder %s12, 1
        %s229 = scalar_select %p228, %s12, 1
        %s230 = smul.addr %s229, 11
        %s231 = smul.addr %s230, 4
        %s232 = scalar_lea.vmem %s2, %s231
      $region36: #{pspnet_forward.9} parent=23 // pred_fallthru
        _
      // Predicated region
      $region37: #{pspnet_forward.9} parent=23 // pred_check
        %p233 = pneg %p110
      $region38: #{pspnet_forward.9} parent=23 // pred_check_branch
        %235 = sbr.rel (%p233) target = $region40
      $region39: #{pspnet_forward.9} parent=23 // pred_region
        %p236 = scmp.lt.s32.totalorder %s12, 1
        %s237 = scalar_select %p236, %s12, 1
        %s238 = smul.addr %s237, 11
        %s239 = smul.addr %s238, 4
        %s240 = scalar_lea.vmem %s3, %s239
      $region40: #{pspnet_forward.9} parent=23 // pred_fallthru
        _
    $region24: #{pspnet_forward.9} parent=5 // pred_fallthru
      _
    %p241 = scmp.le.s32.totalorder 1, %s12
    %p242 = scmp.lt.s32.totalorder %s12, 3
    %p243 = pnand %p241, %p242
    %p244 = pneg %p243
    // Predicated region
    $region41: #{pspnet_forward.9} parent=5 // pred_check
      _
    $region42: #{pspnet_forward.9} parent=5 // pred_check_branch
      %246 = sbr.rel (%p243) target = $region44
    $region43: #{pspnet_forward.9} parent=5 // pred_region
      %s247 = ssub.s32 %s12, 1
      %p248 = scmp.lt.s32.totalorder %s17, 1
      %s249 = scalar_select %p248, %s17, 1
      %s250 = smul.addr %s249, 11
      %s251 = smul.addr %s250, 4
      %s252 = scalar_lea.vmem %s0, %s251
      %p253 = pneg %p38
      %p254 = pneg %p35
      %p255 = scmp.lt.s32.totalorder %s17, 1
      %s256 = scalar_select %p255, %s17, 1
      %s257 = smul.addr %s256, 11
      %s258 = smul.addr %s257, 4
      %s259 = scalar_lea.vmem %s1, %s258
      %p260 = pneg %p64
      %p261 = pneg %p61
      %p262 = scmp.lt.s32.totalorder %s17, 1
      %s263 = scalar_select %p262, %s17, 1
      %s264 = smul.addr %s263, 11
      %s265 = smul.addr %s264, 4
      %s266 = scalar_lea.vmem %s2, %s265
      %p267 = pneg %p90
      %p268 = pneg %p87
      %p269 = scmp.lt.s32.totalorder %s17, 1
      %s270 = scalar_select %p269, %s17, 1
      %s271 = smul.addr %s270, 11
      %s272 = smul.addr %s271, 4
      %s273 = scalar_lea.vmem %s3, %s272
      %p274 = pneg %p116
      %p275 = pneg %p113
      %p276 = pneg %p137
      %p277 = pneg %p134
      %p278 = pneg %p158
      %p279 = pneg %p155
      %p280 = pneg %p184
      %p281 = pneg %p181
      %p282 = scmp.lt.s32.totalorder %s17, 1
      %s283 = scalar_select %p282, %s17, 1
      %s284 = smul.addr %s283, 9
      %s285 = smul.addr %s284, 4
      %s286 = scalar_lea.vmem %s6, %s285
      %p287 = scmp.lt.s32.totalorder %s17, 1
      %s288 = scalar_select %p287, %s17, 1
      %s289 = smul.addr %s288, 11
      %s290 = smul.addr %s289, 4
      %s291 = scalar_lea.vmem %s0, %s290
      %p292 = scmp.lt.s32.totalorder %s17, 1
      %s293 = scalar_select %p292, %s17, 1
      %s294 = smul.addr %s293, 11
      %s295 = smul.addr %s294, 4
      %s296 = scalar_lea.vmem %s1, %s295
      %p297 = scmp.lt.s32.totalorder %s17, 1
      %s298 = scalar_select %p297, %s17, 1
      %s299 = smul.addr %s298, 11
      %s300 = smul.addr %s299, 4
      %s301 = scalar_lea.vmem %s2, %s300
      %p302 = scmp.lt.s32.totalorder %s17, 1
      %s303 = scalar_select %p302, %s17, 1
      %s304 = smul.addr %s303, 11
      %s305 = smul.addr %s304, 4
      %s306 = scalar_lea.vmem %s3, %s305
      %p307 = scmp.lt.s32.totalorder %s17, 1
      %s308 = scalar_select %p307, %s17, 1
      %s309 = smul.addr %s308, 9
      %s310 = smul.addr %s309, 4
      %s311 = scalar_lea.vmem %s6, %s310
      %v313 = vld [vmem:[%s291] sm:$0xf]
      %v314 = vld [vmem:[%s291 + $0x4] sm:$0xf]
      %v315 = vld [vmem:[%s291 + $0x8] sm:$0xf]
      %v316 = vld [vmem:[%s291 + $0xc] sm:$0xf]
      %v317 = vld [vmem:[%s291 + $0x10] sm:$0xf]
      %v318 = vld [vmem:[%s291 + $0x14] sm:$0xf]
      %v319 = vld [vmem:[%s291 + $0x18] sm:$0xf]
      %v320 = vld [vmem:[%s291 + $0x1c] sm:$0xf]
      %v321 = vld [vmem:[%s291 + $0x20] sm:$0xf]
      %v322 = vld [vmem:[%s291 + $0x24] sm:$0xf]
      %v323 = vld [vmem:[%s291 + $0x28] sm:$0x1]
      %v324 = vld [vmem:[%s296] sm:$0xf]
      %v325 = vld [vmem:[%s296 + $0x4] sm:$0xf]
      %v326 = vld [vmem:[%s296 + $0x8] sm:$0xf]
      %v327 = vld [vmem:[%s296 + $0xc] sm:$0xf]
      %v328 = vld [vmem:[%s296 + $0x10] sm:$0xf]
      %v329 = vld [vmem:[%s296 + $0x14] sm:$0xf]
      %v330 = vld [vmem:[%s296 + $0x18] sm:$0xf]
      %v331 = vld [vmem:[%s296 + $0x1c] sm:$0xf]
      %v332 = vld [vmem:[%s296 + $0x20] sm:$0xf]
      %v333 = vld [vmem:[%s296 + $0x24] sm:$0xf]
      %v334 = vld [vmem:[%s296 + $0x28] sm:$0x1]
      %v335 = vld [vmem:[%s301] sm:$0xf]
      %v336 = vld [vmem:[%s301 + $0x4] sm:$0xf]
      %v337 = vld [vmem:[%s301 + $0x8] sm:$0xf]
      %v338 = vld [vmem:[%s301 + $0xc] sm:$0xf]
      %v339 = vld [vmem:[%s301 + $0x10] sm:$0xf]
      %v340 = vld [vmem:[%s301 + $0x14] sm:$0xf]
      %v341 = vld [vmem:[%s301 + $0x18] sm:$0xf]
      %v342 = vld [vmem:[%s301 + $0x1c] sm:$0xf]
      %v343 = vld [vmem:[%s301 + $0x20] sm:$0xf]
      %v344 = vld [vmem:[%s301 + $0x24] sm:$0xf]
      %v345 = vld [vmem:[%s306] sm:$0xf]
      %v346 = vld [vmem:[%s306 + $0x4] sm:$0xf]
      %v347 = vld [vmem:[%s306 + $0x8] sm:$0xf]
      %v348 = vld [vmem:[%s306 + $0xc] sm:$0xf]
      %v349 = vld [vmem:[%s306 + $0x10] sm:$0xf]
      %v350 = vld [vmem:[%s306 + $0x14] sm:$0xf]
      %v351 = vld [vmem:[%s306 + $0x18] sm:$0xf]
      %v352 = vld [vmem:[%s306 + $0x1c] sm:$0xf]
      %v353 = vld [vmem:[%s306 + $0x20] sm:$0xf]
      %v354 = vld [vmem:[%s4] sm:$0x3]
      %s355 = scalar_lea.vmem %s4, 2
      %v356 = vld [vmem:[%s355] sm:$0x3]
      %v366 = vunpack.c.l.b16 %v324
      %v367 = vunpack.c.l.b16 %v325
      %v368 = vunpack.c.l.b16 %v326
      %v369 = vunpack.c.l.b16 %v327
      %v370 = vunpack.c.l.b16 %v328
      %v371 = vunpack.c.l.b16 %v329
      %v372 = vunpack.c.l.b16 %v330
      %v373 = vunpack.c.l.b16 %v331
      %v374 = vunpack.c.l.b16 %v332
      %v375 = vpack.c.b16 %v367, %v366
      %v376 = vpack.c.b16 %v369, %v368
      %v377 = vpack.c.b16 %v371, %v370
      %v378 = vpack.c.b16 %v373, %v372
      %v379 = vpack.c.b16 %v374, %v374
      %vm380 = vcmask 23552
      %v382 = vsel %vm380, %v375, 0
      %v385 = vsel %vm380, %v376, 0
      %v388 = vsel %vm380, %v377, 0
      %v391 = vsel %vm380, %v378, 0
      %v394 = vsel %vm380, %v379, 0
      %vm396 = vcmask 1040384
      %vm397 = vcmask 1041408
      %v398 = vsel %vm396, 4294967295, 65535
      %v399 = vsel %vm397, %v398, 0
      %v401 = vand.u32 %v356, %v399
      %403 = vmatprep.subr.bf16.mxu0 0
      %404 = vmatpush1.bf16.msra.mxu0 %v401
      %405 = vmatprep.subr.bf16.mxu0 0
      %406 = vmatpush1.bf16.msra.mxu0 0
      %407 = vmatprep.subr.bf16.mxu0 0
      %408 = vmatpush1.bf16.msra.mxu0 0
      %409 = vmatprep.subr.bf16.mxu0 0
      %410 = vmatpush1.bf16.msra.mxu0 0
      %411 = vmatprep.subr.bf16.mxu0 0
      %412 = vmatpush1.bf16.msra.mxu0 0
      %413 = vmatprep.subr.bf16.mxu0 0
      %414 = vmatpush1.bf16.msra.mxu0 0
      %415 = vmatprep.subr.bf16.mxu0 0
      %416 = vmatpush1.bf16.msra.mxu0 0
      %417 = vmatprep.subr.bf16.mxu0 0
      %418 = vmatpush1.bf16.msra.mxu0 0
      %419 = vmatprep.subr.bf16.mxu0 0
      %420 = vmatpush1.bf16.msra.mxu0 0
      %421 = vmatprep.subr.bf16.mxu0 0
      %422 = vmatpush1.bf16.msra.mxu0 0
      %423 = vmatprep.subr.bf16.mxu0 0
      %424 = vmatpush1.bf16.msra.mxu0 0
      %425 = vmatprep.subr.bf16.mxu0 0
      %426 = vmatpush1.bf16.msra.mxu0 0
      %427 = vmatprep.subr.bf16.mxu0 0
      %428 = vmatpush1.bf16.msra.mxu0 0
      %429 = vmatprep.subr.bf16.mxu0 0
      %430 = vmatpush1.bf16.msra.mxu0 0
      %431 = vmatprep.subr.bf16.mxu0 0
      %432 = vmatpush1.bf16.msra.mxu0 0
      %433 = vmatprep.subr.bf16.mxu0 0
      %434 = vmatpush1.bf16.msra.mxu0 0
      %435 = vmatprep.mubr.bf16.mxu0 0
      %436 = vmatmul.mubr.bf16.gmra.mrb[0].mxu0 %v382
      %v437 = vpop.f32.mrb[0].mxu0
      %v438 = vadd.f32 0.0, %v437
      %v439 = vpop.f32.mrb[0].mxu0
      %v440 = vpop.f32.mrb[0].mxu0
      %v441 = vadd.f32 0.0, %v440
      %v442 = vpop.f32.mrb[0].mxu0
      %443 = vmatprep.mubr.bf16.mxu0 0
      %444 = vmatmul.mubr.bf16.gmra.mrb[0].mxu0 %v385
      %v445 = vpop.f32.mrb[0].mxu0
      %v446 = vadd.f32 0.0, %v445
      %v447 = vpop.f32.mrb[0].mxu0
      %v448 = vpop.f32.mrb[0].mxu0
      %v449 = vadd.f32 0.0, %v448
      %v450 = vpop.f32.mrb[0].mxu0
      %451 = vmatprep.mubr.bf16.mxu0 0
      %452 = vmatmul.mubr.bf16.gmra.mrb[0].mxu0 %v388
      %v453 = vpop.f32.mrb[0].mxu0
      %v454 = vadd.f32 0.0, %v453
      %v455 = vpop.f32.mrb[0].mxu0
      %v456 = vpop.f32.mrb[0].mxu0
      %v457 = vadd.f32 0.0, %v456
      %v458 = vpop.f32.mrb[0].mxu0
      %459 = vmatprep.mubr.bf16.mxu0 0
      %460 = vmatmul.mubr.bf16.gmra.mrb[0].mxu0 %v391
      %v461 = vpop.f32.mrb[0].mxu0
      %v462 = vadd.f32 0.0, %v461
      %v463 = vpop.f32.mrb[0].mxu0
      %v464 = vpop.f32.mrb[0].mxu0
      %v465 = vadd.f32 0.0, %v464
      %v466 = vpop.f32.mrb[0].mxu0
      %467 = vmatprep.mubr.bf16.mxu0 0
      %468 = vmatmul.mubr.bf16.gmra.mrb[0].mxu0 %v394
      %v469 = vpop.f32.mrb[0].mxu0
      %v470 = vadd.f32 0.0, %v469
      %v471 = vpop.f32.mrb[0].mxu0
      %v472 = vpop.f32.mrb[0].mxu0
      %v473 = vpop.f32.mrb[0].mxu0
      %474 = vdwg.mxu0
      %v484 = vunpack.c.l.b16 %v313
      %v485 = vunpack.c.l.b16 %v314
      %v486 = vunpack.c.l.b16 %v315
      %v487 = vunpack.c.l.b16 %v316
      %v488 = vunpack.c.l.b16 %v317
      %v489 = vunpack.c.l.b16 %v318
      %v490 = vunpack.c.l.b16 %v319
      %v491 = vunpack.c.l.b16 %v320
      %v492 = vunpack.c.l.b16 %v321
      %v493 = vpack.c.b16 %v485, %v484
      %v494 = vpack.c.b16 %v487, %v486
      %v495 = vpack.c.b16 %v489, %v488
      %v496 = vpack.c.b16 %v491, %v490
      %v497 = vpack.c.b16 %v492, %v492
      %v499 = vsel %vm380, %v493, 0
      %v502 = vsel %vm380, %v494, 0
      %v505 = vsel %vm380, %v495, 0
      %v508 = vsel %vm380, %v496, 0
      %v511 = vsel %vm380, %v497, 0
      %v514 = vand.u32 %v354, %v399
      %516 = vmatprep.subr.bf16.mxu0 0
      %517 = vmatpush1.bf16.msra.mxu0 %v514
      %518 = vmatprep.subr.bf16.mxu0 0
      %519 = vmatpush1.bf16.msra.mxu0 0
      %520 = vmatprep.subr.bf16.mxu0 0
      %521 = vmatpush1.bf16.msra.mxu0 0
      %522 = vmatprep.subr.bf16.mxu0 0
      %523 = vmatpush1.bf16.msra.mxu0 0
      %524 = vmatprep.subr.bf16.mxu0 0
      %525 = vmatpush1.bf16.msra.mxu0 0
      %526 = vmatprep.subr.bf16.mxu0 0
      %527 = vmatpush1.bf16.msra.mxu0 0
      %528 = vmatprep.subr.bf16.mxu0 0
      %529 = vmatpush1.bf16.msra.mxu0 0
      %530 = vmatprep.subr.bf16.mxu0 0
      %531 = vmatpush1.bf16.msra.mxu0 0
      %532 = vmatprep.subr.bf16.mxu0 0
      %533 = vmatpush1.bf16.msra.mxu0 0
      %534 = vmatprep.subr.bf16.mxu0 0
      %535 = vmatpush1.bf16.msra.mxu0 0
      %536 = vmatprep.subr.bf16.mxu0 0
      %537 = vmatpush1.bf16.msra.mxu0 0
      %538 = vmatprep.subr.bf16.mxu0 0
      %539 = vmatpush1.bf16.msra.mxu0 0
      %540 = vmatprep.subr.bf16.mxu0 0
      %541 = vmatpush1.bf16.msra.mxu0 0
      %542 = vmatprep.subr.bf16.mxu0 0
      %543 = vmatpush1.bf16.msra.mxu0 0
      %544 = vmatprep.subr.bf16.mxu0 0
      %545 = vmatpush1.bf16.msra.mxu0 0
      %546 = vmatprep.subr.bf16.mxu0 0
      %547 = vmatpush1.bf16.msra.mxu0 0
      %548 = vmatprep.mubr.bf16.mxu0 0
      %549 = vmatmul.mubr.bf16.gmra.mrb[0].mxu0 %v499
      %v550 = vpop.f32.mrb[0].mxu0
      %v551 = vadd.f32 %v438, %v550
      %v552 = vpop.f32.mrb[0].mxu0
      %v553 = vpop.f32.mrb[0].mxu0
      %v554 = vadd.f32 %v441, %v553
      %v555 = vpop.f32.mrb[0].mxu0
      %556 = vmatprep.mubr.bf16.mxu0 0
      %557 = vmatmul.mubr.bf16.gmra.mrb[0].mxu0 %v502
      %v558 = vpop.f32.mrb[0].mxu0
      %v559 = vadd.f32 %v446, %v558
      %v560 = vpop.f32.mrb[0].mxu0
      %v561 = vpop.f32.mrb[0].mxu0
      %v562 = vadd.f32 %v449, %v561
      %v563 = vpop.f32.mrb[0].mxu0
      %564 = vmatprep.mubr.bf16.mxu0 0
      %565 = vmatmul.mubr.bf16.gmra.mrb[0].mxu0 %v505
      %v566 = vpop.f32.mrb[0].mxu0
      %v567 = vadd.f32 %v454, %v566
      %v568 = vpop.f32.mrb[0].mxu0
      %v569 = vpop.f32.mrb[0].mxu0
      %v570 = vadd.f32 %v457, %v569
      %v571 = vpop.f32.mrb[0].mxu0
      %572 = vmatprep.mubr.bf16.mxu0 0
      %573 = vmatmul.mubr.bf16.gmra.mrb[0].mxu0 %v508
      %v574 = vpop.f32.mrb[0].mxu0
      %v575 = vadd.f32 %v462, %v574
      %v576 = vpop.f32.mrb[0].mxu0
      %v577 = vpop.f32.mrb[0].mxu0
      %v578 = vadd.f32 %v465, %v577
      %v579 = vpop.f32.mrb[0].mxu0
      %580 = vmatprep.mubr.bf16.mxu0 0
      %581 = vmatmul.mubr.bf16.gmra.mrb[0].mxu0 %v511
      %v582 = vpop.f32.mrb[0].mxu0
      %v583 = vadd.f32 %v470, %v582
      %v584 = vpop.f32.mrb[0].mxu0
      %v585 = vpop.f32.mrb[0].mxu0
      %v586 = vpop.f32.mrb[0].mxu0
      %587 = vdwg.mxu0
      %s588 = scalar_lea.vmem %s4, 4
      %v589 = vld [vmem:[%s588] sm:$0x3]
      %v591 = vunpack.c.l.b16 %v322
      %v592 = vpack.c.b16 %v591, %v492
      %vm593 = vsmask.f32 7424
      %v594 = vshrl.u32 %v493, 16
      %v596 = vshll.u32 %v493, 16
      %v598 = vrot.slane %v596, 1
      %v599 = vor.u32 %v594, %v598
      %v600 = vshll.u32 %v494, 16
      %v602 = vrot.slane %v600, 1
      %v603 = vsel %vm593, %v599, %v602
      %v604 = vshrl.u32 %v494, 16
      %v606 = vor.u32 %v604, %v602
      %v607 = vshll.u32 %v495, 16
      %v609 = vrot.slane %v607, 1
      %v610 = vsel %vm593, %v606, %v609
      %v611 = vshrl.u32 %v495, 16
      %v613 = vor.u32 %v611, %v609
      %v614 = vshll.u32 %v496, 16
      %v616 = vrot.slane %v614, 1
      %v617 = vsel %vm593, %v613, %v616
      %v618 = vshrl.u32 %v496, 16
      %v620 = vor.u32 %v618, %v616
      %v622 = vshll.u32 %v592, 16
      %v624 = vrot.slane %v622, 1
      %v625 = vsel %vm593, %v620, %v624
      %v626 = vshrl.u32 %v592, 16
      %v628 = vor.u32 %v626, %v624
      %v630 = vsel %vm380, %v603, 0
      %v633 = vsel %vm380, %v610, 0
      %v636 = vsel %vm380, %v617, 0
      %v639 = vsel %vm380, %v625, 0
      %v642 = vsel %vm380, %v628, 0
      %v645 = vand.u32 %v589, %v399
      %647 = vmatprep.subr.bf16.mxu0 0
      %648 = vmatpush1.bf16.msra.mxu0 %v645
      %649 = vmatprep.subr.bf16.mxu0 0
      %650 = vmatpush1.bf16.msra.mxu0 0
      %651 = vmatprep.subr.bf16.mxu0 0
      %652 = vmatpush1.bf16.msra.mxu0 0
      %653 = vmatprep.subr.bf16.mxu0 0
      %654 = vmatpush1.bf16.msra.mxu0 0
      %655 = vmatprep.subr.bf16.mxu0 0
      %656 = vmatpush1.bf16.msra.mxu0 0
      %657 = vmatprep.subr.bf16.mxu0 0
      %658 = vmatpush1.bf16.msra.mxu0 0
      %659 = vmatprep.subr.bf16.mxu0 0
      %660 = vmatpush1.bf16.msra.mxu0 0
      %661 = vmatprep.subr.bf16.mxu0 0
      %662 = vmatpush1.bf16.msra.mxu0 0
      %663 = vmatprep.subr.bf16.mxu0 0
      %664 = vmatpush1.bf16.msra.mxu0 0
      %665 = vmatprep.subr.bf16.mxu0 0
      %666 = vmatpush1.bf16.msra.mxu0 0
      %667 = vmatprep.subr.bf16.mxu0 0
      %668 = vmatpush1.bf16.msra.mxu0 0
      %669 = vmatprep.subr.bf16.mxu0 0
      %670 = vmatpush1.bf16.msra.mxu0 0
      %671 = vmatprep.subr.bf16.mxu0 0
      %672 = vmatpush1.bf16.msra.mxu0 0
      %673 = vmatprep.subr.bf16.mxu0 0
      %674 = vmatpush1.bf16.msra.mxu0 0
      %675 = vmatprep.subr.bf16.mxu0 0
      %676 = vmatpush1.bf16.msra.mxu0 0
      %677 = vmatprep.subr.bf16.mxu0 0
      %678 = vmatpush1.bf16.msra.mxu0 0
      %679 = vmatprep.mubr.bf16.mxu0 0
      %680 = vmatmul.mubr.bf16.gmra.mrb[0].mxu0 %v630
      %v681 = vpop.f32.mrb[0].mxu0
      %v682 = vadd.f32 0.0, %v681
      %v683 = vpop.f32.mrb[0].mxu0
      %v684 = vpop.f32.mrb[0].mxu0
      %v685 = vadd.f32 0.0, %v684
      %v686 = vpop.f32.mrb[0].mxu0
      %687 = vmatprep.mubr.bf16.mxu0 0
      %688 = vmatmul.mubr.bf16.gmra.mrb[0].mxu0 %v633
      %v689 = vpop.f32.mrb[0].mxu0
      %v690 = vadd.f32 0.0, %v689
      %v691 = vpop.f32.mrb[0].mxu0
      %v692 = vpop.f32.mrb[0].mxu0
      %v693 = vadd.f32 0.0, %v692
      %v694 = vpop.f32.mrb[0].mxu0
      %695 = vmatprep.mubr.bf16.mxu0 0
      %696 = vmatmul.mubr.bf16.gmra.mrb[0].mxu0 %v636
      %v697 = vpop.f32.mrb[0].mxu0
      %v698 = vadd.f32 0.0, %v697
      %v699 = vpop.f32.mrb[0].mxu0
      %v700 = vpop.f32.mrb[0].mxu0
      %v701 = vadd.f32 0.0, %v700
      %v702 = vpop.f32.mrb[0].mxu0
      %703 = vmatprep.mubr.bf16.mxu0 0
      %704 = vmatmul.mubr.bf16.gmra.mrb[0].mxu0 %v639
      %v705 = vpop.f32.mrb[0].mxu0
      %v706 = vadd.f32 0.0, %v705
      %v707 = vpop.f32.mrb[0].mxu0
      %v708 = vpop.f32.mrb[0].mxu0
      %v709 = vadd.f32 0.0, %v708
      %v710 = vpop.f32.mrb[0].mxu0
      %711 = vmatprep.mubr.bf16.mxu0 0
      %712 = vmatmul.mubr.bf16.gmra.mrb[0].mxu0 %v642
      %v713 = vpop.f32.mrb[0].mxu0
      %v714 = vadd.f32 0.0, %v713
      %v715 = vpop.f32.mrb[0].mxu0
      %v716 = vpop.f32.mrb[0].mxu0
      %v717 = vpop.f32.mrb[0].mxu0
      %718 = vdwg.mxu0
      %v719 = vadd.f32 %v551, %v682
      %v720 = vadd.f32 %v554, %v685
      %v721 = vadd.f32 %v559, %v690
      %v722 = vadd.f32 %v562, %v693
      %v723 = vadd.f32 %v567, %v698
      %v724 = vadd.f32 %v570, %v701
      %v725 = vadd.f32 %v575, %v706
      %v726 = vadd.f32 %v578, %v709
      %v727 = vadd.f32 %v583, %v714
      %s728 = scalar_lea.vmem %s4, 6
      %v729 = vld [vmem:[%s728] sm:$0x3]
      %v739 = vunpack.c.l.b16 %v335
      %v740 = vunpack.c.l.b16 %v336
      %v741 = vunpack.c.l.b16 %v337
      %v742 = vunpack.c.l.b16 %v338
      %v743 = vunpack.c.l.b16 %v339
      %v744 = vunpack.c.l.b16 %v340
      %v745 = vunpack.c.l.b16 %v341
      %v746 = vunpack.c.l.b16 %v342
      %v747 = vunpack.c.l.b16 %v343
      %v748 = vpack.c.b16 %v740, %v739
      %v749 = vpack.c.b16 %v742, %v741
      %v750 = vpack.c.b16 %v744, %v743
      %v751 = vpack.c.b16 %v746, %v745
      %v752 = vpack.c.b16 %v747, %v747
      %v754 = vsel %vm380, %v748, 0
      %v757 = vsel %vm380, %v749, 0
      %v760 = vsel %vm380, %v750, 0
      %v763 = vsel %vm380, %v751, 0
      %v766 = vsel %vm380, %v752, 0
      %v769 = vand.u32 %v729, %v399
      %771 = vmatprep.subr.bf16.mxu0 0
      %772 = vmatpush1.bf16.msra.mxu0 %v769
      %773 = vmatprep.subr.bf16.mxu0 0
      %774 = vmatpush1.bf16.msra.mxu0 0
      %775 = vmatprep.subr.bf16.mxu0 0
      %776 = vmatpush1.bf16.msra.mxu0 0
      %777 = vmatprep.subr.bf16.mxu0 0
      %778 = vmatpush1.bf16.msra.mxu0 0
      %779 = vmatprep.subr.bf16.mxu0 0
      %780 = vmatpush1.bf16.msra.mxu0 0
      %781 = vmatprep.subr.bf16.mxu0 0
      %782 = vmatpush1.bf16.msra.mxu0 0
      %783 = vmatprep.subr.bf16.mxu0 0
      %784 = vmatpush1.bf16.msra.mxu0 0
      %785 = vmatprep.subr.bf16.mxu0 0
      %786 = vmatpush1.bf16.msra.mxu0 0
      %787 = vmatprep.subr.bf16.mxu0 0
      %788 = vmatpush1.bf16.msra.mxu0 0
      %789 = vmatprep.subr.bf16.mxu0 0
      %790 = vmatpush1.bf16.msra.mxu0 0
      %791 = vmatprep.subr.bf16.mxu0 0
      %792 = vmatpush1.bf16.msra.mxu0 0
      %793 = vmatprep.subr.bf16.mxu0 0
      %794 = vmatpush1.bf16.msra.mxu0 0
      %795 = vmatprep.subr.bf16.mxu0 0
      %796 = vmatpush1.bf16.msra.mxu0 0
      %797 = vmatprep.subr.bf16.mxu0 0
      %798 = vmatpush1.bf16.msra.mxu0 0
      %799 = vmatprep.subr.bf16.mxu0 0
      %800 = vmatpush1.bf16.msra.mxu0 0
      %801 = vmatprep.subr.bf16.mxu0 0
      %802 = vmatpush1.bf16.msra.mxu0 0
      %803 = vmatprep.mubr.bf16.mxu0 0
      %804 = vmatmul.mubr.bf16.gmra.mrb[0].mxu0 %v754
      %v805 = vpop.f32.mrb[0].mxu0
      %v806 = vadd.f32 0.0, %v805
      %v807 = vpop.f32.mrb[0].mxu0
      %v808 = vpop.f32.mrb[0].mxu0
      %v809 = vadd.f32 0.0, %v808
      %v810 = vpop.f32.mrb[0].mxu0
      %811 = vmatprep.mubr.bf16.mxu0 0
      %812 = vmatmul.mubr.bf16.gmra.mrb[0].mxu0 %v757
      %v813 = vpop.f32.mrb[0].mxu0
      %v814 = vadd.f32 0.0, %v813
      %v815 = vpop.f32.mrb[0].mxu0
      %v816 = vpop.f32.mrb[0].mxu0
      %v817 = vadd.f32 0.0, %v816
      %v818 = vpop.f32.mrb[0].mxu0
      %819 = vmatprep.mubr.bf16.mxu0 0
      %820 = vmatmul.mubr.bf16.gmra.mrb[0].mxu0 %v760
      %v821 = vpop.f32.mrb[0].mxu0
      %v822 = vadd.f32 0.0, %v821
      %v823 = vpop.f32.mrb[0].mxu0
      %v824 = vpop.f32.mrb[0].mxu0
      %v825 = vadd.f32 0.0, %v824
      %v826 = vpop.f32.mrb[0].mxu0
      %827 = vmatprep.mubr.bf16.mxu0 0
      %828 = vmatmul.mubr.bf16.gmra.mrb[0].mxu0 %v763
      %v829 = vpop.f32.mrb[0].mxu0
      %v830 = vadd.f32 0.0, %v829
      %v831 = vpop.f32.mrb[0].mxu0
      %v832 = vpop.f32.mrb[0].mxu0
      %v833 = vadd.f32 0.0, %v832
      %v834 = vpop.f32.mrb[0].mxu0
      %835 = vmatprep.mubr.bf16.mxu0 0
      %836 = vmatmul.mubr.bf16.gmra.mrb[0].mxu0 %v766
      %v837 = vpop.f32.mrb[0].mxu0
      %v838 = vadd.f32 0.0, %v837
      %v839 = vpop.f32.mrb[0].mxu0
      %v840 = vpop.f32.mrb[0].mxu0
      %v841 = vpop.f32.mrb[0].mxu0
      %842 = vdwg.mxu0
      %v843 = vadd.f32 %v719, %v806
      %v844 = vadd.f32 %v720, %v809
      %v845 = vadd.f32 %v721, %v814
      %v846 = vadd.f32 %v722, %v817
      %v847 = vadd.f32 %v723, %v822
      %v848 = vadd.f32 %v724, %v825
      %v849 = vadd.f32 %v725, %v830
      %v850 = vadd.f32 %v726, %v833
      %v851 = vadd.f32 %v727, %v838
      %s852 = scalar_lea.vmem %s4, 8
      %v853 = vld [vmem:[%s852] sm:$0x3]
      %v863 = vunpack.c.l.b16 %v345
      %v864 = vunpack.c.l.b16 %v346
      %v865 = vunpack.c.l.b16 %v347
      %v866 = vunpack.c.l.b16 %v348
      %v867 = vunpack.c.l.b16 %v349
      %v868 = vunpack.c.l.b16 %v350
      %v869 = vunpack.c.l.b16 %v351
      %v870 = vunpack.c.l.b16 %v352
      %v871 = vunpack.c.l.b16 %v353
      %v872 = vpack.c.b16 %v864, %v863
      %v873 = vpack.c.b16 %v866, %v865
      %v874 = vpack.c.b16 %v868, %v867
      %v875 = vpack.c.b16 %v870, %v869
      %v876 = vpack.c.b16 %v871, %v871
      %v878 = vsel %vm380, %v872, 0
      %v881 = vsel %vm380, %v873, 0
      %v884 = vsel %vm380, %v874, 0
      %v887 = vsel %vm380, %v875, 0
      %v890 = vsel %vm380, %v876, 0
      %v893 = vand.u32 %v853, %v399
      %895 = vmatprep.subr.bf16.mxu0 0
      %896 = vmatpush1.bf16.msra.mxu0 %v893
      %897 = vmatprep.subr.bf16.mxu0 0
      %898 = vmatpush1.bf16.msra.mxu0 0
      %899 = vmatprep.subr.bf16.mxu0 0
      %900 = vmatpush1.bf16.msra.mxu0 0
      %901 = vmatprep.subr.bf16.mxu0 0
      %902 = vmatpush1.bf16.msra.mxu0 0
      %903 = vmatprep.subr.bf16.mxu0 0
      %904 = vmatpush1.bf16.msra.mxu0 0
      %905 = vmatprep.subr.bf16.mxu0 0
      %906 = vmatpush1.bf16.msra.mxu0 0
      %907 = vmatprep.subr.bf16.mxu0 0
      %908 = vmatpush1.bf16.msra.mxu0 0
      %909 = vmatprep.subr.bf16.mxu0 0
      %910 = vmatpush1.bf16.msra.mxu0 0
      %911 = vmatprep.subr.bf16.mxu0 0
      %912 = vmatpush1.bf16.msra.mxu0 0
      %913 = vmatprep.subr.bf16.mxu0 0
      %914 = vmatpush1.bf16.msra.mxu0 0
      %915 = vmatprep.subr.bf16.mxu0 0
      %916 = vmatpush1.bf16.msra.mxu0 0
      %917 = vmatprep.subr.bf16.mxu0 0
      %918 = vmatpush1.bf16.msra.mxu0 0
      %919 = vmatprep.subr.bf16.mxu0 0
      %920 = vmatpush1.bf16.msra.mxu0 0
      %921 = vmatprep.subr.bf16.mxu0 0
      %922 = vmatpush1.bf16.msra.mxu0 0
      %923 = vmatprep.subr.bf16.mxu0 0
      %924 = vmatpush1.bf16.msra.mxu0 0
      %925 = vmatprep.subr.bf16.mxu0 0
      %926 = vmatpush1.bf16.msra.mxu0 0
      %927 = vmatprep.mubr.bf16.mxu0 0
      %928 = vmatmul.mubr.bf16.gmra.mrb[0].mxu0 %v878
      %v929 = vpop.f32.mrb[0].mxu0
      %v930 = vadd.f32 0.0, %v929
      %v931 = vpop.f32.mrb[0].mxu0
      %v932 = vpop.f32.mrb[0].mxu0
      %v933 = vadd.f32 0.0, %v932
      %v934 = vpop.f32.mrb[0].mxu0
      %935 = vmatprep.mubr.bf16.mxu0 0
      %936 = vmatmul.mubr.bf16.gmra.mrb[0].mxu0 %v881
      %v937 = vpop.f32.mrb[0].mxu0
      %v938 = vadd.f32 0.0, %v937
      %v939 = vpop.f32.mrb[0].mxu0
      %v940 = vpop.f32.mrb[0].mxu0
      %v941 = vadd.f32 0.0, %v940
      %v942 = vpop.f32.mrb[0].mxu0
      %943 = vmatprep.mubr.bf16.mxu0 0
      %944 = vmatmul.mubr.bf16.gmra.mrb[0].mxu0 %v884
      %v945 = vpop.f32.mrb[0].mxu0
      %v946 = vadd.f32 0.0, %v945
      %v947 = vpop.f32.mrb[0].mxu0
      %v948 = vpop.f32.mrb[0].mxu0
      %v949 = vadd.f32 0.0, %v948
      %v950 = vpop.f32.mrb[0].mxu0
      %951 = vmatprep.mubr.bf16.mxu0 0
      %952 = vmatmul.mubr.bf16.gmra.mrb[0].mxu0 %v887
      %v953 = vpop.f32.mrb[0].mxu0
      %v954 = vadd.f32 0.0, %v953
      %v955 = vpop.f32.mrb[0].mxu0
      %v956 = vpop.f32.mrb[0].mxu0
      %v957 = vadd.f32 0.0, %v956
      %v958 = vpop.f32.mrb[0].mxu0
      %959 = vmatprep.mubr.bf16.mxu0 0
      %960 = vmatmul.mubr.bf16.gmra.mrb[0].mxu0 %v890
      %v961 = vpop.f32.mrb[0].mxu0
      %v962 = vadd.f32 0.0, %v961
      %v963 = vpop.f32.mrb[0].mxu0
      %v964 = vpop.f32.mrb[0].mxu0
      %v965 = vpop.f32.mrb[0].mxu0
      %966 = vdwg.mxu0
      %v967 = vadd.f32 %v843, %v930
      %v968 = vadd.f32 %v844, %v933
      %v969 = vadd.f32 %v845, %v938
      %v970 = vadd.f32 %v846, %v941
      %v971 = vadd.f32 %v847, %v946
      %v972 = vadd.f32 %v848, %v949
      %v973 = vadd.f32 %v849, %v954
      %v974 = vadd.f32 %v850, %v957
      %v975 = vadd.f32 %v851, %v962
      %s976 = scalar_lea.vmem %s4, 10
      %v977 = vld [vmem:[%s976] sm:$0x3]
      %v979 = vunpack.c.l.b16 %v344
      %v980 = vpack.c.b16 %v979, %v747
      %v981 = vshrl.u32 %v748, 16
      %v983 = vshll.u32 %v748, 16
      %v985 = vrot.slane %v983, 1
      %v986 = vor.u32 %v981, %v985
      %v987 = vshll.u32 %v749, 16
      %v989 = vrot.slane %v987, 1
      %v990 = vsel %vm593, %v986, %v989
      %v991 = vshrl.u32 %v749, 16
      %v993 = vor.u32 %v991, %v989
      %v994 = vshll.u32 %v750, 16
      %v996 = vrot.slane %v994, 1
      %v997 = vsel %vm593, %v993, %v996
      %v998 = vshrl.u32 %v750, 16
      %v1000 = vor.u32 %v998, %v996
      %v1001 = vshll.u32 %v751, 16
      %v1003 = vrot.slane %v1001, 1
      %v1004 = vsel %vm593, %v1000, %v1003
      %v1005 = vshrl.u32 %v751, 16
      %v1007 = vor.u32 %v1005, %v1003
      %v1009 = vshll.u32 %v980, 16
      %v1011 = vrot.slane %v1009, 1
      %v1012 = vsel %vm593, %v1007, %v1011
      %v1013 = vshrl.u32 %v980, 16
      %v1015 = vor.u32 %v1013, %v1011
      %v1017 = vsel %vm380, %v990, 0
      %v1020 = vsel %vm380, %v997, 0
      %v1023 = vsel %vm380, %v1004, 0
      %v1026 = vsel %vm380, %v1012, 0
      %v1029 = vsel %vm380, %v1015, 0
      %v1032 = vand.u32 %v977, %v399
      %1034 = vmatprep.subr.bf16.mxu0 0
      %1035 = vmatpush1.bf16.msra.mxu0 %v1032
      %1036 = vmatprep.subr.bf16.mxu0 0
      %1037 = vmatpush1.bf16.msra.mxu0 0
      %1038 = vmatprep.subr.bf16.mxu0 0
      %1039 = vmatpush1.bf16.msra.mxu0 0
      %1040 = vmatprep.subr.bf16.mxu0 0
      %1041 = vmatpush1.bf16.msra.mxu0 0
      %1042 = vmatprep.subr.bf16.mxu0 0
      %1043 = vmatpush1.bf16.msra.mxu0 0
      %1044 = vmatprep.subr.bf16.mxu0 0
      %1045 = vmatpush1.bf16.msra.mxu0 0
      %1046 = vmatprep.subr.bf16.mxu0 0
      %1047 = vmatpush1.bf16.msra.mxu0 0
      %1048 = vmatprep.subr.bf16.mxu0 0
      %1049 = vmatpush1.bf16.msra.mxu0 0
      %1050 = vmatprep.subr.bf16.mxu0 0
      %1051 = vmatpush1.bf16.msra.mxu0 0
      %1052 = vmatprep.subr.bf16.mxu0 0
      %1053 = vmatpush1.bf16.msra.mxu0 0
      %1054 = vmatprep.subr.bf16.mxu0 0
      %1055 = vmatpush1.bf16.msra.mxu0 0
      %1056 = vmatprep.subr.bf16.mxu0 0
      %1057 = vmatpush1.bf16.msra.mxu0 0
      %1058 = vmatprep.subr.bf16.mxu0 0
      %1059 = vmatpush1.bf16.msra.mxu0 0
      %1060 = vmatprep.subr.bf16.mxu0 0
      %1061 = vmatpush1.bf16.msra.mxu0 0
      %1062 = vmatprep.subr.bf16.mxu0 0
      %1063 = vmatpush1.bf16.msra.mxu0 0
      %1064 = vmatprep.subr.bf16.mxu0 0
      %1065 = vmatpush1.bf16.msra.mxu0 0
      %1066 = vmatprep.mubr.bf16.mxu0 0
      %1067 = vmatmul.mubr.bf16.gmra.mrb[0].mxu0 %v1017
      %v1068 = vpop.f32.mrb[0].mxu0
      %v1069 = vadd.f32 0.0, %v1068
      %v1070 = vpop.f32.mrb[0].mxu0
      %v1071 = vpop.f32.mrb[0].mxu0
      %v1072 = vadd.f32 0.0, %v1071
      %v1073 = vpop.f32.mrb[0].mxu0
      %1074 = vmatprep.mubr.bf16.mxu0 0
      %1075 = vmatmul.mubr.bf16.gmra.mrb[0].mxu0 %v1020
      %v1076 = vpop.f32.mrb[0].mxu0
      %v1077 = vadd.f32 0.0, %v1076
      %v1078 = vpop.f32.mrb[0].mxu0
      %v1079 = vpop.f32.mrb[0].mxu0
      %v1080 = vadd.f32 0.0, %v1079
      %v1081 = vpop.f32.mrb[0].mxu0
      %1082 = vmatprep.mubr.bf16.mxu0 0
      %1083 = vmatmul.mubr.bf16.gmra.mrb[0].mxu0 %v1023
      %v1084 = vpop.f32.mrb[0].mxu0
      %v1085 = vadd.f32 0.0, %v1084
      %v1086 = vpop.f32.mrb[0].mxu0
      %v1087 = vpop.f32.mrb[0].mxu0
      %v1088 = vadd.f32 0.0, %v1087
      %v1089 = vpop.f32.mrb[0].mxu0
      %1090 = vmatprep.mubr.bf16.mxu0 0
      %1091 = vmatmul.mubr.bf16.gmra.mrb[0].mxu0 %v1026
      %v1092 = vpop.f32.mrb[0].mxu0
      %v1093 = vadd.f32 0.0, %v1092
      %v1094 = vpop.f32.mrb[0].mxu0
      %v1095 = vpop.f32.mrb[0].mxu0
      %v1096 = vadd.f32 0.0, %v1095
      %v1097 = vpop.f32.mrb[0].mxu0
      %1098 = vmatprep.mubr.bf16.mxu0 0
      %1099 = vmatmul.mubr.bf16.gmra.mrb[0].mxu0 %v1029
      %v1100 = vpop.f32.mrb[0].mxu0
      %v1101 = vadd.f32 0.0, %v1100
      %v1102 = vpop.f32.mrb[0].mxu0
      %v1103 = vpop.f32.mrb[0].mxu0
      %v1104 = vpop.f32.mrb[0].mxu0
      %1105 = vdwg.mxu0
      %v1106 = vadd.f32 %v967, %v1069
      %v1107 = vadd.f32 %v968, %v1072
      %v1108 = vadd.f32 %v969, %v1077
      %v1109 = vadd.f32 %v970, %v1080
      %v1110 = vadd.f32 %v971, %v1085
      %v1111 = vadd.f32 %v972, %v1088
      %v1112 = vadd.f32 %v973, %v1093
      %v1113 = vadd.f32 %v974, %v1096
      %v1114 = vadd.f32 %v975, %v1101
      %s1115 = scalar_lea.vmem %s4, 12
      %v1116 = vld [vmem:[%s1115] sm:$0x3]
      %v1118 = vunpack.c.l.b16 %v323
      %v1119 = vpack.c.b16 %v486, %v485
      %v1120 = vpack.c.b16 %v488, %v487
      %v1121 = vpack.c.b16 %v490, %v489
      %v1122 = vpack.c.b16 %v492, %v491
      %v1123 = vpack.c.b16 %v1118, %v591
      %v1125 = vshrl.u32 %v1119, 16
      %v1127 = vshll.u32 %v1119, 16
      %v1129 = vrot.slane %v1127, 1
      %v1130 = vor.u32 %v1125, %v1129
      %v1132 = vshll.u32 %v1120, 16
      %v1134 = vrot.slane %v1132, 1
      %v1135 = vsel %vm593, %v1130, %v1134
      %v1136 = vshrl.u32 %v1120, 16
      %v1138 = vor.u32 %v1136, %v1134
      %v1140 = vshll.u32 %v1121, 16
      %v1142 = vrot.slane %v1140, 1
      %v1143 = vsel %vm593, %v1138, %v1142
      %v1144 = vshrl.u32 %v1121, 16
      %v1146 = vor.u32 %v1144, %v1142
      %v1148 = vshll.u32 %v1122, 16
      %v1150 = vrot.slane %v1148, 1
      %v1151 = vsel %vm593, %v1146, %v1150
      %v1152 = vshrl.u32 %v1122, 16
      %v1154 = vor.u32 %v1152, %v1150
      %v1156 = vshll.u32 %v1123, 16
      %v1158 = vrot.slane %v1156, 1
      %v1159 = vsel %vm593, %v1154, %v1158
      %v1160 = vshrl.u32 %v1123, 16
      %v1162 = vor.u32 %v1160, %v1158
      %v1164 = vsel %vm380, %v1135, 0
      %v1167 = vsel %vm380, %v1143, 0
      %v1170 = vsel %vm380, %v1151, 0
      %v1173 = vsel %vm380, %v1159, 0
      %v1176 = vsel %vm380, %v1162, 0
      %v1179 = vand.u32 %v1116, %v399
      %1181 = vmatprep.subr.bf16.mxu0 0
      %1182 = vmatpush1.bf16.msra.mxu0 %v1179
      %1183 = vmatprep.subr.bf16.mxu0 0
      %1184 = vmatpush1.bf16.msra.mxu0 0
      %1185 = vmatprep.subr.bf16.mxu0 0
      %1186 = vmatpush1.bf16.msra.mxu0 0
      %1187 = vmatprep.subr.bf16.mxu0 0
      %1188 = vmatpush1.bf16.msra.mxu0 0
      %1189 = vmatprep.subr.bf16.mxu0 0
      %1190 = vmatpush1.bf16.msra.mxu0 0
      %1191 = vmatprep.subr.bf16.mxu0 0
      %1192 = vmatpush1.bf16.msra.mxu0 0
      %1193 = vmatprep.subr.bf16.mxu0 0
      %1194 = vmatpush1.bf16.msra.mxu0 0
      %1195 = vmatprep.subr.bf16.mxu0 0
      %1196 = vmatpush1.bf16.msra.mxu0 0
      %1197 = vmatprep.subr.bf16.mxu0 0
      %1198 = vmatpush1.bf16.msra.mxu0 0
      %1199 = vmatprep.subr.bf16.mxu0 0
      %1200 = vmatpush1.bf16.msra.mxu0 0
      %1201 = vmatprep.subr.bf16.mxu0 0
      %1202 = vmatpush1.bf16.msra.mxu0 0
      %1203 = vmatprep.subr.bf16.mxu0 0
      %1204 = vmatpush1.bf16.msra.mxu0 0
      %1205 = vmatprep.subr.bf16.mxu0 0
      %1206 = vmatpush1.bf16.msra.mxu0 0
      %1207 = vmatprep.subr.bf16.mxu0 0
      %1208 = vmatpush1.bf16.msra.mxu0 0
      %1209 = vmatprep.subr.bf16.mxu0 0
      %1210 = vmatpush1.bf16.msra.mxu0 0
      %1211 = vmatprep.subr.bf16.mxu0 0
      %1212 = vmatpush1.bf16.msra.mxu0 0
      %1213 = vmatprep.mubr.bf16.mxu0 0
      %1214 = vmatmul.mubr.bf16.gmra.mrb[0].mxu0 %v1164
      %v1215 = vpop.f32.mrb[0].mxu0
      %v1216 = vadd.f32 0.0, %v1215
      %v1217 = vpop.f32.mrb[0].mxu0
      %v1218 = vpop.f32.mrb[0].mxu0
      %v1219 = vadd.f32 0.0, %v1218
      %v1220 = vpop.f32.mrb[0].mxu0
      %1221 = vmatprep.mubr.bf16.mxu0 0
      %1222 = vmatmul.mubr.bf16.gmra.mrb[0].mxu0 %v1167
      %v1223 = vpop.f32.mrb[0].mxu0
      %v1224 = vadd.f32 0.0, %v1223
      %v1225 = vpop.f32.mrb[0].mxu0
      %v1226 = vpop.f32.mrb[0].mxu0
      %v1227 = vadd.f32 0.0, %v1226
      %v1228 = vpop.f32.mrb[0].mxu0
      %1229 = vmatprep.mubr.bf16.mxu0 0
      %1230 = vmatmul.mubr.bf16.gmra.mrb[0].mxu0 %v1170
      %v1231 = vpop.f32.mrb[0].mxu0
      %v1232 = vadd.f32 0.0, %v1231
      %v1233 = vpop.f32.mrb[0].mxu0
      %v1234 = vpop.f32.mrb[0].mxu0
      %v1235 = vadd.f32 0.0, %v1234
      %v1236 = vpop.f32.mrb[0].mxu0
      %1237 = vmatprep.mubr.bf16.mxu0 0
      %1238 = vmatmul.mubr.bf16.gmra.mrb[0].mxu0 %v1173
      %v1239 = vpop.f32.mrb[0].mxu0
      %v1240 = vadd.f32 0.0, %v1239
      %v1241 = vpop.f32.mrb[0].mxu0
      %v1242 = vpop.f32.mrb[0].mxu0
      %v1243 = vadd.f32 0.0, %v1242
      %v1244 = vpop.f32.mrb[0].mxu0
      %1245 = vmatprep.mubr.bf16.mxu0 0
      %1246 = vmatmul.mubr.bf16.gmra.mrb[0].mxu0 %v1176
      %v1247 = vpop.f32.mrb[0].mxu0
      %v1248 = vadd.f32 0.0, %v1247
      %v1249 = vpop.f32.mrb[0].mxu0
      %v1250 = vpop.f32.mrb[0].mxu0
      %v1251 = vpop.f32.mrb[0].mxu0
      %1252 = vdwg.mxu0
      %v1253 = vadd.f32 %v1106, %v1216
      %v1254 = vadd.f32 %v1107, %v1219
      %v1255 = vadd.f32 %v1108, %v1224
      %v1256 = vadd.f32 %v1109, %v1227
      %v1257 = vadd.f32 %v1110, %v1232
      %v1258 = vadd.f32 %v1111, %v1235
      %v1259 = vadd.f32 %v1112, %v1240
      %v1260 = vadd.f32 %v1113, %v1243
      %v1261 = vadd.f32 %v1114, %v1248
      %s1262 = scalar_lea.vmem %s4, 14
      %v1263 = vld [vmem:[%s1262] sm:$0x3]
      %v1266 = vunpack.c.l.b16 %v333
      %v1267 = vunpack.c.l.b16 %v334
      %v1268 = vpack.c.b16 %v368, %v367
      %v1269 = vpack.c.b16 %v370, %v369
      %v1270 = vpack.c.b16 %v372, %v371
      %v1271 = vpack.c.b16 %v374, %v373
      %v1272 = vpack.c.b16 %v1267, %v1266
      %v1274 = vshrl.u32 %v1268, 16
      %v1276 = vshll.u32 %v1268, 16
      %v1278 = vrot.slane %v1276, 1
      %v1279 = vor.u32 %v1274, %v1278
      %v1281 = vshll.u32 %v1269, 16
      %v1283 = vrot.slane %v1281, 1
      %v1284 = vsel %vm593, %v1279, %v1283
      %v1285 = vshrl.u32 %v1269, 16
      %v1287 = vor.u32 %v1285, %v1283
      %v1289 = vshll.u32 %v1270, 16
      %v1291 = vrot.slane %v1289, 1
      %v1292 = vsel %vm593, %v1287, %v1291
      %v1293 = vshrl.u32 %v1270, 16
      %v1295 = vor.u32 %v1293, %v1291
      %v1297 = vshll.u32 %v1271, 16
      %v1299 = vrot.slane %v1297, 1
      %v1300 = vsel %vm593, %v1295, %v1299
      %v1301 = vshrl.u32 %v1271, 16
      %v1303 = vor.u32 %v1301, %v1299
      %v1305 = vshll.u32 %v1272, 16
      %v1307 = vrot.slane %v1305, 1
      %v1308 = vsel %vm593, %v1303, %v1307
      %v1309 = vshrl.u32 %v1272, 16
      %v1311 = vor.u32 %v1309, %v1307
      %v1313 = vsel %vm380, %v1284, 0
      %v1316 = vsel %vm380, %v1292, 0
      %v1319 = vsel %vm380, %v1300, 0
      %v1322 = vsel %vm380, %v1308, 0
      %v1325 = vsel %vm380, %v1311, 0
      %v1328 = vand.u32 %v1263, %v399
      %1330 = vmatprep.subr.bf16.mxu0 0
      %1331 = vmatpush1.bf16.msra.mxu0 %v1328
      %1332 = vmatprep.subr.bf16.mxu0 0
      %1333 = vmatpush1.bf16.msra.mxu0 0
      %1334 = vmatprep.subr.bf16.mxu0 0
      %1335 = vmatpush1.bf16.msra.mxu0 0
      %1336 = vmatprep.subr.bf16.mxu0 0
      %1337 = vmatpush1.bf16.msra.mxu0 0
      %1338 = vmatprep.subr.bf16.mxu0 0
      %1339 = vmatpush1.bf16.msra.mxu0 0
      %1340 = vmatprep.subr.bf16.mxu0 0
      %1341 = vmatpush1.bf16.msra.mxu0 0
      %1342 = vmatprep.subr.bf16.mxu0 0
      %1343 = vmatpush1.bf16.msra.mxu0 0
      %1344 = vmatprep.subr.bf16.mxu0 0
      %1345 = vmatpush1.bf16.msra.mxu0 0
      %1346 = vmatprep.subr.bf16.mxu0 0
      %1347 = vmatpush1.bf16.msra.mxu0 0
      %1348 = vmatprep.subr.bf16.mxu0 0
      %1349 = vmatpush1.bf16.msra.mxu0 0
      %1350 = vmatprep.subr.bf16.mxu0 0
      %1351 = vmatpush1.bf16.msra.mxu0 0
      %1352 = vmatprep.subr.bf16.mxu0 0
      %1353 = vmatpush1.bf16.msra.mxu0 0
      %1354 = vmatprep.subr.bf16.mxu0 0
      %1355 = vmatpush1.bf16.msra.mxu0 0
      %1356 = vmatprep.subr.bf16.mxu0 0
      %1357 = vmatpush1.bf16.msra.mxu0 0
      %1358 = vmatprep.subr.bf16.mxu0 0
      %1359 = vmatpush1.bf16.msra.mxu0 0
      %1360 = vmatprep.subr.bf16.mxu0 0
      %1361 = vmatpush1.bf16.msra.mxu0 0
      %1362 = vmatprep.mubr.bf16.mxu0 0
      %1363 = vmatmul.mubr.bf16.gmra.mrb[0].mxu0 %v1313
      %v1364 = vpop.f32.mrb[0].mxu0
      %v1365 = vadd.f32 0.0, %v1364
      %v1366 = vpop.f32.mrb[0].mxu0
      %v1367 = vpop.f32.mrb[0].mxu0
      %v1368 = vadd.f32 0.0, %v1367
      %v1369 = vpop.f32.mrb[0].mxu0
      %1370 = vmatprep.mubr.bf16.mxu0 0
      %1371 = vmatmul.mubr.bf16.gmra.mrb[0].mxu0 %v1316
      %v1372 = vpop.f32.mrb[0].mxu0
      %v1373 = vadd.f32 0.0, %v1372
      %v1374 = vpop.f32.mrb[0].mxu0
      %v1375 = vpop.f32.mrb[0].mxu0
      %v1376 = vadd.f32 0.0, %v1375
      %v1377 = vpop.f32.mrb[0].mxu0
      %1378 = vmatprep.mubr.bf16.mxu0 0
      %1379 = vmatmul.mubr.bf16.gmra.mrb[0].mxu0 %v1319
      %v1380 = vpop.f32.mrb[0].mxu0
      %v1381 = vadd.f32 0.0, %v1380
      %v1382 = vpop.f32.mrb[0].mxu0
      %v1383 = vpop.f32.mrb[0].mxu0
      %v1384 = vadd.f32 0.0, %v1383
      %v1385 = vpop.f32.mrb[0].mxu0
      %1386 = vmatprep.mubr.bf16.mxu0 0
      %1387 = vmatmul.mubr.bf16.gmra.mrb[0].mxu0 %v1322
      %v1388 = vpop.f32.mrb[0].mxu0
      %v1389 = vadd.f32 0.0, %v1388
      %v1390 = vpop.f32.mrb[0].mxu0
      %v1391 = vpop.f32.mrb[0].mxu0
      %v1392 = vadd.f32 0.0, %v1391
      %v1393 = vpop.f32.mrb[0].mxu0
      %1394 = vmatprep.mubr.bf16.mxu0 0
      %1395 = vmatmul.mubr.bf16.gmra.mrb[0].mxu0 %v1325
      %v1396 = vpop.f32.mrb[0].mxu0
      %v1397 = vadd.f32 0.0, %v1396
      %v1398 = vpop.f32.mrb[0].mxu0
      %v1399 = vpop.f32.mrb[0].mxu0
      %v1400 = vpop.f32.mrb[0].mxu0
      %1401 = vdwg.mxu0
      %v1402 = vadd.f32 %v1253, %v1365
      %v1403 = vadd.f32 %v1254, %v1368
      %v1404 = vadd.f32 %v1255, %v1373
      %v1405 = vadd.f32 %v1256, %v1376
      %v1406 = vadd.f32 %v1257, %v1381
      %v1407 = vadd.f32 %v1258, %v1384
      %v1408 = vadd.f32 %v1259, %v1389
      %v1409 = vadd.f32 %v1260, %v1392
      %v1410 = vadd.f32 %v1261, %v1397
      %s1411 = scalar_lea.vmem %s4, 16
      %v1412 = vld [vmem:[%s1411] sm:$0x3]
      %vm1413 = vcmask 1046528
      %v1414 = vrot.slane %v1119, 1
      %v1415 = vrot.slane %v1120, 1
      %v1416 = vsel %vm1413, %v1414, %v1415
      %v1417 = vrot.slane %v1121, 1
      %v1418 = vsel %vm1413, %v1415, %v1417
      %v1419 = vrot.slane %v1122, 1
      %v1420 = vsel %vm1413, %v1417, %v1419
      %v1421 = vrot.slane %v1123, 1
      %v1422 = vsel %vm1413, %v1419, %v1421
      %v1424 = vsel %vm380, %v1416, 0
      %v1427 = vsel %vm380, %v1418, 0
      %v1430 = vsel %vm380, %v1420, 0
      %v1433 = vsel %vm380, %v1422, 0
      %v1436 = vsel %vm380, %v1421, 0
      %v1439 = vand.u32 %v1412, %v399
      %1441 = vmatprep.subr.bf16.mxu0 0
      %1442 = vmatpush1.bf16.msra.mxu0 %v1439
      %1443 = vmatprep.subr.bf16.mxu0 0
      %1444 = vmatpush1.bf16.msra.mxu0 0
      %1445 = vmatprep.subr.bf16.mxu0 0
      %1446 = vmatpush1.bf16.msra.mxu0 0
      %1447 = vmatprep.subr.bf16.mxu0 0
      %1448 = vmatpush1.bf16.msra.mxu0 0
      %1449 = vmatprep.subr.bf16.mxu0 0
      %1450 = vmatpush1.bf16.msra.mxu0 0
      %1451 = vmatprep.subr.bf16.mxu0 0
      %1452 = vmatpush1.bf16.msra.mxu0 0
      %1453 = vmatprep.subr.bf16.mxu0 0
      %1454 = vmatpush1.bf16.msra.mxu0 0
      %1455 = vmatprep.subr.bf16.mxu0 0
      %1456 = vmatpush1.bf16.msra.mxu0 0
      %1457 = vmatprep.subr.bf16.mxu0 0
      %1458 = vmatpush1.bf16.msra.mxu0 0
      %1459 = vmatprep.subr.bf16.mxu0 0
      %1460 = vmatpush1.bf16.msra.mxu0 0
      %1461 = vmatprep.subr.bf16.mxu0 0
      %1462 = vmatpush1.bf16.msra.mxu0 0
      %1463 = vmatprep.subr.bf16.mxu0 0
      %1464 = vmatpush1.bf16.msra.mxu0 0
      %1465 = vmatprep.subr.bf16.mxu0 0
      %1466 = vmatpush1.bf16.msra.mxu0 0
      %1467 = vmatprep.subr.bf16.mxu0 0
      %1468 = vmatpush1.bf16.msra.mxu0 0
      %1469 = vmatprep.subr.bf16.mxu0 0
      %1470 = vmatpush1.bf16.msra.mxu0 0
      %1471 = vmatprep.subr.bf16.mxu0 0
      %1472 = vmatpush1.bf16.msra.mxu0 0
      %1473 = vmatprep.mubr.bf16.mxu0 0
      %1474 = vmatmul.mubr.bf16.gmra.mrb[0].mxu0 %v1424
      %v1475 = vpop.f32.mrb[0].mxu0
      %v1476 = vadd.f32 0.0, %v1475
      %v1477 = vpop.f32.mrb[0].mxu0
      %v1478 = vpop.f32.mrb[0].mxu0
      %v1479 = vadd.f32 0.0, %v1478
      %v1480 = vpop.f32.mrb[0].mxu0
      %1481 = vmatprep.mubr.bf16.mxu0 0
      %1482 = vmatmul.mubr.bf16.gmra.mrb[0].mxu0 %v1427
      %v1483 = vpop.f32.mrb[0].mxu0
      %v1484 = vadd.f32 0.0, %v1483
      %v1485 = vpop.f32.mrb[0].mxu0
      %v1486 = vpop.f32.mrb[0].mxu0
      %v1487 = vadd.f32 0.0, %v1486
      %v1488 = vpop.f32.mrb[0].mxu0
      %1489 = vmatprep.mubr.bf16.mxu0 0
      %1490 = vmatmul.mubr.bf16.gmra.mrb[0].mxu0 %v1430
      %v1491 = vpop.f32.mrb[0].mxu0
      %v1492 = vadd.f32 0.0, %v1491
      %v1493 = vpop.f32.mrb[0].mxu0
      %v1494 = vpop.f32.mrb[0].mxu0
      %v1495 = vadd.f32 0.0, %v1494
      %v1496 = vpop.f32.mrb[0].mxu0
      %1497 = vmatprep.mubr.bf16.mxu0 0
      %1498 = vmatmul.mubr.bf16.gmra.mrb[0].mxu0 %v1433
      %v1499 = vpop.f32.mrb[0].mxu0
      %v1500 = vadd.f32 0.0, %v1499
      %v1501 = vpop.f32.mrb[0].mxu0
      %v1502 = vpop.f32.mrb[0].mxu0
      %v1503 = vadd.f32 0.0, %v1502
      %v1504 = vpop.f32.mrb[0].mxu0
      %1505 = vmatprep.mubr.bf16.mxu0 0
      %1506 = vmatmul.mubr.bf16.gmra.mrb[0].mxu0 %v1436
      %v1507 = vpop.f32.mrb[0].mxu0
      %v1508 = vadd.f32 0.0, %v1507
      %v1509 = vpop.f32.mrb[0].mxu0
      %v1510 = vpop.f32.mrb[0].mxu0
      %v1511 = vpop.f32.mrb[0].mxu0
      %1512 = vdwg.mxu0
      %v1513 = vadd.f32 %v1402, %v1476
      %v1514 = vadd.f32 %v1403, %v1479
      %v1515 = vadd.f32 %v1404, %v1484
      %v1516 = vadd.f32 %v1405, %v1487
      %v1517 = vadd.f32 %v1406, %v1492
      %v1518 = vadd.f32 %v1407, %v1495
      %v1519 = vadd.f32 %v1408, %v1500
      %v1520 = vadd.f32 %v1409, %v1503
      %v1521 = vadd.f32 %v1410, %v1508
      %v1522 = vld [vmem:[%s5] sm:$0x1]
      %v1524 = vlaneseq
      %v1525 = vshrl.u32 %v1524, 7
      %v1526 = vsub.s32 0, %v1525
      %v1527 = vrot.slane %v1522, %v1526
      %v1529 = vadd.f32 %v1513, %v1527
      %v1530 = vadd.f32 %v1514, %v1527
      %v1531 = vadd.f32 %v1515, %v1527
      %v1532 = vadd.f32 %v1516, %v1527
      %v1533 = vadd.f32 %v1517, %v1527
      %v1534 = vadd.f32 %v1518, %v1527
      %v1535 = vadd.f32 %v1519, %v1527
      %v1536 = vadd.f32 %v1520, %v1527
      %v1537 = vadd.f32 %v1521, %v1527
      %v1538 = vmax.f32 %v1529, 0.0
      %v1539 = vmax.f32 %v1530, 0.0
      %v1540 = vmax.f32 %v1531, 0.0
      %v1541 = vmax.f32 %v1532, 0.0
      %v1542 = vmax.f32 %v1533, 0.0
      %v1543 = vmax.f32 %v1534, 0.0
      %v1544 = vmax.f32 %v1535, 0.0
      %v1545 = vmax.f32 %v1536, 0.0
      %v1546 = vmax.f32 %v1537, 0.0
      %v1547 = vpack.c.bf16 %v1539, %v1538
      %v1548 = vpack.c.bf16 %v1541, %v1540
      %v1549 = vpack.c.bf16 %v1543, %v1542
      %v1550 = vpack.c.bf16 %v1545, %v1544
      %v1551 = vpack.c.bf16 %v1546, %v1546
      %v1557 = vunpack.c.l.b16 %v1547
      %v1558 = vunpack.c.h.b16 %v1547
      %v1559 = vunpack.c.l.b16 %v1548
      %v1560 = vunpack.c.h.b16 %v1548
      %v1561 = vunpack.c.l.b16 %v1549
      %v1562 = vunpack.c.h.b16 %v1549
      %v1563 = vunpack.c.l.b16 %v1550
      %v1564 = vunpack.c.h.b16 %v1550
      %v1565 = vunpack.c.l.b16 %v1551
      %v1566 = vpack.c.b16 %v1557, %v1557
      %v1567 = vpack.c.b16 %v1558, %v1558
      %v1568 = vpack.c.b16 %v1559, %v1559
      %v1569 = vpack.c.b16 %v1560, %v1560
      %v1570 = vpack.c.b16 %v1561, %v1561
      %v1571 = vpack.c.b16 %v1562, %v1562
      %v1572 = vpack.c.b16 %v1563, %v1563
      %v1573 = vpack.c.b16 %v1564, %v1564
      %v1574 = vpack.c.b16 %v1565, %v1565
      %vm1584 = vcmask 125952
      %1585 = vst.msk [vmem:[%s311] sm:$0xf] %vm1584, %v1566
      %1586 = vst.msk [vmem:[%s311 + $0x4] sm:$0xf] %vm1584, %v1567
      %1587 = vst.msk [vmem:[%s311 + $0x8] sm:$0xf] %vm1584, %v1568
      %1588 = vst.msk [vmem:[%s311 + $0xc] sm:$0xf] %vm1584, %v1569
      %1589 = vst.msk [vmem:[%s311 + $0x10] sm:$0xf] %vm1584, %v1570
      %1590 = vst.msk [vmem:[%s311 + $0x14] sm:$0xf] %vm1584, %v1571
      %1591 = vst.msk [vmem:[%s311 + $0x18] sm:$0xf] %vm1584, %v1572
      %1592 = vst.msk [vmem:[%s311 + $0x1c] sm:$0xf] %vm1584, %v1573
      %1593 = vst.msk [vmem:[%s311 + $0x20] sm:$0xf] %vm1584, %v1574
      %p1594 = scmp.lt.s32.totalorder %s17, 1
      %s1595 = scalar_select %p1594, %s17, 1
      %s1596 = smul.addr %s1595, 9
      %s1597 = smul.addr %s1596, 4
      %s1598 = scalar_lea.vmem %s6, %s1597
      // Predicated region
      $region45: #{pspnet_forward.9} parent=43 // pred_check
        %p1599 = pneg %p181
      $region46: #{pspnet_forward.9} parent=43 // pred_check_branch
        %1601 = sbr.rel (%p1599) target = $region48
      $region47: #{pspnet_forward.9} parent=43 // pred_region
        _
      $region48: #{pspnet_forward.9} parent=43 // pred_fallthru
        _
    $region44: #{pspnet_forward.9} parent=5 // pred_fallthru
      _
    %p1602 = scmp.le.s32.totalorder 2, %s12
    // Predicated region
    $region49: #{pspnet_forward.9} parent=5 // pred_check
      %p1603 = pneg %p1602
    $region50: #{pspnet_forward.9} parent=5 // pred_check_branch
      %1605 = sbr.rel (%p1603) target = $region52
    $region51: #{pspnet_forward.9} parent=5 // pred_region
      %s1606 = ssub.s32 %s12, 2
      // Predicated region
      $region53: #{pspnet_forward.9} parent=51 // pred_check
        %p1607 = pneg %p187
      $region54: #{pspnet_forward.9} parent=51 // pred_check_branch
        %1609 = sbr.rel (%p1607) target = $region56
      $region55: #{pspnet_forward.9} parent=51 // pred_region
        %p1610 = scmp.lt.s32.totalorder %s18, 1
        %s1611 = scalar_select %p1610, %s18, 1
        %s1612 = smul.addr %s1611, 9
        %s1613 = smul.addr %s1612, 4
        %s1614 = scalar_lea.vmem %s6, %s1613
      $region56: #{pspnet_forward.9} parent=51 // pred_fallthru
        _
    $region52: #{pspnet_forward.9} parent=5 // pred_fallthru
      _
  $region6: #{pspnet_forward.9} parent=0 // loop_footer
    %s16 = sadd.s32 1, %s12
  $region7: #{pspnet_forward.9} parent=0 // loop_footer_branch
    %11 = sbr.rel target = $region3
  $region8: #{pspnet_forward.9} parent=0 // loop_exit
    _

// kernel: pspnet_forward.11
$region0: #{pspnet_forward.11}
  #allocation0 [shape = 'u32[]', space=smem, size = 0x4, offset = 0x4, fixed_abs, tag = 'smem constant byte address 0x4 - core index']
  #allocation1 [shape = 'u32[144,128]{1,0:T(1,128)}', space=vmem, size = 0x12000, scoped, tag = 'internal scratch']
  %s0 = inlined_call_operand.vmem [shape: bf16[2,16,32], index: 0, kind: input, shape index: {}]
  %s1 = inlined_call_operand.vmem [shape: bf16[4,36,16], index: 1, kind: input, shape index: {}]
  %s2 = inlined_call_operand.vmem [shape: bf16[4,16,36], index: 2, kind: input, shape index: {}]
  %s3 = inlined_call_operand.vmem [shape: bf16[4,32,64], index: 3, kind: input, shape index: {}]
  %s4 = inlined_call_operand.vmem [shape: bf16[32,64], index: 4, kind: input, shape index: {}]
  %s5 = inlined_call_operand.vmem [shape: bf16[2,16,64], index: 5, kind: output, shape index: {}]
  %s6 = sld [smem:[#allocation0]]
  $region53: #{pspnet_forward.11} parent=0
    _
  %s8 = ssub.s32 1, %s6
  %s9 = scalar_select 0, %s8, %s6
  loop: start=0, step=1, limit=4
  $region2: #{pspnet_forward.11} parent=0 // loop_pre_header
    _
  $region3: #{pspnet_forward.11} parent=0 // loop_header
    %s11 = sphi 0, %s15
    %p12 = scmp.ge.s32.totalorder %s11, 4
    %s21 = sphi 0, %s23
    %s24 = sphi 0, %s21
    %s25 = sphi 0, %s24
    %s41 = sphi 0, %s25
    %s45 = sphi 0, %s45
    %s47 = sphi 0, %s45
    %s48 = sphi 0, %s47
    %s62 = sphi 0, %s48
    %s66 = sphi 0, %s66
    %s68 = sphi 0, %s66
    %s69 = sphi 0, %s68
    %s83 = sphi 0, %s69
    %s87 = sphi 0, %s87
    %s89 = sphi 0, %s87
    %s90 = sphi 0, %s89
    %s104 = sphi 0, %s90
    %s108 = sphi 0, %s108
    %s110 = sphi 0, %s108
    %s111 = sphi 0, %s110
    %s125 = sphi 0, %s111
    %s131 = sphi 0, %s133
    %s134 = sphi 0, %s131
    %s135 = sphi 0, %s134
    %s151 = sphi 0, %s135
  $region4: #{pspnet_forward.11} parent=0 // loop_header_branch
    %14 = sbr.rel (%p12) target = $region8
  $region5: #{pspnet_forward.11} parent=0 // loop_body
    %s16 = ssub.s32 %s11, 1
    %s17 = ssub.s32 %s11, 2
    %s18 = sadd.s32 %s11, 1
    %s19 = ssub.s32 %s11, %s18
    %p20 = scmp.eq.s32.totalorder %s19, 0
    %s22 = sadd.s32 %s21, 1
    %s23 = scalar_select %p20, %s21, %s22
    %p26 = pneg %p20
    %p27 = scmp.eq.s32.totalorder %s11, 1
    %p28 = por %p26, %p27
    %p29 = scmp.ne.s32.totalorder %s21, %s24
    %p30 = scmp.eq.s32.totalorder %s11, 0
    %p31 = por %p29, %p30
    %p32 = scmp.ne.s32.totalorder %s21, %s24
    %p33 = scmp.eq.s32.totalorder %s16, 1
    %p34 = por %p32, %p33
    %p35 = scmp.ne.s32.totalorder %s24, %s25
    %p36 = scmp.eq.s32.totalorder %s16, 0
    %p37 = por %p35, %p36
    %p38 = scmp.ne.s32.totalorder %s24, %s25
    %p39 = scmp.eq.s32.totalorder %s17, 1
    %p40 = por %p38, %p39
    %p42 = scmp.ne.s32.totalorder %s25, %s41
    %p43 = scmp.eq.s32.totalorder %s17, 0
    %p44 = por %p42, %p43
    %s46 = sadd.s32 %s45, 1
    %p49 = scmp.eq.s32.totalorder %s11, 1
    %p50 = scmp.ne.s32.totalorder %s45, %s47
    %p51 = scmp.eq.s32.totalorder %s11, 0
    %p52 = por %p50, %p51
    %p53 = scmp.ne.s32.totalorder %s45, %s47
    %p54 = scmp.eq.s32.totalorder %s16, 1
    %p55 = por %p53, %p54
    %p56 = scmp.ne.s32.totalorder %s47, %s48
    %p57 = scmp.eq.s32.totalorder %s16, 0
    %p58 = por %p56, %p57
    %p59 = scmp.ne.s32.totalorder %s47, %s48
    %p60 = scmp.eq.s32.totalorder %s17, 1
    %p61 = por %p59, %p60
    %p63 = scmp.ne.s32.totalorder %s48, %s62
    %p64 = scmp.eq.s32.totalorder %s17, 0
    %p65 = por %p63, %p64
    %s67 = sadd.s32 %s66, 1
    %p70 = scmp.eq.s32.totalorder %s11, 1
    %p71 = scmp.ne.s32.totalorder %s66, %s68
    %p72 = scmp.eq.s32.totalorder %s11, 0
    %p73 = por %p71, %p72
    %p74 = scmp.ne.s32.totalorder %s66, %s68
    %p75 = scmp.eq.s32.totalorder %s16, 1
    %p76 = por %p74, %p75
    %p77 = scmp.ne.s32.totalorder %s68, %s69
    %p78 = scmp.eq.s32.totalorder %s16, 0
    %p79 = por %p77, %p78
    %p80 = scmp.ne.s32.totalorder %s68, %s69
    %p81 = scmp.eq.s32.totalorder %s17, 1
    %p82 = por %p80, %p81
    %p84 = scmp.ne.s32.totalorder %s69, %s83
    %p85 = scmp.eq.s32.totalorder %s17, 0
    %p86 = por %p84, %p85
    %s88 = sadd.s32 %s87, 1
    %p91 = scmp.eq.s32.totalorder %s11, 1
    %p92 = scmp.ne.s32.totalorder %s87, %s89
    %p93 = scmp.eq.s32.totalorder %s11, 0
    %p94 = por %p92, %p93
    %p95 = scmp.ne.s32.totalorder %s87, %s89
    %p96 = scmp.eq.s32.totalorder %s16, 1
    %p97 = por %p95, %p96
    %p98 = scmp.ne.s32.totalorder %s89, %s90
    %p99 = scmp.eq.s32.totalorder %s16, 0
    %p100 = por %p98, %p99
    %p101 = scmp.ne.s32.totalorder %s89, %s90
    %p102 = scmp.eq.s32.totalorder %s17, 1
    %p103 = por %p101, %p102
    %p105 = scmp.ne.s32.totalorder %s90, %s104
    %p106 = scmp.eq.s32.totalorder %s17, 0
    %p107 = por %p105, %p106
    %s109 = sadd.s32 %s108, 1
    %p112 = scmp.eq.s32.totalorder %s11, 1
    %p113 = scmp.ne.s32.totalorder %s108, %s110
    %p114 = scmp.eq.s32.totalorder %s11, 0
    %p115 = por %p113, %p114
    %p116 = scmp.ne.s32.totalorder %s108, %s110
    %p117 = scmp.eq.s32.totalorder %s16, 1
    %p118 = por %p116, %p117
    %p119 = scmp.ne.s32.totalorder %s110, %s111
    %p120 = scmp.eq.s32.totalorder %s16, 0
    %p121 = por %p119, %p120
    %p122 = scmp.ne.s32.totalorder %s110, %s111
    %p123 = scmp.eq.s32.totalorder %s17, 1
    %p124 = por %p122, %p123
    %p126 = scmp.ne.s32.totalorder %s111, %s125
    %p127 = scmp.eq.s32.totalorder %s17, 0
    %p128 = por %p126, %p127
    %s129 = ssub.s32 %s11, %s18
    %p130 = scmp.eq.s32.totalorder %s129, 0
    %s132 = sadd.s32 %s131, 1
    %s133 = scalar_select %p130, %s131, %s132
    %p136 = pneg %p130
    %p137 = scmp.eq.s32.totalorder %s11, 1
    %p138 = por %p136, %p137
    %p139 = scmp.ne.s32.totalorder %s131, %s134
    %p140 = scmp.eq.s32.totalorder %s11, 0
    %p141 = por %p139, %p140
    %p142 = scmp.ne.s32.totalorder %s131, %s134
    %p143 = scmp.eq.s32.totalorder %s16, 1
    %p144 = por %p142, %p143
    %p145 = scmp.ne.s32.totalorder %s134, %s135
    %p146 = scmp.eq.s32.totalorder %s16, 0
    %p147 = por %p145, %p146
    %p148 = scmp.ne.s32.totalorder %s134, %s135
    %p149 = scmp.eq.s32.totalorder %s17, 1
    %p150 = por %p148, %p149
    %p152 = scmp.ne.s32.totalorder %s135, %s151
    %p153 = scmp.eq.s32.totalorder %s17, 0
    %p154 = por %p152, %p153
    %p155 = scmp.le.s32.totalorder 1, %s11
    %p156 = scmp.lt.s32.totalorder %s11, 3
    %p157 = pnand %p155, %p156
    %p158 = pneg %p157
    // Predicated region
    $region9: #{pspnet_forward.11} parent=5 // pred_check
      _
    $region10: #{pspnet_forward.11} parent=5 // pred_check_branch
      %160 = sbr.rel (%p157) target = $region12
    $region11: #{pspnet_forward.11} parent=5 // pred_region
      %s161 = ssub.s32 %s11, 1
      // Predicated region
      $region13: #{pspnet_forward.11} parent=11 // pred_check
        %p162 = pneg %p58
      $region14: #{pspnet_forward.11} parent=11 // pred_check_branch
        %164 = sbr.rel (%p162) target = $region16
      $region15: #{pspnet_forward.11} parent=11 // pred_region
        _
      $region16: #{pspnet_forward.11} parent=11 // pred_fallthru
        _
      // Predicated region
      $region17: #{pspnet_forward.11} parent=11 // pred_check
        %p165 = pneg %p79
      $region18: #{pspnet_forward.11} parent=11 // pred_check_branch
        %167 = sbr.rel (%p165) target = $region20
      $region19: #{pspnet_forward.11} parent=11 // pred_region
        _
      $region20: #{pspnet_forward.11} parent=11 // pred_fallthru
        _
      // Predicated region
      $region21: #{pspnet_forward.11} parent=11 // pred_check
        %p168 = pneg %p100
      $region22: #{pspnet_forward.11} parent=11 // pred_check_branch
        %170 = sbr.rel (%p168) target = $region24
      $region23: #{pspnet_forward.11} parent=11 // pred_region
        _
      $region24: #{pspnet_forward.11} parent=11 // pred_fallthru
        _
      // Predicated region
      $region25: #{pspnet_forward.11} parent=11 // pred_check
        %p171 = pneg %p121
      $region26: #{pspnet_forward.11} parent=11 // pred_check_branch
        %173 = sbr.rel (%p171) target = $region28
      $region27: #{pspnet_forward.11} parent=11 // pred_region
        _
      $region28: #{pspnet_forward.11} parent=11 // pred_fallthru
        _
    $region12: #{pspnet_forward.11} parent=5 // pred_fallthru
      _
    %p174 = scmp.lt.s32.totalorder %s11, 2
    // Predicated region
    $region29: #{pspnet_forward.11} parent=5 // pred_check
      %p175 = pneg %p174
    $region30: #{pspnet_forward.11} parent=5 // pred_check_branch
      %177 = sbr.rel (%p175) target = $region32
    $region31: #{pspnet_forward.11} parent=5 // pred_region
      // Predicated region
      $region33: #{pspnet_forward.11} parent=31 // pred_check
        %p178 = pneg %p31
      $region34: #{pspnet_forward.11} parent=31 // pred_check_branch
        %180 = sbr.rel (%p178) target = $region36
      $region35: #{pspnet_forward.11} parent=31 // pred_region
        %p181 = scmp.lt.s32.totalorder %s11, 1
        %s182 = scalar_select %p181, %s11, 1
        %s183 = smul.addr %s182, 2
        %s184 = smul.addr %s183, 4
        %s185 = scalar_lea.vmem %s0, %s184
      $region36: #{pspnet_forward.11} parent=31 // pred_fallthru
        _
    $region32: #{pspnet_forward.11} parent=5 // pred_fallthru
      _
    %p186 = scmp.le.s32.totalorder 1, %s11
    %p187 = scmp.lt.s32.totalorder %s11, 3
    %p188 = pnand %p186, %p187
    %p189 = pneg %p188
    // Predicated region
    $region37: #{pspnet_forward.11} parent=5 // pred_check
      _
    $region38: #{pspnet_forward.11} parent=5 // pred_check_branch
      %191 = sbr.rel (%p188) target = $region40
    $region39: #{pspnet_forward.11} parent=5 // pred_region
      %s192 = ssub.s32 %s11, 1
      %p193 = scmp.lt.s32.totalorder %s16, 1
      %s194 = scalar_select %p193, %s16, 1
      %s195 = smul.addr %s194, 2
      %s196 = smul.addr %s195, 4
      %s197 = scalar_lea.vmem %s0, %s196
      %p198 = pneg %p37
      %p199 = pneg %p34
      %p200 = pneg %p58
      %p201 = pneg %p55
      %p202 = pneg %p79
      %p203 = pneg %p76
      %p204 = pneg %p100
      %p205 = pneg %p97
      %p206 = pneg %p121
      %p207 = pneg %p118
      %p208 = pneg %p147
      %p209 = pneg %p144
      %p210 = scmp.lt.s32.totalorder %s16, 1
      %s211 = scalar_select %p210, %s16, 1
      %s212 = smul.addr %s211, 2
      %s213 = smul.addr %s212, 4
      %s214 = scalar_lea.vmem %s5, %s213
      %p215 = scmp.lt.s32.totalorder %s16, 1
      %s216 = scalar_select %p215, %s16, 1
      %s217 = smul.addr %s216, 2
      %s218 = smul.addr %s217, 4
      %s219 = scalar_lea.vmem %s0, %s218
      %p220 = scmp.lt.s32.totalorder %s16, 1
      %s221 = scalar_select %p220, %s16, 1
      %s222 = smul.addr %s221, 2
      %s223 = smul.addr %s222, 4
      %s224 = scalar_lea.vmem %s5, %s223
      %v226 = vld [vmem:[%s219] sm:$0xf]
      %v227 = vld [vmem:[%s219 + $0x4] sm:$0xf]
      %v228 = vld [vmem:[%s4] sm:$0xf]
      %v229 = vld [vmem:[%s4 + $0x4] sm:$0xf]
      %v230 = vld [vmem:[%s4 + $0x8] sm:$0xf]
      %v231 = vld [vmem:[%s4 + $0xc] sm:$0xf]
      %v232 = vld [vmem:[%s1] sm:$0xf]
      %v233 = vld [vmem:[%s1 + $0x4] sm:$0xf]
      %v234 = vld [vmem:[%s1 + $0x8] sm:$0xf]
      %v235 = vld [vmem:[%s1 + $0xc] sm:$0xf]
      %v236 = vld [vmem:[%s1 + $0x10] sm:$0x3]
      %v242 = vunpack.c.l.b16 %v232
      %v243 = vunpack.c.l.b16 %v233
      %v244 = vunpack.c.l.b16 %v234
      %v245 = vunpack.c.l.b16 %v235
      %v246 = vunpack.c.l.b16 %v236
      %v247 = vpack.c.b16 %v243, %v242
      %v248 = vpack.c.b16 %v245, %v244
      %v249 = vpack.c.b16 %v246, %v246
      %v252 = vunpack.c.l.b16 %v226
      %v253 = vunpack.c.l.b16 %v227
      %v254 = vpack.c.b16 %v253, %v252
      %vm256 = vcmask 130048
      %v258 = vsel %vm256, %v247, 0
      %v261 = vsel %vm256, %v248, 0
      %v264 = vsel %vm256, %v249, 0
      %266 = vmatprep.subr.bf16.mxu0 0
      %267 = vmatpush1.bf16.msra.mxu0 %v254
      %268 = vmatprep.subr.bf16.mxu0 0
      %269 = vmatpush1.bf16.msra.mxu0 0
      %270 = vmatprep.subr.bf16.mxu0 0
      %271 = vmatpush1.bf16.msra.mxu0 0
      %272 = vmatprep.subr.bf16.mxu0 0
      %273 = vmatpush1.bf16.msra.mxu0 0
      %274 = vmatprep.subr.bf16.mxu0 0
      %275 = vmatpush1.bf16.msra.mxu0 0
      %276 = vmatprep.subr.bf16.mxu0 0
      %277 = vmatpush1.bf16.msra.mxu0 0
      %278 = vmatprep.subr.bf16.mxu0 0
      %279 = vmatpush1.bf16.msra.mxu0 0
      %280 = vmatprep.subr.bf16.mxu0 0
      %281 = vmatpush1.bf16.msra.mxu0 0
      %282 = vmatprep.subr.bf16.mxu0 0
      %283 = vmatpush1.bf16.msra.mxu0 0
      %284 = vmatprep.subr.bf16.mxu0 0
      %285 = vmatpush1.bf16.msra.mxu0 0
      %286 = vmatprep.subr.bf16.mxu0 0
      %287 = vmatpush1.bf16.msra.mxu0 0
      %288 = vmatprep.subr.bf16.mxu0 0
      %289 = vmatpush1.bf16.msra.mxu0 0
      %290 = vmatprep.subr.bf16.mxu0 0
      %291 = vmatpush1.bf16.msra.mxu0 0
      %292 = vmatprep.subr.bf16.mxu0 0
      %293 = vmatpush1.bf16.msra.mxu0 0
      %294 = vmatprep.subr.bf16.mxu0 0
      %295 = vmatpush1.bf16.msra.mxu0 0
      %296 = vmatprep.subr.bf16.mxu0 0
      %297 = vmatpush1.bf16.msra.mxu0 0
      %298 = vmatprep.mubr.bf16.mxu0 0
      %299 = vmatmul.mubr.bf16.gmra.mrb[0].mxu0 %v258
      %v300 = vpop.f32.mrb[0].mxu0
      %v301 = vadd.f32 0.0, %v300
      %v302 = vpop.f32.mrb[0].mxu0
      %v303 = vpop.f32.mrb[0].mxu0
      %v304 = vadd.f32 0.0, %v303
      %v305 = vpop.f32.mrb[0].mxu0
      %306 = vmatprep.mubr.bf16.mxu0 0
      %307 = vmatmul.mubr.bf16.gmra.mrb[0].mxu0 %v261
      %v308 = vpop.f32.mrb[0].mxu0
      %v309 = vadd.f32 0.0, %v308
      %v310 = vpop.f32.mrb[0].mxu0
      %v311 = vpop.f32.mrb[0].mxu0
      %v312 = vadd.f32 0.0, %v311
      %v313 = vpop.f32.mrb[0].mxu0
      %314 = vmatprep.mubr.bf16.mxu0 0
      %315 = vmatmul.mubr.bf16.gmra.mrb[0].mxu0 %v264
      %v316 = vpop.f32.mrb[0].mxu0
      %v317 = vadd.f32 0.0, %v316
      %v318 = vpop.f32.mrb[0].mxu0
      %v319 = vpop.f32.mrb[0].mxu0
      %v320 = vpop.f32.mrb[0].mxu0
      %321 = vdwg.mxu0
      %v322 = vpack.c.bf16 %v304, %v301
      %v323 = vpack.c.bf16 %v312, %v309
      %v324 = vpack.c.bf16 %v317, %v317
      %v325 = vld [vmem:[%s3] sm:$0xf]
      %v326 = vld [vmem:[%s3 + $0x4] sm:$0xf]
      %v327 = vld [vmem:[%s3 + $0x8] sm:$0xf]
      %v328 = vld [vmem:[%s3 + $0xc] sm:$0xf]
      %v333 = vunpack.c.l.b16 %v325
      %v334 = vunpack.c.l.b16 %v326
      %v335 = vunpack.c.l.b16 %v327
      %v336 = vunpack.c.l.b16 %v328
      %v337 = vpack.c.b16 %v334, %v333
      %v338 = vpack.c.b16 %v336, %v335
      %vm341 = vcmask 261120
      %v343 = vsel %vm341, %v322, 0
      %v346 = vsel %vm341, %v323, 0
      %v349 = vsel %vm341, %v324, 0
      %351 = vmatprep.subr.bf16.mxu0 0
      %352 = vmatpush1.bf16.msra.mxu0 %v337
      %353 = vmatprep.subr.bf16.mxu0 0
      %354 = vmatpush1.bf16.msra.mxu0 %v338
      %355 = vmatprep.subr.bf16.mxu0 0
      %356 = vmatpush1.bf16.msra.mxu0 0
      %357 = vmatprep.subr.bf16.mxu0 0
      %358 = vmatpush1.bf16.msra.mxu0 0
      %359 = vmatprep.subr.bf16.mxu0 0
      %360 = vmatpush1.bf16.msra.mxu0 0
      %361 = vmatprep.subr.bf16.mxu0 0
      %362 = vmatpush1.bf16.msra.mxu0 0
      %363 = vmatprep.subr.bf16.mxu0 0
      %364 = vmatpush1.bf16.msra.mxu0 0
      %365 = vmatprep.subr.bf16.mxu0 0
      %366 = vmatpush1.bf16.msra.mxu0 0
      %367 = vmatprep.subr.bf16.mxu0 0
      %368 = vmatpush1.bf16.msra.mxu0 0
      %369 = vmatprep.subr.bf16.mxu0 0
      %370 = vmatpush1.bf16.msra.mxu0 0
      %371 = vmatprep.subr.bf16.mxu0 0
      %372 = vmatpush1.bf16.msra.mxu0 0
      %373 = vmatprep.subr.bf16.mxu0 0
      %374 = vmatpush1.bf16.msra.mxu0 0
      %375 = vmatprep.subr.bf16.mxu0 0
      %376 = vmatpush1.bf16.msra.mxu0 0
      %377 = vmatprep.subr.bf16.mxu0 0
      %378 = vmatpush1.bf16.msra.mxu0 0
      %379 = vmatprep.subr.bf16.mxu0 0
      %380 = vmatpush1.bf16.msra.mxu0 0
      %381 = vmatprep.subr.bf16.mxu0 0
      %382 = vmatpush1.bf16.msra.mxu0 0
      %383 = vmatprep.mubr.bf16.mxu0 0
      %384 = vmatmul.mubr.bf16.gmra.mrb[0].mxu0 %v343
      %v385 = vpop.f32.mrb[0].mxu0
      %v386 = vadd.f32 0.0, %v385
      %v387 = vpop.f32.mrb[0].mxu0
      %v388 = vpop.f32.mrb[0].mxu0
      %v389 = vadd.f32 0.0, %v388
      %v390 = vpop.f32.mrb[0].mxu0
      %391 = vmatprep.mubr.bf16.mxu0 0
      %392 = vmatmul.mubr.bf16.gmra.mrb[0].mxu0 %v346
      %v393 = vpop.f32.mrb[0].mxu0
      %v394 = vadd.f32 0.0, %v393
      %v395 = vpop.f32.mrb[0].mxu0
      %v396 = vpop.f32.mrb[0].mxu0
      %v397 = vadd.f32 0.0, %v396
      %v398 = vpop.f32.mrb[0].mxu0
      %399 = vmatprep.mubr.bf16.mxu0 0
      %400 = vmatmul.mubr.bf16.gmra.mrb[0].mxu0 %v349
      %v401 = vpop.f32.mrb[0].mxu0
      %v402 = vadd.f32 0.0, %v401
      %v403 = vpop.f32.mrb[0].mxu0
      %v404 = vpop.f32.mrb[0].mxu0
      %v405 = vpop.f32.mrb[0].mxu0
      %406 = vdwg.mxu0
      %v407 = vld [vmem:[%s2] sm:$0xf]
      %v408 = vld [vmem:[%s2 + $0x4] sm:$0xf]
      %v409 = vpack.c.bf16 %v389, %v386
      %v410 = vpack.c.bf16 %v397, %v394
      %v411 = vpack.c.bf16 %v402, %v402
      %v414 = vunpack.c.l.b16 %v407
      %v415 = vunpack.c.l.b16 %v408
      %v416 = vpack.c.b16 %v415, %v414
      %vm417 = vcmask 293888
      %v419 = vsel %vm417, %v416, 0
      %vm421 = vcmask 1041408
      %v423 = vsel %vm421, %v411, 0
      %425 = vmatprep.subr.bf16.mxu0 0
      %426 = vmatpush1.bf16.msra.mxu0 %v409
      %427 = vmatprep.subr.bf16.mxu0 0
      %428 = vmatpush1.bf16.msra.mxu0 %v410
      %429 = vmatprep.subr.bf16.mxu0 0
      %430 = vmatpush1.bf16.msra.mxu0 %v423
      %431 = vmatprep.subr.bf16.mxu0 0
      %432 = vmatpush1.bf16.msra.mxu0 0
      %433 = vmatprep.subr.bf16.mxu0 0
      %434 = vmatpush1.bf16.msra.mxu0 0
      %435 = vmatprep.subr.bf16.mxu0 0
      %436 = vmatpush1.bf16.msra.mxu0 0
      %437 = vmatprep.subr.bf16.mxu0 0
      %438 = vmatpush1.bf16.msra.mxu0 0
      %439 = vmatprep.subr.bf16.mxu0 0
      %440 = vmatpush1.bf16.msra.mxu0 0
      %441 = vmatprep.subr.bf16.mxu0 0
      %442 = vmatpush1.bf16.msra.mxu0 0
      %443 = vmatprep.subr.bf16.mxu0 0
      %444 = vmatpush1.bf16.msra.mxu0 0
      %445 = vmatprep.subr.bf16.mxu0 0
      %446 = vmatpush1.bf16.msra.mxu0 0
      %447 = vmatprep.subr.bf16.mxu0 0
      %448 = vmatpush1.bf16.msra.mxu0 0
      %449 = vmatprep.subr.bf16.mxu0 0
      %450 = vmatpush1.bf16.msra.mxu0 0
      %451 = vmatprep.subr.bf16.mxu0 0
      %452 = vmatpush1.bf16.msra.mxu0 0
      %453 = vmatprep.subr.bf16.mxu0 0
      %454 = vmatpush1.bf16.msra.mxu0 0
      %455 = vmatprep.subr.bf16.mxu0 0
      %456 = vmatpush1.bf16.msra.mxu0 0
      %457 = vmatprep.mubr.bf16.mxu0 0
      %458 = vmatmul.mubr.bf16.gmra.mrb[0].mxu0 %v419
      %v459 = vpop.f32.mrb[0].mxu0
      %v460 = vadd.f32 0.0, %v459
      %v461 = vpop.f32.mrb[0].mxu0
      %v462 = vpop.f32.mrb[0].mxu0
      %v463 = vadd.f32 0.0, %v462
      %v464 = vpop.f32.mrb[0].mxu0
      %465 = vdwg.mxu0
      %v470 = vunpack.c.l.b16 %v228
      %v471 = vunpack.c.l.b16 %v229
      %v472 = vunpack.c.l.b16 %v230
      %v473 = vunpack.c.l.b16 %v231
      %v474 = vpack.c.b16 %v471, %v470
      %v475 = vpack.c.b16 %v473, %v472
      %v479 = vsel %vm341, %v254, 0
      %481 = vmatprep.subr.bf16.mxu0 0
      %482 = vmatpush1.bf16.msra.mxu0 %v474
      %483 = vmatprep.subr.bf16.mxu0 0
      %484 = vmatpush1.bf16.msra.mxu0 %v475
      %485 = vmatprep.subr.bf16.mxu0 0
      %486 = vmatpush1.bf16.msra.mxu0 0
      %487 = vmatprep.subr.bf16.mxu0 0
      %488 = vmatpush1.bf16.msra.mxu0 0
      %489 = vmatprep.subr.bf16.mxu0 0
      %490 = vmatpush1.bf16.msra.mxu0 0
      %491 = vmatprep.subr.bf16.mxu0 0
      %492 = vmatpush1.bf16.msra.mxu0 0
      %493 = vmatprep.subr.bf16.mxu0 0
      %494 = vmatpush1.bf16.msra.mxu0 0
      %495 = vmatprep.subr.bf16.mxu0 0
      %496 = vmatpush1.bf16.msra.mxu0 0
      %497 = vmatprep.subr.bf16.mxu0 0
      %498 = vmatpush1.bf16.msra.mxu0 0
      %499 = vmatprep.subr.bf16.mxu0 0
      %500 = vmatpush1.bf16.msra.mxu0 0
      %501 = vmatprep.subr.bf16.mxu0 0
      %502 = vmatpush1.bf16.msra.mxu0 0
      %503 = vmatprep.subr.bf16.mxu0 0
      %504 = vmatpush1.bf16.msra.mxu0 0
      %505 = vmatprep.subr.bf16.mxu0 0
      %506 = vmatpush1.bf16.msra.mxu0 0
      %507 = vmatprep.subr.bf16.mxu0 0
      %508 = vmatpush1.bf16.msra.mxu0 0
      %509 = vmatprep.subr.bf16.mxu0 0
      %510 = vmatpush1.bf16.msra.mxu0 0
      %511 = vmatprep.subr.bf16.mxu0 0
      %512 = vmatpush1.bf16.msra.mxu0 0
      %513 = vmatprep.mubr.bf16.mxu0 0
      %514 = vmatmul.mubr.bf16.gmra.mrb[0].mxu0 %v479
      %v515 = vpop.f32.mrb[0].mxu0
      %v516 = vadd.f32 %v460, %v515
      %v517 = vpop.f32.mrb[0].mxu0
      %v518 = vpop.f32.mrb[0].mxu0
      %v519 = vadd.f32 %v463, %v518
      %v520 = vpop.f32.mrb[0].mxu0
      %521 = vdwg.mxu0
      %s522 = scalar_lea.vmem %s1, 20
      %v523 = vld [vmem:[%s522] sm:$0xf]
      %v524 = vld [vmem:[%s522 + $0x4] sm:$0xf]
      %v525 = vld [vmem:[%s522 + $0x8] sm:$0xf]
      %v526 = vld [vmem:[%s522 + $0xc] sm:$0xf]
      %v527 = vld [vmem:[%s522 + $0x10] sm:$0x3]
      %v533 = vunpack.c.l.b16 %v523
      %v534 = vunpack.c.l.b16 %v524
      %v535 = vunpack.c.l.b16 %v525
      %v536 = vunpack.c.l.b16 %v526
      %v537 = vunpack.c.l.b16 %v527
      %v538 = vpack.c.b16 %v534, %v533
      %v539 = vpack.c.b16 %v536, %v535
      %v540 = vpack.c.b16 %v537, %v537
      %v542 = vsel %vm256, %v538, 0
      %v545 = vsel %vm256, %v539, 0
      %v548 = vsel %vm256, %v540, 0
      %550 = vmatprep.subr.bf16.mxu0 0
      %551 = vmatpush1.bf16.msra.mxu0 %v254
      %552 = vmatprep.subr.bf16.mxu0 0
      %553 = vmatpush1.bf16.msra.mxu0 0
      %554 = vmatprep.subr.bf16.mxu0 0
      %555 = vmatpush1.bf16.msra.mxu0 0
      %556 = vmatprep.subr.bf16.mxu0 0
      %557 = vmatpush1.bf16.msra.mxu0 0
      %558 = vmatprep.subr.bf16.mxu0 0
      %559 = vmatpush1.bf16.msra.mxu0 0
      %560 = vmatprep.subr.bf16.mxu0 0
      %561 = vmatpush1.bf16.msra.mxu0 0
      %562 = vmatprep.subr.bf16.mxu0 0
      %563 = vmatpush1.bf16.msra.mxu0 0
      %564 = vmatprep.subr.bf16.mxu0 0
      %565 = vmatpush1.bf16.msra.mxu0 0
      %566 = vmatprep.subr.bf16.mxu0 0
      %567 = vmatpush1.bf16.msra.mxu0 0
      %568 = vmatprep.subr.bf16.mxu0 0
      %569 = vmatpush1.bf16.msra.mxu0 0
      %570 = vmatprep.subr.bf16.mxu0 0
      %571 = vmatpush1.bf16.msra.mxu0 0
      %572 = vmatprep.subr.bf16.mxu0 0
      %573 = vmatpush1.bf16.msra.mxu0 0
      %574 = vmatprep.subr.bf16.mxu0 0
      %575 = vmatpush1.bf16.msra.mxu0 0
      %576 = vmatprep.subr.bf16.mxu0 0
      %577 = vmatpush1.bf16.msra.mxu0 0
      %578 = vmatprep.subr.bf16.mxu0 0
      %579 = vmatpush1.bf16.msra.mxu0 0
      %580 = vmatprep.subr.bf16.mxu0 0
      %581 = vmatpush1.bf16.msra.mxu0 0
      %582 = vmatprep.mubr.bf16.mxu0 0
      %583 = vmatmul.mubr.bf16.gmra.mrb[0].mxu0 %v542
      %v584 = vpop.f32.mrb[0].mxu0
      %v585 = vadd.f32 0.0, %v584
      %v586 = vpop.f32.mrb[0].mxu0
      %v587 = vpop.f32.mrb[0].mxu0
      %v588 = vadd.f32 0.0, %v587
      %v589 = vpop.f32.mrb[0].mxu0
      %590 = vmatprep.mubr.bf16.mxu0 0
      %591 = vmatmul.mubr.bf16.gmra.mrb[0].mxu0 %v545
      %v592 = vpop.f32.mrb[0].mxu0
      %v593 = vadd.f32 0.0, %v592
      %v594 = vpop.f32.mrb[0].mxu0
      %v595 = vpop.f32.mrb[0].mxu0
      %v596 = vadd.f32 0.0, %v595
      %v597 = vpop.f32.mrb[0].mxu0
      %598 = vmatprep.mubr.bf16.mxu0 0
      %599 = vmatmul.mubr.bf16.gmra.mrb[0].mxu0 %v548
      %v600 = vpop.f32.mrb[0].mxu0
      %v601 = vadd.f32 0.0, %v600
      %v602 = vpop.f32.mrb[0].mxu0
      %v603 = vpop.f32.mrb[0].mxu0
      %v604 = vpop.f32.mrb[0].mxu0
      %605 = vdwg.mxu0
      %v606 = vpack.c.bf16 %v588, %v585
      %v607 = vpack.c.bf16 %v596, %v593
      %v608 = vpack.c.bf16 %v601, %v601
      %s609 = scalar_lea.vmem %s3, 16
      %v610 = vld [vmem:[%s609] sm:$0xf]
      %v611 = vld [vmem:[%s609 + $0x4] sm:$0xf]
      %v612 = vld [vmem:[%s609 + $0x8] sm:$0xf]
      %v613 = vld [vmem:[%s609 + $0xc] sm:$0xf]
      %v618 = vunpack.c.l.b16 %v610
      %v619 = vunpack.c.l.b16 %v611
      %v620 = vunpack.c.l.b16 %v612
      %v621 = vunpack.c.l.b16 %v613
      %v622 = vpack.c.b16 %v619, %v618
      %v623 = vpack.c.b16 %v621, %v620
      %v627 = vsel %vm341, %v606, 0
      %v630 = vsel %vm341, %v607, 0
      %v633 = vsel %vm341, %v608, 0
      %635 = vmatprep.subr.bf16.mxu0 0
      %636 = vmatpush1.bf16.msra.mxu0 %v622
      %637 = vmatprep.subr.bf16.mxu0 0
      %638 = vmatpush1.bf16.msra.mxu0 %v623
      %639 = vmatprep.subr.bf16.mxu0 0
      %640 = vmatpush1.bf16.msra.mxu0 0
      %641 = vmatprep.subr.bf16.mxu0 0
      %642 = vmatpush1.bf16.msra.mxu0 0
      %643 = vmatprep.subr.bf16.mxu0 0
      %644 = vmatpush1.bf16.msra.mxu0 0
      %645 = vmatprep.subr.bf16.mxu0 0
      %646 = vmatpush1.bf16.msra.mxu0 0
      %647 = vmatprep.subr.bf16.mxu0 0
      %648 = vmatpush1.bf16.msra.mxu0 0
      %649 = vmatprep.subr.bf16.mxu0 0
      %650 = vmatpush1.bf16.msra.mxu0 0
      %651 = vmatprep.subr.bf16.mxu0 0
      %652 = vmatpush1.bf16.msra.mxu0 0
      %653 = vmatprep.subr.bf16.mxu0 0
      %654 = vmatpush1.bf16.msra.mxu0 0
      %655 = vmatprep.subr.bf16.mxu0 0
      %656 = vmatpush1.bf16.msra.mxu0 0
      %657 = vmatprep.subr.bf16.mxu0 0
      %658 = vmatpush1.bf16.msra.mxu0 0
      %659 = vmatprep.subr.bf16.mxu0 0
      %660 = vmatpush1.bf16.msra.mxu0 0
      %661 = vmatprep.subr.bf16.mxu0 0
      %662 = vmatpush1.bf16.msra.mxu0 0
      %663 = vmatprep.subr.bf16.mxu0 0
      %664 = vmatpush1.bf16.msra.mxu0 0
      %665 = vmatprep.subr.bf16.mxu0 0
      %666 = vmatpush1.bf16.msra.mxu0 0
      %667 = vmatprep.mubr.bf16.mxu0 0
      %668 = vmatmul.mubr.bf16.gmra.mrb[0].mxu0 %v627
      %v669 = vpop.f32.mrb[0].mxu0
      %v670 = vadd.f32 0.0, %v669
      %v671 = vpop.f32.mrb[0].mxu0
      %v672 = vpop.f32.mrb[0].mxu0
      %v673 = vadd.f32 0.0, %v672
      %v674 = vpop.f32.mrb[0].mxu0
      %675 = vmatprep.mubr.bf16.mxu0 0
      %676 = vmatmul.mubr.bf16.gmra.mrb[0].mxu0 %v630
      %v677 = vpop.f32.mrb[0].mxu0
      %v678 = vadd.f32 0.0, %v677
      %v679 = vpop.f32.mrb[0].mxu0
      %v680 = vpop.f32.mrb[0].mxu0
      %v681 = vadd.f32 0.0, %v680
      %v682 = vpop.f32.mrb[0].mxu0
      %683 = vmatprep.mubr.bf16.mxu0 0
      %684 = vmatmul.mubr.bf16.gmra.mrb[0].mxu0 %v633
      %v685 = vpop.f32.mrb[0].mxu0
      %v686 = vadd.f32 0.0, %v685
      %v687 = vpop.f32.mrb[0].mxu0
      %v688 = vpop.f32.mrb[0].mxu0
      %v689 = vpop.f32.mrb[0].mxu0
      %690 = vdwg.mxu0
      %s691 = scalar_lea.vmem %s2, 8
      %v692 = vld [vmem:[%s691] sm:$0xf]
      %v693 = vld [vmem:[%s691 + $0x4] sm:$0xf]
      %v694 = vpack.c.bf16 %v673, %v670
      %v695 = vpack.c.bf16 %v681, %v678
      %v696 = vpack.c.bf16 %v686, %v686
      %v699 = vunpack.c.l.b16 %v692
      %v700 = vunpack.c.l.b16 %v693
      %v701 = vpack.c.b16 %v700, %v699
      %v703 = vsel %vm417, %v701, 0
      %v706 = vsel %vm421, %v696, 0
      %708 = vmatprep.subr.bf16.mxu0 0
      %709 = vmatpush1.bf16.msra.mxu0 %v694
      %710 = vmatprep.subr.bf16.mxu0 0
      %711 = vmatpush1.bf16.msra.mxu0 %v695
      %712 = vmatprep.subr.bf16.mxu0 0
      %713 = vmatpush1.bf16.msra.mxu0 %v706
      %714 = vmatprep.subr.bf16.mxu0 0
      %715 = vmatpush1.bf16.msra.mxu0 0
      %716 = vmatprep.subr.bf16.mxu0 0
      %717 = vmatpush1.bf16.msra.mxu0 0
      %718 = vmatprep.subr.bf16.mxu0 0
      %719 = vmatpush1.bf16.msra.mxu0 0
      %720 = vmatprep.subr.bf16.mxu0 0
      %721 = vmatpush1.bf16.msra.mxu0 0
      %722 = vmatprep.subr.bf16.mxu0 0
      %723 = vmatpush1.bf16.msra.mxu0 0
      %724 = vmatprep.subr.bf16.mxu0 0
      %725 = vmatpush1.bf16.msra.mxu0 0
      %726 = vmatprep.subr.bf16.mxu0 0
      %727 = vmatpush1.bf16.msra.mxu0 0
      %728 = vmatprep.subr.bf16.mxu0 0
      %729 = vmatpush1.bf16.msra.mxu0 0
      %730 = vmatprep.subr.bf16.mxu0 0
      %731 = vmatpush1.bf16.msra.mxu0 0
      %732 = vmatprep.subr.bf16.mxu0 0
      %733 = vmatpush1.bf16.msra.mxu0 0
      %734 = vmatprep.subr.bf16.mxu0 0
      %735 = vmatpush1.bf16.msra.mxu0 0
      %736 = vmatprep.subr.bf16.mxu0 0
      %737 = vmatpush1.bf16.msra.mxu0 0
      %738 = vmatprep.subr.bf16.mxu0 0
      %739 = vmatpush1.bf16.msra.mxu0 0
      %740 = vmatprep.mubr.bf16.mxu0 0
      %741 = vmatmul.mubr.bf16.gmra.mrb[0].mxu0 %v703
      %v742 = vpop.f32.mrb[0].mxu0
      %v743 = vadd.f32 0.0, %v742
      %v744 = vpop.f32.mrb[0].mxu0
      %v745 = vpop.f32.mrb[0].mxu0
      %v746 = vadd.f32 0.0, %v745
      %v747 = vpop.f32.mrb[0].mxu0
      %748 = vdwg.mxu0
      %v749 = vadd.f32 %v516, %v743
      %v750 = vadd.f32 %v519, %v746
      %s751 = scalar_lea.vmem %s1, 40
      %v752 = vld [vmem:[%s751] sm:$0xf]
      %v753 = vld [vmem:[%s751 + $0x4] sm:$0xf]
      %v754 = vld [vmem:[%s751 + $0x8] sm:$0xf]
      %v755 = vld [vmem:[%s751 + $0xc] sm:$0xf]
      %v756 = vld [vmem:[%s751 + $0x10] sm:$0x3]
      %v762 = vunpack.c.l.b16 %v752
      %v763 = vunpack.c.l.b16 %v753
      %v764 = vunpack.c.l.b16 %v754
      %v765 = vunpack.c.l.b16 %v755
      %v766 = vunpack.c.l.b16 %v756
      %v767 = vpack.c.b16 %v763, %v762
      %v768 = vpack.c.b16 %v765, %v764
      %v769 = vpack.c.b16 %v766, %v766
      %v771 = vsel %vm256, %v767, 0
      %v774 = vsel %vm256, %v768, 0
      %v777 = vsel %vm256, %v769, 0
      %779 = vmatprep.subr.bf16.mxu0 0
      %780 = vmatpush1.bf16.msra.mxu0 %v254
      %781 = vmatprep.subr.bf16.mxu0 0
      %782 = vmatpush1.bf16.msra.mxu0 0
      %783 = vmatprep.subr.bf16.mxu0 0
      %784 = vmatpush1.bf16.msra.mxu0 0
      %785 = vmatprep.subr.bf16.mxu0 0
      %786 = vmatpush1.bf16.msra.mxu0 0
      %787 = vmatprep.subr.bf16.mxu0 0
      %788 = vmatpush1.bf16.msra.mxu0 0
      %789 = vmatprep.subr.bf16.mxu0 0
      %790 = vmatpush1.bf16.msra.mxu0 0
      %791 = vmatprep.subr.bf16.mxu0 0
      %792 = vmatpush1.bf16.msra.mxu0 0
      %793 = vmatprep.subr.bf16.mxu0 0
      %794 = vmatpush1.bf16.msra.mxu0 0
      %795 = vmatprep.subr.bf16.mxu0 0
      %796 = vmatpush1.bf16.msra.mxu0 0
      %797 = vmatprep.subr.bf16.mxu0 0
      %798 = vmatpush1.bf16.msra.mxu0 0
      %799 = vmatprep.subr.bf16.mxu0 0
      %800 = vmatpush1.bf16.msra.mxu0 0
      %801 = vmatprep.subr.bf16.mxu0 0
      %802 = vmatpush1.bf16.msra.mxu0 0
      %803 = vmatprep.subr.bf16.mxu0 0
      %804 = vmatpush1.bf16.msra.mxu0 0
      %805 = vmatprep.subr.bf16.mxu0 0
      %806 = vmatpush1.bf16.msra.mxu0 0
      %807 = vmatprep.subr.bf16.mxu0 0
      %808 = vmatpush1.bf16.msra.mxu0 0
      %809 = vmatprep.subr.bf16.mxu0 0
      %810 = vmatpush1.bf16.msra.mxu0 0
      %811 = vmatprep.mubr.bf16.mxu0 0
      %812 = vmatmul.mubr.bf16.gmra.mrb[0].mxu0 %v771
      %v813 = vpop.f32.mrb[0].mxu0
      %v814 = vadd.f32 0.0, %v813
      %v815 = vpop.f32.mrb[0].mxu0
      %v816 = vpop.f32.mrb[0].mxu0
      %v817 = vadd.f32 0.0, %v816
      %v818 = vpop.f32.mrb[0].mxu0
      %819 = vmatprep.mubr.bf16.mxu0 0
      %820 = vmatmul.mubr.bf16.gmra.mrb[0].mxu0 %v774
      %v821 = vpop.f32.mrb[0].mxu0
      %v822 = vadd.f32 0.0, %v821
      %v823 = vpop.f32.mrb[0].mxu0
      %v824 = vpop.f32.mrb[0].mxu0
      %v825 = vadd.f32 0.0, %v824
      %v826 = vpop.f32.mrb[0].mxu0
      %827 = vmatprep.mubr.bf16.mxu0 0
      %828 = vmatmul.mubr.bf16.gmra.mrb[0].mxu0 %v777
      %v829 = vpop.f32.mrb[0].mxu0
      %v830 = vadd.f32 0.0, %v829
      %v831 = vpop.f32.mrb[0].mxu0
      %v832 = vpop.f32.mrb[0].mxu0
      %v833 = vpop.f32.mrb[0].mxu0
      %834 = vdwg.mxu0
      %v835 = vpack.c.bf16 %v817, %v814
      %v836 = vpack.c.bf16 %v825, %v822
      %v837 = vpack.c.bf16 %v830, %v830
      %s838 = scalar_lea.vmem %s3, 32
      %v839 = vld [vmem:[%s838] sm:$0xf]
      %v840 = vld [vmem:[%s838 + $0x4] sm:$0xf]
      %v841 = vld [vmem:[%s838 + $0x8] sm:$0xf]
      %v842 = vld [vmem:[%s838 + $0xc] sm:$0xf]
      %v847 = vunpack.c.l.b16 %v839
      %v848 = vunpack.c.l.b16 %v840
      %v849 = vunpack.c.l.b16 %v841
      %v850 = vunpack.c.l.b16 %v842
      %v851 = vpack.c.b16 %v848, %v847
      %v852 = vpack.c.b16 %v850, %v849
      %v856 = vsel %vm341, %v835, 0
      %v859 = vsel %vm341, %v836, 0
      %v862 = vsel %vm341, %v837, 0
      %864 = vmatprep.subr.bf16.mxu0 0
      %865 = vmatpush1.bf16.msra.mxu0 %v851
      %866 = vmatprep.subr.bf16.mxu0 0
      %867 = vmatpush1.bf16.msra.mxu0 %v852
      %868 = vmatprep.subr.bf16.mxu0 0
      %869 = vmatpush1.bf16.msra.mxu0 0
      %870 = vmatprep.subr.bf16.mxu0 0
      %871 = vmatpush1.bf16.msra.mxu0 0
      %872 = vmatprep.subr.bf16.mxu0 0
      %873 = vmatpush1.bf16.msra.mxu0 0
      %874 = vmatprep.subr.bf16.mxu0 0
      %875 = vmatpush1.bf16.msra.mxu0 0
      %876 = vmatprep.subr.bf16.mxu0 0
      %877 = vmatpush1.bf16.msra.mxu0 0
      %878 = vmatprep.subr.bf16.mxu0 0
      %879 = vmatpush1.bf16.msra.mxu0 0
      %880 = vmatprep.subr.bf16.mxu0 0
      %881 = vmatpush1.bf16.msra.mxu0 0
      %882 = vmatprep.subr.bf16.mxu0 0
      %883 = vmatpush1.bf16.msra.mxu0 0
      %884 = vmatprep.subr.bf16.mxu0 0
      %885 = vmatpush1.bf16.msra.mxu0 0
      %886 = vmatprep.subr.bf16.mxu0 0
      %887 = vmatpush1.bf16.msra.mxu0 0
      %888 = vmatprep.subr.bf16.mxu0 0
      %889 = vmatpush1.bf16.msra.mxu0 0
      %890 = vmatprep.subr.bf16.mxu0 0
      %891 = vmatpush1.bf16.msra.mxu0 0
      %892 = vmatprep.subr.bf16.mxu0 0
      %893 = vmatpush1.bf16.msra.mxu0 0
      %894 = vmatprep.subr.bf16.mxu0 0
      %895 = vmatpush1.bf16.msra.mxu0 0
      %896 = vmatprep.mubr.bf16.mxu0 0
      %897 = vmatmul.mubr.bf16.gmra.mrb[0].mxu0 %v856
      %v898 = vpop.f32.mrb[0].mxu0
      %v899 = vadd.f32 0.0, %v898
      %v900 = vpop.f32.mrb[0].mxu0
      %v901 = vpop.f32.mrb[0].mxu0
      %v902 = vadd.f32 0.0, %v901
      %v903 = vpop.f32.mrb[0].mxu0
      %904 = vmatprep.mubr.bf16.mxu0 0
      %905 = vmatmul.mubr.bf16.gmra.mrb[0].mxu0 %v859
      %v906 = vpop.f32.mrb[0].mxu0
      %v907 = vadd.f32 0.0, %v906
      %v908 = vpop.f32.mrb[0].mxu0
      %v909 = vpop.f32.mrb[0].mxu0
      %v910 = vadd.f32 0.0, %v909
      %v911 = vpop.f32.mrb[0].mxu0
      %912 = vmatprep.mubr.bf16.mxu0 0
      %913 = vmatmul.mubr.bf16.gmra.mrb[0].mxu0 %v862
      %v914 = vpop.f32.mrb[0].mxu0
      %v915 = vadd.f32 0.0, %v914
      %v916 = vpop.f32.mrb[0].mxu0
      %v917 = vpop.f32.mrb[0].mxu0
      %v918 = vpop.f32.mrb[0].mxu0
      %919 = vdwg.mxu0
      %s920 = scalar_lea.vmem %s2, 16
      %v921 = vld [vmem:[%s920] sm:$0xf]
      %v922 = vld [vmem:[%s920 + $0x4] sm:$0xf]
      %v923 = vpack.c.bf16 %v902, %v899
      %v924 = vpack.c.bf16 %v910, %v907
      %v925 = vpack.c.bf16 %v915, %v915
      %v928 = vunpack.c.l.b16 %v921
      %v929 = vunpack.c.l.b16 %v922
      %v930 = vpack.c.b16 %v929, %v928
      %v932 = vsel %vm417, %v930, 0
      %v935 = vsel %vm421, %v925, 0
      %937 = vmatprep.subr.bf16.mxu0 0
      %938 = vmatpush1.bf16.msra.mxu0 %v923
      %939 = vmatprep.subr.bf16.mxu0 0
      %940 = vmatpush1.bf16.msra.mxu0 %v924
      %941 = vmatprep.subr.bf16.mxu0 0
      %942 = vmatpush1.bf16.msra.mxu0 %v935
      %943 = vmatprep.subr.bf16.mxu0 0
      %944 = vmatpush1.bf16.msra.mxu0 0
      %945 = vmatprep.subr.bf16.mxu0 0
      %946 = vmatpush1.bf16.msra.mxu0 0
      %947 = vmatprep.subr.bf16.mxu0 0
      %948 = vmatpush1.bf16.msra.mxu0 0
      %949 = vmatprep.subr.bf16.mxu0 0
      %950 = vmatpush1.bf16.msra.mxu0 0
      %951 = vmatprep.subr.bf16.mxu0 0
      %952 = vmatpush1.bf16.msra.mxu0 0
      %953 = vmatprep.subr.bf16.mxu0 0
      %954 = vmatpush1.bf16.msra.mxu0 0
      %955 = vmatprep.subr.bf16.mxu0 0
      %956 = vmatpush1.bf16.msra.mxu0 0
      %957 = vmatprep.subr.bf16.mxu0 0
      %958 = vmatpush1.bf16.msra.mxu0 0
      %959 = vmatprep.subr.bf16.mxu0 0
      %960 = vmatpush1.bf16.msra.mxu0 0
      %961 = vmatprep.subr.bf16.mxu0 0
      %962 = vmatpush1.bf16.msra.mxu0 0
      %963 = vmatprep.subr.bf16.mxu0 0
      %964 = vmatpush1.bf16.msra.mxu0 0
      %965 = vmatprep.subr.bf16.mxu0 0
      %966 = vmatpush1.bf16.msra.mxu0 0
      %967 = vmatprep.subr.bf16.mxu0 0
      %968 = vmatpush1.bf16.msra.mxu0 0
      %969 = vmatprep.mubr.bf16.mxu0 0
      %970 = vmatmul.mubr.bf16.gmra.mrb[0].mxu0 %v932
      %v971 = vpop.f32.mrb[0].mxu0
      %v972 = vadd.f32 0.0, %v971
      %v973 = vpop.f32.mrb[0].mxu0
      %v974 = vpop.f32.mrb[0].mxu0
      %v975 = vadd.f32 0.0, %v974
      %v976 = vpop.f32.mrb[0].mxu0
      %977 = vdwg.mxu0
      %v978 = vadd.f32 %v749, %v972
      %v979 = vadd.f32 %v750, %v975
      %s980 = scalar_lea.vmem %s1, 60
      %v981 = vld [vmem:[%s980] sm:$0xf]
      %v982 = vld [vmem:[%s980 + $0x4] sm:$0xf]
      %v983 = vld [vmem:[%s980 + $0x8] sm:$0xf]
      %v984 = vld [vmem:[%s980 + $0xc] sm:$0xf]
      %v985 = vld [vmem:[%s980 + $0x10] sm:$0x3]
      %v991 = vunpack.c.l.b16 %v981
      %v992 = vunpack.c.l.b16 %v982
      %v993 = vunpack.c.l.b16 %v983
      %v994 = vunpack.c.l.b16 %v984
      %v995 = vunpack.c.l.b16 %v985
      %v996 = vpack.c.b16 %v992, %v991
      %v997 = vpack.c.b16 %v994, %v993
      %v998 = vpack.c.b16 %v995, %v995
      %v1000 = vsel %vm256, %v996, 0
      %v1003 = vsel %vm256, %v997, 0
      %v1006 = vsel %vm256, %v998, 0
      %1008 = vmatprep.subr.bf16.mxu0 0
      %1009 = vmatpush1.bf16.msra.mxu0 %v254
      %1010 = vmatprep.subr.bf16.mxu0 0
      %1011 = vmatpush1.bf16.msra.mxu0 0
      %1012 = vmatprep.subr.bf16.mxu0 0
      %1013 = vmatpush1.bf16.msra.mxu0 0
      %1014 = vmatprep.subr.bf16.mxu0 0
      %1015 = vmatpush1.bf16.msra.mxu0 0
      %1016 = vmatprep.subr.bf16.mxu0 0
      %1017 = vmatpush1.bf16.msra.mxu0 0
      %1018 = vmatprep.subr.bf16.mxu0 0
      %1019 = vmatpush1.bf16.msra.mxu0 0
      %1020 = vmatprep.subr.bf16.mxu0 0
      %1021 = vmatpush1.bf16.msra.mxu0 0
      %1022 = vmatprep.subr.bf16.mxu0 0
      %1023 = vmatpush1.bf16.msra.mxu0 0
      %1024 = vmatprep.subr.bf16.mxu0 0
      %1025 = vmatpush1.bf16.msra.mxu0 0
      %1026 = vmatprep.subr.bf16.mxu0 0
      %1027 = vmatpush1.bf16.msra.mxu0 0
      %1028 = vmatprep.subr.bf16.mxu0 0
      %1029 = vmatpush1.bf16.msra.mxu0 0
      %1030 = vmatprep.subr.bf16.mxu0 0
      %1031 = vmatpush1.bf16.msra.mxu0 0
      %1032 = vmatprep.subr.bf16.mxu0 0
      %1033 = vmatpush1.bf16.msra.mxu0 0
      %1034 = vmatprep.subr.bf16.mxu0 0
      %1035 = vmatpush1.bf16.msra.mxu0 0
      %1036 = vmatprep.subr.bf16.mxu0 0
      %1037 = vmatpush1.bf16.msra.mxu0 0
      %1038 = vmatprep.subr.bf16.mxu0 0
      %1039 = vmatpush1.bf16.msra.mxu0 0
      %1040 = vmatprep.mubr.bf16.mxu0 0
      %1041 = vmatmul.mubr.bf16.gmra.mrb[0].mxu0 %v1000
      %v1042 = vpop.f32.mrb[0].mxu0
      %v1043 = vadd.f32 0.0, %v1042
      %v1044 = vpop.f32.mrb[0].mxu0
      %v1045 = vpop.f32.mrb[0].mxu0
      %v1046 = vadd.f32 0.0, %v1045
      %v1047 = vpop.f32.mrb[0].mxu0
      %1048 = vmatprep.mubr.bf16.mxu0 0
      %1049 = vmatmul.mubr.bf16.gmra.mrb[0].mxu0 %v1003
      %v1050 = vpop.f32.mrb[0].mxu0
      %v1051 = vadd.f32 0.0, %v1050
      %v1052 = vpop.f32.mrb[0].mxu0
      %v1053 = vpop.f32.mrb[0].mxu0
      %v1054 = vadd.f32 0.0, %v1053
      %v1055 = vpop.f32.mrb[0].mxu0
      %1056 = vmatprep.mubr.bf16.mxu0 0
      %1057 = vmatmul.mubr.bf16.gmra.mrb[0].mxu0 %v1006
      %v1058 = vpop.f32.mrb[0].mxu0
      %v1059 = vadd.f32 0.0, %v1058
      %v1060 = vpop.f32.mrb[0].mxu0
      %v1061 = vpop.f32.mrb[0].mxu0
      %v1062 = vpop.f32.mrb[0].mxu0
      %1063 = vdwg.mxu0
      %v1064 = vpack.c.bf16 %v1046, %v1043
      %v1065 = vpack.c.bf16 %v1054, %v1051
      %v1066 = vpack.c.bf16 %v1059, %v1059
      %s1067 = scalar_lea.vmem %s3, 48
      %v1068 = vld [vmem:[%s1067] sm:$0xf]
      %v1069 = vld [vmem:[%s1067 + $0x4] sm:$0xf]
      %v1070 = vld [vmem:[%s1067 + $0x8] sm:$0xf]
      %v1071 = vld [vmem:[%s1067 + $0xc] sm:$0xf]
      %v1076 = vunpack.c.l.b16 %v1068
      %v1077 = vunpack.c.l.b16 %v1069
      %v1078 = vunpack.c.l.b16 %v1070
      %v1079 = vunpack.c.l.b16 %v1071
      %v1080 = vpack.c.b16 %v1077, %v1076
      %v1081 = vpack.c.b16 %v1079, %v1078
      %v1085 = vsel %vm341, %v1064, 0
      %v1088 = vsel %vm341, %v1065, 0
      %v1091 = vsel %vm341, %v1066, 0
      %1093 = vmatprep.subr.bf16.mxu0 0
      %1094 = vmatpush1.bf16.msra.mxu0 %v1080
      %1095 = vmatprep.subr.bf16.mxu0 0
      %1096 = vmatpush1.bf16.msra.mxu0 %v1081
      %1097 = vmatprep.subr.bf16.mxu0 0
      %1098 = vmatpush1.bf16.msra.mxu0 0
      %1099 = vmatprep.subr.bf16.mxu0 0
      %1100 = vmatpush1.bf16.msra.mxu0 0
      %1101 = vmatprep.subr.bf16.mxu0 0
      %1102 = vmatpush1.bf16.msra.mxu0 0
      %1103 = vmatprep.subr.bf16.mxu0 0
      %1104 = vmatpush1.bf16.msra.mxu0 0
      %1105 = vmatprep.subr.bf16.mxu0 0
      %1106 = vmatpush1.bf16.msra.mxu0 0
      %1107 = vmatprep.subr.bf16.mxu0 0
      %1108 = vmatpush1.bf16.msra.mxu0 0
      %1109 = vmatprep.subr.bf16.mxu0 0
      %1110 = vmatpush1.bf16.msra.mxu0 0
      %1111 = vmatprep.subr.bf16.mxu0 0
      %1112 = vmatpush1.bf16.msra.mxu0 0
      %1113 = vmatprep.subr.bf16.mxu0 0
      %1114 = vmatpush1.bf16.msra.mxu0 0
      %1115 = vmatprep.subr.bf16.mxu0 0
      %1116 = vmatpush1.bf16.msra.mxu0 0
      %1117 = vmatprep.subr.bf16.mxu0 0
      %1118 = vmatpush1.bf16.msra.mxu0 0
      %1119 = vmatprep.subr.bf16.mxu0 0
      %1120 = vmatpush1.bf16.msra.mxu0 0
      %1121 = vmatprep.subr.bf16.mxu0 0
      %1122 = vmatpush1.bf16.msra.mxu0 0
      %1123 = vmatprep.subr.bf16.mxu0 0
      %1124 = vmatpush1.bf16.msra.mxu0 0
      %1125 = vmatprep.mubr.bf16.mxu0 0
      %1126 = vmatmul.mubr.bf16.gmra.mrb[0].mxu0 %v1085
      %v1127 = vpop.f32.mrb[0].mxu0
      %v1128 = vadd.f32 0.0, %v1127
      %v1129 = vpop.f32.mrb[0].mxu0
      %v1130 = vpop.f32.mrb[0].mxu0
      %v1131 = vadd.f32 0.0, %v1130
      %v1132 = vpop.f32.mrb[0].mxu0
      %1133 = vmatprep.mubr.bf16.mxu0 0
      %1134 = vmatmul.mubr.bf16.gmra.mrb[0].mxu0 %v1088
      %v1135 = vpop.f32.mrb[0].mxu0
      %v1136 = vadd.f32 0.0, %v1135
      %v1137 = vpop.f32.mrb[0].mxu0
      %v1138 = vpop.f32.mrb[0].mxu0
      %v1139 = vadd.f32 0.0, %v1138
      %v1140 = vpop.f32.mrb[0].mxu0
      %1141 = vmatprep.mubr.bf16.mxu0 0
      %1142 = vmatmul.mubr.bf16.gmra.mrb[0].mxu0 %v1091
      %v1143 = vpop.f32.mrb[0].mxu0
      %v1144 = vadd.f32 0.0, %v1143
      %v1145 = vpop.f32.mrb[0].mxu0
      %v1146 = vpop.f32.mrb[0].mxu0
      %v1147 = vpop.f32.mrb[0].mxu0
      %1148 = vdwg.mxu0
      %s1149 = scalar_lea.vmem %s2, 24
      %v1150 = vld [vmem:[%s1149] sm:$0xf]
      %v1151 = vld [vmem:[%s1149 + $0x4] sm:$0xf]
      %v1152 = vpack.c.bf16 %v1131, %v1128
      %v1153 = vpack.c.bf16 %v1139, %v1136
      %v1154 = vpack.c.bf16 %v1144, %v1144
      %v1157 = vunpack.c.l.b16 %v1150
      %v1158 = vunpack.c.l.b16 %v1151
      %v1159 = vpack.c.b16 %v1158, %v1157
      %v1161 = vsel %vm417, %v1159, 0
      %v1164 = vsel %vm421, %v1154, 0
      %1166 = vmatprep.subr.bf16.mxu0 0
      %1167 = vmatpush1.bf16.msra.mxu0 %v1152
      %1168 = vmatprep.subr.bf16.mxu0 0
      %1169 = vmatpush1.bf16.msra.mxu0 %v1153
      %1170 = vmatprep.subr.bf16.mxu0 0
      %1171 = vmatpush1.bf16.msra.mxu0 %v1164
      %1172 = vmatprep.subr.bf16.mxu0 0
      %1173 = vmatpush1.bf16.msra.mxu0 0
      %1174 = vmatprep.subr.bf16.mxu0 0
      %1175 = vmatpush1.bf16.msra.mxu0 0
      %1176 = vmatprep.subr.bf16.mxu0 0
      %1177 = vmatpush1.bf16.msra.mxu0 0
      %1178 = vmatprep.subr.bf16.mxu0 0
      %1179 = vmatpush1.bf16.msra.mxu0 0
      %1180 = vmatprep.subr.bf16.mxu0 0
      %1181 = vmatpush1.bf16.msra.mxu0 0
      %1182 = vmatprep.subr.bf16.mxu0 0
      %1183 = vmatpush1.bf16.msra.mxu0 0
      %1184 = vmatprep.subr.bf16.mxu0 0
      %1185 = vmatpush1.bf16.msra.mxu0 0
      %1186 = vmatprep.subr.bf16.mxu0 0
      %1187 = vmatpush1.bf16.msra.mxu0 0
      %1188 = vmatprep.subr.bf16.mxu0 0
      %1189 = vmatpush1.bf16.msra.mxu0 0
      %1190 = vmatprep.subr.bf16.mxu0 0
      %1191 = vmatpush1.bf16.msra.mxu0 0
      %1192 = vmatprep.subr.bf16.mxu0 0
      %1193 = vmatpush1.bf16.msra.mxu0 0
      %1194 = vmatprep.subr.bf16.mxu0 0
      %1195 = vmatpush1.bf16.msra.mxu0 0
      %1196 = vmatprep.subr.bf16.mxu0 0
      %1197 = vmatpush1.bf16.msra.mxu0 0
      %1198 = vmatprep.mubr.bf16.mxu0 0
      %1199 = vmatmul.mubr.bf16.gmra.mrb[0].mxu0 %v1161
      %v1200 = vpop.f32.mrb[0].mxu0
      %v1201 = vadd.f32 0.0, %v1200
      %v1202 = vpop.f32.mrb[0].mxu0
      %v1203 = vpop.f32.mrb[0].mxu0
      %v1204 = vadd.f32 0.0, %v1203
      %v1205 = vpop.f32.mrb[0].mxu0
      %1206 = vdwg.mxu0
      %v1207 = vadd.f32 %v978, %v1201
      %v1208 = vadd.f32 %v979, %v1204
      %v1209 = vpack.c.bf16 %v1208, %v1207
      %v1211 = vunpack.c.l.b16 %v1209
      %v1212 = vunpack.c.h.b16 %v1209
      %v1213 = vpack.c.b16 %v1211, %v1211
      %v1214 = vpack.c.b16 %v1212, %v1212
      %vm1217 = vcmask 519168
      %1218 = vst.msk [vmem:[%s224] sm:$0xf] %vm1217, %v1213
      %1219 = vst.msk [vmem:[%s224 + $0x4] sm:$0xf] %vm1217, %v1214
      %p1220 = scmp.lt.s32.totalorder %s16, 1
      %s1221 = scalar_select %p1220, %s16, 1
      %s1222 = smul.addr %s1221, 2
      %s1223 = smul.addr %s1222, 4
      %s1224 = scalar_lea.vmem %s5, %s1223
      // Predicated region
      $region41: #{pspnet_forward.11} parent=39 // pred_check
        %p1225 = pneg %p144
      $region42: #{pspnet_forward.11} parent=39 // pred_check_branch
        %1227 = sbr.rel (%p1225) target = $region44
      $region43: #{pspnet_forward.11} parent=39 // pred_region
        _
      $region44: #{pspnet_forward.11} parent=39 // pred_fallthru
        _
    $region40: #{pspnet_forward.11} parent=5 // pred_fallthru
      _
    %p1228 = scmp.le.s32.totalorder 2, %s11
    // Predicated region
    $region45: #{pspnet_forward.11} parent=5 // pred_check
      %p1229 = pneg %p1228
    $region46: #{pspnet_forward.11} parent=5 // pred_check_branch
      %1231 = sbr.rel (%p1229) target = $region48
    $region47: #{pspnet_forward.11} parent=5 // pred_region
      %s1232 = ssub.s32 %s11, 2
      // Predicated region
      $region49: #{pspnet_forward.11} parent=47 // pred_check
        %p1233 = pneg %p150
      $region50: #{pspnet_forward.11} parent=47 // pred_check_branch
        %1235 = sbr.rel (%p1233) target = $region52
      $region51: #{pspnet_forward.11} parent=47 // pred_region
        %p1236 = scmp.lt.s32.totalorder %s17, 1
        %s1237 = scalar_select %p1236, %s17, 1
        %s1238 = smul.addr %s1237, 2
        %s1239 = smul.addr %s1238, 4
        %s1240 = scalar_lea.vmem %s5, %s1239
      $region52: #{pspnet_forward.11} parent=47 // pred_fallthru
        _
    $region48: #{pspnet_forward.11} parent=5 // pred_fallthru
      _
  $region6: #{pspnet_forward.11} parent=0 // loop_footer
    %s15 = sadd.s32 1, %s11
  $region7: #{pspnet_forward.11} parent=0 // loop_footer_branch
    %10 = sbr.rel target = $region3
  $region8: #{pspnet_forward.11} parent=0 // loop_exit
    _

// kernel: pspnet_forward.13
$region0: #{pspnet_forward.13}
  #allocation0 [shape = 'u32[]', space=smem, size = 0x4, offset = 0x4, fixed_abs, tag = 'smem constant byte address 0x4 - core index']
  #allocation1 [shape = 'u32[144,128]{1,0:T(1,128)}', space=vmem, size = 0x12000, scoped, tag = 'internal scratch']
  %s0 = inlined_call_operand.vmem [shape: bf16[64,16], index: 0, kind: input, shape index: {}]
  %s1 = inlined_call_operand.vmem [shape: bf16[2,16,16], index: 1, kind: input, shape index: {}]
  %s2 = inlined_call_operand.vmem [shape: bf16[2,64,16], index: 2, kind: output, shape index: {}]
  %s3 = sld [smem:[#allocation0]]
  $region41: #{pspnet_forward.13} parent=0
    _
  %s5 = ssub.s32 1, %s3
  %s6 = scalar_select 0, %s5, %s3
  loop: start=0, step=1, limit=4
  $region2: #{pspnet_forward.13} parent=0 // loop_pre_header
    _
  $region3: #{pspnet_forward.13} parent=0 // loop_header
    %s8 = sphi 0, %s12
    %p9 = scmp.ge.s32.totalorder %s8, 4
    %s16 = sphi 0, %s16
    %s18 = sphi 0, %s16
    %s19 = sphi 0, %s18
    %s33 = sphi 0, %s19
    %s39 = sphi 0, %s41
    %s42 = sphi 0, %s39
    %s43 = sphi 0, %s42
    %s59 = sphi 0, %s43
    %s65 = sphi 0, %s67
    %s68 = sphi 0, %s65
    %s69 = sphi 0, %s68
    %s85 = sphi 0, %s69
  $region4: #{pspnet_forward.13} parent=0 // loop_header_branch
    %11 = sbr.rel (%p9) target = $region8
  $region5: #{pspnet_forward.13} parent=0 // loop_body
    %s13 = ssub.s32 %s8, 1
    %s14 = ssub.s32 %s8, 2
    %s15 = sadd.s32 %s8, 1
    %s17 = sadd.s32 %s16, 1
    %p20 = scmp.eq.s32.totalorder %s8, 1
    %p21 = scmp.ne.s32.totalorder %s16, %s18
    %p22 = scmp.eq.s32.totalorder %s8, 0
    %p23 = por %p21, %p22
    %p24 = scmp.ne.s32.totalorder %s16, %s18
    %p25 = scmp.eq.s32.totalorder %s13, 1
    %p26 = por %p24, %p25
    %p27 = scmp.ne.s32.totalorder %s18, %s19
    %p28 = scmp.eq.s32.totalorder %s13, 0
    %p29 = por %p27, %p28
    %p30 = scmp.ne.s32.totalorder %s18, %s19
    %p31 = scmp.eq.s32.totalorder %s14, 1
    %p32 = por %p30, %p31
    %p34 = scmp.ne.s32.totalorder %s19, %s33
    %p35 = scmp.eq.s32.totalorder %s14, 0
    %p36 = por %p34, %p35
    %s37 = ssub.s32 %s8, %s15
    %p38 = scmp.eq.s32.totalorder %s37, 0
    %s40 = sadd.s32 %s39, 1
    %s41 = scalar_select %p38, %s39, %s40
    %p44 = pneg %p38
    %p45 = scmp.eq.s32.totalorder %s8, 1
    %p46 = por %p44, %p45
    %p47 = scmp.ne.s32.totalorder %s39, %s42
    %p48 = scmp.eq.s32.totalorder %s8, 0
    %p49 = por %p47, %p48
    %p50 = scmp.ne.s32.totalorder %s39, %s42
    %p51 = scmp.eq.s32.totalorder %s13, 1
    %p52 = por %p50, %p51
    %p53 = scmp.ne.s32.totalorder %s42, %s43
    %p54 = scmp.eq.s32.totalorder %s13, 0
    %p55 = por %p53, %p54
    %p56 = scmp.ne.s32.totalorder %s42, %s43
    %p57 = scmp.eq.s32.totalorder %s14, 1
    %p58 = por %p56, %p57
    %p60 = scmp.ne.s32.totalorder %s43, %s59
    %p61 = scmp.eq.s32.totalorder %s14, 0
    %p62 = por %p60, %p61
    %s63 = ssub.s32 %s8, %s15
    %p64 = scmp.eq.s32.totalorder %s63, 0
    %s66 = sadd.s32 %s65, 1
    %s67 = scalar_select %p64, %s65, %s66
    %p70 = pneg %p64
    %p71 = scmp.eq.s32.totalorder %s8, 1
    %p72 = por %p70, %p71
    %p73 = scmp.ne.s32.totalorder %s65, %s68
    %p74 = scmp.eq.s32.totalorder %s8, 0
    %p75 = por %p73, %p74
    %p76 = scmp.ne.s32.totalorder %s65, %s68
    %p77 = scmp.eq.s32.totalorder %s13, 1
    %p78 = por %p76, %p77
    %p79 = scmp.ne.s32.totalorder %s68, %s69
    %p80 = scmp.eq.s32.totalorder %s13, 0
    %p81 = por %p79, %p80
    %p82 = scmp.ne.s32.totalorder %s68, %s69
    %p83 = scmp.eq.s32.totalorder %s14, 1
    %p84 = por %p82, %p83
    %p86 = scmp.ne.s32.totalorder %s69, %s85
    %p87 = scmp.eq.s32.totalorder %s14, 0
    %p88 = por %p86, %p87
    %p89 = scmp.le.s32.totalorder 1, %s8
    %p90 = scmp.lt.s32.totalorder %s8, 3
    %p91 = pnand %p89, %p90
    %p92 = pneg %p91
    // Predicated region
    $region9: #{pspnet_forward.13} parent=5 // pred_check
      _
    $region10: #{pspnet_forward.13} parent=5 // pred_check_branch
      %94 = sbr.rel (%p91) target = $region12
    $region11: #{pspnet_forward.13} parent=5 // pred_region
      %s95 = ssub.s32 %s8, 1
      // Predicated region
      $region13: #{pspnet_forward.13} parent=11 // pred_check
        %p96 = pneg %p29
      $region14: #{pspnet_forward.13} parent=11 // pred_check_branch
        %98 = sbr.rel (%p96) target = $region16
      $region15: #{pspnet_forward.13} parent=11 // pred_region
        _
      $region16: #{pspnet_forward.13} parent=11 // pred_fallthru
        _
    $region12: #{pspnet_forward.13} parent=5 // pred_fallthru
      _
    %p99 = scmp.lt.s32.totalorder %s8, 2
    // Predicated region
    $region17: #{pspnet_forward.13} parent=5 // pred_check
      %p100 = pneg %p99
    $region18: #{pspnet_forward.13} parent=5 // pred_check_branch
      %102 = sbr.rel (%p100) target = $region20
    $region19: #{pspnet_forward.13} parent=5 // pred_region
      // Predicated region
      $region21: #{pspnet_forward.13} parent=19 // pred_check
        %p103 = pneg %p49
      $region22: #{pspnet_forward.13} parent=19 // pred_check_branch
        %105 = sbr.rel (%p103) target = $region24
      $region23: #{pspnet_forward.13} parent=19 // pred_region
        %p106 = scmp.lt.s32.totalorder %s8, 1
        %s107 = scalar_select %p106, %s8, 1
        %s108 = smul.addr %s107, 2
        %s109 = smul.addr %s108, 4
        %s110 = scalar_lea.vmem %s1, %s109
      $region24: #{pspnet_forward.13} parent=19 // pred_fallthru
        _
    $region20: #{pspnet_forward.13} parent=5 // pred_fallthru
      _
    %p111 = scmp.le.s32.totalorder 1, %s8
    %p112 = scmp.lt.s32.totalorder %s8, 3
    %p113 = pnand %p111, %p112
    %p114 = pneg %p113
    // Predicated region
    $region25: #{pspnet_forward.13} parent=5 // pred_check
      _
    $region26: #{pspnet_forward.13} parent=5 // pred_check_branch
      %116 = sbr.rel (%p113) target = $region28
    $region27: #{pspnet_forward.13} parent=5 // pred_region
      %s117 = ssub.s32 %s8, 1
      %p118 = pneg %p29
      %p119 = pneg %p26
      %p120 = scmp.lt.s32.totalorder %s13, 1
      %s121 = scalar_select %p120, %s13, 1
      %s122 = smul.addr %s121, 2
      %s123 = smul.addr %s122, 4
      %s124 = scalar_lea.vmem %s1, %s123
      %p125 = pneg %p55
      %p126 = pneg %p52
      %p127 = pneg %p81
      %p128 = pneg %p78
      %p129 = scmp.lt.s32.totalorder %s13, 1
      %s130 = scalar_select %p129, %s13, 1
      %s131 = smul.addr %s130, 8
      %s132 = smul.addr %s131, 4
      %s133 = scalar_lea.vmem %s2, %s132
      %p134 = scmp.lt.s32.totalorder %s13, 1
      %s135 = scalar_select %p134, %s13, 1
      %s136 = smul.addr %s135, 2
      %s137 = smul.addr %s136, 4
      %s138 = scalar_lea.vmem %s1, %s137
      %p139 = scmp.lt.s32.totalorder %s13, 1
      %s140 = scalar_select %p139, %s13, 1
      %s141 = smul.addr %s140, 8
      %s142 = smul.addr %s141, 4
      %s143 = scalar_lea.vmem %s2, %s142
      %v145 = vld [vmem:[%s0] sm:$0xf]
      %v146 = vld [vmem:[%s0 + $0x4] sm:$0xf]
      %v147 = vld [vmem:[%s0 + $0x8] sm:$0xf]
      %v148 = vld [vmem:[%s0 + $0xc] sm:$0xf]
      %v149 = vld [vmem:[%s0 + $0x10] sm:$0xf]
      %v150 = vld [vmem:[%s0 + $0x14] sm:$0xf]
      %v151 = vld [vmem:[%s0 + $0x18] sm:$0xf]
      %v152 = vld [vmem:[%s0 + $0x1c] sm:$0xf]
      %v153 = vld [vmem:[%s138] sm:$0xf]
      %v154 = vld [vmem:[%s138 + $0x4] sm:$0xf]
      %v163 = vunpack.c.l.b16 %v145
      %v164 = vunpack.c.l.b16 %v146
      %v165 = vunpack.c.l.b16 %v147
      %v166 = vunpack.c.l.b16 %v148
      %v167 = vunpack.c.l.b16 %v149
      %v168 = vunpack.c.l.b16 %v150
      %v169 = vunpack.c.l.b16 %v151
      %v170 = vunpack.c.l.b16 %v152
      %v171 = vpack.c.b16 %v164, %v163
      %v172 = vpack.c.b16 %v166, %v165
      %v173 = vpack.c.b16 %v168, %v167
      %v174 = vpack.c.b16 %v170, %v169
      %v177 = vunpack.c.l.b16 %v153
      %v178 = vunpack.c.l.b16 %v154
      %v179 = vpack.c.b16 %v178, %v177
      %vm181 = vcmask 130048
      %v183 = vsel %vm181, %v171, 0
      %v186 = vsel %vm181, %v172, 0
      %v189 = vsel %vm181, %v173, 0
      %v192 = vsel %vm181, %v174, 0
      %194 = vmatprep.subr.bf16.mxu0 0
      %195 = vmatpush1.bf16.msra.mxu0 %v179
      %196 = vmatprep.subr.bf16.mxu0 0
      %197 = vmatpush1.bf16.msra.mxu0 0
      %198 = vmatprep.subr.bf16.mxu0 0
      %199 = vmatpush1.bf16.msra.mxu0 0
      %200 = vmatprep.subr.bf16.mxu0 0
      %201 = vmatpush1.bf16.msra.mxu0 0
      %202 = vmatprep.subr.bf16.mxu0 0
      %203 = vmatpush1.bf16.msra.mxu0 0
      %204 = vmatprep.subr.bf16.mxu0 0
      %205 = vmatpush1.bf16.msra.mxu0 0
      %206 = vmatprep.subr.bf16.mxu0 0
      %207 = vmatpush1.bf16.msra.mxu0 0
      %208 = vmatprep.subr.bf16.mxu0 0
      %209 = vmatpush1.bf16.msra.mxu0 0
      %210 = vmatprep.subr.bf16.mxu0 0
      %211 = vmatpush1.bf16.msra.mxu0 0
      %212 = vmatprep.subr.bf16.mxu0 0
      %213 = vmatpush1.bf16.msra.mxu0 0
      %214 = vmatprep.subr.bf16.mxu0 0
      %215 = vmatpush1.bf16.msra.mxu0 0
      %216 = vmatprep.subr.bf16.mxu0 0
      %217 = vmatpush1.bf16.msra.mxu0 0
      %218 = vmatprep.subr.bf16.mxu0 0
      %219 = vmatpush1.bf16.msra.mxu0 0
      %220 = vmatprep.subr.bf16.mxu0 0
      %221 = vmatpush1.bf16.msra.mxu0 0
      %222 = vmatprep.subr.bf16.mxu0 0
      %223 = vmatpush1.bf16.msra.mxu0 0
      %224 = vmatprep.subr.bf16.mxu0 0
      %225 = vmatpush1.bf16.msra.mxu0 0
      %226 = vmatprep.mubr.bf16.mxu0 0
      %227 = vmatmul.mubr.bf16.gmra.mrb[0].mxu0 %v183
      %v228 = vpop.f32.mrb[0].mxu0
      %v229 = vadd.f32 0.0, %v228
      %v230 = vpop.f32.mrb[0].mxu0
      %v231 = vpop.f32.mrb[0].mxu0
      %v232 = vadd.f32 0.0, %v231
      %v233 = vpop.f32.mrb[0].mxu0
      %234 = vmatprep.mubr.bf16.mxu0 0
      %235 = vmatmul.mubr.bf16.gmra.mrb[0].mxu0 %v186
      %v236 = vpop.f32.mrb[0].mxu0
      %v237 = vadd.f32 0.0, %v236
      %v238 = vpop.f32.mrb[0].mxu0
      %v239 = vpop.f32.mrb[0].mxu0
      %v240 = vadd.f32 0.0, %v239
      %v241 = vpop.f32.mrb[0].mxu0
      %242 = vmatprep.mubr.bf16.mxu0 0
      %243 = vmatmul.mubr.bf16.gmra.mrb[0].mxu0 %v189
      %v244 = vpop.f32.mrb[0].mxu0
      %v245 = vadd.f32 0.0, %v244
      %v246 = vpop.f32.mrb[0].mxu0
      %v247 = vpop.f32.mrb[0].mxu0
      %v248 = vadd.f32 0.0, %v247
      %v249 = vpop.f32.mrb[0].mxu0
      %250 = vmatprep.mubr.bf16.mxu0 0
      %251 = vmatmul.mubr.bf16.gmra.mrb[0].mxu0 %v192
      %v252 = vpop.f32.mrb[0].mxu0
      %v253 = vadd.f32 0.0, %v252
      %v254 = vpop.f32.mrb[0].mxu0
      %v255 = vpop.f32.mrb[0].mxu0
      %v256 = vadd.f32 0.0, %v255
      %v257 = vpop.f32.mrb[0].mxu0
      %258 = vdwg.mxu0
      %v259 = vpack.c.bf16 %v232, %v229
      %v260 = vpack.c.bf16 %v240, %v237
      %v261 = vpack.c.bf16 %v248, %v245
      %v262 = vpack.c.bf16 %v256, %v253
      %v267 = vunpack.c.l.b16 %v259
      %v268 = vunpack.c.h.b16 %v259
      %v269 = vunpack.c.l.b16 %v260
      %v270 = vunpack.c.h.b16 %v260
      %v271 = vunpack.c.l.b16 %v261
      %v272 = vunpack.c.h.b16 %v261
      %v273 = vunpack.c.l.b16 %v262
      %v274 = vunpack.c.h.b16 %v262
      %v275 = vpack.c.b16 %v267, %v267
      %v276 = vpack.c.b16 %v268, %v268
      %v277 = vpack.c.b16 %v269, %v269
      %v278 = vpack.c.b16 %v270, %v270
      %v279 = vpack.c.b16 %v271, %v271
      %v280 = vpack.c.b16 %v272, %v272
      %v281 = vpack.c.b16 %v273, %v273
      %v282 = vpack.c.b16 %v274, %v274
      %vm291 = vcmask 125952
      %292 = vst.msk [vmem:[%s143] sm:$0xf] %vm291, %v275
      %293 = vst.msk [vmem:[%s143 + $0x4] sm:$0xf] %vm291, %v276
      %294 = vst.msk [vmem:[%s143 + $0x8] sm:$0xf] %vm291, %v277
      %295 = vst.msk [vmem:[%s143 + $0xc] sm:$0xf] %vm291, %v278
      %296 = vst.msk [vmem:[%s143 + $0x10] sm:$0xf] %vm291, %v279
      %297 = vst.msk [vmem:[%s143 + $0x14] sm:$0xf] %vm291, %v280
      %298 = vst.msk [vmem:[%s143 + $0x18] sm:$0xf] %vm291, %v281
      %299 = vst.msk [vmem:[%s143 + $0x1c] sm:$0xf] %vm291, %v282
      %p300 = scmp.lt.s32.totalorder %s13, 1
      %s301 = scalar_select %p300, %s13, 1
      %s302 = smul.addr %s301, 8
      %s303 = smul.addr %s302, 4
      %s304 = scalar_lea.vmem %s2, %s303
      // Predicated region
      $region29: #{pspnet_forward.13} parent=27 // pred_check
        %p305 = pneg %p78
      $region30: #{pspnet_forward.13} parent=27 // pred_check_branch
        %307 = sbr.rel (%p305) target = $region32
      $region31: #{pspnet_forward.13} parent=27 // pred_region
        _
      $region32: #{pspnet_forward.13} parent=27 // pred_fallthru
        _
    $region28: #{pspnet_forward.13} parent=5 // pred_fallthru
      _
    %p308 = scmp.le.s32.totalorder 2, %s8
    // Predicated region
    $region33: #{pspnet_forward.13} parent=5 // pred_check
      %p309 = pneg %p308
    $region34: #{pspnet_forward.13} parent=5 // pred_check_branch
      %311 = sbr.rel (%p309) target = $region36
    $region35: #{pspnet_forward.13} parent=5 // pred_region
      %s312 = ssub.s32 %s8, 2
      // Predicated region
      $region37: #{pspnet_forward.13} parent=35 // pred_check
        %p313 = pneg %p84
      $region38: #{pspnet_forward.13} parent=35 // pred_check_branch
        %315 = sbr.rel (%p313) target = $region40
      $region39: #{pspnet_forward.13} parent=35 // pred_region
        %p316 = scmp.lt.s32.totalorder %s14, 1
        %s317 = scalar_select %p316, %s14, 1
        %s318 = smul.addr %s317, 8
        %s319 = smul.addr %s318, 4
        %s320 = scalar_lea.vmem %s2, %s319
      $region40: #{pspnet_forward.13} parent=35 // pred_fallthru
        _
    $region36: #{pspnet_forward.13} parent=5 // pred_fallthru
      _
  $region6: #{pspnet_forward.13} parent=0 // loop_footer
    %s12 = sadd.s32 1, %s8
  $region7: #{pspnet_forward.13} parent=0 // loop_footer_branch
    %7 = sbr.rel target = $region3
  $region8: #{pspnet_forward.13} parent=0 // loop_exit
    _

// kernel: pspnet_forward.12
$region0: #{pspnet_forward.12}
  #allocation0 [shape = 'u32[]', space=smem, size = 0x4, offset = 0x4, fixed_abs, tag = 'smem constant byte address 0x4 - core index']
  #allocation1 [shape = 'u32[144,128]{1,0:T(1,128)}', space=vmem, size = 0x12000, scoped, tag = 'internal scratch']
  %s0 = inlined_call_operand.vmem [shape: bf16[2,38,64], index: 0, kind: input, shape index: {}]
  %s1 = inlined_call_operand.vmem [shape: bf16[9,64,16], index: 1, kind: input, shape index: {}]
  %s2 = inlined_call_operand.vmem [shape: f32[1,16], index: 2, kind: input, shape index: {}]
  %s3 = inlined_call_operand.vmem [shape: bf16[2,24,16], index: 3, kind: output, shape index: {}]
  %s4 = sld [smem:[#allocation0]]
  $region45: #{pspnet_forward.12} parent=0
    _
  %s6 = ssub.s32 1, %s4
  %s7 = scalar_select 0, %s6, %s4
  loop: start=0, step=1, limit=4
  $region2: #{pspnet_forward.12} parent=0 // loop_pre_header
    _
  $region3: #{pspnet_forward.12} parent=0 // loop_header
    %s9 = sphi 0, %s13
    %p10 = scmp.ge.s32.totalorder %s9, 4
    %s19 = sphi 0, %s21
    %s22 = sphi 0, %s19
    %s23 = sphi 0, %s22
    %s39 = sphi 0, %s23
    %s43 = sphi 0, %s43
    %s45 = sphi 0, %s43
    %s46 = sphi 0, %s45
    %s60 = sphi 0, %s46
    %s64 = sphi 0, %s64
    %s66 = sphi 0, %s64
    %s67 = sphi 0, %s66
    %s81 = sphi 0, %s67
    %s87 = sphi 0, %s89
    %s90 = sphi 0, %s87
    %s91 = sphi 0, %s90
    %s107 = sphi 0, %s91
  $region4: #{pspnet_forward.12} parent=0 // loop_header_branch
    %12 = sbr.rel (%p10) target = $region8
  $region5: #{pspnet_forward.12} parent=0 // loop_body
    %s14 = ssub.s32 %s9, 1
    %s15 = ssub.s32 %s9, 2
    %s16 = sadd.s32 %s9, 1
    %s17 = ssub.s32 %s9, %s16
    %p18 = scmp.eq.s32.totalorder %s17, 0
    %s20 = sadd.s32 %s19, 1
    %s21 = scalar_select %p18, %s19, %s20
    %p24 = pneg %p18
    %p25 = scmp.eq.s32.totalorder %s9, 1
    %p26 = por %p24, %p25
    %p27 = scmp.ne.s32.totalorder %s19, %s22
    %p28 = scmp.eq.s32.totalorder %s9, 0
    %p29 = por %p27, %p28
    %p30 = scmp.ne.s32.totalorder %s19, %s22
    %p31 = scmp.eq.s32.totalorder %s14, 1
    %p32 = por %p30, %p31
    %p33 = scmp.ne.s32.totalorder %s22, %s23
    %p34 = scmp.eq.s32.totalorder %s14, 0
    %p35 = por %p33, %p34
    %p36 = scmp.ne.s32.totalorder %s22, %s23
    %p37 = scmp.eq.s32.totalorder %s15, 1
    %p38 = por %p36, %p37
    %p40 = scmp.ne.s32.totalorder %s23, %s39
    %p41 = scmp.eq.s32.totalorder %s15, 0
    %p42 = por %p40, %p41
    %s44 = sadd.s32 %s43, 1
    %p47 = scmp.eq.s32.totalorder %s9, 1
    %p48 = scmp.ne.s32.totalorder %s43, %s45
    %p49 = scmp.eq.s32.totalorder %s9, 0
    %p50 = por %p48, %p49
    %p51 = scmp.ne.s32.totalorder %s43, %s45
    %p52 = scmp.eq.s32.totalorder %s14, 1
    %p53 = por %p51, %p52
    %p54 = scmp.ne.s32.totalorder %s45, %s46
    %p55 = scmp.eq.s32.totalorder %s14, 0
    %p56 = por %p54, %p55
    %p57 = scmp.ne.s32.totalorder %s45, %s46
    %p58 = scmp.eq.s32.totalorder %s15, 1
    %p59 = por %p57, %p58
    %p61 = scmp.ne.s32.totalorder %s46, %s60
    %p62 = scmp.eq.s32.totalorder %s15, 0
    %p63 = por %p61, %p62
    %s65 = sadd.s32 %s64, 1
    %p68 = scmp.eq.s32.totalorder %s9, 1
    %p69 = scmp.ne.s32.totalorder %s64, %s66
    %p70 = scmp.eq.s32.totalorder %s9, 0
    %p71 = por %p69, %p70
    %p72 = scmp.ne.s32.totalorder %s64, %s66
    %p73 = scmp.eq.s32.totalorder %s14, 1
    %p74 = por %p72, %p73
    %p75 = scmp.ne.s32.totalorder %s66, %s67
    %p76 = scmp.eq.s32.totalorder %s14, 0
    %p77 = por %p75, %p76
    %p78 = scmp.ne.s32.totalorder %s66, %s67
    %p79 = scmp.eq.s32.totalorder %s15, 1
    %p80 = por %p78, %p79
    %p82 = scmp.ne.s32.totalorder %s67, %s81
    %p83 = scmp.eq.s32.totalorder %s15, 0
    %p84 = por %p82, %p83
    %s85 = ssub.s32 %s9, %s16
    %p86 = scmp.eq.s32.totalorder %s85, 0
    %s88 = sadd.s32 %s87, 1
    %s89 = scalar_select %p86, %s87, %s88
    %p92 = pneg %p86
    %p93 = scmp.eq.s32.totalorder %s9, 1
    %p94 = por %p92, %p93
    %p95 = scmp.ne.s32.totalorder %s87, %s90
    %p96 = scmp.eq.s32.totalorder %s9, 0
    %p97 = por %p95, %p96
    %p98 = scmp.ne.s32.totalorder %s87, %s90
    %p99 = scmp.eq.s32.totalorder %s14, 1
    %p100 = por %p98, %p99
    %p101 = scmp.ne.s32.totalorder %s90, %s91
    %p102 = scmp.eq.s32.totalorder %s14, 0
    %p103 = por %p101, %p102
    %p104 = scmp.ne.s32.totalorder %s90, %s91
    %p105 = scmp.eq.s32.totalorder %s15, 1
    %p106 = por %p104, %p105
    %p108 = scmp.ne.s32.totalorder %s91, %s107
    %p109 = scmp.eq.s32.totalorder %s15, 0
    %p110 = por %p108, %p109
    %p111 = scmp.le.s32.totalorder 1, %s9
    %p112 = scmp.lt.s32.totalorder %s9, 3
    %p113 = pnand %p111, %p112
    %p114 = pneg %p113
    // Predicated region
    $region9: #{pspnet_forward.12} parent=5 // pred_check
      _
    $region10: #{pspnet_forward.12} parent=5 // pred_check_branch
      %116 = sbr.rel (%p113) target = $region12
    $region11: #{pspnet_forward.12} parent=5 // pred_region
      %s117 = ssub.s32 %s9, 1
      // Predicated region
      $region13: #{pspnet_forward.12} parent=11 // pred_check
        %p118 = pneg %p56
      $region14: #{pspnet_forward.12} parent=11 // pred_check_branch
        %120 = sbr.rel (%p118) target = $region16
      $region15: #{pspnet_forward.12} parent=11 // pred_region
        _
      $region16: #{pspnet_forward.12} parent=11 // pred_fallthru
        _
      // Predicated region
      $region17: #{pspnet_forward.12} parent=11 // pred_check
        %p121 = pneg %p77
      $region18: #{pspnet_forward.12} parent=11 // pred_check_branch
        %123 = sbr.rel (%p121) target = $region20
      $region19: #{pspnet_forward.12} parent=11 // pred_region
        _
      $region20: #{pspnet_forward.12} parent=11 // pred_fallthru
        _
    $region12: #{pspnet_forward.12} parent=5 // pred_fallthru
      _
    %p124 = scmp.lt.s32.totalorder %s9, 2
    // Predicated region
    $region21: #{pspnet_forward.12} parent=5 // pred_check
      %p125 = pneg %p124
    $region22: #{pspnet_forward.12} parent=5 // pred_check_branch
      %127 = sbr.rel (%p125) target = $region24
    $region23: #{pspnet_forward.12} parent=5 // pred_region
      // Predicated region
      $region25: #{pspnet_forward.12} parent=23 // pred_check
        %p128 = pneg %p29
      $region26: #{pspnet_forward.12} parent=23 // pred_check_branch
        %130 = sbr.rel (%p128) target = $region28
      $region27: #{pspnet_forward.12} parent=23 // pred_region
        %p131 = scmp.lt.s32.totalorder %s9, 1
        %s132 = scalar_select %p131, %s9, 1
        %s133 = smul.addr %s132, 5
        %s134 = smul.addr %s133, 4
        %s135 = scalar_lea.vmem %s0, %s134
      $region28: #{pspnet_forward.12} parent=23 // pred_fallthru
        _
    $region24: #{pspnet_forward.12} parent=5 // pred_fallthru
      _
    %p136 = scmp.le.s32.totalorder 1, %s9
    %p137 = scmp.lt.s32.totalorder %s9, 3
    %p138 = pnand %p136, %p137
    %p139 = pneg %p138
    // Predicated region
    $region29: #{pspnet_forward.12} parent=5 // pred_check
      _
    $region30: #{pspnet_forward.12} parent=5 // pred_check_branch
      %141 = sbr.rel (%p138) target = $region32
    $region31: #{pspnet_forward.12} parent=5 // pred_region
      %s142 = ssub.s32 %s9, 1
      %p143 = scmp.lt.s32.totalorder %s14, 1
      %s144 = scalar_select %p143, %s14, 1
      %s145 = smul.addr %s144, 5
      %s146 = smul.addr %s145, 4
      %s147 = scalar_lea.vmem %s0, %s146
      %p148 = pneg %p35
      %p149 = pneg %p32
      %p150 = pneg %p56
      %p151 = pneg %p53
      %p152 = pneg %p77
      %p153 = pneg %p74
      %p154 = pneg %p103
      %p155 = pneg %p100
      %p156 = scmp.lt.s32.totalorder %s14, 1
      %s157 = scalar_select %p156, %s14, 1
      %s158 = smul.addr %s157, 3
      %s159 = smul.addr %s158, 4
      %s160 = scalar_lea.vmem %s3, %s159
      %p161 = scmp.lt.s32.totalorder %s14, 1
      %s162 = scalar_select %p161, %s14, 1
      %s163 = smul.addr %s162, 5
      %s164 = smul.addr %s163, 4
      %s165 = scalar_lea.vmem %s0, %s164
      %p166 = scmp.lt.s32.totalorder %s14, 1
      %s167 = scalar_select %p166, %s14, 1
      %s168 = smul.addr %s167, 3
      %s169 = smul.addr %s168, 4
      %s170 = scalar_lea.vmem %s3, %s169
      %v172 = vld [vmem:[%s165] sm:$0xf]
      %v173 = vld [vmem:[%s165 + $0x4] sm:$0xf]
      %v174 = vld [vmem:[%s165 + $0x8] sm:$0xf]
      %v175 = vld [vmem:[%s165 + $0xc] sm:$0xf]
      %v176 = vld [vmem:[%s165 + $0x10] sm:$0x7]
      %v177 = vld [vmem:[%s1] sm:$0xf]
      %v178 = vld [vmem:[%s1 + $0x4] sm:$0xf]
      %v179 = vld [vmem:[%s1 + $0x8] sm:$0xf]
      %v180 = vld [vmem:[%s1 + $0xc] sm:$0xf]
      %v181 = vld [vmem:[%s1 + $0x10] sm:$0xf]
      %v182 = vld [vmem:[%s1 + $0x14] sm:$0xf]
      %v183 = vld [vmem:[%s1 + $0x18] sm:$0xf]
      %v184 = vld [vmem:[%s1 + $0x1c] sm:$0xf]
      %s185 = scalar_lea.vmem %s1, 32
      %v186 = vld [vmem:[%s185] sm:$0xf]
      %v187 = vld [vmem:[%s185 + $0x4] sm:$0xf]
      %v188 = vld [vmem:[%s185 + $0x8] sm:$0xf]
      %v189 = vld [vmem:[%s185 + $0xc] sm:$0xf]
      %v190 = vld [vmem:[%s185 + $0x10] sm:$0xf]
      %v191 = vld [vmem:[%s185 + $0x14] sm:$0xf]
      %v192 = vld [vmem:[%s185 + $0x18] sm:$0xf]
      %v193 = vld [vmem:[%s185 + $0x1c] sm:$0xf]
      %v198 = vunpack.c.l.b16 %v172
      %v199 = vunpack.c.l.b16 %v173
      %v200 = vunpack.c.l.b16 %v174
      %v201 = vunpack.c.l.b16 %v175
      %v202 = vpack.c.b16 %v199, %v198
      %v203 = vpack.c.b16 %v201, %v200
      %vm204 = vsmask.f32 7424
      %v206 = vshrl.u32 %v202, 16
      %v208 = vshll.u32 %v202, 16
      %v210 = vrot.slane %v208, 1
      %v211 = vor.u32 %v206, %v210
      %v213 = vshll.u32 %v203, 16
      %v215 = vrot.slane %v213, 1
      %v216 = vsel %vm204, %v211, %v215
      %v217 = vshrl.u32 %v203, 16
      %v219 = vor.u32 %v217, %v215
      %v228 = vunpack.c.l.b16 %v186
      %v229 = vunpack.c.l.b16 %v187
      %v230 = vunpack.c.l.b16 %v188
      %v231 = vunpack.c.l.b16 %v189
      %v232 = vunpack.c.l.b16 %v190
      %v233 = vunpack.c.l.b16 %v191
      %v234 = vunpack.c.l.b16 %v192
      %v235 = vunpack.c.l.b16 %v193
      %v236 = vpack.c.b16 %v229, %v228
      %v237 = vpack.c.b16 %v231, %v230
      %v238 = vpack.c.b16 %v233, %v232
      %v239 = vpack.c.b16 %v235, %v234
      %vm244 = vcmask 523264
      %v246 = vsel %vm244, %v216, 0
      %v249 = vsel %vm244, %v219, 0
      %251 = vmatprep.subr.bf16.mxu0 0
      %252 = vmatpush1.bf16.msra.mxu0 %v236
      %253 = vmatprep.subr.bf16.mxu0 0
      %254 = vmatpush1.bf16.msra.mxu0 %v237
      %255 = vmatprep.subr.bf16.mxu0 0
      %256 = vmatpush1.bf16.msra.mxu0 %v238
      %257 = vmatprep.subr.bf16.mxu0 0
      %258 = vmatpush1.bf16.msra.mxu0 %v239
      %259 = vmatprep.subr.bf16.mxu0 0
      %260 = vmatpush1.bf16.msra.mxu0 0
      %261 = vmatprep.subr.bf16.mxu0 0
      %262 = vmatpush1.bf16.msra.mxu0 0
      %263 = vmatprep.subr.bf16.mxu0 0
      %264 = vmatpush1.bf16.msra.mxu0 0
      %265 = vmatprep.subr.bf16.mxu0 0
      %266 = vmatpush1.bf16.msra.mxu0 0
      %267 = vmatprep.subr.bf16.mxu0 0
      %268 = vmatpush1.bf16.msra.mxu0 0
      %269 = vmatprep.subr.bf16.mxu0 0
      %270 = vmatpush1.bf16.msra.mxu0 0
      %271 = vmatprep.subr.bf16.mxu0 0
      %272 = vmatpush1.bf16.msra.mxu0 0
      %273 = vmatprep.subr.bf16.mxu0 0
      %274 = vmatpush1.bf16.msra.mxu0 0
      %275 = vmatprep.subr.bf16.mxu0 0
      %276 = vmatpush1.bf16.msra.mxu0 0
      %277 = vmatprep.subr.bf16.mxu0 0
      %278 = vmatpush1.bf16.msra.mxu0 0
      %279 = vmatprep.subr.bf16.mxu0 0
      %280 = vmatpush1.bf16.msra.mxu0 0
      %281 = vmatprep.subr.bf16.mxu0 0
      %282 = vmatpush1.bf16.msra.mxu0 0
      %283 = vmatprep.mubr.bf16.mxu0 0
      %284 = vmatmul.mubr.bf16.gmra.mrb[0].mxu0 %v246
      %v285 = vpop.f32.mrb[0].mxu0
      %v286 = vadd.f32 0.0, %v285
      %v287 = vpop.f32.mrb[0].mxu0
      %v288 = vpop.f32.mrb[0].mxu0
      %v289 = vadd.f32 0.0, %v288
      %v290 = vpop.f32.mrb[0].mxu0
      %291 = vmatprep.mubr.bf16.mxu0 0
      %292 = vmatmul.mubr.bf16.gmra.mrb[0].mxu0 %v249
      %v293 = vpop.f32.mrb[0].mxu0
      %v294 = vadd.f32 0.0, %v293
      %v295 = vpop.f32.mrb[0].mxu0
      %v296 = vpop.f32.mrb[0].mxu0
      %v297 = vpop.f32.mrb[0].mxu0
      %298 = vdwg.mxu0
      %v299 = vpack.c.b16 %v200, %v200
      %v308 = vunpack.c.l.b16 %v177
      %v309 = vunpack.c.l.b16 %v178
      %v310 = vunpack.c.l.b16 %v179
      %v311 = vunpack.c.l.b16 %v180
      %v312 = vunpack.c.l.b16 %v181
      %v313 = vunpack.c.l.b16 %v182
      %v314 = vunpack.c.l.b16 %v183
      %v315 = vunpack.c.l.b16 %v184
      %v316 = vpack.c.b16 %v309, %v308
      %v317 = vpack.c.b16 %v311, %v310
      %v318 = vpack.c.b16 %v313, %v312
      %v319 = vpack.c.b16 %v315, %v314
      %v324 = vsel %vm244, %v202, 0
      %v327 = vsel %vm244, %v299, 0
      %329 = vmatprep.subr.bf16.mxu0 0
      %330 = vmatpush1.bf16.msra.mxu0 %v316
      %331 = vmatprep.subr.bf16.mxu0 0
      %332 = vmatpush1.bf16.msra.mxu0 %v317
      %333 = vmatprep.subr.bf16.mxu0 0
      %334 = vmatpush1.bf16.msra.mxu0 %v318
      %335 = vmatprep.subr.bf16.mxu0 0
      %336 = vmatpush1.bf16.msra.mxu0 %v319
      %337 = vmatprep.subr.bf16.mxu0 0
      %338 = vmatpush1.bf16.msra.mxu0 0
      %339 = vmatprep.subr.bf16.mxu0 0
      %340 = vmatpush1.bf16.msra.mxu0 0
      %341 = vmatprep.subr.bf16.mxu0 0
      %342 = vmatpush1.bf16.msra.mxu0 0
      %343 = vmatprep.subr.bf16.mxu0 0
      %344 = vmatpush1.bf16.msra.mxu0 0
      %345 = vmatprep.subr.bf16.mxu0 0
      %346 = vmatpush1.bf16.msra.mxu0 0
      %347 = vmatprep.subr.bf16.mxu0 0
      %348 = vmatpush1.bf16.msra.mxu0 0
      %349 = vmatprep.subr.bf16.mxu0 0
      %350 = vmatpush1.bf16.msra.mxu0 0
      %351 = vmatprep.subr.bf16.mxu0 0
      %352 = vmatpush1.bf16.msra.mxu0 0
      %353 = vmatprep.subr.bf16.mxu0 0
      %354 = vmatpush1.bf16.msra.mxu0 0
      %355 = vmatprep.subr.bf16.mxu0 0
      %356 = vmatpush1.bf16.msra.mxu0 0
      %357 = vmatprep.subr.bf16.mxu0 0
      %358 = vmatpush1.bf16.msra.mxu0 0
      %359 = vmatprep.subr.bf16.mxu0 0
      %360 = vmatpush1.bf16.msra.mxu0 0
      %361 = vmatprep.mubr.bf16.mxu0 0
      %362 = vmatmul.mubr.bf16.gmra.mrb[0].mxu0 %v324
      %v363 = vpop.f32.mrb[0].mxu0
      %v364 = vadd.f32 %v286, %v363
      %v365 = vpop.f32.mrb[0].mxu0
      %v366 = vpop.f32.mrb[0].mxu0
      %v367 = vadd.f32 %v289, %v366
      %v368 = vpop.f32.mrb[0].mxu0
      %369 = vmatprep.mubr.bf16.mxu0 0
      %370 = vmatmul.mubr.bf16.gmra.mrb[0].mxu0 %v327
      %v371 = vpop.f32.mrb[0].mxu0
      %v372 = vadd.f32 %v294, %v371
      %v373 = vpop.f32.mrb[0].mxu0
      %v374 = vpop.f32.mrb[0].mxu0
      %v375 = vpop.f32.mrb[0].mxu0
      %376 = vdwg.mxu0
      %s377 = scalar_lea.vmem %s1, 64
      %v378 = vld [vmem:[%s377] sm:$0xf]
      %v379 = vld [vmem:[%s377 + $0x4] sm:$0xf]
      %v380 = vld [vmem:[%s377 + $0x8] sm:$0xf]
      %v381 = vld [vmem:[%s377 + $0xc] sm:$0xf]
      %v382 = vld [vmem:[%s377 + $0x10] sm:$0xf]
      %v383 = vld [vmem:[%s377 + $0x14] sm:$0xf]
      %v384 = vld [vmem:[%s377 + $0x18] sm:$0xf]
      %v385 = vld [vmem:[%s377 + $0x1c] sm:$0xf]
      %vm386 = vcmask 1046528
      %v387 = vrot.slane %v202, 1
      %v388 = vrot.slane %v203, 1
      %v389 = vsel %vm386, %v387, %v388
      %v398 = vunpack.c.l.b16 %v378
      %v399 = vunpack.c.l.b16 %v379
      %v400 = vunpack.c.l.b16 %v380
      %v401 = vunpack.c.l.b16 %v381
      %v402 = vunpack.c.l.b16 %v382
      %v403 = vunpack.c.l.b16 %v383
      %v404 = vunpack.c.l.b16 %v384
      %v405 = vunpack.c.l.b16 %v385
      %v406 = vpack.c.b16 %v399, %v398
      %v407 = vpack.c.b16 %v401, %v400
      %v408 = vpack.c.b16 %v403, %v402
      %v409 = vpack.c.b16 %v405, %v404
      %v415 = vsel %vm244, %v389, 0
      %v418 = vsel %vm244, %v388, 0
      %420 = vmatprep.subr.bf16.mxu0 0
      %421 = vmatpush1.bf16.msra.mxu0 %v406
      %422 = vmatprep.subr.bf16.mxu0 0
      %423 = vmatpush1.bf16.msra.mxu0 %v407
      %424 = vmatprep.subr.bf16.mxu0 0
      %425 = vmatpush1.bf16.msra.mxu0 %v408
      %426 = vmatprep.subr.bf16.mxu0 0
      %427 = vmatpush1.bf16.msra.mxu0 %v409
      %428 = vmatprep.subr.bf16.mxu0 0
      %429 = vmatpush1.bf16.msra.mxu0 0
      %430 = vmatprep.subr.bf16.mxu0 0
      %431 = vmatpush1.bf16.msra.mxu0 0
      %432 = vmatprep.subr.bf16.mxu0 0
      %433 = vmatpush1.bf16.msra.mxu0 0
      %434 = vmatprep.subr.bf16.mxu0 0
      %435 = vmatpush1.bf16.msra.mxu0 0
      %436 = vmatprep.subr.bf16.mxu0 0
      %437 = vmatpush1.bf16.msra.mxu0 0
      %438 = vmatprep.subr.bf16.mxu0 0
      %439 = vmatpush1.bf16.msra.mxu0 0
      %440 = vmatprep.subr.bf16.mxu0 0
      %441 = vmatpush1.bf16.msra.mxu0 0
      %442 = vmatprep.subr.bf16.mxu0 0
      %443 = vmatpush1.bf16.msra.mxu0 0
      %444 = vmatprep.subr.bf16.mxu0 0
      %445 = vmatpush1.bf16.msra.mxu0 0
      %446 = vmatprep.subr.bf16.mxu0 0
      %447 = vmatpush1.bf16.msra.mxu0 0
      %448 = vmatprep.subr.bf16.mxu0 0
      %449 = vmatpush1.bf16.msra.mxu0 0
      %450 = vmatprep.subr.bf16.mxu0 0
      %451 = vmatpush1.bf16.msra.mxu0 0
      %452 = vmatprep.mubr.bf16.mxu0 0
      %453 = vmatmul.mubr.bf16.gmra.mrb[0].mxu0 %v415
      %v454 = vpop.f32.mrb[0].mxu0
      %v455 = vadd.f32 0.0, %v454
      %v456 = vpop.f32.mrb[0].mxu0
      %v457 = vpop.f32.mrb[0].mxu0
      %v458 = vadd.f32 0.0, %v457
      %v459 = vpop.f32.mrb[0].mxu0
      %460 = vmatprep.mubr.bf16.mxu0 0
      %461 = vmatmul.mubr.bf16.gmra.mrb[0].mxu0 %v418
      %v462 = vpop.f32.mrb[0].mxu0
      %v463 = vadd.f32 0.0, %v462
      %v464 = vpop.f32.mrb[0].mxu0
      %v465 = vpop.f32.mrb[0].mxu0
      %v466 = vpop.f32.mrb[0].mxu0
      %467 = vdwg.mxu0
      %v468 = vadd.f32 %v364, %v455
      %v469 = vadd.f32 %v367, %v458
      %v470 = vadd.f32 %v372, %v463
      %s471 = scalar_lea.vmem %s1, 96
      %v472 = vld [vmem:[%s471] sm:$0xf]
      %v473 = vld [vmem:[%s471 + $0x4] sm:$0xf]
      %v474 = vld [vmem:[%s471 + $0x8] sm:$0xf]
      %v475 = vld [vmem:[%s471 + $0xc] sm:$0xf]
      %v476 = vld [vmem:[%s471 + $0x10] sm:$0xf]
      %v477 = vld [vmem:[%s471 + $0x14] sm:$0xf]
      %v478 = vld [vmem:[%s471 + $0x18] sm:$0xf]
      %v479 = vld [vmem:[%s471 + $0x1c] sm:$0xf]
      %vm480 = vcmask 1044480
      %v481 = vrot.slane %v202, 3
      %v482 = vrot.slane %v203, 3
      %v483 = vsel %vm480, %v481, %v482
      %v492 = vunpack.c.l.b16 %v472
      %v493 = vunpack.c.l.b16 %v473
      %v494 = vunpack.c.l.b16 %v474
      %v495 = vunpack.c.l.b16 %v475
      %v496 = vunpack.c.l.b16 %v476
      %v497 = vunpack.c.l.b16 %v477
      %v498 = vunpack.c.l.b16 %v478
      %v499 = vunpack.c.l.b16 %v479
      %v500 = vpack.c.b16 %v493, %v492
      %v501 = vpack.c.b16 %v495, %v494
      %v502 = vpack.c.b16 %v497, %v496
      %v503 = vpack.c.b16 %v499, %v498
      %v509 = vsel %vm244, %v483, 0
      %v512 = vsel %vm244, %v482, 0
      %514 = vmatprep.subr.bf16.mxu0 0
      %515 = vmatpush1.bf16.msra.mxu0 %v500
      %516 = vmatprep.subr.bf16.mxu0 0
      %517 = vmatpush1.bf16.msra.mxu0 %v501
      %518 = vmatprep.subr.bf16.mxu0 0
      %519 = vmatpush1.bf16.msra.mxu0 %v502
      %520 = vmatprep.subr.bf16.mxu0 0
      %521 = vmatpush1.bf16.msra.mxu0 %v503
      %522 = vmatprep.subr.bf16.mxu0 0
      %523 = vmatpush1.bf16.msra.mxu0 0
      %524 = vmatprep.subr.bf16.mxu0 0
      %525 = vmatpush1.bf16.msra.mxu0 0
      %526 = vmatprep.subr.bf16.mxu0 0
      %527 = vmatpush1.bf16.msra.mxu0 0
      %528 = vmatprep.subr.bf16.mxu0 0
      %529 = vmatpush1.bf16.msra.mxu0 0
      %530 = vmatprep.subr.bf16.mxu0 0
      %531 = vmatpush1.bf16.msra.mxu0 0
      %532 = vmatprep.subr.bf16.mxu0 0
      %533 = vmatpush1.bf16.msra.mxu0 0
      %534 = vmatprep.subr.bf16.mxu0 0
      %535 = vmatpush1.bf16.msra.mxu0 0
      %536 = vmatprep.subr.bf16.mxu0 0
      %537 = vmatpush1.bf16.msra.mxu0 0
      %538 = vmatprep.subr.bf16.mxu0 0
      %539 = vmatpush1.bf16.msra.mxu0 0
      %540 = vmatprep.subr.bf16.mxu0 0
      %541 = vmatpush1.bf16.msra.mxu0 0
      %542 = vmatprep.subr.bf16.mxu0 0
      %543 = vmatpush1.bf16.msra.mxu0 0
      %544 = vmatprep.subr.bf16.mxu0 0
      %545 = vmatpush1.bf16.msra.mxu0 0
      %546 = vmatprep.mubr.bf16.mxu0 0
      %547 = vmatmul.mubr.bf16.gmra.mrb[0].mxu0 %v509
      %v548 = vpop.f32.mrb[0].mxu0
      %v549 = vadd.f32 0.0, %v548
      %v550 = vpop.f32.mrb[0].mxu0
      %v551 = vpop.f32.mrb[0].mxu0
      %v552 = vadd.f32 0.0, %v551
      %v553 = vpop.f32.mrb[0].mxu0
      %554 = vmatprep.mubr.bf16.mxu0 0
      %555 = vmatmul.mubr.bf16.gmra.mrb[0].mxu0 %v512
      %v556 = vpop.f32.mrb[0].mxu0
      %v557 = vadd.f32 0.0, %v556
      %v558 = vpop.f32.mrb[0].mxu0
      %v559 = vpop.f32.mrb[0].mxu0
      %v560 = vpop.f32.mrb[0].mxu0
      %561 = vdwg.mxu0
      %v562 = vadd.f32 %v468, %v549
      %v563 = vadd.f32 %v469, %v552
      %v564 = vadd.f32 %v470, %v557
      %s565 = scalar_lea.vmem %s1, 128
      %v566 = vld [vmem:[%s565] sm:$0xf]
      %v567 = vld [vmem:[%s565 + $0x4] sm:$0xf]
      %v568 = vld [vmem:[%s565 + $0x8] sm:$0xf]
      %v569 = vld [vmem:[%s565 + $0xc] sm:$0xf]
      %v570 = vld [vmem:[%s565 + $0x10] sm:$0xf]
      %v571 = vld [vmem:[%s565 + $0x14] sm:$0xf]
      %v572 = vld [vmem:[%s565 + $0x18] sm:$0xf]
      %v573 = vld [vmem:[%s565 + $0x1c] sm:$0xf]
      %vm574 = vsmask.f32 4352
      %v575 = vrot.slane %v206, 3
      %v576 = vrot.slane %v208, 4
      %v577 = vor.u32 %v575, %v576
      %v578 = vrot.slane %v217, 3
      %v579 = vrot.slane %v213, 4
      %v580 = vor.u32 %v578, %v579
      %v581 = vsel %vm574, %v577, %v580
      %v590 = vunpack.c.l.b16 %v566
      %v591 = vunpack.c.l.b16 %v567
      %v592 = vunpack.c.l.b16 %v568
      %v593 = vunpack.c.l.b16 %v569
      %v594 = vunpack.c.l.b16 %v570
      %v595 = vunpack.c.l.b16 %v571
      %v596 = vunpack.c.l.b16 %v572
      %v597 = vunpack.c.l.b16 %v573
      %v598 = vpack.c.b16 %v591, %v590
      %v599 = vpack.c.b16 %v593, %v592
      %v600 = vpack.c.b16 %v595, %v594
      %v601 = vpack.c.b16 %v597, %v596
      %v607 = vsel %vm244, %v581, 0
      %v610 = vsel %vm244, %v580, 0
      %612 = vmatprep.subr.bf16.mxu0 0
      %613 = vmatpush1.bf16.msra.mxu0 %v598
      %614 = vmatprep.subr.bf16.mxu0 0
      %615 = vmatpush1.bf16.msra.mxu0 %v599
      %616 = vmatprep.subr.bf16.mxu0 0
      %617 = vmatpush1.bf16.msra.mxu0 %v600
      %618 = vmatprep.subr.bf16.mxu0 0
      %619 = vmatpush1.bf16.msra.mxu0 %v601
      %620 = vmatprep.subr.bf16.mxu0 0
      %621 = vmatpush1.bf16.msra.mxu0 0
      %622 = vmatprep.subr.bf16.mxu0 0
      %623 = vmatpush1.bf16.msra.mxu0 0
      %624 = vmatprep.subr.bf16.mxu0 0
      %625 = vmatpush1.bf16.msra.mxu0 0
      %626 = vmatprep.subr.bf16.mxu0 0
      %627 = vmatpush1.bf16.msra.mxu0 0
      %628 = vmatprep.subr.bf16.mxu0 0
      %629 = vmatpush1.bf16.msra.mxu0 0
      %630 = vmatprep.subr.bf16.mxu0 0
      %631 = vmatpush1.bf16.msra.mxu0 0
      %632 = vmatprep.subr.bf16.mxu0 0
      %633 = vmatpush1.bf16.msra.mxu0 0
      %634 = vmatprep.subr.bf16.mxu0 0
      %635 = vmatpush1.bf16.msra.mxu0 0
      %636 = vmatprep.subr.bf16.mxu0 0
      %637 = vmatpush1.bf16.msra.mxu0 0
      %638 = vmatprep.subr.bf16.mxu0 0
      %639 = vmatpush1.bf16.msra.mxu0 0
      %640 = vmatprep.subr.bf16.mxu0 0
      %641 = vmatpush1.bf16.msra.mxu0 0
      %642 = vmatprep.subr.bf16.mxu0 0
      %643 = vmatpush1.bf16.msra.mxu0 0
      %644 = vmatprep.mubr.bf16.mxu0 0
      %645 = vmatmul.mubr.bf16.gmra.mrb[0].mxu0 %v607
      %v646 = vpop.f32.mrb[0].mxu0
      %v647 = vadd.f32 0.0, %v646
      %v648 = vpop.f32.mrb[0].mxu0
      %v649 = vpop.f32.mrb[0].mxu0
      %v650 = vadd.f32 0.0, %v649
      %v651 = vpop.f32.mrb[0].mxu0
      %652 = vmatprep.mubr.bf16.mxu0 0
      %653 = vmatmul.mubr.bf16.gmra.mrb[0].mxu0 %v610
      %v654 = vpop.f32.mrb[0].mxu0
      %v655 = vadd.f32 0.0, %v654
      %v656 = vpop.f32.mrb[0].mxu0
      %v657 = vpop.f32.mrb[0].mxu0
      %v658 = vpop.f32.mrb[0].mxu0
      %659 = vdwg.mxu0
      %v660 = vadd.f32 %v562, %v647
      %v661 = vadd.f32 %v563, %v650
      %v662 = vadd.f32 %v564, %v655
      %s663 = scalar_lea.vmem %s1, 160
      %v664 = vld [vmem:[%s663] sm:$0xf]
      %v665 = vld [vmem:[%s663 + $0x4] sm:$0xf]
      %v666 = vld [vmem:[%s663 + $0x8] sm:$0xf]
      %v667 = vld [vmem:[%s663 + $0xc] sm:$0xf]
      %v668 = vld [vmem:[%s663 + $0x10] sm:$0xf]
      %v669 = vld [vmem:[%s663 + $0x14] sm:$0xf]
      %v670 = vld [vmem:[%s663 + $0x18] sm:$0xf]
      %v671 = vld [vmem:[%s663 + $0x1c] sm:$0xf]
      %v672 = vpack.c.b16 %v200, %v199
      %v673 = vpack.c.b16 %v201, %v201
      %v682 = vunpack.c.l.b16 %v664
      %v683 = vunpack.c.l.b16 %v665
      %v684 = vunpack.c.l.b16 %v666
      %v685 = vunpack.c.l.b16 %v667
      %v686 = vunpack.c.l.b16 %v668
      %v687 = vunpack.c.l.b16 %v669
      %v688 = vunpack.c.l.b16 %v670
      %v689 = vunpack.c.l.b16 %v671
      %v690 = vpack.c.b16 %v683, %v682
      %v691 = vpack.c.b16 %v685, %v684
      %v692 = vpack.c.b16 %v687, %v686
      %v693 = vpack.c.b16 %v689, %v688
      %v699 = vsel %vm244, %v672, 0
      %v702 = vsel %vm244, %v673, 0
      %704 = vmatprep.subr.bf16.mxu0 0
      %705 = vmatpush1.bf16.msra.mxu0 %v690
      %706 = vmatprep.subr.bf16.mxu0 0
      %707 = vmatpush1.bf16.msra.mxu0 %v691
      %708 = vmatprep.subr.bf16.mxu0 0
      %709 = vmatpush1.bf16.msra.mxu0 %v692
      %710 = vmatprep.subr.bf16.mxu0 0
      %711 = vmatpush1.bf16.msra.mxu0 %v693
      %712 = vmatprep.subr.bf16.mxu0 0
      %713 = vmatpush1.bf16.msra.mxu0 0
      %714 = vmatprep.subr.bf16.mxu0 0
      %715 = vmatpush1.bf16.msra.mxu0 0
      %716 = vmatprep.subr.bf16.mxu0 0
      %717 = vmatpush1.bf16.msra.mxu0 0
      %718 = vmatprep.subr.bf16.mxu0 0
      %719 = vmatpush1.bf16.msra.mxu0 0
      %720 = vmatprep.subr.bf16.mxu0 0
      %721 = vmatpush1.bf16.msra.mxu0 0
      %722 = vmatprep.subr.bf16.mxu0 0
      %723 = vmatpush1.bf16.msra.mxu0 0
      %724 = vmatprep.subr.bf16.mxu0 0
      %725 = vmatpush1.bf16.msra.mxu0 0
      %726 = vmatprep.subr.bf16.mxu0 0
      %727 = vmatpush1.bf16.msra.mxu0 0
      %728 = vmatprep.subr.bf16.mxu0 0
      %729 = vmatpush1.bf16.msra.mxu0 0
      %730 = vmatprep.subr.bf16.mxu0 0
      %731 = vmatpush1.bf16.msra.mxu0 0
      %732 = vmatprep.subr.bf16.mxu0 0
      %733 = vmatpush1.bf16.msra.mxu0 0
      %734 = vmatprep.subr.bf16.mxu0 0
      %735 = vmatpush1.bf16.msra.mxu0 0
      %736 = vmatprep.mubr.bf16.mxu0 0
      %737 = vmatmul.mubr.bf16.gmra.mrb[0].mxu0 %v699
      %v738 = vpop.f32.mrb[0].mxu0
      %v739 = vadd.f32 0.0, %v738
      %v740 = vpop.f32.mrb[0].mxu0
      %v741 = vpop.f32.mrb[0].mxu0
      %v742 = vadd.f32 0.0, %v741
      %v743 = vpop.f32.mrb[0].mxu0
      %744 = vmatprep.mubr.bf16.mxu0 0
      %745 = vmatmul.mubr.bf16.gmra.mrb[0].mxu0 %v702
      %v746 = vpop.f32.mrb[0].mxu0
      %v747 = vadd.f32 0.0, %v746
      %v748 = vpop.f32.mrb[0].mxu0
      %v749 = vpop.f32.mrb[0].mxu0
      %v750 = vpop.f32.mrb[0].mxu0
      %751 = vdwg.mxu0
      %v752 = vadd.f32 %v660, %v739
      %v753 = vadd.f32 %v661, %v742
      %v754 = vadd.f32 %v662, %v747
      %s755 = scalar_lea.vmem %s1, 192
      %v756 = vld [vmem:[%s755] sm:$0xf]
      %v757 = vld [vmem:[%s755 + $0x4] sm:$0xf]
      %v758 = vld [vmem:[%s755 + $0x8] sm:$0xf]
      %v759 = vld [vmem:[%s755 + $0xc] sm:$0xf]
      %v760 = vld [vmem:[%s755 + $0x10] sm:$0xf]
      %v761 = vld [vmem:[%s755 + $0x14] sm:$0xf]
      %v762 = vld [vmem:[%s755 + $0x18] sm:$0xf]
      %v763 = vld [vmem:[%s755 + $0x1c] sm:$0xf]
      %v765 = vunpack.c.l.b16 %v176
      %v766 = vpack.c.b16 %v765, %v201
      %vm767 = vcmask 1045504
      %v768 = vrot.slane %v672, 2
      %v769 = vrot.slane %v766, 2
      %v770 = vsel %vm767, %v768, %v769
      %v779 = vunpack.c.l.b16 %v756
      %v780 = vunpack.c.l.b16 %v757
      %v781 = vunpack.c.l.b16 %v758
      %v782 = vunpack.c.l.b16 %v759
      %v783 = vunpack.c.l.b16 %v760
      %v784 = vunpack.c.l.b16 %v761
      %v785 = vunpack.c.l.b16 %v762
      %v786 = vunpack.c.l.b16 %v763
      %v787 = vpack.c.b16 %v780, %v779
      %v788 = vpack.c.b16 %v782, %v781
      %v789 = vpack.c.b16 %v784, %v783
      %v790 = vpack.c.b16 %v786, %v785
      %v796 = vsel %vm244, %v770, 0
      %v799 = vsel %vm244, %v769, 0
      %801 = vmatprep.subr.bf16.mxu0 0
      %802 = vmatpush1.bf16.msra.mxu0 %v787
      %803 = vmatprep.subr.bf16.mxu0 0
      %804 = vmatpush1.bf16.msra.mxu0 %v788
      %805 = vmatprep.subr.bf16.mxu0 0
      %806 = vmatpush1.bf16.msra.mxu0 %v789
      %807 = vmatprep.subr.bf16.mxu0 0
      %808 = vmatpush1.bf16.msra.mxu0 %v790
      %809 = vmatprep.subr.bf16.mxu0 0
      %810 = vmatpush1.bf16.msra.mxu0 0
      %811 = vmatprep.subr.bf16.mxu0 0
      %812 = vmatpush1.bf16.msra.mxu0 0
      %813 = vmatprep.subr.bf16.mxu0 0
      %814 = vmatpush1.bf16.msra.mxu0 0
      %815 = vmatprep.subr.bf16.mxu0 0
      %816 = vmatpush1.bf16.msra.mxu0 0
      %817 = vmatprep.subr.bf16.mxu0 0
      %818 = vmatpush1.bf16.msra.mxu0 0
      %819 = vmatprep.subr.bf16.mxu0 0
      %820 = vmatpush1.bf16.msra.mxu0 0
      %821 = vmatprep.subr.bf16.mxu0 0
      %822 = vmatpush1.bf16.msra.mxu0 0
      %823 = vmatprep.subr.bf16.mxu0 0
      %824 = vmatpush1.bf16.msra.mxu0 0
      %825 = vmatprep.subr.bf16.mxu0 0
      %826 = vmatpush1.bf16.msra.mxu0 0
      %827 = vmatprep.subr.bf16.mxu0 0
      %828 = vmatpush1.bf16.msra.mxu0 0
      %829 = vmatprep.subr.bf16.mxu0 0
      %830 = vmatpush1.bf16.msra.mxu0 0
      %831 = vmatprep.subr.bf16.mxu0 0
      %832 = vmatpush1.bf16.msra.mxu0 0
      %833 = vmatprep.mubr.bf16.mxu0 0
      %834 = vmatmul.mubr.bf16.gmra.mrb[0].mxu0 %v796
      %v835 = vpop.f32.mrb[0].mxu0
      %v836 = vadd.f32 0.0, %v835
      %v837 = vpop.f32.mrb[0].mxu0
      %v838 = vpop.f32.mrb[0].mxu0
      %v839 = vadd.f32 0.0, %v838
      %v840 = vpop.f32.mrb[0].mxu0
      %841 = vmatprep.mubr.bf16.mxu0 0
      %842 = vmatmul.mubr.bf16.gmra.mrb[0].mxu0 %v799
      %v843 = vpop.f32.mrb[0].mxu0
      %v844 = vadd.f32 0.0, %v843
      %v845 = vpop.f32.mrb[0].mxu0
      %v846 = vpop.f32.mrb[0].mxu0
      %v847 = vpop.f32.mrb[0].mxu0
      %848 = vdwg.mxu0
      %v849 = vadd.f32 %v752, %v836
      %v850 = vadd.f32 %v753, %v839
      %v851 = vadd.f32 %v754, %v844
      %s852 = scalar_lea.vmem %s1, 224
      %v853 = vld [vmem:[%s852] sm:$0xf]
      %v854 = vld [vmem:[%s852 + $0x4] sm:$0xf]
      %v855 = vld [vmem:[%s852 + $0x8] sm:$0xf]
      %v856 = vld [vmem:[%s852 + $0xc] sm:$0xf]
      %v857 = vld [vmem:[%s852 + $0x10] sm:$0xf]
      %v858 = vld [vmem:[%s852 + $0x14] sm:$0xf]
      %v859 = vld [vmem:[%s852 + $0x18] sm:$0xf]
      %v860 = vld [vmem:[%s852 + $0x1c] sm:$0xf]
      %vm861 = vsmask.f32 5376
      %v862 = vshrl.u32 %v672, 16
      %v864 = vrot.slane %v862, 2
      %v865 = vshll.u32 %v672, 16
      %v867 = vrot.slane %v865, 3
      %v868 = vor.u32 %v864, %v867
      %v870 = vshrl.u32 %v766, 16
      %v872 = vrot.slane %v870, 2
      %v873 = vshll.u32 %v766, 16
      %v875 = vrot.slane %v873, 3
      %v876 = vor.u32 %v872, %v875
      %v877 = vsel %vm861, %v868, %v876
      %v886 = vunpack.c.l.b16 %v853
      %v887 = vunpack.c.l.b16 %v854
      %v888 = vunpack.c.l.b16 %v855
      %v889 = vunpack.c.l.b16 %v856
      %v890 = vunpack.c.l.b16 %v857
      %v891 = vunpack.c.l.b16 %v858
      %v892 = vunpack.c.l.b16 %v859
      %v893 = vunpack.c.l.b16 %v860
      %v894 = vpack.c.b16 %v887, %v886
      %v895 = vpack.c.b16 %v889, %v888
      %v896 = vpack.c.b16 %v891, %v890
      %v897 = vpack.c.b16 %v893, %v892
      %v903 = vsel %vm244, %v877, 0
      %v906 = vsel %vm244, %v876, 0
      %908 = vmatprep.subr.bf16.mxu0 0
      %909 = vmatpush1.bf16.msra.mxu0 %v894
      %910 = vmatprep.subr.bf16.mxu0 0
      %911 = vmatpush1.bf16.msra.mxu0 %v895
      %912 = vmatprep.subr.bf16.mxu0 0
      %913 = vmatpush1.bf16.msra.mxu0 %v896
      %914 = vmatprep.subr.bf16.mxu0 0
      %915 = vmatpush1.bf16.msra.mxu0 %v897
      %916 = vmatprep.subr.bf16.mxu0 0
      %917 = vmatpush1.bf16.msra.mxu0 0
      %918 = vmatprep.subr.bf16.mxu0 0
      %919 = vmatpush1.bf16.msra.mxu0 0
      %920 = vmatprep.subr.bf16.mxu0 0
      %921 = vmatpush1.bf16.msra.mxu0 0
      %922 = vmatprep.subr.bf16.mxu0 0
      %923 = vmatpush1.bf16.msra.mxu0 0
      %924 = vmatprep.subr.bf16.mxu0 0
      %925 = vmatpush1.bf16.msra.mxu0 0
      %926 = vmatprep.subr.bf16.mxu0 0
      %927 = vmatpush1.bf16.msra.mxu0 0
      %928 = vmatprep.subr.bf16.mxu0 0
      %929 = vmatpush1.bf16.msra.mxu0 0
      %930 = vmatprep.subr.bf16.mxu0 0
      %931 = vmatpush1.bf16.msra.mxu0 0
      %932 = vmatprep.subr.bf16.mxu0 0
      %933 = vmatpush1.bf16.msra.mxu0 0
      %934 = vmatprep.subr.bf16.mxu0 0
      %935 = vmatpush1.bf16.msra.mxu0 0
      %936 = vmatprep.subr.bf16.mxu0 0
      %937 = vmatpush1.bf16.msra.mxu0 0
      %938 = vmatprep.subr.bf16.mxu0 0
      %939 = vmatpush1.bf16.msra.mxu0 0
      %940 = vmatprep.mubr.bf16.mxu0 0
      %941 = vmatmul.mubr.bf16.gmra.mrb[0].mxu0 %v903
      %v942 = vpop.f32.mrb[0].mxu0
      %v943 = vadd.f32 0.0, %v942
      %v944 = vpop.f32.mrb[0].mxu0
      %v945 = vpop.f32.mrb[0].mxu0
      %v946 = vadd.f32 0.0, %v945
      %v947 = vpop.f32.mrb[0].mxu0
      %948 = vmatprep.mubr.bf16.mxu0 0
      %949 = vmatmul.mubr.bf16.gmra.mrb[0].mxu0 %v906
      %v950 = vpop.f32.mrb[0].mxu0
      %v951 = vadd.f32 0.0, %v950
      %v952 = vpop.f32.mrb[0].mxu0
      %v953 = vpop.f32.mrb[0].mxu0
      %v954 = vpop.f32.mrb[0].mxu0
      %955 = vdwg.mxu0
      %v956 = vadd.f32 %v849, %v943
      %v957 = vadd.f32 %v850, %v946
      %v958 = vadd.f32 %v851, %v951
      %s959 = scalar_lea.vmem %s1, 256
      %v960 = vld [vmem:[%s959] sm:$0xf]
      %v961 = vld [vmem:[%s959 + $0x4] sm:$0xf]
      %v962 = vld [vmem:[%s959 + $0x8] sm:$0xf]
      %v963 = vld [vmem:[%s959 + $0xc] sm:$0xf]
      %v964 = vld [vmem:[%s959 + $0x10] sm:$0xf]
      %v965 = vld [vmem:[%s959 + $0x14] sm:$0xf]
      %v966 = vld [vmem:[%s959 + $0x18] sm:$0xf]
      %v967 = vld [vmem:[%s959 + $0x1c] sm:$0xf]
      %v968 = vrot.slane %v672, 3
      %v969 = vrot.slane %v766, 3
      %v970 = vsel %vm480, %v968, %v969
      %v979 = vunpack.c.l.b16 %v960
      %v980 = vunpack.c.l.b16 %v961
      %v981 = vunpack.c.l.b16 %v962
      %v982 = vunpack.c.l.b16 %v963
      %v983 = vunpack.c.l.b16 %v964
      %v984 = vunpack.c.l.b16 %v965
      %v985 = vunpack.c.l.b16 %v966
      %v986 = vunpack.c.l.b16 %v967
      %v987 = vpack.c.b16 %v980, %v979
      %v988 = vpack.c.b16 %v982, %v981
      %v989 = vpack.c.b16 %v984, %v983
      %v990 = vpack.c.b16 %v986, %v985
      %v996 = vsel %vm244, %v970, 0
      %v999 = vsel %vm244, %v969, 0
      %1001 = vmatprep.subr.bf16.mxu0 0
      %1002 = vmatpush1.bf16.msra.mxu0 %v987
      %1003 = vmatprep.subr.bf16.mxu0 0
      %1004 = vmatpush1.bf16.msra.mxu0 %v988
      %1005 = vmatprep.subr.bf16.mxu0 0
      %1006 = vmatpush1.bf16.msra.mxu0 %v989
      %1007 = vmatprep.subr.bf16.mxu0 0
      %1008 = vmatpush1.bf16.msra.mxu0 %v990
      %1009 = vmatprep.subr.bf16.mxu0 0
      %1010 = vmatpush1.bf16.msra.mxu0 0
      %1011 = vmatprep.subr.bf16.mxu0 0
      %1012 = vmatpush1.bf16.msra.mxu0 0
      %1013 = vmatprep.subr.bf16.mxu0 0
      %1014 = vmatpush1.bf16.msra.mxu0 0
      %1015 = vmatprep.subr.bf16.mxu0 0
      %1016 = vmatpush1.bf16.msra.mxu0 0
      %1017 = vmatprep.subr.bf16.mxu0 0
      %1018 = vmatpush1.bf16.msra.mxu0 0
      %1019 = vmatprep.subr.bf16.mxu0 0
      %1020 = vmatpush1.bf16.msra.mxu0 0
      %1021 = vmatprep.subr.bf16.mxu0 0
      %1022 = vmatpush1.bf16.msra.mxu0 0
      %1023 = vmatprep.subr.bf16.mxu0 0
      %1024 = vmatpush1.bf16.msra.mxu0 0
      %1025 = vmatprep.subr.bf16.mxu0 0
      %1026 = vmatpush1.bf16.msra.mxu0 0
      %1027 = vmatprep.subr.bf16.mxu0 0
      %1028 = vmatpush1.bf16.msra.mxu0 0
      %1029 = vmatprep.subr.bf16.mxu0 0
      %1030 = vmatpush1.bf16.msra.mxu0 0
      %1031 = vmatprep.subr.bf16.mxu0 0
      %1032 = vmatpush1.bf16.msra.mxu0 0
      %1033 = vmatprep.mubr.bf16.mxu0 0
      %1034 = vmatmul.mubr.bf16.gmra.mrb[0].mxu0 %v996
      %v1035 = vpop.f32.mrb[0].mxu0
      %v1036 = vadd.f32 0.0, %v1035
      %v1037 = vpop.f32.mrb[0].mxu0
      %v1038 = vpop.f32.mrb[0].mxu0
      %v1039 = vadd.f32 0.0, %v1038
      %v1040 = vpop.f32.mrb[0].mxu0
      %1041 = vmatprep.mubr.bf16.mxu0 0
      %1042 = vmatmul.mubr.bf16.gmra.mrb[0].mxu0 %v999
      %v1043 = vpop.f32.mrb[0].mxu0
      %v1044 = vadd.f32 0.0, %v1043
      %v1045 = vpop.f32.mrb[0].mxu0
      %v1046 = vpop.f32.mrb[0].mxu0
      %v1047 = vpop.f32.mrb[0].mxu0
      %1048 = vdwg.mxu0
      %v1049 = vadd.f32 %v956, %v1036
      %v1050 = vadd.f32 %v957, %v1039
      %v1051 = vadd.f32 %v958, %v1044
      %v1052 = vld [vmem:[%s2] sm:$0x1]
      %v1054 = vlaneseq
      %v1055 = vshrl.u32 %v1054, 7
      %v1056 = vsub.s32 0, %v1055
      %v1057 = vrot.slane %v1052, %v1056
      %v1059 = vadd.f32 %v1049, %v1057
      %v1060 = vadd.f32 %v1050, %v1057
      %v1061 = vadd.f32 %v1051, %v1057
      %v1062 = vmax.f32 %v1059, 0.0
      %v1063 = vmax.f32 %v1060, 0.0
      %v1064 = vmax.f32 %v1061, 0.0
      %v1065 = vpack.c.bf16 %v1063, %v1062
      %v1066 = vpack.c.bf16 %v1064, %v1064
      %v1069 = vunpack.c.l.b16 %v1065
      %v1070 = vunpack.c.h.b16 %v1065
      %v1071 = vunpack.c.l.b16 %v1066
      %v1072 = vpack.c.b16 %v1069, %v1069
      %v1073 = vpack.c.b16 %v1070, %v1070
      %v1074 = vpack.c.b16 %v1071, %v1071
      %vm1078 = vcmask 125952
      %1079 = vst.msk [vmem:[%s170] sm:$0xf] %vm1078, %v1072
      %1080 = vst.msk [vmem:[%s170 + $0x4] sm:$0xf] %vm1078, %v1073
      %1081 = vst.msk [vmem:[%s170 + $0x8] sm:$0xf] %vm1078, %v1074
      %p1082 = scmp.lt.s32.totalorder %s14, 1
      %s1083 = scalar_select %p1082, %s14, 1
      %s1084 = smul.addr %s1083, 3
      %s1085 = smul.addr %s1084, 4
      %s1086 = scalar_lea.vmem %s3, %s1085
      // Predicated region
      $region33: #{pspnet_forward.12} parent=31 // pred_check
        %p1087 = pneg %p100
      $region34: #{pspnet_forward.12} parent=31 // pred_check_branch
        %1089 = sbr.rel (%p1087) target = $region36
      $region35: #{pspnet_forward.12} parent=31 // pred_region
        _
      $region36: #{pspnet_forward.12} parent=31 // pred_fallthru
        _
    $region32: #{pspnet_forward.12} parent=5 // pred_fallthru
      _
    %p1090 = scmp.le.s32.totalorder 2, %s9
    // Predicated region
    $region37: #{pspnet_forward.12} parent=5 // pred_check
      %p1091 = pneg %p1090
    $region38: #{pspnet_forward.12} parent=5 // pred_check_branch
      %1093 = sbr.rel (%p1091) target = $region40
    $region39: #{pspnet_forward.12} parent=5 // pred_region
      %s1094 = ssub.s32 %s9, 2
      // Predicated region
      $region41: #{pspnet_forward.12} parent=39 // pred_check
        %p1095 = pneg %p106
      $region42: #{pspnet_forward.12} parent=39 // pred_check_branch
        %1097 = sbr.rel (%p1095) target = $region44
      $region43: #{pspnet_forward.12} parent=39 // pred_region
        %p1098 = scmp.lt.s32.totalorder %s15, 1
        %s1099 = scalar_select %p1098, %s15, 1
        %s1100 = smul.addr %s1099, 3
        %s1101 = smul.addr %s1100, 4
        %s1102 = scalar_lea.vmem %s3, %s1101
      $region44: #{pspnet_forward.12} parent=39 // pred_fallthru
        _
    $region40: #{pspnet_forward.12} parent=5 // pred_fallthru
      _
  $region6: #{pspnet_forward.12} parent=0 // loop_footer
    %s13 = sadd.s32 1, %s9
  $region7: #{pspnet_forward.12} parent=0 // loop_footer_branch
    %8 = sbr.rel target = $region3
  $region8: #{pspnet_forward.12} parent=0 // loop_exit
    _

// kernel: pspnet_forward.15
$region0: #{pspnet_forward.15}
  #allocation0 [shape = 'u32[]', space=smem, size = 0x4, offset = 0x4, fixed_abs, tag = 'smem constant byte address 0x4 - core index']
  #allocation1 [shape = 'u32[144,128]{1,0:T(1,128)}', space=vmem, size = 0x12000, scoped, tag = 'internal scratch']
  %s0 = inlined_call_operand.vmem [shape: bf16[256,64], index: 0, kind: input, shape index: {}]
  %s1 = inlined_call_operand.vmem [shape: bf16[2,64,8], index: 1, kind: input, shape index: {}]
  %s2 = inlined_call_operand.vmem [shape: bf16[2,256,8], index: 2, kind: output, shape index: {}]
  %s3 = sld [smem:[#allocation0]]
  $region41: #{pspnet_forward.15} parent=0
    _
  %s5 = ssub.s32 1, %s3
  %s6 = scalar_select 0, %s5, %s3
  loop: start=0, step=1, limit=4
  $region2: #{pspnet_forward.15} parent=0 // loop_pre_header
    _
  $region3: #{pspnet_forward.15} parent=0 // loop_header
    %s8 = sphi 0, %s12
    %p9 = scmp.ge.s32.totalorder %s8, 4
    %s16 = sphi 0, %s16
    %s18 = sphi 0, %s16
    %s19 = sphi 0, %s18
    %s33 = sphi 0, %s19
    %s39 = sphi 0, %s41
    %s42 = sphi 0, %s39
    %s43 = sphi 0, %s42
    %s59 = sphi 0, %s43
    %s65 = sphi 0, %s67
    %s68 = sphi 0, %s65
    %s69 = sphi 0, %s68
    %s85 = sphi 0, %s69
  $region4: #{pspnet_forward.15} parent=0 // loop_header_branch
    %11 = sbr.rel (%p9) target = $region8
  $region5: #{pspnet_forward.15} parent=0 // loop_body
    %s13 = ssub.s32 %s8, 1
    %s14 = ssub.s32 %s8, 2
    %s15 = sadd.s32 %s8, 1
    %s17 = sadd.s32 %s16, 1
    %p20 = scmp.eq.s32.totalorder %s8, 1
    %p21 = scmp.ne.s32.totalorder %s16, %s18
    %p22 = scmp.eq.s32.totalorder %s8, 0
    %p23 = por %p21, %p22
    %p24 = scmp.ne.s32.totalorder %s16, %s18
    %p25 = scmp.eq.s32.totalorder %s13, 1
    %p26 = por %p24, %p25
    %p27 = scmp.ne.s32.totalorder %s18, %s19
    %p28 = scmp.eq.s32.totalorder %s13, 0
    %p29 = por %p27, %p28
    %p30 = scmp.ne.s32.totalorder %s18, %s19
    %p31 = scmp.eq.s32.totalorder %s14, 1
    %p32 = por %p30, %p31
    %p34 = scmp.ne.s32.totalorder %s19, %s33
    %p35 = scmp.eq.s32.totalorder %s14, 0
    %p36 = por %p34, %p35
    %s37 = ssub.s32 %s8, %s15
    %p38 = scmp.eq.s32.totalorder %s37, 0
    %s40 = sadd.s32 %s39, 1
    %s41 = scalar_select %p38, %s39, %s40
    %p44 = pneg %p38
    %p45 = scmp.eq.s32.totalorder %s8, 1
    %p46 = por %p44, %p45
    %p47 = scmp.ne.s32.totalorder %s39, %s42
    %p48 = scmp.eq.s32.totalorder %s8, 0
    %p49 = por %p47, %p48
    %p50 = scmp.ne.s32.totalorder %s39, %s42
    %p51 = scmp.eq.s32.totalorder %s13, 1
    %p52 = por %p50, %p51
    %p53 = scmp.ne.s32.totalorder %s42, %s43
    %p54 = scmp.eq.s32.totalorder %s13, 0
    %p55 = por %p53, %p54
    %p56 = scmp.ne.s32.totalorder %s42, %s43
    %p57 = scmp.eq.s32.totalorder %s14, 1
    %p58 = por %p56, %p57
    %p60 = scmp.ne.s32.totalorder %s43, %s59
    %p61 = scmp.eq.s32.totalorder %s14, 0
    %p62 = por %p60, %p61
    %s63 = ssub.s32 %s8, %s15
    %p64 = scmp.eq.s32.totalorder %s63, 0
    %s66 = sadd.s32 %s65, 1
    %s67 = scalar_select %p64, %s65, %s66
    %p70 = pneg %p64
    %p71 = scmp.eq.s32.totalorder %s8, 1
    %p72 = por %p70, %p71
    %p73 = scmp.ne.s32.totalorder %s65, %s68
    %p74 = scmp.eq.s32.totalorder %s8, 0
    %p75 = por %p73, %p74
    %p76 = scmp.ne.s32.totalorder %s65, %s68
    %p77 = scmp.eq.s32.totalorder %s13, 1
    %p78 = por %p76, %p77
    %p79 = scmp.ne.s32.totalorder %s68, %s69
    %p80 = scmp.eq.s32.totalorder %s13, 0
    %p81 = por %p79, %p80
    %p82 = scmp.ne.s32.totalorder %s68, %s69
    %p83 = scmp.eq.s32.totalorder %s14, 1
    %p84 = por %p82, %p83
    %p86 = scmp.ne.s32.totalorder %s69, %s85
    %p87 = scmp.eq.s32.totalorder %s14, 0
    %p88 = por %p86, %p87
    %p89 = scmp.le.s32.totalorder 1, %s8
    %p90 = scmp.lt.s32.totalorder %s8, 3
    %p91 = pnand %p89, %p90
    %p92 = pneg %p91
    // Predicated region
    $region9: #{pspnet_forward.15} parent=5 // pred_check
      _
    $region10: #{pspnet_forward.15} parent=5 // pred_check_branch
      %94 = sbr.rel (%p91) target = $region12
    $region11: #{pspnet_forward.15} parent=5 // pred_region
      %s95 = ssub.s32 %s8, 1
      // Predicated region
      $region13: #{pspnet_forward.15} parent=11 // pred_check
        %p96 = pneg %p29
      $region14: #{pspnet_forward.15} parent=11 // pred_check_branch
        %98 = sbr.rel (%p96) target = $region16
      $region15: #{pspnet_forward.15} parent=11 // pred_region
        _
      $region16: #{pspnet_forward.15} parent=11 // pred_fallthru
        _
    $region12: #{pspnet_forward.15} parent=5 // pred_fallthru
      _
    %p99 = scmp.lt.s32.totalorder %s8, 2
    // Predicated region
    $region17: #{pspnet_forward.15} parent=5 // pred_check
      %p100 = pneg %p99
    $region18: #{pspnet_forward.15} parent=5 // pred_check_branch
      %102 = sbr.rel (%p100) target = $region20
    $region19: #{pspnet_forward.15} parent=5 // pred_region
      // Predicated region
      $region21: #{pspnet_forward.15} parent=19 // pred_check
        %p103 = pneg %p49
      $region22: #{pspnet_forward.15} parent=19 // pred_check_branch
        %105 = sbr.rel (%p103) target = $region24
      $region23: #{pspnet_forward.15} parent=19 // pred_region
        %p106 = scmp.lt.s32.totalorder %s8, 1
        %s107 = scalar_select %p106, %s8, 1
        %s108 = smul.addr %s107, 8
        %s109 = smul.addr %s108, 4
        %s110 = scalar_lea.vmem %s1, %s109
      $region24: #{pspnet_forward.15} parent=19 // pred_fallthru
        _
    $region20: #{pspnet_forward.15} parent=5 // pred_fallthru
      _
    %p111 = scmp.le.s32.totalorder 1, %s8
    %p112 = scmp.lt.s32.totalorder %s8, 3
    %p113 = pnand %p111, %p112
    %p114 = pneg %p113
    // Predicated region
    $region25: #{pspnet_forward.15} parent=5 // pred_check
      _
    $region26: #{pspnet_forward.15} parent=5 // pred_check_branch
      %116 = sbr.rel (%p113) target = $region28
    $region27: #{pspnet_forward.15} parent=5 // pred_region
      %s117 = ssub.s32 %s8, 1
      %p118 = pneg %p29
      %p119 = pneg %p26
      %p120 = scmp.lt.s32.totalorder %s13, 1
      %s121 = scalar_select %p120, %s13, 1
      %s122 = smul.addr %s121, 8
      %s123 = smul.addr %s122, 4
      %s124 = scalar_lea.vmem %s1, %s123
      %p125 = pneg %p55
      %p126 = pneg %p52
      %p127 = pneg %p81
      %p128 = pneg %p78
      %p129 = scmp.lt.s32.totalorder %s13, 1
      %s130 = scalar_select %p129, %s13, 1
      %s131 = smul.addr %s130, 32
      %s132 = smul.addr %s131, 4
      %s133 = scalar_lea.vmem %s2, %s132
      %p134 = scmp.lt.s32.totalorder %s13, 1
      %s135 = scalar_select %p134, %s13, 1
      %s136 = smul.addr %s135, 8
      %s137 = smul.addr %s136, 4
      %s138 = scalar_lea.vmem %s1, %s137
      %p139 = scmp.lt.s32.totalorder %s13, 1
      %s140 = scalar_select %p139, %s13, 1
      %s141 = smul.addr %s140, 32
      %s142 = smul.addr %s141, 4
      %s143 = scalar_lea.vmem %s2, %s142
      %v145 = vld [vmem:[%s0] sm:$0xf]
      %v146 = vld [vmem:[%s0 + $0x4] sm:$0xf]
      %v147 = vld [vmem:[%s0 + $0x8] sm:$0xf]
      %v148 = vld [vmem:[%s0 + $0xc] sm:$0xf]
      %v149 = vld [vmem:[%s0 + $0x10] sm:$0xf]
      %v150 = vld [vmem:[%s0 + $0x14] sm:$0xf]
      %v151 = vld [vmem:[%s0 + $0x18] sm:$0xf]
      %v152 = vld [vmem:[%s0 + $0x1c] sm:$0xf]
      %v153 = vld [vmem:[%s0 + $0x20] sm:$0xf]
      %v154 = vld [vmem:[%s0 + $0x24] sm:$0xf]
      %v155 = vld [vmem:[%s0 + $0x28] sm:$0xf]
      %v156 = vld [vmem:[%s0 + $0x2c] sm:$0xf]
      %v157 = vld [vmem:[%s0 + $0x30] sm:$0xf]
      %v158 = vld [vmem:[%s0 + $0x34] sm:$0xf]
      %v159 = vld [vmem:[%s0 + $0x38] sm:$0xf]
      %v160 = vld [vmem:[%s0 + $0x3c] sm:$0xf]
      %v161 = vld [vmem:[%s0 + $0x40] sm:$0xf]
      %v162 = vld [vmem:[%s0 + $0x44] sm:$0xf]
      %v163 = vld [vmem:[%s0 + $0x48] sm:$0xf]
      %v164 = vld [vmem:[%s0 + $0x4c] sm:$0xf]
      %v165 = vld [vmem:[%s0 + $0x50] sm:$0xf]
      %v166 = vld [vmem:[%s0 + $0x54] sm:$0xf]
      %v167 = vld [vmem:[%s0 + $0x58] sm:$0xf]
      %v168 = vld [vmem:[%s0 + $0x5c] sm:$0xf]
      %v169 = vld [vmem:[%s0 + $0x60] sm:$0xf]
      %v170 = vld [vmem:[%s0 + $0x64] sm:$0xf]
      %v171 = vld [vmem:[%s0 + $0x68] sm:$0xf]
      %v172 = vld [vmem:[%s0 + $0x6c] sm:$0xf]
      %v173 = vld [vmem:[%s0 + $0x70] sm:$0xf]
      %v174 = vld [vmem:[%s0 + $0x74] sm:$0xf]
      %v175 = vld [vmem:[%s0 + $0x78] sm:$0xf]
      %v176 = vld [vmem:[%s0 + $0x7c] sm:$0xf]
      %v177 = vld [vmem:[%s138] sm:$0xf]
      %v178 = vld [vmem:[%s138 + $0x4] sm:$0xf]
      %v179 = vld [vmem:[%s138 + $0x8] sm:$0xf]
      %v180 = vld [vmem:[%s138 + $0xc] sm:$0xf]
      %v181 = vld [vmem:[%s138 + $0x10] sm:$0xf]
      %v182 = vld [vmem:[%s138 + $0x14] sm:$0xf]
      %v183 = vld [vmem:[%s138 + $0x18] sm:$0xf]
      %v184 = vld [vmem:[%s138 + $0x1c] sm:$0xf]
      %v217 = vunpack.c.l.b16 %v145
      %v218 = vunpack.c.l.b16 %v146
      %v219 = vunpack.c.l.b16 %v147
      %v220 = vunpack.c.l.b16 %v148
      %v221 = vunpack.c.l.b16 %v149
      %v222 = vunpack.c.l.b16 %v150
      %v223 = vunpack.c.l.b16 %v151
      %v224 = vunpack.c.l.b16 %v152
      %v225 = vunpack.c.l.b16 %v153
      %v226 = vunpack.c.l.b16 %v154
      %v227 = vunpack.c.l.b16 %v155
      %v228 = vunpack.c.l.b16 %v156
      %v229 = vunpack.c.l.b16 %v157
      %v230 = vunpack.c.l.b16 %v158
      %v231 = vunpack.c.l.b16 %v159
      %v232 = vunpack.c.l.b16 %v160
      %v233 = vunpack.c.l.b16 %v161
      %v234 = vunpack.c.l.b16 %v162
      %v235 = vunpack.c.l.b16 %v163
      %v236 = vunpack.c.l.b16 %v164
      %v237 = vunpack.c.l.b16 %v165
      %v238 = vunpack.c.l.b16 %v166
      %v239 = vunpack.c.l.b16 %v167
      %v240 = vunpack.c.l.b16 %v168
      %v241 = vunpack.c.l.b16 %v169
      %v242 = vunpack.c.l.b16 %v170
      %v243 = vunpack.c.l.b16 %v171
      %v244 = vunpack.c.l.b16 %v172
      %v245 = vunpack.c.l.b16 %v173
      %v246 = vunpack.c.l.b16 %v174
      %v247 = vunpack.c.l.b16 %v175
      %v248 = vunpack.c.l.b16 %v176
      %v249 = vpack.c.b16 %v218, %v217
      %v250 = vpack.c.b16 %v220, %v219
      %v251 = vpack.c.b16 %v222, %v221
      %v252 = vpack.c.b16 %v224, %v223
      %v253 = vpack.c.b16 %v226, %v225
      %v254 = vpack.c.b16 %v228, %v227
      %v255 = vpack.c.b16 %v230, %v229
      %v256 = vpack.c.b16 %v232, %v231
      %v257 = vpack.c.b16 %v234, %v233
      %v258 = vpack.c.b16 %v236, %v235
      %v259 = vpack.c.b16 %v238, %v237
      %v260 = vpack.c.b16 %v240, %v239
      %v261 = vpack.c.b16 %v242, %v241
      %v262 = vpack.c.b16 %v244, %v243
      %v263 = vpack.c.b16 %v246, %v245
      %v264 = vpack.c.b16 %v248, %v247
      %v273 = vunpack.c.l.b16 %v177
      %v274 = vunpack.c.l.b16 %v178
      %v275 = vunpack.c.l.b16 %v179
      %v276 = vunpack.c.l.b16 %v180
      %v277 = vunpack.c.l.b16 %v181
      %v278 = vunpack.c.l.b16 %v182
      %v279 = vunpack.c.l.b16 %v183
      %v280 = vunpack.c.l.b16 %v184
      %v281 = vpack.c.b16 %v274, %v273
      %v282 = vpack.c.b16 %v276, %v275
      %v283 = vpack.c.b16 %v278, %v277
      %v284 = vpack.c.b16 %v280, %v279
      %vm289 = vcmask 523264
      %v291 = vsel %vm289, %v249, 0
      %v294 = vsel %vm289, %v250, 0
      %v297 = vsel %vm289, %v251, 0
      %v300 = vsel %vm289, %v252, 0
      %v303 = vsel %vm289, %v253, 0
      %v306 = vsel %vm289, %v254, 0
      %v309 = vsel %vm289, %v255, 0
      %v312 = vsel %vm289, %v256, 0
      %v315 = vsel %vm289, %v257, 0
      %v318 = vsel %vm289, %v258, 0
      %v321 = vsel %vm289, %v259, 0
      %v324 = vsel %vm289, %v260, 0
      %v327 = vsel %vm289, %v261, 0
      %v330 = vsel %vm289, %v262, 0
      %v333 = vsel %vm289, %v263, 0
      %v336 = vsel %vm289, %v264, 0
      %338 = vmatprep.subr.bf16.mxu0 0
      %339 = vmatpush1.bf16.msra.mxu0 %v281
      %340 = vmatprep.subr.bf16.mxu0 0
      %341 = vmatpush1.bf16.msra.mxu0 %v282
      %342 = vmatprep.subr.bf16.mxu0 0
      %343 = vmatpush1.bf16.msra.mxu0 %v283
      %344 = vmatprep.subr.bf16.mxu0 0
      %345 = vmatpush1.bf16.msra.mxu0 %v284
      %346 = vmatprep.subr.bf16.mxu0 0
      %347 = vmatpush1.bf16.msra.mxu0 0
      %348 = vmatprep.subr.bf16.mxu0 0
      %349 = vmatpush1.bf16.msra.mxu0 0
      %350 = vmatprep.subr.bf16.mxu0 0
      %351 = vmatpush1.bf16.msra.mxu0 0
      %352 = vmatprep.subr.bf16.mxu0 0
      %353 = vmatpush1.bf16.msra.mxu0 0
      %354 = vmatprep.subr.bf16.mxu0 0
      %355 = vmatpush1.bf16.msra.mxu0 0
      %356 = vmatprep.subr.bf16.mxu0 0
      %357 = vmatpush1.bf16.msra.mxu0 0
      %358 = vmatprep.subr.bf16.mxu0 0
      %359 = vmatpush1.bf16.msra.mxu0 0
      %360 = vmatprep.subr.bf16.mxu0 0
      %361 = vmatpush1.bf16.msra.mxu0 0
      %362 = vmatprep.subr.bf16.mxu0 0
      %363 = vmatpush1.bf16.msra.mxu0 0
      %364 = vmatprep.subr.bf16.mxu0 0
      %365 = vmatpush1.bf16.msra.mxu0 0
      %366 = vmatprep.subr.bf16.mxu0 0
      %367 = vmatpush1.bf16.msra.mxu0 0
      %368 = vmatprep.subr.bf16.mxu0 0
      %369 = vmatpush1.bf16.msra.mxu0 0
      %370 = vmatprep.mubr.bf16.mxu0 0
      %371 = vmatmul.mubr.bf16.gmra.mrb[0].mxu0 %v291
      %v372 = vpop.f32.mrb[0].mxu0
      %v373 = vadd.f32 0.0, %v372
      %v374 = vpop.f32.mrb[0].mxu0
      %v375 = vpop.f32.mrb[0].mxu0
      %v376 = vadd.f32 0.0, %v375
      %v377 = vpop.f32.mrb[0].mxu0
      %378 = vmatprep.mubr.bf16.mxu0 0
      %379 = vmatmul.mubr.bf16.gmra.mrb[0].mxu0 %v294
      %v380 = vpop.f32.mrb[0].mxu0
      %v381 = vadd.f32 0.0, %v380
      %v382 = vpop.f32.mrb[0].mxu0
      %v383 = vpop.f32.mrb[0].mxu0
      %v384 = vadd.f32 0.0, %v383
      %v385 = vpop.f32.mrb[0].mxu0
      %386 = vmatprep.mubr.bf16.mxu0 0
      %387 = vmatmul.mubr.bf16.gmra.mrb[0].mxu0 %v297
      %v388 = vpop.f32.mrb[0].mxu0
      %v389 = vadd.f32 0.0, %v388
      %v390 = vpop.f32.mrb[0].mxu0
      %v391 = vpop.f32.mrb[0].mxu0
      %v392 = vadd.f32 0.0, %v391
      %v393 = vpop.f32.mrb[0].mxu0
      %394 = vmatprep.mubr.bf16.mxu0 0
      %395 = vmatmul.mubr.bf16.gmra.mrb[0].mxu0 %v300
      %v396 = vpop.f32.mrb[0].mxu0
      %v397 = vadd.f32 0.0, %v396
      %v398 = vpop.f32.mrb[0].mxu0
      %v399 = vpop.f32.mrb[0].mxu0
      %v400 = vadd.f32 0.0, %v399
      %v401 = vpop.f32.mrb[0].mxu0
      %402 = vmatprep.mubr.bf16.mxu0 0
      %403 = vmatmul.mubr.bf16.gmra.mrb[0].mxu0 %v303
      %v404 = vpop.f32.mrb[0].mxu0
      %v405 = vadd.f32 0.0, %v404
      %v406 = vpop.f32.mrb[0].mxu0
      %v407 = vpop.f32.mrb[0].mxu0
      %v408 = vadd.f32 0.0, %v407
      %v409 = vpop.f32.mrb[0].mxu0
      %410 = vmatprep.mubr.bf16.mxu0 0
      %411 = vmatmul.mubr.bf16.gmra.mrb[0].mxu0 %v306
      %v412 = vpop.f32.mrb[0].mxu0
      %v413 = vadd.f32 0.0, %v412
      %v414 = vpop.f32.mrb[0].mxu0
      %v415 = vpop.f32.mrb[0].mxu0
      %v416 = vadd.f32 0.0, %v415
      %v417 = vpop.f32.mrb[0].mxu0
      %418 = vmatprep.mubr.bf16.mxu0 0
      %419 = vmatmul.mubr.bf16.gmra.mrb[0].mxu0 %v309
      %v420 = vpop.f32.mrb[0].mxu0
      %v421 = vadd.f32 0.0, %v420
      %v422 = vpop.f32.mrb[0].mxu0
      %v423 = vpop.f32.mrb[0].mxu0
      %v424 = vadd.f32 0.0, %v423
      %v425 = vpop.f32.mrb[0].mxu0
      %426 = vmatprep.mubr.bf16.mxu0 0
      %427 = vmatmul.mubr.bf16.gmra.mrb[0].mxu0 %v312
      %v428 = vpop.f32.mrb[0].mxu0
      %v429 = vadd.f32 0.0, %v428
      %v430 = vpop.f32.mrb[0].mxu0
      %v431 = vpop.f32.mrb[0].mxu0
      %v432 = vadd.f32 0.0, %v431
      %v433 = vpop.f32.mrb[0].mxu0
      %434 = vmatprep.mubr.bf16.mxu0 0
      %435 = vmatmul.mubr.bf16.gmra.mrb[0].mxu0 %v315
      %v436 = vpop.f32.mrb[0].mxu0
      %v437 = vadd.f32 0.0, %v436
      %v438 = vpop.f32.mrb[0].mxu0
      %v439 = vpop.f32.mrb[0].mxu0
      %v440 = vadd.f32 0.0, %v439
      %v441 = vpop.f32.mrb[0].mxu0
      %442 = vmatprep.mubr.bf16.mxu0 0
      %443 = vmatmul.mubr.bf16.gmra.mrb[0].mxu0 %v318
      %v444 = vpop.f32.mrb[0].mxu0
      %v445 = vadd.f32 0.0, %v444
      %v446 = vpop.f32.mrb[0].mxu0
      %v447 = vpop.f32.mrb[0].mxu0
      %v448 = vadd.f32 0.0, %v447
      %v449 = vpop.f32.mrb[0].mxu0
      %450 = vmatprep.mubr.bf16.mxu0 0
      %451 = vmatmul.mubr.bf16.gmra.mrb[0].mxu0 %v321
      %v452 = vpop.f32.mrb[0].mxu0
      %v453 = vadd.f32 0.0, %v452
      %v454 = vpop.f32.mrb[0].mxu0
      %v455 = vpop.f32.mrb[0].mxu0
      %v456 = vadd.f32 0.0, %v455
      %v457 = vpop.f32.mrb[0].mxu0
      %458 = vmatprep.mubr.bf16.mxu0 0
      %459 = vmatmul.mubr.bf16.gmra.mrb[0].mxu0 %v324
      %v460 = vpop.f32.mrb[0].mxu0
      %v461 = vadd.f32 0.0, %v460
      %v462 = vpop.f32.mrb[0].mxu0
      %v463 = vpop.f32.mrb[0].mxu0
      %v464 = vadd.f32 0.0, %v463
      %v465 = vpop.f32.mrb[0].mxu0
      %466 = vmatprep.mubr.bf16.mxu0 0
      %467 = vmatmul.mubr.bf16.gmra.mrb[0].mxu0 %v327
      %v468 = vpop.f32.mrb[0].mxu0
      %v469 = vadd.f32 0.0, %v468
      %v470 = vpop.f32.mrb[0].mxu0
      %v471 = vpop.f32.mrb[0].mxu0
      %v472 = vadd.f32 0.0, %v471
      %v473 = vpop.f32.mrb[0].mxu0
      %474 = vmatprep.mubr.bf16.mxu0 0
      %475 = vmatmul.mubr.bf16.gmra.mrb[0].mxu0 %v330
      %v476 = vpop.f32.mrb[0].mxu0
      %v477 = vadd.f32 0.0, %v476
      %v478 = vpop.f32.mrb[0].mxu0
      %v479 = vpop.f32.mrb[0].mxu0
      %v480 = vadd.f32 0.0, %v479
      %v481 = vpop.f32.mrb[0].mxu0
      %482 = vmatprep.mubr.bf16.mxu0 0
      %483 = vmatmul.mubr.bf16.gmra.mrb[0].mxu0 %v333
      %v484 = vpop.f32.mrb[0].mxu0
      %v485 = vadd.f32 0.0, %v484
      %v486 = vpop.f32.mrb[0].mxu0
      %v487 = vpop.f32.mrb[0].mxu0
      %v488 = vadd.f32 0.0, %v487
      %v489 = vpop.f32.mrb[0].mxu0
      %490 = vmatprep.mubr.bf16.mxu0 0
      %491 = vmatmul.mubr.bf16.gmra.mrb[0].mxu0 %v336
      %v492 = vpop.f32.mrb[0].mxu0
      %v493 = vadd.f32 0.0, %v492
      %v494 = vpop.f32.mrb[0].mxu0
      %v495 = vpop.f32.mrb[0].mxu0
      %v496 = vadd.f32 0.0, %v495
      %v497 = vpop.f32.mrb[0].mxu0
      %498 = vdwg.mxu0
      %v499 = vpack.c.bf16 %v376, %v373
      %v500 = vpack.c.bf16 %v384, %v381
      %v501 = vpack.c.bf16 %v392, %v389
      %v502 = vpack.c.bf16 %v400, %v397
      %v503 = vpack.c.bf16 %v408, %v405
      %v504 = vpack.c.bf16 %v416, %v413
      %v505 = vpack.c.bf16 %v424, %v421
      %v506 = vpack.c.bf16 %v432, %v429
      %v507 = vpack.c.bf16 %v440, %v437
      %v508 = vpack.c.bf16 %v448, %v445
      %v509 = vpack.c.bf16 %v456, %v453
      %v510 = vpack.c.bf16 %v464, %v461
      %v511 = vpack.c.bf16 %v472, %v469
      %v512 = vpack.c.bf16 %v480, %v477
      %v513 = vpack.c.bf16 %v488, %v485
      %v514 = vpack.c.bf16 %v496, %v493
      %v531 = vunpack.c.l.b16 %v499
      %v532 = vunpack.c.h.b16 %v499
      %v533 = vunpack.c.l.b16 %v500
      %v534 = vunpack.c.h.b16 %v500
      %v535 = vunpack.c.l.b16 %v501
      %v536 = vunpack.c.h.b16 %v501
      %v537 = vunpack.c.l.b16 %v502
      %v538 = vunpack.c.h.b16 %v502
      %v539 = vunpack.c.l.b16 %v503
      %v540 = vunpack.c.h.b16 %v503
      %v541 = vunpack.c.l.b16 %v504
      %v542 = vunpack.c.h.b16 %v504
      %v543 = vunpack.c.l.b16 %v505
      %v544 = vunpack.c.h.b16 %v505
      %v545 = vunpack.c.l.b16 %v506
      %v546 = vunpack.c.h.b16 %v506
      %v547 = vunpack.c.l.b16 %v507
      %v548 = vunpack.c.h.b16 %v507
      %v549 = vunpack.c.l.b16 %v508
      %v550 = vunpack.c.h.b16 %v508
      %v551 = vunpack.c.l.b16 %v509
      %v552 = vunpack.c.h.b16 %v509
      %v553 = vunpack.c.l.b16 %v510
      %v554 = vunpack.c.h.b16 %v510
      %v555 = vunpack.c.l.b16 %v511
      %v556 = vunpack.c.h.b16 %v511
      %v557 = vunpack.c.l.b16 %v512
      %v558 = vunpack.c.h.b16 %v512
      %v559 = vunpack.c.l.b16 %v513
      %v560 = vunpack.c.h.b16 %v513
      %v561 = vunpack.c.l.b16 %v514
      %v562 = vunpack.c.h.b16 %v514
      %v563 = vpack.c.b16 %v531, %v531
      %v564 = vpack.c.b16 %v532, %v532
      %v565 = vpack.c.b16 %v533, %v533
      %v566 = vpack.c.b16 %v534, %v534
      %v567 = vpack.c.b16 %v535, %v535
      %v568 = vpack.c.b16 %v536, %v536
      %v569 = vpack.c.b16 %v537, %v537
      %v570 = vpack.c.b16 %v538, %v538
      %v571 = vpack.c.b16 %v539, %v539
      %v572 = vpack.c.b16 %v540, %v540
      %v573 = vpack.c.b16 %v541, %v541
      %v574 = vpack.c.b16 %v542, %v542
      %v575 = vpack.c.b16 %v543, %v543
      %v576 = vpack.c.b16 %v544, %v544
      %v577 = vpack.c.b16 %v545, %v545
      %v578 = vpack.c.b16 %v546, %v546
      %v579 = vpack.c.b16 %v547, %v547
      %v580 = vpack.c.b16 %v548, %v548
      %v581 = vpack.c.b16 %v549, %v549
      %v582 = vpack.c.b16 %v550, %v550
      %v583 = vpack.c.b16 %v551, %v551
      %v584 = vpack.c.b16 %v552, %v552
      %v585 = vpack.c.b16 %v553, %v553
      %v586 = vpack.c.b16 %v554, %v554
      %v587 = vpack.c.b16 %v555, %v555
      %v588 = vpack.c.b16 %v556, %v556
      %v589 = vpack.c.b16 %v557, %v557
      %v590 = vpack.c.b16 %v558, %v558
      %v591 = vpack.c.b16 %v559, %v559
      %v592 = vpack.c.b16 %v560, %v560
      %v593 = vpack.c.b16 %v561, %v561
      %v594 = vpack.c.b16 %v562, %v562
      %vm627 = vcmask 60416
      %628 = vst.msk [vmem:[%s143] sm:$0xf] %vm627, %v563
      %629 = vst.msk [vmem:[%s143 + $0x4] sm:$0xf] %vm627, %v564
      %630 = vst.msk [vmem:[%s143 + $0x8] sm:$0xf] %vm627, %v565
      %631 = vst.msk [vmem:[%s143 + $0xc] sm:$0xf] %vm627, %v566
      %632 = vst.msk [vmem:[%s143 + $0x10] sm:$0xf] %vm627, %v567
      %633 = vst.msk [vmem:[%s143 + $0x14] sm:$0xf] %vm627, %v568
      %634 = vst.msk [vmem:[%s143 + $0x18] sm:$0xf] %vm627, %v569
      %635 = vst.msk [vmem:[%s143 + $0x1c] sm:$0xf] %vm627, %v570
      %636 = vst.msk [vmem:[%s143 + $0x20] sm:$0xf] %vm627, %v571
      %637 = vst.msk [vmem:[%s143 + $0x24] sm:$0xf] %vm627, %v572
      %638 = vst.msk [vmem:[%s143 + $0x28] sm:$0xf] %vm627, %v573
      %639 = vst.msk [vmem:[%s143 + $0x2c] sm:$0xf] %vm627, %v574
      %640 = vst.msk [vmem:[%s143 + $0x30] sm:$0xf] %vm627, %v575
      %641 = vst.msk [vmem:[%s143 + $0x34] sm:$0xf] %vm627, %v576
      %642 = vst.msk [vmem:[%s143 + $0x38] sm:$0xf] %vm627, %v577
      %643 = vst.msk [vmem:[%s143 + $0x3c] sm:$0xf] %vm627, %v578
      %644 = vst.msk [vmem:[%s143 + $0x40] sm:$0xf] %vm627, %v579
      %645 = vst.msk [vmem:[%s143 + $0x44] sm:$0xf] %vm627, %v580
      %646 = vst.msk [vmem:[%s143 + $0x48] sm:$0xf] %vm627, %v581
      %647 = vst.msk [vmem:[%s143 + $0x4c] sm:$0xf] %vm627, %v582
      %648 = vst.msk [vmem:[%s143 + $0x50] sm:$0xf] %vm627, %v583
      %649 = vst.msk [vmem:[%s143 + $0x54] sm:$0xf] %vm627, %v584
      %650 = vst.msk [vmem:[%s143 + $0x58] sm:$0xf] %vm627, %v585
      %651 = vst.msk [vmem:[%s143 + $0x5c] sm:$0xf] %vm627, %v586
      %652 = vst.msk [vmem:[%s143 + $0x60] sm:$0xf] %vm627, %v587
      %653 = vst.msk [vmem:[%s143 + $0x64] sm:$0xf] %vm627, %v588
      %654 = vst.msk [vmem:[%s143 + $0x68] sm:$0xf] %vm627, %v589
      %655 = vst.msk [vmem:[%s143 + $0x6c] sm:$0xf] %vm627, %v590
      %656 = vst.msk [vmem:[%s143 + $0x70] sm:$0xf] %vm627, %v591
      %657 = vst.msk [vmem:[%s143 + $0x74] sm:$0xf] %vm627, %v592
      %658 = vst.msk [vmem:[%s143 + $0x78] sm:$0xf] %vm627, %v593
      %659 = vst.msk [vmem:[%s143 + $0x7c] sm:$0xf] %vm627, %v594
      %p660 = scmp.lt.s32.totalorder %s13, 1
      %s661 = scalar_select %p660, %s13, 1
      %s662 = smul.addr %s661, 32
      %s663 = smul.addr %s662, 4
      %s664 = scalar_lea.vmem %s2, %s663
      // Predicated region
      $region29: #{pspnet_forward.15} parent=27 // pred_check
        %p665 = pneg %p78
      $region30: #{pspnet_forward.15} parent=27 // pred_check_branch
        %667 = sbr.rel (%p665) target = $region32
      $region31: #{pspnet_forward.15} parent=27 // pred_region
        _
      $region32: #{pspnet_forward.15} parent=27 // pred_fallthru
        _
    $region28: #{pspnet_forward.15} parent=5 // pred_fallthru
      _
    %p668 = scmp.le.s32.totalorder 2, %s8
    // Predicated region
    $region33: #{pspnet_forward.15} parent=5 // pred_check
      %p669 = pneg %p668
    $region34: #{pspnet_forward.15} parent=5 // pred_check_branch
      %671 = sbr.rel (%p669) target = $region36
    $region35: #{pspnet_forward.15} parent=5 // pred_region
      %s672 = ssub.s32 %s8, 2
      // Predicated region
      $region37: #{pspnet_forward.15} parent=35 // pred_check
        %p673 = pneg %p84
      $region38: #{pspnet_forward.15} parent=35 // pred_check_branch
        %675 = sbr.rel (%p673) target = $region40
      $region39: #{pspnet_forward.15} parent=35 // pred_region
        %p676 = scmp.lt.s32.totalorder %s14, 1
        %s677 = scalar_select %p676, %s14, 1
        %s678 = smul.addr %s677, 32
        %s679 = smul.addr %s678, 4
        %s680 = scalar_lea.vmem %s2, %s679
      $region40: #{pspnet_forward.15} parent=35 // pred_fallthru
        _
    $region36: #{pspnet_forward.15} parent=5 // pred_fallthru
      _
  $region6: #{pspnet_forward.15} parent=0 // loop_footer
    %s12 = sadd.s32 1, %s8
  $region7: #{pspnet_forward.15} parent=0 // loop_footer_branch
    %7 = sbr.rel target = $region3
  $region8: #{pspnet_forward.15} parent=0 // loop_exit
    _

// kernel: pspnet_forward.14
$region0: #{pspnet_forward.14}
  #allocation0 [shape = 'u32[]', space=smem, size = 0x4, offset = 0x4, fixed_abs, tag = 'smem constant byte address 0x4 - core index']
  #allocation1 [shape = 'u32[144,128]{1,0:T(1,128)}', space=vmem, size = 0x12000, scoped, tag = 'internal scratch']
  %s0 = inlined_call_operand.vmem [shape: bf16[2,102,16], index: 0, kind: input, shape index: {}]
  %s1 = inlined_call_operand.vmem [shape: bf16[9,16,8], index: 1, kind: input, shape index: {}]
  %s2 = inlined_call_operand.vmem [shape: f32[1,8], index: 2, kind: input, shape index: {}]
  %s3 = inlined_call_operand.vmem [shape: bf16[2,80,8], index: 3, kind: output, shape index: {}]
  %s4 = sld [smem:[#allocation0]]
  $region45: #{pspnet_forward.14} parent=0
    _
  %s6 = ssub.s32 1, %s4
  %s7 = scalar_select 0, %s6, %s4
  loop: start=0, step=1, limit=4
  $region2: #{pspnet_forward.14} parent=0 // loop_pre_header
    _
  $region3: #{pspnet_forward.14} parent=0 // loop_header
    %s9 = sphi 0, %s13
    %p10 = scmp.ge.s32.totalorder %s9, 4
    %s19 = sphi 0, %s21
    %s22 = sphi 0, %s19
    %s23 = sphi 0, %s22
    %s39 = sphi 0, %s23
    %s43 = sphi 0, %s43
    %s45 = sphi 0, %s43
    %s46 = sphi 0, %s45
    %s60 = sphi 0, %s46
    %s64 = sphi 0, %s64
    %s66 = sphi 0, %s64
    %s67 = sphi 0, %s66
    %s81 = sphi 0, %s67
    %s87 = sphi 0, %s89
    %s90 = sphi 0, %s87
    %s91 = sphi 0, %s90
    %s107 = sphi 0, %s91
  $region4: #{pspnet_forward.14} parent=0 // loop_header_branch
    %12 = sbr.rel (%p10) target = $region8
  $region5: #{pspnet_forward.14} parent=0 // loop_body
    %s14 = ssub.s32 %s9, 1
    %s15 = ssub.s32 %s9, 2
    %s16 = sadd.s32 %s9, 1
    %s17 = ssub.s32 %s9, %s16
    %p18 = scmp.eq.s32.totalorder %s17, 0
    %s20 = sadd.s32 %s19, 1
    %s21 = scalar_select %p18, %s19, %s20
    %p24 = pneg %p18
    %p25 = scmp.eq.s32.totalorder %s9, 1
    %p26 = por %p24, %p25
    %p27 = scmp.ne.s32.totalorder %s19, %s22
    %p28 = scmp.eq.s32.totalorder %s9, 0
    %p29 = por %p27, %p28
    %p30 = scmp.ne.s32.totalorder %s19, %s22
    %p31 = scmp.eq.s32.totalorder %s14, 1
    %p32 = por %p30, %p31
    %p33 = scmp.ne.s32.totalorder %s22, %s23
    %p34 = scmp.eq.s32.totalorder %s14, 0
    %p35 = por %p33, %p34
    %p36 = scmp.ne.s32.totalorder %s22, %s23
    %p37 = scmp.eq.s32.totalorder %s15, 1
    %p38 = por %p36, %p37
    %p40 = scmp.ne.s32.totalorder %s23, %s39
    %p41 = scmp.eq.s32.totalorder %s15, 0
    %p42 = por %p40, %p41
    %s44 = sadd.s32 %s43, 1
    %p47 = scmp.eq.s32.totalorder %s9, 1
    %p48 = scmp.ne.s32.totalorder %s43, %s45
    %p49 = scmp.eq.s32.totalorder %s9, 0
    %p50 = por %p48, %p49
    %p51 = scmp.ne.s32.totalorder %s43, %s45
    %p52 = scmp.eq.s32.totalorder %s14, 1
    %p53 = por %p51, %p52
    %p54 = scmp.ne.s32.totalorder %s45, %s46
    %p55 = scmp.eq.s32.totalorder %s14, 0
    %p56 = por %p54, %p55
    %p57 = scmp.ne.s32.totalorder %s45, %s46
    %p58 = scmp.eq.s32.totalorder %s15, 1
    %p59 = por %p57, %p58
    %p61 = scmp.ne.s32.totalorder %s46, %s60
    %p62 = scmp.eq.s32.totalorder %s15, 0
    %p63 = por %p61, %p62
    %s65 = sadd.s32 %s64, 1
    %p68 = scmp.eq.s32.totalorder %s9, 1
    %p69 = scmp.ne.s32.totalorder %s64, %s66
    %p70 = scmp.eq.s32.totalorder %s9, 0
    %p71 = por %p69, %p70
    %p72 = scmp.ne.s32.totalorder %s64, %s66
    %p73 = scmp.eq.s32.totalorder %s14, 1
    %p74 = por %p72, %p73
    %p75 = scmp.ne.s32.totalorder %s66, %s67
    %p76 = scmp.eq.s32.totalorder %s14, 0
    %p77 = por %p75, %p76
    %p78 = scmp.ne.s32.totalorder %s66, %s67
    %p79 = scmp.eq.s32.totalorder %s15, 1
    %p80 = por %p78, %p79
    %p82 = scmp.ne.s32.totalorder %s67, %s81
    %p83 = scmp.eq.s32.totalorder %s15, 0
    %p84 = por %p82, %p83
    %s85 = ssub.s32 %s9, %s16
    %p86 = scmp.eq.s32.totalorder %s85, 0
    %s88 = sadd.s32 %s87, 1
    %s89 = scalar_select %p86, %s87, %s88
    %p92 = pneg %p86
    %p93 = scmp.eq.s32.totalorder %s9, 1
    %p94 = por %p92, %p93
    %p95 = scmp.ne.s32.totalorder %s87, %s90
    %p96 = scmp.eq.s32.totalorder %s9, 0
    %p97 = por %p95, %p96
    %p98 = scmp.ne.s32.totalorder %s87, %s90
    %p99 = scmp.eq.s32.totalorder %s14, 1
    %p100 = por %p98, %p99
    %p101 = scmp.ne.s32.totalorder %s90, %s91
    %p102 = scmp.eq.s32.totalorder %s14, 0
    %p103 = por %p101, %p102
    %p104 = scmp.ne.s32.totalorder %s90, %s91
    %p105 = scmp.eq.s32.totalorder %s15, 1
    %p106 = por %p104, %p105
    %p108 = scmp.ne.s32.totalorder %s91, %s107
    %p109 = scmp.eq.s32.totalorder %s15, 0
    %p110 = por %p108, %p109
    %p111 = scmp.le.s32.totalorder 1, %s9
    %p112 = scmp.lt.s32.totalorder %s9, 3
    %p113 = pnand %p111, %p112
    %p114 = pneg %p113
    // Predicated region
    $region9: #{pspnet_forward.14} parent=5 // pred_check
      _
    $region10: #{pspnet_forward.14} parent=5 // pred_check_branch
      %116 = sbr.rel (%p113) target = $region12
    $region11: #{pspnet_forward.14} parent=5 // pred_region
      %s117 = ssub.s32 %s9, 1
      // Predicated region
      $region13: #{pspnet_forward.14} parent=11 // pred_check
        %p118 = pneg %p56
      $region14: #{pspnet_forward.14} parent=11 // pred_check_branch
        %120 = sbr.rel (%p118) target = $region16
      $region15: #{pspnet_forward.14} parent=11 // pred_region
        _
      $region16: #{pspnet_forward.14} parent=11 // pred_fallthru
        _
      // Predicated region
      $region17: #{pspnet_forward.14} parent=11 // pred_check
        %p121 = pneg %p77
      $region18: #{pspnet_forward.14} parent=11 // pred_check_branch
        %123 = sbr.rel (%p121) target = $region20
      $region19: #{pspnet_forward.14} parent=11 // pred_region
        _
      $region20: #{pspnet_forward.14} parent=11 // pred_fallthru
        _
    $region12: #{pspnet_forward.14} parent=5 // pred_fallthru
      _
    %p124 = scmp.lt.s32.totalorder %s9, 2
    // Predicated region
    $region21: #{pspnet_forward.14} parent=5 // pred_check
      %p125 = pneg %p124
    $region22: #{pspnet_forward.14} parent=5 // pred_check_branch
      %127 = sbr.rel (%p125) target = $region24
    $region23: #{pspnet_forward.14} parent=5 // pred_region
      // Predicated region
      $region25: #{pspnet_forward.14} parent=23 // pred_check
        %p128 = pneg %p29
      $region26: #{pspnet_forward.14} parent=23 // pred_check_branch
        %130 = sbr.rel (%p128) target = $region28
      $region27: #{pspnet_forward.14} parent=23 // pred_region
        %p131 = scmp.lt.s32.totalorder %s9, 1
        %s132 = scalar_select %p131, %s9, 1
        %s133 = smul.addr %s132, 13
        %s134 = smul.addr %s133, 4
        %s135 = scalar_lea.vmem %s0, %s134
      $region28: #{pspnet_forward.14} parent=23 // pred_fallthru
        _
    $region24: #{pspnet_forward.14} parent=5 // pred_fallthru
      _
    %p136 = scmp.le.s32.totalorder 1, %s9
    %p137 = scmp.lt.s32.totalorder %s9, 3
    %p138 = pnand %p136, %p137
    %p139 = pneg %p138
    // Predicated region
    $region29: #{pspnet_forward.14} parent=5 // pred_check
      _
    $region30: #{pspnet_forward.14} parent=5 // pred_check_branch
      %141 = sbr.rel (%p138) target = $region32
    $region31: #{pspnet_forward.14} parent=5 // pred_region
      %s142 = ssub.s32 %s9, 1
      %p143 = scmp.lt.s32.totalorder %s14, 1
      %s144 = scalar_select %p143, %s14, 1
      %s145 = smul.addr %s144, 13
      %s146 = smul.addr %s145, 4
      %s147 = scalar_lea.vmem %s0, %s146
      %p148 = pneg %p35
      %p149 = pneg %p32
      %p150 = pneg %p56
      %p151 = pneg %p53
      %p152 = pneg %p77
      %p153 = pneg %p74
      %p154 = pneg %p103
      %p155 = pneg %p100
      %p156 = scmp.lt.s32.totalorder %s14, 1
      %s157 = scalar_select %p156, %s14, 1
      %s158 = smul.addr %s157, 10
      %s159 = smul.addr %s158, 4
      %s160 = scalar_lea.vmem %s3, %s159
      %p161 = scmp.lt.s32.totalorder %s14, 1
      %s162 = scalar_select %p161, %s14, 1
      %s163 = smul.addr %s162, 13
      %s164 = smul.addr %s163, 4
      %s165 = scalar_lea.vmem %s0, %s164
      %p166 = scmp.lt.s32.totalorder %s14, 1
      %s167 = scalar_select %p166, %s14, 1
      %s168 = smul.addr %s167, 10
      %s169 = smul.addr %s168, 4
      %s170 = scalar_lea.vmem %s3, %s169
      %v172 = vld [vmem:[%s165] sm:$0xf]
      %v173 = vld [vmem:[%s165 + $0x4] sm:$0xf]
      %v174 = vld [vmem:[%s165 + $0x8] sm:$0xf]
      %v175 = vld [vmem:[%s165 + $0xc] sm:$0xf]
      %v176 = vld [vmem:[%s165 + $0x10] sm:$0xf]
      %v177 = vld [vmem:[%s165 + $0x14] sm:$0xf]
      %v178 = vld [vmem:[%s165 + $0x18] sm:$0xf]
      %v179 = vld [vmem:[%s165 + $0x1c] sm:$0xf]
      %v180 = vld [vmem:[%s165 + $0x20] sm:$0xf]
      %v181 = vld [vmem:[%s165 + $0x24] sm:$0xf]
      %v182 = vld [vmem:[%s165 + $0x28] sm:$0xf]
      %v183 = vld [vmem:[%s165 + $0x2c] sm:$0xf]
      %v184 = vld [vmem:[%s165 + $0x30] sm:$0x7]
      %v185 = vld [vmem:[%s1] sm:$0xf]
      %v186 = vld [vmem:[%s1 + $0x4] sm:$0xf]
      %s187 = scalar_lea.vmem %s1, 8
      %v188 = vld [vmem:[%s187] sm:$0xf]
      %v189 = vld [vmem:[%s187 + $0x4] sm:$0xf]
      %v201 = vunpack.c.l.b16 %v172
      %v202 = vunpack.c.l.b16 %v173
      %v203 = vunpack.c.l.b16 %v174
      %v204 = vunpack.c.l.b16 %v175
      %v205 = vunpack.c.l.b16 %v176
      %v206 = vunpack.c.l.b16 %v177
      %v207 = vunpack.c.l.b16 %v178
      %v208 = vunpack.c.l.b16 %v179
      %v209 = vunpack.c.l.b16 %v180
      %v210 = vunpack.c.l.b16 %v181
      %v211 = vunpack.c.l.b16 %v182
      %v212 = vpack.c.b16 %v202, %v201
      %v213 = vpack.c.b16 %v204, %v203
      %v214 = vpack.c.b16 %v206, %v205
      %v215 = vpack.c.b16 %v208, %v207
      %v216 = vpack.c.b16 %v210, %v209
      %v217 = vpack.c.b16 %v211, %v211
      %vm218 = vsmask.f32 7424
      %v220 = vshrl.u32 %v212, 16
      %v222 = vshll.u32 %v212, 16
      %v224 = vrot.slane %v222, 1
      %v225 = vor.u32 %v220, %v224
      %v227 = vshll.u32 %v213, 16
      %v229 = vrot.slane %v227, 1
      %v230 = vsel %vm218, %v225, %v229
      %v231 = vshrl.u32 %v213, 16
      %v233 = vor.u32 %v231, %v229
      %v235 = vshll.u32 %v214, 16
      %v237 = vrot.slane %v235, 1
      %v238 = vsel %vm218, %v233, %v237
      %v239 = vshrl.u32 %v214, 16
      %v241 = vor.u32 %v239, %v237
      %v243 = vshll.u32 %v215, 16
      %v245 = vrot.slane %v243, 1
      %v246 = vsel %vm218, %v241, %v245
      %v247 = vshrl.u32 %v215, 16
      %v249 = vor.u32 %v247, %v245
      %v251 = vshll.u32 %v216, 16
      %v253 = vrot.slane %v251, 1
      %v254 = vsel %vm218, %v249, %v253
      %v255 = vshrl.u32 %v216, 16
      %v257 = vor.u32 %v255, %v253
      %v259 = vshll.u32 %v217, 16
      %v261 = vrot.slane %v259, 1
      %v262 = vsel %vm218, %v257, %v261
      %v265 = vunpack.c.l.b16 %v188
      %v266 = vunpack.c.l.b16 %v189
      %v267 = vpack.c.b16 %v266, %v265
      %vm269 = vcmask 130048
      %v271 = vsel %vm269, %v230, 0
      %v274 = vsel %vm269, %v238, 0
      %v277 = vsel %vm269, %v246, 0
      %v280 = vsel %vm269, %v254, 0
      %v283 = vsel %vm269, %v262, 0
      %285 = vmatprep.subr.bf16.mxu0 0
      %286 = vmatpush1.bf16.msra.mxu0 %v267
      %287 = vmatprep.subr.bf16.mxu0 0
      %288 = vmatpush1.bf16.msra.mxu0 0
      %289 = vmatprep.subr.bf16.mxu0 0
      %290 = vmatpush1.bf16.msra.mxu0 0
      %291 = vmatprep.subr.bf16.mxu0 0
      %292 = vmatpush1.bf16.msra.mxu0 0
      %293 = vmatprep.subr.bf16.mxu0 0
      %294 = vmatpush1.bf16.msra.mxu0 0
      %295 = vmatprep.subr.bf16.mxu0 0
      %296 = vmatpush1.bf16.msra.mxu0 0
      %297 = vmatprep.subr.bf16.mxu0 0
      %298 = vmatpush1.bf16.msra.mxu0 0
      %299 = vmatprep.subr.bf16.mxu0 0
      %300 = vmatpush1.bf16.msra.mxu0 0
      %301 = vmatprep.subr.bf16.mxu0 0
      %302 = vmatpush1.bf16.msra.mxu0 0
      %303 = vmatprep.subr.bf16.mxu0 0
      %304 = vmatpush1.bf16.msra.mxu0 0
      %305 = vmatprep.subr.bf16.mxu0 0
      %306 = vmatpush1.bf16.msra.mxu0 0
      %307 = vmatprep.subr.bf16.mxu0 0
      %308 = vmatpush1.bf16.msra.mxu0 0
      %309 = vmatprep.subr.bf16.mxu0 0
      %310 = vmatpush1.bf16.msra.mxu0 0
      %311 = vmatprep.subr.bf16.mxu0 0
      %312 = vmatpush1.bf16.msra.mxu0 0
      %313 = vmatprep.subr.bf16.mxu0 0
      %314 = vmatpush1.bf16.msra.mxu0 0
      %315 = vmatprep.subr.bf16.mxu0 0
      %316 = vmatpush1.bf16.msra.mxu0 0
      %317 = vmatprep.mubr.bf16.mxu0 0
      %318 = vmatmul.mubr.bf16.gmra.mrb[0].mxu0 %v271
      %v319 = vpop.f32.mrb[0].mxu0
      %v320 = vadd.f32 0.0, %v319
      %v321 = vpop.f32.mrb[0].mxu0
      %v322 = vpop.f32.mrb[0].mxu0
      %v323 = vadd.f32 0.0, %v322
      %v324 = vpop.f32.mrb[0].mxu0
      %325 = vmatprep.mubr.bf16.mxu0 0
      %326 = vmatmul.mubr.bf16.gmra.mrb[0].mxu0 %v274
      %v327 = vpop.f32.mrb[0].mxu0
      %v328 = vadd.f32 0.0, %v327
      %v329 = vpop.f32.mrb[0].mxu0
      %v330 = vpop.f32.mrb[0].mxu0
      %v331 = vadd.f32 0.0, %v330
      %v332 = vpop.f32.mrb[0].mxu0
      %333 = vmatprep.mubr.bf16.mxu0 0
      %334 = vmatmul.mubr.bf16.gmra.mrb[0].mxu0 %v277
      %v335 = vpop.f32.mrb[0].mxu0
      %v336 = vadd.f32 0.0, %v335
      %v337 = vpop.f32.mrb[0].mxu0
      %v338 = vpop.f32.mrb[0].mxu0
      %v339 = vadd.f32 0.0, %v338
      %v340 = vpop.f32.mrb[0].mxu0
      %341 = vmatprep.mubr.bf16.mxu0 0
      %342 = vmatmul.mubr.bf16.gmra.mrb[0].mxu0 %v280
      %v343 = vpop.f32.mrb[0].mxu0
      %v344 = vadd.f32 0.0, %v343
      %v345 = vpop.f32.mrb[0].mxu0
      %v346 = vpop.f32.mrb[0].mxu0
      %v347 = vadd.f32 0.0, %v346
      %v348 = vpop.f32.mrb[0].mxu0
      %349 = vmatprep.mubr.bf16.mxu0 0
      %350 = vmatmul.mubr.bf16.gmra.mrb[0].mxu0 %v283
      %v351 = vpop.f32.mrb[0].mxu0
      %v352 = vadd.f32 0.0, %v351
      %v353 = vpop.f32.mrb[0].mxu0
      %v354 = vpop.f32.mrb[0].mxu0
      %v355 = vadd.f32 0.0, %v354
      %v356 = vpop.f32.mrb[0].mxu0
      %357 = vdwg.mxu0
      %v360 = vunpack.c.l.b16 %v185
      %v361 = vunpack.c.l.b16 %v186
      %v362 = vpack.c.b16 %v361, %v360
      %v364 = vsel %vm269, %v212, 0
      %v366 = vsel %vm269, %v213, 0
      %v368 = vsel %vm269, %v214, 0
      %v370 = vsel %vm269, %v215, 0
      %v372 = vsel %vm269, %v216, 0
      %374 = vmatprep.subr.bf16.mxu0 0
      %375 = vmatpush1.bf16.msra.mxu0 %v362
      %376 = vmatprep.subr.bf16.mxu0 0
      %377 = vmatpush1.bf16.msra.mxu0 0
      %378 = vmatprep.subr.bf16.mxu0 0
      %379 = vmatpush1.bf16.msra.mxu0 0
      %380 = vmatprep.subr.bf16.mxu0 0
      %381 = vmatpush1.bf16.msra.mxu0 0
      %382 = vmatprep.subr.bf16.mxu0 0
      %383 = vmatpush1.bf16.msra.mxu0 0
      %384 = vmatprep.subr.bf16.mxu0 0
      %385 = vmatpush1.bf16.msra.mxu0 0
      %386 = vmatprep.subr.bf16.mxu0 0
      %387 = vmatpush1.bf16.msra.mxu0 0
      %388 = vmatprep.subr.bf16.mxu0 0
      %389 = vmatpush1.bf16.msra.mxu0 0
      %390 = vmatprep.subr.bf16.mxu0 0
      %391 = vmatpush1.bf16.msra.mxu0 0
      %392 = vmatprep.subr.bf16.mxu0 0
      %393 = vmatpush1.bf16.msra.mxu0 0
      %394 = vmatprep.subr.bf16.mxu0 0
      %395 = vmatpush1.bf16.msra.mxu0 0
      %396 = vmatprep.subr.bf16.mxu0 0
      %397 = vmatpush1.bf16.msra.mxu0 0
      %398 = vmatprep.subr.bf16.mxu0 0
      %399 = vmatpush1.bf16.msra.mxu0 0
      %400 = vmatprep.subr.bf16.mxu0 0
      %401 = vmatpush1.bf16.msra.mxu0 0
      %402 = vmatprep.subr.bf16.mxu0 0
      %403 = vmatpush1.bf16.msra.mxu0 0
      %404 = vmatprep.subr.bf16.mxu0 0
      %405 = vmatpush1.bf16.msra.mxu0 0
      %406 = vmatprep.mubr.bf16.mxu0 0
      %407 = vmatmul.mubr.bf16.gmra.mrb[0].mxu0 %v364
      %v408 = vpop.f32.mrb[0].mxu0
      %v409 = vadd.f32 %v320, %v408
      %v410 = vpop.f32.mrb[0].mxu0
      %v411 = vpop.f32.mrb[0].mxu0
      %v412 = vadd.f32 %v323, %v411
      %v413 = vpop.f32.mrb[0].mxu0
      %414 = vmatprep.mubr.bf16.mxu0 0
      %415 = vmatmul.mubr.bf16.gmra.mrb[0].mxu0 %v366
      %v416 = vpop.f32.mrb[0].mxu0
      %v417 = vadd.f32 %v328, %v416
      %v418 = vpop.f32.mrb[0].mxu0
      %v419 = vpop.f32.mrb[0].mxu0
      %v420 = vadd.f32 %v331, %v419
      %v421 = vpop.f32.mrb[0].mxu0
      %422 = vmatprep.mubr.bf16.mxu0 0
      %423 = vmatmul.mubr.bf16.gmra.mrb[0].mxu0 %v368
      %v424 = vpop.f32.mrb[0].mxu0
      %v425 = vadd.f32 %v336, %v424
      %v426 = vpop.f32.mrb[0].mxu0
      %v427 = vpop.f32.mrb[0].mxu0
      %v428 = vadd.f32 %v339, %v427
      %v429 = vpop.f32.mrb[0].mxu0
      %430 = vmatprep.mubr.bf16.mxu0 0
      %431 = vmatmul.mubr.bf16.gmra.mrb[0].mxu0 %v370
      %v432 = vpop.f32.mrb[0].mxu0
      %v433 = vadd.f32 %v344, %v432
      %v434 = vpop.f32.mrb[0].mxu0
      %v435 = vpop.f32.mrb[0].mxu0
      %v436 = vadd.f32 %v347, %v435
      %v437 = vpop.f32.mrb[0].mxu0
      %438 = vmatprep.mubr.bf16.mxu0 0
      %439 = vmatmul.mubr.bf16.gmra.mrb[0].mxu0 %v372
      %v440 = vpop.f32.mrb[0].mxu0
      %v441 = vadd.f32 %v352, %v440
      %v442 = vpop.f32.mrb[0].mxu0
      %v443 = vpop.f32.mrb[0].mxu0
      %v444 = vadd.f32 %v355, %v443
      %v445 = vpop.f32.mrb[0].mxu0
      %446 = vdwg.mxu0
      %s447 = scalar_lea.vmem %s1, 16
      %v448 = vld [vmem:[%s447] sm:$0xf]
      %v449 = vld [vmem:[%s447 + $0x4] sm:$0xf]
      %vm450 = vcmask 1046528
      %v451 = vrot.slane %v212, 1
      %v452 = vrot.slane %v213, 1
      %v453 = vsel %vm450, %v451, %v452
      %v454 = vrot.slane %v214, 1
      %v455 = vsel %vm450, %v452, %v454
      %v456 = vrot.slane %v215, 1
      %v457 = vsel %vm450, %v454, %v456
      %v458 = vrot.slane %v216, 1
      %v459 = vsel %vm450, %v456, %v458
      %v460 = vrot.slane %v217, 1
      %v461 = vsel %vm450, %v458, %v460
      %v464 = vunpack.c.l.b16 %v448
      %v465 = vunpack.c.l.b16 %v449
      %v466 = vpack.c.b16 %v465, %v464
      %v469 = vsel %vm269, %v453, 0
      %v472 = vsel %vm269, %v455, 0
      %v475 = vsel %vm269, %v457, 0
      %v478 = vsel %vm269, %v459, 0
      %v481 = vsel %vm269, %v461, 0
      %483 = vmatprep.subr.bf16.mxu0 0
      %484 = vmatpush1.bf16.msra.mxu0 %v466
      %485 = vmatprep.subr.bf16.mxu0 0
      %486 = vmatpush1.bf16.msra.mxu0 0
      %487 = vmatprep.subr.bf16.mxu0 0
      %488 = vmatpush1.bf16.msra.mxu0 0
      %489 = vmatprep.subr.bf16.mxu0 0
      %490 = vmatpush1.bf16.msra.mxu0 0
      %491 = vmatprep.subr.bf16.mxu0 0
      %492 = vmatpush1.bf16.msra.mxu0 0
      %493 = vmatprep.subr.bf16.mxu0 0
      %494 = vmatpush1.bf16.msra.mxu0 0
      %495 = vmatprep.subr.bf16.mxu0 0
      %496 = vmatpush1.bf16.msra.mxu0 0
      %497 = vmatprep.subr.bf16.mxu0 0
      %498 = vmatpush1.bf16.msra.mxu0 0
      %499 = vmatprep.subr.bf16.mxu0 0
      %500 = vmatpush1.bf16.msra.mxu0 0
      %501 = vmatprep.subr.bf16.mxu0 0
      %502 = vmatpush1.bf16.msra.mxu0 0
      %503 = vmatprep.subr.bf16.mxu0 0
      %504 = vmatpush1.bf16.msra.mxu0 0
      %505 = vmatprep.subr.bf16.mxu0 0
      %506 = vmatpush1.bf16.msra.mxu0 0
      %507 = vmatprep.subr.bf16.mxu0 0
      %508 = vmatpush1.bf16.msra.mxu0 0
      %509 = vmatprep.subr.bf16.mxu0 0
      %510 = vmatpush1.bf16.msra.mxu0 0
      %511 = vmatprep.subr.bf16.mxu0 0
      %512 = vmatpush1.bf16.msra.mxu0 0
      %513 = vmatprep.subr.bf16.mxu0 0
      %514 = vmatpush1.bf16.msra.mxu0 0
      %515 = vmatprep.mubr.bf16.mxu0 0
      %516 = vmatmul.mubr.bf16.gmra.mrb[0].mxu0 %v469
      %v517 = vpop.f32.mrb[0].mxu0
      %v518 = vadd.f32 0.0, %v517
      %v519 = vpop.f32.mrb[0].mxu0
      %v520 = vpop.f32.mrb[0].mxu0
      %v521 = vadd.f32 0.0, %v520
      %v522 = vpop.f32.mrb[0].mxu0
      %523 = vmatprep.mubr.bf16.mxu0 0
      %524 = vmatmul.mubr.bf16.gmra.mrb[0].mxu0 %v472
      %v525 = vpop.f32.mrb[0].mxu0
      %v526 = vadd.f32 0.0, %v525
      %v527 = vpop.f32.mrb[0].mxu0
      %v528 = vpop.f32.mrb[0].mxu0
      %v529 = vadd.f32 0.0, %v528
      %v530 = vpop.f32.mrb[0].mxu0
      %531 = vmatprep.mubr.bf16.mxu0 0
      %532 = vmatmul.mubr.bf16.gmra.mrb[0].mxu0 %v475
      %v533 = vpop.f32.mrb[0].mxu0
      %v534 = vadd.f32 0.0, %v533
      %v535 = vpop.f32.mrb[0].mxu0
      %v536 = vpop.f32.mrb[0].mxu0
      %v537 = vadd.f32 0.0, %v536
      %v538 = vpop.f32.mrb[0].mxu0
      %539 = vmatprep.mubr.bf16.mxu0 0
      %540 = vmatmul.mubr.bf16.gmra.mrb[0].mxu0 %v478
      %v541 = vpop.f32.mrb[0].mxu0
      %v542 = vadd.f32 0.0, %v541
      %v543 = vpop.f32.mrb[0].mxu0
      %v544 = vpop.f32.mrb[0].mxu0
      %v545 = vadd.f32 0.0, %v544
      %v546 = vpop.f32.mrb[0].mxu0
      %547 = vmatprep.mubr.bf16.mxu0 0
      %548 = vmatmul.mubr.bf16.gmra.mrb[0].mxu0 %v481
      %v549 = vpop.f32.mrb[0].mxu0
      %v550 = vadd.f32 0.0, %v549
      %v551 = vpop.f32.mrb[0].mxu0
      %v552 = vpop.f32.mrb[0].mxu0
      %v553 = vadd.f32 0.0, %v552
      %v554 = vpop.f32.mrb[0].mxu0
      %555 = vdwg.mxu0
      %v556 = vadd.f32 %v409, %v518
      %v557 = vadd.f32 %v412, %v521
      %v558 = vadd.f32 %v417, %v526
      %v559 = vadd.f32 %v420, %v529
      %v560 = vadd.f32 %v425, %v534
      %v561 = vadd.f32 %v428, %v537
      %v562 = vadd.f32 %v433, %v542
      %v563 = vadd.f32 %v436, %v545
      %v564 = vadd.f32 %v441, %v550
      %v565 = vadd.f32 %v444, %v553
      %s566 = scalar_lea.vmem %s1, 24
      %v567 = vld [vmem:[%s566] sm:$0xf]
      %v568 = vld [vmem:[%s566 + $0x4] sm:$0xf]
      %v570 = vunpack.c.l.b16 %v183
      %v571 = vpack.c.b16 %v203, %v202
      %v572 = vpack.c.b16 %v205, %v204
      %v573 = vpack.c.b16 %v207, %v206
      %v574 = vpack.c.b16 %v209, %v208
      %v575 = vpack.c.b16 %v211, %v210
      %v576 = vpack.c.b16 %v570, %v570
      %v577 = vrot.slane %v571, 1
      %v578 = vrot.slane %v572, 1
      %v579 = vsel %vm450, %v577, %v578
      %v580 = vrot.slane %v573, 1
      %v581 = vsel %vm450, %v578, %v580
      %v582 = vrot.slane %v574, 1
      %v583 = vsel %vm450, %v580, %v582
      %v584 = vrot.slane %v575, 1
      %v585 = vsel %vm450, %v582, %v584
      %v586 = vrot.slane %v576, 1
      %v587 = vsel %vm450, %v584, %v586
      %v590 = vunpack.c.l.b16 %v567
      %v591 = vunpack.c.l.b16 %v568
      %v592 = vpack.c.b16 %v591, %v590
      %v595 = vsel %vm269, %v579, 0
      %v598 = vsel %vm269, %v581, 0
      %v601 = vsel %vm269, %v583, 0
      %v604 = vsel %vm269, %v585, 0
      %v607 = vsel %vm269, %v587, 0
      %609 = vmatprep.subr.bf16.mxu0 0
      %610 = vmatpush1.bf16.msra.mxu0 %v592
      %611 = vmatprep.subr.bf16.mxu0 0
      %612 = vmatpush1.bf16.msra.mxu0 0
      %613 = vmatprep.subr.bf16.mxu0 0
      %614 = vmatpush1.bf16.msra.mxu0 0
      %615 = vmatprep.subr.bf16.mxu0 0
      %616 = vmatpush1.bf16.msra.mxu0 0
      %617 = vmatprep.subr.bf16.mxu0 0
      %618 = vmatpush1.bf16.msra.mxu0 0
      %619 = vmatprep.subr.bf16.mxu0 0
      %620 = vmatpush1.bf16.msra.mxu0 0
      %621 = vmatprep.subr.bf16.mxu0 0
      %622 = vmatpush1.bf16.msra.mxu0 0
      %623 = vmatprep.subr.bf16.mxu0 0
      %624 = vmatpush1.bf16.msra.mxu0 0
      %625 = vmatprep.subr.bf16.mxu0 0
      %626 = vmatpush1.bf16.msra.mxu0 0
      %627 = vmatprep.subr.bf16.mxu0 0
      %628 = vmatpush1.bf16.msra.mxu0 0
      %629 = vmatprep.subr.bf16.mxu0 0
      %630 = vmatpush1.bf16.msra.mxu0 0
      %631 = vmatprep.subr.bf16.mxu0 0
      %632 = vmatpush1.bf16.msra.mxu0 0
      %633 = vmatprep.subr.bf16.mxu0 0
      %634 = vmatpush1.bf16.msra.mxu0 0
      %635 = vmatprep.subr.bf16.mxu0 0
      %636 = vmatpush1.bf16.msra.mxu0 0
      %637 = vmatprep.subr.bf16.mxu0 0
      %638 = vmatpush1.bf16.msra.mxu0 0
      %639 = vmatprep.subr.bf16.mxu0 0
      %640 = vmatpush1.bf16.msra.mxu0 0
      %641 = vmatprep.mubr.bf16.mxu0 0
      %642 = vmatmul.mubr.bf16.gmra.mrb[0].mxu0 %v595
      %v643 = vpop.f32.mrb[0].mxu0
      %v644 = vadd.f32 0.0, %v643
      %v645 = vpop.f32.mrb[0].mxu0
      %v646 = vpop.f32.mrb[0].mxu0
      %v647 = vadd.f32 0.0, %v646
      %v648 = vpop.f32.mrb[0].mxu0
      %649 = vmatprep.mubr.bf16.mxu0 0
      %650 = vmatmul.mubr.bf16.gmra.mrb[0].mxu0 %v598
      %v651 = vpop.f32.mrb[0].mxu0
      %v652 = vadd.f32 0.0, %v651
      %v653 = vpop.f32.mrb[0].mxu0
      %v654 = vpop.f32.mrb[0].mxu0
      %v655 = vadd.f32 0.0, %v654
      %v656 = vpop.f32.mrb[0].mxu0
      %657 = vmatprep.mubr.bf16.mxu0 0
      %658 = vmatmul.mubr.bf16.gmra.mrb[0].mxu0 %v601
      %v659 = vpop.f32.mrb[0].mxu0
      %v660 = vadd.f32 0.0, %v659
      %v661 = vpop.f32.mrb[0].mxu0
      %v662 = vpop.f32.mrb[0].mxu0
      %v663 = vadd.f32 0.0, %v662
      %v664 = vpop.f32.mrb[0].mxu0
      %665 = vmatprep.mubr.bf16.mxu0 0
      %666 = vmatmul.mubr.bf16.gmra.mrb[0].mxu0 %v604
      %v667 = vpop.f32.mrb[0].mxu0
      %v668 = vadd.f32 0.0, %v667
      %v669 = vpop.f32.mrb[0].mxu0
      %v670 = vpop.f32.mrb[0].mxu0
      %v671 = vadd.f32 0.0, %v670
      %v672 = vpop.f32.mrb[0].mxu0
      %673 = vmatprep.mubr.bf16.mxu0 0
      %674 = vmatmul.mubr.bf16.gmra.mrb[0].mxu0 %v607
      %v675 = vpop.f32.mrb[0].mxu0
      %v676 = vadd.f32 0.0, %v675
      %v677 = vpop.f32.mrb[0].mxu0
      %v678 = vpop.f32.mrb[0].mxu0
      %v679 = vadd.f32 0.0, %v678
      %v680 = vpop.f32.mrb[0].mxu0
      %681 = vdwg.mxu0
      %v682 = vadd.f32 %v556, %v644
      %v683 = vadd.f32 %v557, %v647
      %v684 = vadd.f32 %v558, %v652
      %v685 = vadd.f32 %v559, %v655
      %v686 = vadd.f32 %v560, %v660
      %v687 = vadd.f32 %v561, %v663
      %v688 = vadd.f32 %v562, %v668
      %v689 = vadd.f32 %v563, %v671
      %v690 = vadd.f32 %v564, %v676
      %v691 = vadd.f32 %v565, %v679
      %s692 = scalar_lea.vmem %s1, 32
      %v693 = vld [vmem:[%s692] sm:$0xf]
      %v694 = vld [vmem:[%s692 + $0x4] sm:$0xf]
      %vm695 = vsmask.f32 6400
      %v697 = vshrl.u32 %v571, 16
      %v699 = vrot.slane %v697, 1
      %v700 = vshll.u32 %v571, 16
      %v702 = vrot.slane %v700, 2
      %v703 = vor.u32 %v699, %v702
      %v705 = vshrl.u32 %v572, 16
      %v707 = vrot.slane %v705, 1
      %v708 = vshll.u32 %v572, 16
      %v710 = vrot.slane %v708, 2
      %v711 = vor.u32 %v707, %v710
      %v712 = vsel %vm695, %v703, %v711
      %v714 = vshrl.u32 %v573, 16
      %v716 = vrot.slane %v714, 1
      %v717 = vshll.u32 %v573, 16
      %v719 = vrot.slane %v717, 2
      %v720 = vor.u32 %v716, %v719
      %v721 = vsel %vm695, %v711, %v720
      %v723 = vshrl.u32 %v574, 16
      %v725 = vrot.slane %v723, 1
      %v726 = vshll.u32 %v574, 16
      %v728 = vrot.slane %v726, 2
      %v729 = vor.u32 %v725, %v728
      %v730 = vsel %vm695, %v720, %v729
      %v732 = vshrl.u32 %v575, 16
      %v734 = vrot.slane %v732, 1
      %v735 = vshll.u32 %v575, 16
      %v737 = vrot.slane %v735, 2
      %v738 = vor.u32 %v734, %v737
      %v739 = vsel %vm695, %v729, %v738
      %v741 = vshrl.u32 %v576, 16
      %v743 = vrot.slane %v741, 1
      %v744 = vshll.u32 %v576, 16
      %v746 = vrot.slane %v744, 2
      %v747 = vor.u32 %v743, %v746
      %v748 = vsel %vm695, %v738, %v747
      %v751 = vunpack.c.l.b16 %v693
      %v752 = vunpack.c.l.b16 %v694
      %v753 = vpack.c.b16 %v752, %v751
      %v756 = vsel %vm269, %v712, 0
      %v759 = vsel %vm269, %v721, 0
      %v762 = vsel %vm269, %v730, 0
      %v765 = vsel %vm269, %v739, 0
      %v768 = vsel %vm269, %v748, 0
      %770 = vmatprep.subr.bf16.mxu0 0
      %771 = vmatpush1.bf16.msra.mxu0 %v753
      %772 = vmatprep.subr.bf16.mxu0 0
      %773 = vmatpush1.bf16.msra.mxu0 0
      %774 = vmatprep.subr.bf16.mxu0 0
      %775 = vmatpush1.bf16.msra.mxu0 0
      %776 = vmatprep.subr.bf16.mxu0 0
      %777 = vmatpush1.bf16.msra.mxu0 0
      %778 = vmatprep.subr.bf16.mxu0 0
      %779 = vmatpush1.bf16.msra.mxu0 0
      %780 = vmatprep.subr.bf16.mxu0 0
      %781 = vmatpush1.bf16.msra.mxu0 0
      %782 = vmatprep.subr.bf16.mxu0 0
      %783 = vmatpush1.bf16.msra.mxu0 0
      %784 = vmatprep.subr.bf16.mxu0 0
      %785 = vmatpush1.bf16.msra.mxu0 0
      %786 = vmatprep.subr.bf16.mxu0 0
      %787 = vmatpush1.bf16.msra.mxu0 0
      %788 = vmatprep.subr.bf16.mxu0 0
      %789 = vmatpush1.bf16.msra.mxu0 0
      %790 = vmatprep.subr.bf16.mxu0 0
      %791 = vmatpush1.bf16.msra.mxu0 0
      %792 = vmatprep.subr.bf16.mxu0 0
      %793 = vmatpush1.bf16.msra.mxu0 0
      %794 = vmatprep.subr.bf16.mxu0 0
      %795 = vmatpush1.bf16.msra.mxu0 0
      %796 = vmatprep.subr.bf16.mxu0 0
      %797 = vmatpush1.bf16.msra.mxu0 0
      %798 = vmatprep.subr.bf16.mxu0 0
      %799 = vmatpush1.bf16.msra.mxu0 0
      %800 = vmatprep.subr.bf16.mxu0 0
      %801 = vmatpush1.bf16.msra.mxu0 0
      %802 = vmatprep.mubr.bf16.mxu0 0
      %803 = vmatmul.mubr.bf16.gmra.mrb[0].mxu0 %v756
      %v804 = vpop.f32.mrb[0].mxu0
      %v805 = vadd.f32 0.0, %v804
      %v806 = vpop.f32.mrb[0].mxu0
      %v807 = vpop.f32.mrb[0].mxu0
      %v808 = vadd.f32 0.0, %v807
      %v809 = vpop.f32.mrb[0].mxu0
      %810 = vmatprep.mubr.bf16.mxu0 0
      %811 = vmatmul.mubr.bf16.gmra.mrb[0].mxu0 %v759
      %v812 = vpop.f32.mrb[0].mxu0
      %v813 = vadd.f32 0.0, %v812
      %v814 = vpop.f32.mrb[0].mxu0
      %v815 = vpop.f32.mrb[0].mxu0
      %v816 = vadd.f32 0.0, %v815
      %v817 = vpop.f32.mrb[0].mxu0
      %818 = vmatprep.mubr.bf16.mxu0 0
      %819 = vmatmul.mubr.bf16.gmra.mrb[0].mxu0 %v762
      %v820 = vpop.f32.mrb[0].mxu0
      %v821 = vadd.f32 0.0, %v820
      %v822 = vpop.f32.mrb[0].mxu0
      %v823 = vpop.f32.mrb[0].mxu0
      %v824 = vadd.f32 0.0, %v823
      %v825 = vpop.f32.mrb[0].mxu0
      %826 = vmatprep.mubr.bf16.mxu0 0
      %827 = vmatmul.mubr.bf16.gmra.mrb[0].mxu0 %v765
      %v828 = vpop.f32.mrb[0].mxu0
      %v829 = vadd.f32 0.0, %v828
      %v830 = vpop.f32.mrb[0].mxu0
      %v831 = vpop.f32.mrb[0].mxu0
      %v832 = vadd.f32 0.0, %v831
      %v833 = vpop.f32.mrb[0].mxu0
      %834 = vmatprep.mubr.bf16.mxu0 0
      %835 = vmatmul.mubr.bf16.gmra.mrb[0].mxu0 %v768
      %v836 = vpop.f32.mrb[0].mxu0
      %v837 = vadd.f32 0.0, %v836
      %v838 = vpop.f32.mrb[0].mxu0
      %v839 = vpop.f32.mrb[0].mxu0
      %v840 = vadd.f32 0.0, %v839
      %v841 = vpop.f32.mrb[0].mxu0
      %842 = vdwg.mxu0
      %v843 = vadd.f32 %v682, %v805
      %v844 = vadd.f32 %v683, %v808
      %v845 = vadd.f32 %v684, %v813
      %v846 = vadd.f32 %v685, %v816
      %v847 = vadd.f32 %v686, %v821
      %v848 = vadd.f32 %v687, %v824
      %v849 = vadd.f32 %v688, %v829
      %v850 = vadd.f32 %v689, %v832
      %v851 = vadd.f32 %v690, %v837
      %v852 = vadd.f32 %v691, %v840
      %s853 = scalar_lea.vmem %s1, 40
      %v854 = vld [vmem:[%s853] sm:$0xf]
      %v855 = vld [vmem:[%s853 + $0x4] sm:$0xf]
      %vm856 = vcmask 1045504
      %v857 = vrot.slane %v571, 2
      %v858 = vrot.slane %v572, 2
      %v859 = vsel %vm856, %v857, %v858
      %v860 = vrot.slane %v573, 2
      %v861 = vsel %vm856, %v858, %v860
      %v862 = vrot.slane %v574, 2
      %v863 = vsel %vm856, %v860, %v862
      %v864 = vrot.slane %v575, 2
      %v865 = vsel %vm856, %v862, %v864
      %v866 = vrot.slane %v576, 2
      %v867 = vsel %vm856, %v864, %v866
      %v870 = vunpack.c.l.b16 %v854
      %v871 = vunpack.c.l.b16 %v855
      %v872 = vpack.c.b16 %v871, %v870
      %v875 = vsel %vm269, %v859, 0
      %v878 = vsel %vm269, %v861, 0
      %v881 = vsel %vm269, %v863, 0
      %v884 = vsel %vm269, %v865, 0
      %v887 = vsel %vm269, %v867, 0
      %889 = vmatprep.subr.bf16.mxu0 0
      %890 = vmatpush1.bf16.msra.mxu0 %v872
      %891 = vmatprep.subr.bf16.mxu0 0
      %892 = vmatpush1.bf16.msra.mxu0 0
      %893 = vmatprep.subr.bf16.mxu0 0
      %894 = vmatpush1.bf16.msra.mxu0 0
      %895 = vmatprep.subr.bf16.mxu0 0
      %896 = vmatpush1.bf16.msra.mxu0 0
      %897 = vmatprep.subr.bf16.mxu0 0
      %898 = vmatpush1.bf16.msra.mxu0 0
      %899 = vmatprep.subr.bf16.mxu0 0
      %900 = vmatpush1.bf16.msra.mxu0 0
      %901 = vmatprep.subr.bf16.mxu0 0
      %902 = vmatpush1.bf16.msra.mxu0 0
      %903 = vmatprep.subr.bf16.mxu0 0
      %904 = vmatpush1.bf16.msra.mxu0 0
      %905 = vmatprep.subr.bf16.mxu0 0
      %906 = vmatpush1.bf16.msra.mxu0 0
      %907 = vmatprep.subr.bf16.mxu0 0
      %908 = vmatpush1.bf16.msra.mxu0 0
      %909 = vmatprep.subr.bf16.mxu0 0
      %910 = vmatpush1.bf16.msra.mxu0 0
      %911 = vmatprep.subr.bf16.mxu0 0
      %912 = vmatpush1.bf16.msra.mxu0 0
      %913 = vmatprep.subr.bf16.mxu0 0
      %914 = vmatpush1.bf16.msra.mxu0 0
      %915 = vmatprep.subr.bf16.mxu0 0
      %916 = vmatpush1.bf16.msra.mxu0 0
      %917 = vmatprep.subr.bf16.mxu0 0
      %918 = vmatpush1.bf16.msra.mxu0 0
      %919 = vmatprep.subr.bf16.mxu0 0
      %920 = vmatpush1.bf16.msra.mxu0 0
      %921 = vmatprep.mubr.bf16.mxu0 0
      %922 = vmatmul.mubr.bf16.gmra.mrb[0].mxu0 %v875
      %v923 = vpop.f32.mrb[0].mxu0
      %v924 = vadd.f32 0.0, %v923
      %v925 = vpop.f32.mrb[0].mxu0
      %v926 = vpop.f32.mrb[0].mxu0
      %v927 = vadd.f32 0.0, %v926
      %v928 = vpop.f32.mrb[0].mxu0
      %929 = vmatprep.mubr.bf16.mxu0 0
      %930 = vmatmul.mubr.bf16.gmra.mrb[0].mxu0 %v878
      %v931 = vpop.f32.mrb[0].mxu0
      %v932 = vadd.f32 0.0, %v931
      %v933 = vpop.f32.mrb[0].mxu0
      %v934 = vpop.f32.mrb[0].mxu0
      %v935 = vadd.f32 0.0, %v934
      %v936 = vpop.f32.mrb[0].mxu0
      %937 = vmatprep.mubr.bf16.mxu0 0
      %938 = vmatmul.mubr.bf16.gmra.mrb[0].mxu0 %v881
      %v939 = vpop.f32.mrb[0].mxu0
      %v940 = vadd.f32 0.0, %v939
      %v941 = vpop.f32.mrb[0].mxu0
      %v942 = vpop.f32.mrb[0].mxu0
      %v943 = vadd.f32 0.0, %v942
      %v944 = vpop.f32.mrb[0].mxu0
      %945 = vmatprep.mubr.bf16.mxu0 0
      %946 = vmatmul.mubr.bf16.gmra.mrb[0].mxu0 %v884
      %v947 = vpop.f32.mrb[0].mxu0
      %v948 = vadd.f32 0.0, %v947
      %v949 = vpop.f32.mrb[0].mxu0
      %v950 = vpop.f32.mrb[0].mxu0
      %v951 = vadd.f32 0.0, %v950
      %v952 = vpop.f32.mrb[0].mxu0
      %953 = vmatprep.mubr.bf16.mxu0 0
      %954 = vmatmul.mubr.bf16.gmra.mrb[0].mxu0 %v887
      %v955 = vpop.f32.mrb[0].mxu0
      %v956 = vadd.f32 0.0, %v955
      %v957 = vpop.f32.mrb[0].mxu0
      %v958 = vpop.f32.mrb[0].mxu0
      %v959 = vadd.f32 0.0, %v958
      %v960 = vpop.f32.mrb[0].mxu0
      %961 = vdwg.mxu0
      %v962 = vadd.f32 %v843, %v924
      %v963 = vadd.f32 %v844, %v927
      %v964 = vadd.f32 %v845, %v932
      %v965 = vadd.f32 %v846, %v935
      %v966 = vadd.f32 %v847, %v940
      %v967 = vadd.f32 %v848, %v943
      %v968 = vadd.f32 %v849, %v948
      %v969 = vadd.f32 %v850, %v951
      %v970 = vadd.f32 %v851, %v956
      %v971 = vadd.f32 %v852, %v959
      %s972 = scalar_lea.vmem %s1, 48
      %v973 = vld [vmem:[%s972] sm:$0xf]
      %v974 = vld [vmem:[%s972 + $0x4] sm:$0xf]
      %v976 = vunpack.c.l.b16 %v184
      %v977 = vpack.c.b16 %v570, %v211
      %v978 = vpack.c.b16 %v976, %v976
      %v979 = vrot.slane %v213, 2
      %v980 = vrot.slane %v214, 2
      %v981 = vsel %vm856, %v979, %v980
      %v982 = vrot.slane %v215, 2
      %v983 = vsel %vm856, %v980, %v982
      %v984 = vrot.slane %v216, 2
      %v985 = vsel %vm856, %v982, %v984
      %v986 = vrot.slane %v977, 2
      %v987 = vsel %vm856, %v984, %v986
      %v988 = vrot.slane %v978, 2
      %v989 = vsel %vm856, %v986, %v988
      %v992 = vunpack.c.l.b16 %v973
      %v993 = vunpack.c.l.b16 %v974
      %v994 = vpack.c.b16 %v993, %v992
      %v997 = vsel %vm269, %v981, 0
      %v1000 = vsel %vm269, %v983, 0
      %v1003 = vsel %vm269, %v985, 0
      %v1006 = vsel %vm269, %v987, 0
      %v1009 = vsel %vm269, %v989, 0
      %1011 = vmatprep.subr.bf16.mxu0 0
      %1012 = vmatpush1.bf16.msra.mxu0 %v994
      %1013 = vmatprep.subr.bf16.mxu0 0
      %1014 = vmatpush1.bf16.msra.mxu0 0
      %1015 = vmatprep.subr.bf16.mxu0 0
      %1016 = vmatpush1.bf16.msra.mxu0 0
      %1017 = vmatprep.subr.bf16.mxu0 0
      %1018 = vmatpush1.bf16.msra.mxu0 0
      %1019 = vmatprep.subr.bf16.mxu0 0
      %1020 = vmatpush1.bf16.msra.mxu0 0
      %1021 = vmatprep.subr.bf16.mxu0 0
      %1022 = vmatpush1.bf16.msra.mxu0 0
      %1023 = vmatprep.subr.bf16.mxu0 0
      %1024 = vmatpush1.bf16.msra.mxu0 0
      %1025 = vmatprep.subr.bf16.mxu0 0
      %1026 = vmatpush1.bf16.msra.mxu0 0
      %1027 = vmatprep.subr.bf16.mxu0 0
      %1028 = vmatpush1.bf16.msra.mxu0 0
      %1029 = vmatprep.subr.bf16.mxu0 0
      %1030 = vmatpush1.bf16.msra.mxu0 0
      %1031 = vmatprep.subr.bf16.mxu0 0
      %1032 = vmatpush1.bf16.msra.mxu0 0
      %1033 = vmatprep.subr.bf16.mxu0 0
      %1034 = vmatpush1.bf16.msra.mxu0 0
      %1035 = vmatprep.subr.bf16.mxu0 0
      %1036 = vmatpush1.bf16.msra.mxu0 0
      %1037 = vmatprep.subr.bf16.mxu0 0
      %1038 = vmatpush1.bf16.msra.mxu0 0
      %1039 = vmatprep.subr.bf16.mxu0 0
      %1040 = vmatpush1.bf16.msra.mxu0 0
      %1041 = vmatprep.subr.bf16.mxu0 0
      %1042 = vmatpush1.bf16.msra.mxu0 0
      %1043 = vmatprep.mubr.bf16.mxu0 0
      %1044 = vmatmul.mubr.bf16.gmra.mrb[0].mxu0 %v997
      %v1045 = vpop.f32.mrb[0].mxu0
      %v1046 = vadd.f32 0.0, %v1045
      %v1047 = vpop.f32.mrb[0].mxu0
      %v1048 = vpop.f32.mrb[0].mxu0
      %v1049 = vadd.f32 0.0, %v1048
      %v1050 = vpop.f32.mrb[0].mxu0
      %1051 = vmatprep.mubr.bf16.mxu0 0
      %1052 = vmatmul.mubr.bf16.gmra.mrb[0].mxu0 %v1000
      %v1053 = vpop.f32.mrb[0].mxu0
      %v1054 = vadd.f32 0.0, %v1053
      %v1055 = vpop.f32.mrb[0].mxu0
      %v1056 = vpop.f32.mrb[0].mxu0
      %v1057 = vadd.f32 0.0, %v1056
      %v1058 = vpop.f32.mrb[0].mxu0
      %1059 = vmatprep.mubr.bf16.mxu0 0
      %1060 = vmatmul.mubr.bf16.gmra.mrb[0].mxu0 %v1003
      %v1061 = vpop.f32.mrb[0].mxu0
      %v1062 = vadd.f32 0.0, %v1061
      %v1063 = vpop.f32.mrb[0].mxu0
      %v1064 = vpop.f32.mrb[0].mxu0
      %v1065 = vadd.f32 0.0, %v1064
      %v1066 = vpop.f32.mrb[0].mxu0
      %1067 = vmatprep.mubr.bf16.mxu0 0
      %1068 = vmatmul.mubr.bf16.gmra.mrb[0].mxu0 %v1006
      %v1069 = vpop.f32.mrb[0].mxu0
      %v1070 = vadd.f32 0.0, %v1069
      %v1071 = vpop.f32.mrb[0].mxu0
      %v1072 = vpop.f32.mrb[0].mxu0
      %v1073 = vadd.f32 0.0, %v1072
      %v1074 = vpop.f32.mrb[0].mxu0
      %1075 = vmatprep.mubr.bf16.mxu0 0
      %1076 = vmatmul.mubr.bf16.gmra.mrb[0].mxu0 %v1009
      %v1077 = vpop.f32.mrb[0].mxu0
      %v1078 = vadd.f32 0.0, %v1077
      %v1079 = vpop.f32.mrb[0].mxu0
      %v1080 = vpop.f32.mrb[0].mxu0
      %v1081 = vadd.f32 0.0, %v1080
      %v1082 = vpop.f32.mrb[0].mxu0
      %1083 = vdwg.mxu0
      %v1084 = vadd.f32 %v962, %v1046
      %v1085 = vadd.f32 %v963, %v1049
      %v1086 = vadd.f32 %v964, %v1054
      %v1087 = vadd.f32 %v965, %v1057
      %v1088 = vadd.f32 %v966, %v1062
      %v1089 = vadd.f32 %v967, %v1065
      %v1090 = vadd.f32 %v968, %v1070
      %v1091 = vadd.f32 %v969, %v1073
      %v1092 = vadd.f32 %v970, %v1078
      %v1093 = vadd.f32 %v971, %v1081
      %s1094 = scalar_lea.vmem %s1, 56
      %v1095 = vld [vmem:[%s1094] sm:$0xf]
      %v1096 = vld [vmem:[%s1094 + $0x4] sm:$0xf]
      %vm1097 = vsmask.f32 5376
      %v1098 = vrot.slane %v231, 2
      %v1099 = vrot.slane %v227, 3
      %v1100 = vor.u32 %v1098, %v1099
      %v1101 = vrot.slane %v239, 2
      %v1102 = vrot.slane %v235, 3
      %v1103 = vor.u32 %v1101, %v1102
      %v1104 = vsel %vm1097, %v1100, %v1103
      %v1105 = vrot.slane %v247, 2
      %v1106 = vrot.slane %v243, 3
      %v1107 = vor.u32 %v1105, %v1106
      %v1108 = vsel %vm1097, %v1103, %v1107
      %v1109 = vrot.slane %v255, 2
      %v1110 = vrot.slane %v251, 3
      %v1111 = vor.u32 %v1109, %v1110
      %v1112 = vsel %vm1097, %v1107, %v1111
      %v1114 = vshrl.u32 %v977, 16
      %v1116 = vrot.slane %v1114, 2
      %v1117 = vshll.u32 %v977, 16
      %v1119 = vrot.slane %v1117, 3
      %v1120 = vor.u32 %v1116, %v1119
      %v1121 = vsel %vm1097, %v1111, %v1120
      %v1123 = vshrl.u32 %v978, 16
      %v1125 = vrot.slane %v1123, 2
      %v1126 = vshll.u32 %v978, 16
      %v1128 = vrot.slane %v1126, 3
      %v1129 = vor.u32 %v1125, %v1128
      %v1130 = vsel %vm1097, %v1120, %v1129
      %v1133 = vunpack.c.l.b16 %v1095
      %v1134 = vunpack.c.l.b16 %v1096
      %v1135 = vpack.c.b16 %v1134, %v1133
      %v1138 = vsel %vm269, %v1104, 0
      %v1141 = vsel %vm269, %v1108, 0
      %v1144 = vsel %vm269, %v1112, 0
      %v1147 = vsel %vm269, %v1121, 0
      %v1150 = vsel %vm269, %v1130, 0
      %1152 = vmatprep.subr.bf16.mxu0 0
      %1153 = vmatpush1.bf16.msra.mxu0 %v1135
      %1154 = vmatprep.subr.bf16.mxu0 0
      %1155 = vmatpush1.bf16.msra.mxu0 0
      %1156 = vmatprep.subr.bf16.mxu0 0
      %1157 = vmatpush1.bf16.msra.mxu0 0
      %1158 = vmatprep.subr.bf16.mxu0 0
      %1159 = vmatpush1.bf16.msra.mxu0 0
      %1160 = vmatprep.subr.bf16.mxu0 0
      %1161 = vmatpush1.bf16.msra.mxu0 0
      %1162 = vmatprep.subr.bf16.mxu0 0
      %1163 = vmatpush1.bf16.msra.mxu0 0
      %1164 = vmatprep.subr.bf16.mxu0 0
      %1165 = vmatpush1.bf16.msra.mxu0 0
      %1166 = vmatprep.subr.bf16.mxu0 0
      %1167 = vmatpush1.bf16.msra.mxu0 0
      %1168 = vmatprep.subr.bf16.mxu0 0
      %1169 = vmatpush1.bf16.msra.mxu0 0
      %1170 = vmatprep.subr.bf16.mxu0 0
      %1171 = vmatpush1.bf16.msra.mxu0 0
      %1172 = vmatprep.subr.bf16.mxu0 0
      %1173 = vmatpush1.bf16.msra.mxu0 0
      %1174 = vmatprep.subr.bf16.mxu0 0
      %1175 = vmatpush1.bf16.msra.mxu0 0
      %1176 = vmatprep.subr.bf16.mxu0 0
      %1177 = vmatpush1.bf16.msra.mxu0 0
      %1178 = vmatprep.subr.bf16.mxu0 0
      %1179 = vmatpush1.bf16.msra.mxu0 0
      %1180 = vmatprep.subr.bf16.mxu0 0
      %1181 = vmatpush1.bf16.msra.mxu0 0
      %1182 = vmatprep.subr.bf16.mxu0 0
      %1183 = vmatpush1.bf16.msra.mxu0 0
      %1184 = vmatprep.mubr.bf16.mxu0 0
      %1185 = vmatmul.mubr.bf16.gmra.mrb[0].mxu0 %v1138
      %v1186 = vpop.f32.mrb[0].mxu0
      %v1187 = vadd.f32 0.0, %v1186
      %v1188 = vpop.f32.mrb[0].mxu0
      %v1189 = vpop.f32.mrb[0].mxu0
      %v1190 = vadd.f32 0.0, %v1189
      %v1191 = vpop.f32.mrb[0].mxu0
      %1192 = vmatprep.mubr.bf16.mxu0 0
      %1193 = vmatmul.mubr.bf16.gmra.mrb[0].mxu0 %v1141
      %v1194 = vpop.f32.mrb[0].mxu0
      %v1195 = vadd.f32 0.0, %v1194
      %v1196 = vpop.f32.mrb[0].mxu0
      %v1197 = vpop.f32.mrb[0].mxu0
      %v1198 = vadd.f32 0.0, %v1197
      %v1199 = vpop.f32.mrb[0].mxu0
      %1200 = vmatprep.mubr.bf16.mxu0 0
      %1201 = vmatmul.mubr.bf16.gmra.mrb[0].mxu0 %v1144
      %v1202 = vpop.f32.mrb[0].mxu0
      %v1203 = vadd.f32 0.0, %v1202
      %v1204 = vpop.f32.mrb[0].mxu0
      %v1205 = vpop.f32.mrb[0].mxu0
      %v1206 = vadd.f32 0.0, %v1205
      %v1207 = vpop.f32.mrb[0].mxu0
      %1208 = vmatprep.mubr.bf16.mxu0 0
      %1209 = vmatmul.mubr.bf16.gmra.mrb[0].mxu0 %v1147
      %v1210 = vpop.f32.mrb[0].mxu0
      %v1211 = vadd.f32 0.0, %v1210
      %v1212 = vpop.f32.mrb[0].mxu0
      %v1213 = vpop.f32.mrb[0].mxu0
      %v1214 = vadd.f32 0.0, %v1213
      %v1215 = vpop.f32.mrb[0].mxu0
      %1216 = vmatprep.mubr.bf16.mxu0 0
      %1217 = vmatmul.mubr.bf16.gmra.mrb[0].mxu0 %v1150
      %v1218 = vpop.f32.mrb[0].mxu0
      %v1219 = vadd.f32 0.0, %v1218
      %v1220 = vpop.f32.mrb[0].mxu0
      %v1221 = vpop.f32.mrb[0].mxu0
      %v1222 = vadd.f32 0.0, %v1221
      %v1223 = vpop.f32.mrb[0].mxu0
      %1224 = vdwg.mxu0
      %v1225 = vadd.f32 %v1084, %v1187
      %v1226 = vadd.f32 %v1085, %v1190
      %v1227 = vadd.f32 %v1086, %v1195
      %v1228 = vadd.f32 %v1087, %v1198
      %v1229 = vadd.f32 %v1088, %v1203
      %v1230 = vadd.f32 %v1089, %v1206
      %v1231 = vadd.f32 %v1090, %v1211
      %v1232 = vadd.f32 %v1091, %v1214
      %v1233 = vadd.f32 %v1092, %v1219
      %v1234 = vadd.f32 %v1093, %v1222
      %s1235 = scalar_lea.vmem %s1, 64
      %v1236 = vld [vmem:[%s1235] sm:$0xf]
      %v1237 = vld [vmem:[%s1235 + $0x4] sm:$0xf]
      %vm1238 = vcmask 1044480
      %v1239 = vrot.slane %v213, 3
      %v1240 = vrot.slane %v214, 3
      %v1241 = vsel %vm1238, %v1239, %v1240
      %v1242 = vrot.slane %v215, 3
      %v1243 = vsel %vm1238, %v1240, %v1242
      %v1244 = vrot.slane %v216, 3
      %v1245 = vsel %vm1238, %v1242, %v1244
      %v1246 = vrot.slane %v977, 3
      %v1247 = vsel %vm1238, %v1244, %v1246
      %v1248 = vrot.slane %v978, 3
      %v1249 = vsel %vm1238, %v1246, %v1248
      %v1252 = vunpack.c.l.b16 %v1236
      %v1253 = vunpack.c.l.b16 %v1237
      %v1254 = vpack.c.b16 %v1253, %v1252
      %v1257 = vsel %vm269, %v1241, 0
      %v1260 = vsel %vm269, %v1243, 0
      %v1263 = vsel %vm269, %v1245, 0
      %v1266 = vsel %vm269, %v1247, 0
      %v1269 = vsel %vm269, %v1249, 0
      %1271 = vmatprep.subr.bf16.mxu0 0
      %1272 = vmatpush1.bf16.msra.mxu0 %v1254
      %1273 = vmatprep.subr.bf16.mxu0 0
      %1274 = vmatpush1.bf16.msra.mxu0 0
      %1275 = vmatprep.subr.bf16.mxu0 0
      %1276 = vmatpush1.bf16.msra.mxu0 0
      %1277 = vmatprep.subr.bf16.mxu0 0
      %1278 = vmatpush1.bf16.msra.mxu0 0
      %1279 = vmatprep.subr.bf16.mxu0 0
      %1280 = vmatpush1.bf16.msra.mxu0 0
      %1281 = vmatprep.subr.bf16.mxu0 0
      %1282 = vmatpush1.bf16.msra.mxu0 0
      %1283 = vmatprep.subr.bf16.mxu0 0
      %1284 = vmatpush1.bf16.msra.mxu0 0
      %1285 = vmatprep.subr.bf16.mxu0 0
      %1286 = vmatpush1.bf16.msra.mxu0 0
      %1287 = vmatprep.subr.bf16.mxu0 0
      %1288 = vmatpush1.bf16.msra.mxu0 0
      %1289 = vmatprep.subr.bf16.mxu0 0
      %1290 = vmatpush1.bf16.msra.mxu0 0
      %1291 = vmatprep.subr.bf16.mxu0 0
      %1292 = vmatpush1.bf16.msra.mxu0 0
      %1293 = vmatprep.subr.bf16.mxu0 0
      %1294 = vmatpush1.bf16.msra.mxu0 0
      %1295 = vmatprep.subr.bf16.mxu0 0
      %1296 = vmatpush1.bf16.msra.mxu0 0
      %1297 = vmatprep.subr.bf16.mxu0 0
      %1298 = vmatpush1.bf16.msra.mxu0 0
      %1299 = vmatprep.subr.bf16.mxu0 0
      %1300 = vmatpush1.bf16.msra.mxu0 0
      %1301 = vmatprep.subr.bf16.mxu0 0
      %1302 = vmatpush1.bf16.msra.mxu0 0
      %1303 = vmatprep.mubr.bf16.mxu0 0
      %1304 = vmatmul.mubr.bf16.gmra.mrb[0].mxu0 %v1257
      %v1305 = vpop.f32.mrb[0].mxu0
      %v1306 = vadd.f32 0.0, %v1305
      %v1307 = vpop.f32.mrb[0].mxu0
      %v1308 = vpop.f32.mrb[0].mxu0
      %v1309 = vadd.f32 0.0, %v1308
      %v1310 = vpop.f32.mrb[0].mxu0
      %1311 = vmatprep.mubr.bf16.mxu0 0
      %1312 = vmatmul.mubr.bf16.gmra.mrb[0].mxu0 %v1260
      %v1313 = vpop.f32.mrb[0].mxu0
      %v1314 = vadd.f32 0.0, %v1313
      %v1315 = vpop.f32.mrb[0].mxu0
      %v1316 = vpop.f32.mrb[0].mxu0
      %v1317 = vadd.f32 0.0, %v1316
      %v1318 = vpop.f32.mrb[0].mxu0
      %1319 = vmatprep.mubr.bf16.mxu0 0
      %1320 = vmatmul.mubr.bf16.gmra.mrb[0].mxu0 %v1263
      %v1321 = vpop.f32.mrb[0].mxu0
      %v1322 = vadd.f32 0.0, %v1321
      %v1323 = vpop.f32.mrb[0].mxu0
      %v1324 = vpop.f32.mrb[0].mxu0
      %v1325 = vadd.f32 0.0, %v1324
      %v1326 = vpop.f32.mrb[0].mxu0
      %1327 = vmatprep.mubr.bf16.mxu0 0
      %1328 = vmatmul.mubr.bf16.gmra.mrb[0].mxu0 %v1266
      %v1329 = vpop.f32.mrb[0].mxu0
      %v1330 = vadd.f32 0.0, %v1329
      %v1331 = vpop.f32.mrb[0].mxu0
      %v1332 = vpop.f32.mrb[0].mxu0
      %v1333 = vadd.f32 0.0, %v1332
      %v1334 = vpop.f32.mrb[0].mxu0
      %1335 = vmatprep.mubr.bf16.mxu0 0
      %1336 = vmatmul.mubr.bf16.gmra.mrb[0].mxu0 %v1269
      %v1337 = vpop.f32.mrb[0].mxu0
      %v1338 = vadd.f32 0.0, %v1337
      %v1339 = vpop.f32.mrb[0].mxu0
      %v1340 = vpop.f32.mrb[0].mxu0
      %v1341 = vadd.f32 0.0, %v1340
      %v1342 = vpop.f32.mrb[0].mxu0
      %1343 = vdwg.mxu0
      %v1344 = vadd.f32 %v1225, %v1306
      %v1345 = vadd.f32 %v1226, %v1309
      %v1346 = vadd.f32 %v1227, %v1314
      %v1347 = vadd.f32 %v1228, %v1317
      %v1348 = vadd.f32 %v1229, %v1322
      %v1349 = vadd.f32 %v1230, %v1325
      %v1350 = vadd.f32 %v1231, %v1330
      %v1351 = vadd.f32 %v1232, %v1333
      %v1352 = vadd.f32 %v1233, %v1338
      %v1353 = vadd.f32 %v1234, %v1341
      %v1354 = vld [vmem:[%s2] sm:$0x1]
      %v1356 = vlaneseq
      %v1357 = vshrl.u32 %v1356, 7
      %v1358 = vsub.s32 0, %v1357
      %v1359 = vrot.slane %v1354, %v1358
      %v1361 = vadd.f32 %v1344, %v1359
      %v1362 = vadd.f32 %v1345, %v1359
      %v1363 = vadd.f32 %v1346, %v1359
      %v1364 = vadd.f32 %v1347, %v1359
      %v1365 = vadd.f32 %v1348, %v1359
      %v1366 = vadd.f32 %v1349, %v1359
      %v1367 = vadd.f32 %v1350, %v1359
      %v1368 = vadd.f32 %v1351, %v1359
      %v1369 = vadd.f32 %v1352, %v1359
      %v1370 = vadd.f32 %v1353, %v1359
      %v1371 = vmax.f32 %v1361, 0.0
      %v1372 = vmax.f32 %v1362, 0.0
      %v1373 = vmax.f32 %v1363, 0.0
      %v1374 = vmax.f32 %v1364, 0.0
      %v1375 = vmax.f32 %v1365, 0.0
      %v1376 = vmax.f32 %v1366, 0.0
      %v1377 = vmax.f32 %v1367, 0.0
      %v1378 = vmax.f32 %v1368, 0.0
      %v1379 = vmax.f32 %v1369, 0.0
      %v1380 = vmax.f32 %v1370, 0.0
      %v1381 = vpack.c.bf16 %v1372, %v1371
      %v1382 = vpack.c.bf16 %v1374, %v1373
      %v1383 = vpack.c.bf16 %v1376, %v1375
      %v1384 = vpack.c.bf16 %v1378, %v1377
      %v1385 = vpack.c.bf16 %v1380, %v1379
      %v1391 = vunpack.c.l.b16 %v1381
      %v1392 = vunpack.c.h.b16 %v1381
      %v1393 = vunpack.c.l.b16 %v1382
      %v1394 = vunpack.c.h.b16 %v1382
      %v1395 = vunpack.c.l.b16 %v1383
      %v1396 = vunpack.c.h.b16 %v1383
      %v1397 = vunpack.c.l.b16 %v1384
      %v1398 = vunpack.c.h.b16 %v1384
      %v1399 = vunpack.c.l.b16 %v1385
      %v1400 = vunpack.c.h.b16 %v1385
      %v1401 = vpack.c.b16 %v1391, %v1391
      %v1402 = vpack.c.b16 %v1392, %v1392
      %v1403 = vpack.c.b16 %v1393, %v1393
      %v1404 = vpack.c.b16 %v1394, %v1394
      %v1405 = vpack.c.b16 %v1395, %v1395
      %v1406 = vpack.c.b16 %v1396, %v1396
      %v1407 = vpack.c.b16 %v1397, %v1397
      %v1408 = vpack.c.b16 %v1398, %v1398
      %v1409 = vpack.c.b16 %v1399, %v1399
      %v1410 = vpack.c.b16 %v1400, %v1400
      %vm1421 = vcmask 60416
      %1422 = vst.msk [vmem:[%s170] sm:$0xf] %vm1421, %v1401
      %1423 = vst.msk [vmem:[%s170 + $0x4] sm:$0xf] %vm1421, %v1402
      %1424 = vst.msk [vmem:[%s170 + $0x8] sm:$0xf] %vm1421, %v1403
      %1425 = vst.msk [vmem:[%s170 + $0xc] sm:$0xf] %vm1421, %v1404
      %1426 = vst.msk [vmem:[%s170 + $0x10] sm:$0xf] %vm1421, %v1405
      %1427 = vst.msk [vmem:[%s170 + $0x14] sm:$0xf] %vm1421, %v1406
      %1428 = vst.msk [vmem:[%s170 + $0x18] sm:$0xf] %vm1421, %v1407
      %1429 = vst.msk [vmem:[%s170 + $0x1c] sm:$0xf] %vm1421, %v1408
      %1430 = vst.msk [vmem:[%s170 + $0x20] sm:$0xf] %vm1421, %v1409
      %1431 = vst.msk [vmem:[%s170 + $0x24] sm:$0xf] %vm1421, %v1410
      %p1432 = scmp.lt.s32.totalorder %s14, 1
      %s1433 = scalar_select %p1432, %s14, 1
      %s1434 = smul.addr %s1433, 10
      %s1435 = smul.addr %s1434, 4
      %s1436 = scalar_lea.vmem %s3, %s1435
      // Predicated region
      $region33: #{pspnet_forward.14} parent=31 // pred_check
        %p1437 = pneg %p100
      $region34: #{pspnet_forward.14} parent=31 // pred_check_branch
        %1439 = sbr.rel (%p1437) target = $region36
      $region35: #{pspnet_forward.14} parent=31 // pred_region
        _
      $region36: #{pspnet_forward.14} parent=31 // pred_fallthru
        _
    $region32: #{pspnet_forward.14} parent=5 // pred_fallthru
      _
    %p1440 = scmp.le.s32.totalorder 2, %s9
    // Predicated region
    $region37: #{pspnet_forward.14} parent=5 // pred_check
      %p1441 = pneg %p1440
    $region38: #{pspnet_forward.14} parent=5 // pred_check_branch
      %1443 = sbr.rel (%p1441) target = $region40
    $region39: #{pspnet_forward.14} parent=5 // pred_region
      %s1444 = ssub.s32 %s9, 2
      // Predicated region
      $region41: #{pspnet_forward.14} parent=39 // pred_check
        %p1445 = pneg %p106
      $region42: #{pspnet_forward.14} parent=39 // pred_check_branch
        %1447 = sbr.rel (%p1445) target = $region44
      $region43: #{pspnet_forward.14} parent=39 // pred_region
        %p1448 = scmp.lt.s32.totalorder %s15, 1
        %s1449 = scalar_select %p1448, %s15, 1
        %s1450 = smul.addr %s1449, 10
        %s1451 = smul.addr %s1450, 4
        %s1452 = scalar_lea.vmem %s3, %s1451
      $region44: #{pspnet_forward.14} parent=39 // pred_fallthru
        _
    $region40: #{pspnet_forward.14} parent=5 // pred_fallthru
      _
  $region6: #{pspnet_forward.14} parent=0 // loop_footer
    %s13 = sadd.s32 1, %s9
  $region7: #{pspnet_forward.14} parent=0 // loop_footer_branch
    %8 = sbr.rel target = $region3
  $region8: #{pspnet_forward.14} parent=0 // loop_exit
    _

// kernel: pspnet_forward.16
$region0: #{pspnet_forward.16}
  #allocation0 [shape = 'u32[]', space=smem, size = 0x4, offset = 0x4, fixed_abs, tag = 'smem constant byte address 0x4 - core index']
  #allocation1 [shape = 'u32[144,128]{1,0:T(1,128)}', space=vmem, size = 0x12000, scoped, tag = 'internal scratch']
  %s0 = inlined_call_operand.vmem [shape: bf16[512,8], index: 0, kind: input, shape index: {}]
  %s1 = inlined_call_operand.vmem [shape: bf16[8,5], index: 1, kind: input, shape index: {}]
  %s2 = inlined_call_operand.vmem [shape: f32[1,5], index: 2, kind: input, shape index: {}]
  %s3 = inlined_call_operand.vmem [shape: bf16[512,5], index: 3, kind: output, shape index: {}]
  %s4 = sld [smem:[#allocation0]]
  $region45: #{pspnet_forward.16} parent=0
    _
  %s6 = ssub.s32 1, %s4
  %s7 = scalar_select 0, %s6, %s4
  loop: start=0, step=1, limit=4
  $region2: #{pspnet_forward.16} parent=0 // loop_pre_header
    _
  $region3: #{pspnet_forward.16} parent=0 // loop_header
    %s9 = sphi 0, %s13
    %p10 = scmp.ge.s32.totalorder %s9, 4
    %s19 = sphi 0, %s21
    %s22 = sphi 0, %s19
    %s23 = sphi 0, %s22
    %s39 = sphi 0, %s23
    %s43 = sphi 0, %s43
    %s45 = sphi 0, %s43
    %s46 = sphi 0, %s45
    %s60 = sphi 0, %s46
    %s64 = sphi 0, %s64
    %s66 = sphi 0, %s64
    %s67 = sphi 0, %s66
    %s81 = sphi 0, %s67
    %s87 = sphi 0, %s89
    %s90 = sphi 0, %s87
    %s91 = sphi 0, %s90
    %s107 = sphi 0, %s91
  $region4: #{pspnet_forward.16} parent=0 // loop_header_branch
    %12 = sbr.rel (%p10) target = $region8
  $region5: #{pspnet_forward.16} parent=0 // loop_body
    %s14 = ssub.s32 %s9, 1
    %s15 = ssub.s32 %s9, 2
    %s16 = sadd.s32 %s9, 1
    %s17 = ssub.s32 %s9, %s16
    %p18 = scmp.eq.s32.totalorder %s17, 0
    %s20 = sadd.s32 %s19, 1
    %s21 = scalar_select %p18, %s19, %s20
    %p24 = pneg %p18
    %p25 = scmp.eq.s32.totalorder %s9, 1
    %p26 = por %p24, %p25
    %p27 = scmp.ne.s32.totalorder %s19, %s22
    %p28 = scmp.eq.s32.totalorder %s9, 0
    %p29 = por %p27, %p28
    %p30 = scmp.ne.s32.totalorder %s19, %s22
    %p31 = scmp.eq.s32.totalorder %s14, 1
    %p32 = por %p30, %p31
    %p33 = scmp.ne.s32.totalorder %s22, %s23
    %p34 = scmp.eq.s32.totalorder %s14, 0
    %p35 = por %p33, %p34
    %p36 = scmp.ne.s32.totalorder %s22, %s23
    %p37 = scmp.eq.s32.totalorder %s15, 1
    %p38 = por %p36, %p37
    %p40 = scmp.ne.s32.totalorder %s23, %s39
    %p41 = scmp.eq.s32.totalorder %s15, 0
    %p42 = por %p40, %p41
    %s44 = sadd.s32 %s43, 1
    %p47 = scmp.eq.s32.totalorder %s9, 1
    %p48 = scmp.ne.s32.totalorder %s43, %s45
    %p49 = scmp.eq.s32.totalorder %s9, 0
    %p50 = por %p48, %p49
    %p51 = scmp.ne.s32.totalorder %s43, %s45
    %p52 = scmp.eq.s32.totalorder %s14, 1
    %p53 = por %p51, %p52
    %p54 = scmp.ne.s32.totalorder %s45, %s46
    %p55 = scmp.eq.s32.totalorder %s14, 0
    %p56 = por %p54, %p55
    %p57 = scmp.ne.s32.totalorder %s45, %s46
    %p58 = scmp.eq.s32.totalorder %s15, 1
    %p59 = por %p57, %p58
    %p61 = scmp.ne.s32.totalorder %s46, %s60
    %p62 = scmp.eq.s32.totalorder %s15, 0
    %p63 = por %p61, %p62
    %s65 = sadd.s32 %s64, 1
    %p68 = scmp.eq.s32.totalorder %s9, 1
    %p69 = scmp.ne.s32.totalorder %s64, %s66
    %p70 = scmp.eq.s32.totalorder %s9, 0
    %p71 = por %p69, %p70
    %p72 = scmp.ne.s32.totalorder %s64, %s66
    %p73 = scmp.eq.s32.totalorder %s14, 1
    %p74 = por %p72, %p73
    %p75 = scmp.ne.s32.totalorder %s66, %s67
    %p76 = scmp.eq.s32.totalorder %s14, 0
    %p77 = por %p75, %p76
    %p78 = scmp.ne.s32.totalorder %s66, %s67
    %p79 = scmp.eq.s32.totalorder %s15, 1
    %p80 = por %p78, %p79
    %p82 = scmp.ne.s32.totalorder %s67, %s81
    %p83 = scmp.eq.s32.totalorder %s15, 0
    %p84 = por %p82, %p83
    %s85 = ssub.s32 %s9, %s16
    %p86 = scmp.eq.s32.totalorder %s85, 0
    %s88 = sadd.s32 %s87, 1
    %s89 = scalar_select %p86, %s87, %s88
    %p92 = pneg %p86
    %p93 = scmp.eq.s32.totalorder %s9, 1
    %p94 = por %p92, %p93
    %p95 = scmp.ne.s32.totalorder %s87, %s90
    %p96 = scmp.eq.s32.totalorder %s9, 0
    %p97 = por %p95, %p96
    %p98 = scmp.ne.s32.totalorder %s87, %s90
    %p99 = scmp.eq.s32.totalorder %s14, 1
    %p100 = por %p98, %p99
    %p101 = scmp.ne.s32.totalorder %s90, %s91
    %p102 = scmp.eq.s32.totalorder %s14, 0
    %p103 = por %p101, %p102
    %p104 = scmp.ne.s32.totalorder %s90, %s91
    %p105 = scmp.eq.s32.totalorder %s15, 1
    %p106 = por %p104, %p105
    %p108 = scmp.ne.s32.totalorder %s91, %s107
    %p109 = scmp.eq.s32.totalorder %s15, 0
    %p110 = por %p108, %p109
    %p111 = scmp.le.s32.totalorder 1, %s9
    %p112 = scmp.lt.s32.totalorder %s9, 3
    %p113 = pnand %p111, %p112
    %p114 = pneg %p113
    // Predicated region
    $region9: #{pspnet_forward.16} parent=5 // pred_check
      _
    $region10: #{pspnet_forward.16} parent=5 // pred_check_branch
      %116 = sbr.rel (%p113) target = $region12
    $region11: #{pspnet_forward.16} parent=5 // pred_region
      %s117 = ssub.s32 %s9, 1
      // Predicated region
      $region13: #{pspnet_forward.16} parent=11 // pred_check
        %p118 = pneg %p56
      $region14: #{pspnet_forward.16} parent=11 // pred_check_branch
        %120 = sbr.rel (%p118) target = $region16
      $region15: #{pspnet_forward.16} parent=11 // pred_region
        _
      $region16: #{pspnet_forward.16} parent=11 // pred_fallthru
        _
      // Predicated region
      $region17: #{pspnet_forward.16} parent=11 // pred_check
        %p121 = pneg %p77
      $region18: #{pspnet_forward.16} parent=11 // pred_check_branch
        %123 = sbr.rel (%p121) target = $region20
      $region19: #{pspnet_forward.16} parent=11 // pred_region
        _
      $region20: #{pspnet_forward.16} parent=11 // pred_fallthru
        _
    $region12: #{pspnet_forward.16} parent=5 // pred_fallthru
      _
    %p124 = scmp.lt.s32.totalorder %s9, 2
    // Predicated region
    $region21: #{pspnet_forward.16} parent=5 // pred_check
      %p125 = pneg %p124
    $region22: #{pspnet_forward.16} parent=5 // pred_check_branch
      %127 = sbr.rel (%p125) target = $region24
    $region23: #{pspnet_forward.16} parent=5 // pred_region
      // Predicated region
      $region25: #{pspnet_forward.16} parent=23 // pred_check
        %p128 = pneg %p29
      $region26: #{pspnet_forward.16} parent=23 // pred_check_branch
        %130 = sbr.rel (%p128) target = $region28
      $region27: #{pspnet_forward.16} parent=23 // pred_region
        %s131 = smul.u32 32, %s9
        %p132 = scmp.lt.s32.totalorder %s131, 63
        %s133 = scalar_select %p132, %s131, 63
        %s134 = smul.addr %s133, 4
        %s135 = scalar_lea.vmem %s0, %s134
        %s136 = smul.u32 32, %s9
      $region28: #{pspnet_forward.16} parent=23 // pred_fallthru
        _
    $region24: #{pspnet_forward.16} parent=5 // pred_fallthru
      _
    %p137 = scmp.le.s32.totalorder 1, %s9
    %p138 = scmp.lt.s32.totalorder %s9, 3
    %p139 = pnand %p137, %p138
    %p140 = pneg %p139
    // Predicated region
    $region29: #{pspnet_forward.16} parent=5 // pred_check
      _
    $region30: #{pspnet_forward.16} parent=5 // pred_check_branch
      %142 = sbr.rel (%p139) target = $region32
    $region31: #{pspnet_forward.16} parent=5 // pred_region
      %s143 = ssub.s32 %s9, 1
      %s144 = smul.u32 32, %s14
      %p145 = scmp.lt.s32.totalorder %s144, 63
      %s146 = scalar_select %p145, %s144, 63
      %s147 = smul.addr %s146, 4
      %s148 = scalar_lea.vmem %s0, %s147
      %p149 = pneg %p35
      %p150 = pneg %p32
      %p151 = pneg %p56
      %p152 = pneg %p53
      %p153 = pneg %p77
      %p154 = pneg %p74
      %p155 = pneg %p103
      %p156 = pneg %p100
      %s157 = smul.u32 32, %s14
      %p158 = scmp.lt.s32.totalorder %s157, 63
      %s159 = scalar_select %p158, %s157, 63
      %s160 = smul.addr %s159, 4
      %s161 = scalar_lea.vmem %s3, %s160
      %s162 = smul.u32 32, %s14
      %p163 = scmp.lt.s32.totalorder %s162, 63
      %s164 = scalar_select %p163, %s162, 63
      %s165 = smul.addr %s164, 4
      %s166 = scalar_lea.vmem %s0, %s165
      %s167 = smul.u32 32, %s14
      %s168 = smul.u32 32, %s14
      %p169 = scmp.lt.s32.totalorder %s168, 63
      %s170 = scalar_select %p169, %s168, 63
      %s171 = smul.addr %s170, 4
      %s172 = scalar_lea.vmem %s3, %s171
      %s173 = smul.u32 32, %s14
      %v175 = vld [vmem:[%s166] sm:$0xf]
      %v176 = vld [vmem:[%s166 + $0x4] sm:$0xf]
      %v177 = vld [vmem:[%s166 + $0x8] sm:$0xf]
      %v178 = vld [vmem:[%s166 + $0xc] sm:$0xf]
      %v179 = vld [vmem:[%s166 + $0x10] sm:$0xf]
      %v180 = vld [vmem:[%s166 + $0x14] sm:$0xf]
      %v181 = vld [vmem:[%s166 + $0x18] sm:$0xf]
      %v182 = vld [vmem:[%s166 + $0x1c] sm:$0xf]
      %v183 = vld [vmem:[%s166 + $0x20] sm:$0xf]
      %v184 = vld [vmem:[%s166 + $0x24] sm:$0xf]
      %v185 = vld [vmem:[%s166 + $0x28] sm:$0xf]
      %v186 = vld [vmem:[%s166 + $0x2c] sm:$0xf]
      %v187 = vld [vmem:[%s166 + $0x30] sm:$0xf]
      %v188 = vld [vmem:[%s166 + $0x34] sm:$0xf]
      %v189 = vld [vmem:[%s166 + $0x38] sm:$0xf]
      %v190 = vld [vmem:[%s166 + $0x3c] sm:$0xf]
      %v191 = vld [vmem:[%s166 + $0x40] sm:$0xf]
      %v192 = vld [vmem:[%s166 + $0x44] sm:$0xf]
      %v193 = vld [vmem:[%s166 + $0x48] sm:$0xf]
      %v194 = vld [vmem:[%s166 + $0x4c] sm:$0xf]
      %v195 = vld [vmem:[%s166 + $0x50] sm:$0xf]
      %v196 = vld [vmem:[%s166 + $0x54] sm:$0xf]
      %v197 = vld [vmem:[%s166 + $0x58] sm:$0xf]
      %v198 = vld [vmem:[%s166 + $0x5c] sm:$0xf]
      %v199 = vld [vmem:[%s166 + $0x60] sm:$0xf]
      %v200 = vld [vmem:[%s166 + $0x64] sm:$0xf]
      %v201 = vld [vmem:[%s166 + $0x68] sm:$0xf]
      %v202 = vld [vmem:[%s166 + $0x6c] sm:$0xf]
      %v203 = vld [vmem:[%s166 + $0x70] sm:$0xf]
      %v204 = vld [vmem:[%s166 + $0x74] sm:$0xf]
      %v205 = vld [vmem:[%s166 + $0x78] sm:$0xf]
      %v206 = vld [vmem:[%s166 + $0x7c] sm:$0xf]
      %v207 = vld [vmem:[%s1] sm:$0xf]
      %v208 = vld [vmem:[%s2] sm:$0x1]
      %v210 = vlaneseq
      %v211 = vshrl.u32 %v210, 7
      %v212 = vsub.s32 0, %v211
      %v213 = vrot.slane %v208, %v212
      %v247 = vunpack.c.l.b16 %v175
      %v248 = vunpack.c.l.b16 %v176
      %v249 = vunpack.c.l.b16 %v177
      %v250 = vunpack.c.l.b16 %v178
      %v251 = vunpack.c.l.b16 %v179
      %v252 = vunpack.c.l.b16 %v180
      %v253 = vunpack.c.l.b16 %v181
      %v254 = vunpack.c.l.b16 %v182
      %v255 = vunpack.c.l.b16 %v183
      %v256 = vunpack.c.l.b16 %v184
      %v257 = vunpack.c.l.b16 %v185
      %v258 = vunpack.c.l.b16 %v186
      %v259 = vunpack.c.l.b16 %v187
      %v260 = vunpack.c.l.b16 %v188
      %v261 = vunpack.c.l.b16 %v189
      %v262 = vunpack.c.l.b16 %v190
      %v263 = vunpack.c.l.b16 %v191
      %v264 = vunpack.c.l.b16 %v192
      %v265 = vunpack.c.l.b16 %v193
      %v266 = vunpack.c.l.b16 %v194
      %v267 = vunpack.c.l.b16 %v195
      %v268 = vunpack.c.l.b16 %v196
      %v269 = vunpack.c.l.b16 %v197
      %v270 = vunpack.c.l.b16 %v198
      %v271 = vunpack.c.l.b16 %v199
      %v272 = vunpack.c.l.b16 %v200
      %v273 = vunpack.c.l.b16 %v201
      %v274 = vunpack.c.l.b16 %v202
      %v275 = vunpack.c.l.b16 %v203
      %v276 = vunpack.c.l.b16 %v204
      %v277 = vunpack.c.l.b16 %v205
      %v278 = vunpack.c.l.b16 %v206
      %v279 = vpack.c.b16 %v248, %v247
      %v280 = vpack.c.b16 %v250, %v249
      %v281 = vpack.c.b16 %v252, %v251
      %v282 = vpack.c.b16 %v254, %v253
      %v283 = vpack.c.b16 %v256, %v255
      %v284 = vpack.c.b16 %v258, %v257
      %v285 = vpack.c.b16 %v260, %v259
      %v286 = vpack.c.b16 %v262, %v261
      %v287 = vpack.c.b16 %v264, %v263
      %v288 = vpack.c.b16 %v266, %v265
      %v289 = vpack.c.b16 %v268, %v267
      %v290 = vpack.c.b16 %v270, %v269
      %v291 = vpack.c.b16 %v272, %v271
      %v292 = vpack.c.b16 %v274, %v273
      %v293 = vpack.c.b16 %v276, %v275
      %v294 = vpack.c.b16 %v278, %v277
      %vm295 = vcmask 64512
      %v297 = vsel %vm295, %v279, 0
      %v300 = vsel %vm295, %v280, 0
      %v303 = vsel %vm295, %v281, 0
      %v306 = vsel %vm295, %v282, 0
      %v309 = vsel %vm295, %v283, 0
      %v312 = vsel %vm295, %v284, 0
      %v315 = vsel %vm295, %v285, 0
      %v318 = vsel %vm295, %v286, 0
      %v321 = vsel %vm295, %v287, 0
      %v324 = vsel %vm295, %v288, 0
      %v327 = vsel %vm295, %v289, 0
      %v330 = vsel %vm295, %v290, 0
      %v333 = vsel %vm295, %v291, 0
      %v336 = vsel %vm295, %v292, 0
      %v339 = vsel %vm295, %v293, 0
      %v342 = vsel %vm295, %v294, 0
      %vm344 = vcmask 1043456
      %v346 = vsel %vm344, %v207, 0
      %348 = vmatprep.subr.bf16.mxu0 0
      %349 = vmatpush1.bf16.msra.mxu0 %v346
      %350 = vmatprep.subr.bf16.mxu0 0
      %351 = vmatpush1.bf16.msra.mxu0 0
      %352 = vmatprep.subr.bf16.mxu0 0
      %353 = vmatpush1.bf16.msra.mxu0 0
      %354 = vmatprep.subr.bf16.mxu0 0
      %355 = vmatpush1.bf16.msra.mxu0 0
      %356 = vmatprep.subr.bf16.mxu0 0
      %357 = vmatpush1.bf16.msra.mxu0 0
      %358 = vmatprep.subr.bf16.mxu0 0
      %359 = vmatpush1.bf16.msra.mxu0 0
      %360 = vmatprep.subr.bf16.mxu0 0
      %361 = vmatpush1.bf16.msra.mxu0 0
      %362 = vmatprep.subr.bf16.mxu0 0
      %363 = vmatpush1.bf16.msra.mxu0 0
      %364 = vmatprep.subr.bf16.mxu0 0
      %365 = vmatpush1.bf16.msra.mxu0 0
      %366 = vmatprep.subr.bf16.mxu0 0
      %367 = vmatpush1.bf16.msra.mxu0 0
      %368 = vmatprep.subr.bf16.mxu0 0
      %369 = vmatpush1.bf16.msra.mxu0 0
      %370 = vmatprep.subr.bf16.mxu0 0
      %371 = vmatpush1.bf16.msra.mxu0 0
      %372 = vmatprep.subr.bf16.mxu0 0
      %373 = vmatpush1.bf16.msra.mxu0 0
      %374 = vmatprep.subr.bf16.mxu0 0
      %375 = vmatpush1.bf16.msra.mxu0 0
      %376 = vmatprep.subr.bf16.mxu0 0
      %377 = vmatpush1.bf16.msra.mxu0 0
      %378 = vmatprep.subr.bf16.mxu0 0
      %379 = vmatpush1.bf16.msra.mxu0 0
      %380 = vmatprep.mubr.bf16.mxu0 0
      %381 = vmatmul.mubr.bf16.gmra.mrb[0].mxu0 %v297
      %v382 = vpop.f32.mrb[0].mxu0
      %v383 = vadd.f32 %v213, %v382
      %v384 = vpop.f32.mrb[0].mxu0
      %v385 = vpop.f32.mrb[0].mxu0
      %v386 = vadd.f32 %v213, %v385
      %v387 = vpop.f32.mrb[0].mxu0
      %388 = vmatprep.mubr.bf16.mxu0 0
      %389 = vmatmul.mubr.bf16.gmra.mrb[0].mxu0 %v300
      %v390 = vpop.f32.mrb[0].mxu0
      %v391 = vadd.f32 %v213, %v390
      %v392 = vpop.f32.mrb[0].mxu0
      %v393 = vpop.f32.mrb[0].mxu0
      %v394 = vadd.f32 %v213, %v393
      %v395 = vpop.f32.mrb[0].mxu0
      %396 = vmatprep.mubr.bf16.mxu0 0
      %397 = vmatmul.mubr.bf16.gmra.mrb[0].mxu0 %v303
      %v398 = vpop.f32.mrb[0].mxu0
      %v399 = vadd.f32 %v213, %v398
      %v400 = vpop.f32.mrb[0].mxu0
      %v401 = vpop.f32.mrb[0].mxu0
      %v402 = vadd.f32 %v213, %v401
      %v403 = vpop.f32.mrb[0].mxu0
      %404 = vmatprep.mubr.bf16.mxu0 0
      %405 = vmatmul.mubr.bf16.gmra.mrb[0].mxu0 %v306
      %v406 = vpop.f32.mrb[0].mxu0
      %v407 = vadd.f32 %v213, %v406
      %v408 = vpop.f32.mrb[0].mxu0
      %v409 = vpop.f32.mrb[0].mxu0
      %v410 = vadd.f32 %v213, %v409
      %v411 = vpop.f32.mrb[0].mxu0
      %412 = vmatprep.mubr.bf16.mxu0 0
      %413 = vmatmul.mubr.bf16.gmra.mrb[0].mxu0 %v309
      %v414 = vpop.f32.mrb[0].mxu0
      %v415 = vadd.f32 %v213, %v414
      %v416 = vpop.f32.mrb[0].mxu0
      %v417 = vpop.f32.mrb[0].mxu0
      %v418 = vadd.f32 %v213, %v417
      %v419 = vpop.f32.mrb[0].mxu0
      %420 = vmatprep.mubr.bf16.mxu0 0
      %421 = vmatmul.mubr.bf16.gmra.mrb[0].mxu0 %v312
      %v422 = vpop.f32.mrb[0].mxu0
      %v423 = vadd.f32 %v213, %v422
      %v424 = vpop.f32.mrb[0].mxu0
      %v425 = vpop.f32.mrb[0].mxu0
      %v426 = vadd.f32 %v213, %v425
      %v427 = vpop.f32.mrb[0].mxu0
      %428 = vmatprep.mubr.bf16.mxu0 0
      %429 = vmatmul.mubr.bf16.gmra.mrb[0].mxu0 %v315
      %v430 = vpop.f32.mrb[0].mxu0
      %v431 = vadd.f32 %v213, %v430
      %v432 = vpop.f32.mrb[0].mxu0
      %v433 = vpop.f32.mrb[0].mxu0
      %v434 = vadd.f32 %v213, %v433
      %v435 = vpop.f32.mrb[0].mxu0
      %436 = vmatprep.mubr.bf16.mxu0 0
      %437 = vmatmul.mubr.bf16.gmra.mrb[0].mxu0 %v318
      %v438 = vpop.f32.mrb[0].mxu0
      %v439 = vadd.f32 %v213, %v438
      %v440 = vpop.f32.mrb[0].mxu0
      %v441 = vpop.f32.mrb[0].mxu0
      %v442 = vadd.f32 %v213, %v441
      %v443 = vpop.f32.mrb[0].mxu0
      %444 = vmatprep.mubr.bf16.mxu0 0
      %445 = vmatmul.mubr.bf16.gmra.mrb[0].mxu0 %v321
      %v446 = vpop.f32.mrb[0].mxu0
      %v447 = vadd.f32 %v213, %v446
      %v448 = vpop.f32.mrb[0].mxu0
      %v449 = vpop.f32.mrb[0].mxu0
      %v450 = vadd.f32 %v213, %v449
      %v451 = vpop.f32.mrb[0].mxu0
      %452 = vmatprep.mubr.bf16.mxu0 0
      %453 = vmatmul.mubr.bf16.gmra.mrb[0].mxu0 %v324
      %v454 = vpop.f32.mrb[0].mxu0
      %v455 = vadd.f32 %v213, %v454
      %v456 = vpop.f32.mrb[0].mxu0
      %v457 = vpop.f32.mrb[0].mxu0
      %v458 = vadd.f32 %v213, %v457
      %v459 = vpop.f32.mrb[0].mxu0
      %460 = vmatprep.mubr.bf16.mxu0 0
      %461 = vmatmul.mubr.bf16.gmra.mrb[0].mxu0 %v327
      %v462 = vpop.f32.mrb[0].mxu0
      %v463 = vadd.f32 %v213, %v462
      %v464 = vpop.f32.mrb[0].mxu0
      %v465 = vpop.f32.mrb[0].mxu0
      %v466 = vadd.f32 %v213, %v465
      %v467 = vpop.f32.mrb[0].mxu0
      %468 = vmatprep.mubr.bf16.mxu0 0
      %469 = vmatmul.mubr.bf16.gmra.mrb[0].mxu0 %v330
      %v470 = vpop.f32.mrb[0].mxu0
      %v471 = vadd.f32 %v213, %v470
      %v472 = vpop.f32.mrb[0].mxu0
      %v473 = vpop.f32.mrb[0].mxu0
      %v474 = vadd.f32 %v213, %v473
      %v475 = vpop.f32.mrb[0].mxu0
      %476 = vmatprep.mubr.bf16.mxu0 0
      %477 = vmatmul.mubr.bf16.gmra.mrb[0].mxu0 %v333
      %v478 = vpop.f32.mrb[0].mxu0
      %v479 = vadd.f32 %v213, %v478
      %v480 = vpop.f32.mrb[0].mxu0
      %v481 = vpop.f32.mrb[0].mxu0
      %v482 = vadd.f32 %v213, %v481
      %v483 = vpop.f32.mrb[0].mxu0
      %484 = vmatprep.mubr.bf16.mxu0 0
      %485 = vmatmul.mubr.bf16.gmra.mrb[0].mxu0 %v336
      %v486 = vpop.f32.mrb[0].mxu0
      %v487 = vadd.f32 %v213, %v486
      %v488 = vpop.f32.mrb[0].mxu0
      %v489 = vpop.f32.mrb[0].mxu0
      %v490 = vadd.f32 %v213, %v489
      %v491 = vpop.f32.mrb[0].mxu0
      %492 = vmatprep.mubr.bf16.mxu0 0
      %493 = vmatmul.mubr.bf16.gmra.mrb[0].mxu0 %v339
      %v494 = vpop.f32.mrb[0].mxu0
      %v495 = vadd.f32 %v213, %v494
      %v496 = vpop.f32.mrb[0].mxu0
      %v497 = vpop.f32.mrb[0].mxu0
      %v498 = vadd.f32 %v213, %v497
      %v499 = vpop.f32.mrb[0].mxu0
      %500 = vmatprep.mubr.bf16.mxu0 0
      %501 = vmatmul.mubr.bf16.gmra.mrb[0].mxu0 %v342
      %v502 = vpop.f32.mrb[0].mxu0
      %v503 = vadd.f32 %v213, %v502
      %v504 = vpop.f32.mrb[0].mxu0
      %v505 = vpop.f32.mrb[0].mxu0
      %v506 = vadd.f32 %v213, %v505
      %v507 = vpop.f32.mrb[0].mxu0
      %508 = vdwg.mxu0
      %v509 = vpack.c.bf16 %v386, %v383
      %v510 = vpack.c.bf16 %v394, %v391
      %v511 = vpack.c.bf16 %v402, %v399
      %v512 = vpack.c.bf16 %v410, %v407
      %v513 = vpack.c.bf16 %v418, %v415
      %v514 = vpack.c.bf16 %v426, %v423
      %v515 = vpack.c.bf16 %v434, %v431
      %v516 = vpack.c.bf16 %v442, %v439
      %v517 = vpack.c.bf16 %v450, %v447
      %v518 = vpack.c.bf16 %v458, %v455
      %v519 = vpack.c.bf16 %v466, %v463
      %v520 = vpack.c.bf16 %v474, %v471
      %v521 = vpack.c.bf16 %v482, %v479
      %v522 = vpack.c.bf16 %v490, %v487
      %v523 = vpack.c.bf16 %v498, %v495
      %v524 = vpack.c.bf16 %v506, %v503
      %v541 = vunpack.c.l.b16 %v509
      %v542 = vunpack.c.h.b16 %v509
      %v543 = vunpack.c.l.b16 %v510
      %v544 = vunpack.c.h.b16 %v510
      %v545 = vunpack.c.l.b16 %v511
      %v546 = vunpack.c.h.b16 %v511
      %v547 = vunpack.c.l.b16 %v512
      %v548 = vunpack.c.h.b16 %v512
      %v549 = vunpack.c.l.b16 %v513
      %v550 = vunpack.c.h.b16 %v513
      %v551 = vunpack.c.l.b16 %v514
      %v552 = vunpack.c.h.b16 %v514
      %v553 = vunpack.c.l.b16 %v515
      %v554 = vunpack.c.h.b16 %v515
      %v555 = vunpack.c.l.b16 %v516
      %v556 = vunpack.c.h.b16 %v516
      %v557 = vunpack.c.l.b16 %v517
      %v558 = vunpack.c.h.b16 %v517
      %v559 = vunpack.c.l.b16 %v518
      %v560 = vunpack.c.h.b16 %v518
      %v561 = vunpack.c.l.b16 %v519
      %v562 = vunpack.c.h.b16 %v519
      %v563 = vunpack.c.l.b16 %v520
      %v564 = vunpack.c.h.b16 %v520
      %v565 = vunpack.c.l.b16 %v521
      %v566 = vunpack.c.h.b16 %v521
      %v567 = vunpack.c.l.b16 %v522
      %v568 = vunpack.c.h.b16 %v522
      %v569 = vunpack.c.l.b16 %v523
      %v570 = vunpack.c.h.b16 %v523
      %v571 = vunpack.c.l.b16 %v524
      %v572 = vunpack.c.h.b16 %v524
      %v573 = vpack.c.b16 %v541, %v541
      %v574 = vpack.c.b16 %v542, %v542
      %v575 = vpack.c.b16 %v543, %v543
      %v576 = vpack.c.b16 %v544, %v544
      %v577 = vpack.c.b16 %v545, %v545
      %v578 = vpack.c.b16 %v546, %v546
      %v579 = vpack.c.b16 %v547, %v547
      %v580 = vpack.c.b16 %v548, %v548
      %v581 = vpack.c.b16 %v549, %v549
      %v582 = vpack.c.b16 %v550, %v550
      %v583 = vpack.c.b16 %v551, %v551
      %v584 = vpack.c.b16 %v552, %v552
      %v585 = vpack.c.b16 %v553, %v553
      %v586 = vpack.c.b16 %v554, %v554
      %v587 = vpack.c.b16 %v555, %v555
      %v588 = vpack.c.b16 %v556, %v556
      %v589 = vpack.c.b16 %v557, %v557
      %v590 = vpack.c.b16 %v558, %v558
      %v591 = vpack.c.b16 %v559, %v559
      %v592 = vpack.c.b16 %v560, %v560
      %v593 = vpack.c.b16 %v561, %v561
      %v594 = vpack.c.b16 %v562, %v562
      %v595 = vpack.c.b16 %v563, %v563
      %v596 = vpack.c.b16 %v564, %v564
      %v597 = vpack.c.b16 %v565, %v565
      %v598 = vpack.c.b16 %v566, %v566
      %v599 = vpack.c.b16 %v567, %v567
      %v600 = vpack.c.b16 %v568, %v568
      %v601 = vpack.c.b16 %v569, %v569
      %v602 = vpack.c.b16 %v570, %v570
      %v603 = vpack.c.b16 %v571, %v571
      %v604 = vpack.c.b16 %v572, %v572
      %vm637 = vcmask 35840
      %638 = vst.msk [vmem:[%s172] sm:$0xf] %vm637, %v573
      %639 = vst.msk [vmem:[%s172 + $0x4] sm:$0xf] %vm637, %v574
      %640 = vst.msk [vmem:[%s172 + $0x8] sm:$0xf] %vm637, %v575
      %641 = vst.msk [vmem:[%s172 + $0xc] sm:$0xf] %vm637, %v576
      %642 = vst.msk [vmem:[%s172 + $0x10] sm:$0xf] %vm637, %v577
      %643 = vst.msk [vmem:[%s172 + $0x14] sm:$0xf] %vm637, %v578
      %644 = vst.msk [vmem:[%s172 + $0x18] sm:$0xf] %vm637, %v579
      %645 = vst.msk [vmem:[%s172 + $0x1c] sm:$0xf] %vm637, %v580
      %646 = vst.msk [vmem:[%s172 + $0x20] sm:$0xf] %vm637, %v581
      %647 = vst.msk [vmem:[%s172 + $0x24] sm:$0xf] %vm637, %v582
      %648 = vst.msk [vmem:[%s172 + $0x28] sm:$0xf] %vm637, %v583
      %649 = vst.msk [vmem:[%s172 + $0x2c] sm:$0xf] %vm637, %v584
      %650 = vst.msk [vmem:[%s172 + $0x30] sm:$0xf] %vm637, %v585
      %651 = vst.msk [vmem:[%s172 + $0x34] sm:$0xf] %vm637, %v586
      %652 = vst.msk [vmem:[%s172 + $0x38] sm:$0xf] %vm637, %v587
      %653 = vst.msk [vmem:[%s172 + $0x3c] sm:$0xf] %vm637, %v588
      %654 = vst.msk [vmem:[%s172 + $0x40] sm:$0xf] %vm637, %v589
      %655 = vst.msk [vmem:[%s172 + $0x44] sm:$0xf] %vm637, %v590
      %656 = vst.msk [vmem:[%s172 + $0x48] sm:$0xf] %vm637, %v591
      %657 = vst.msk [vmem:[%s172 + $0x4c] sm:$0xf] %vm637, %v592
      %658 = vst.msk [vmem:[%s172 + $0x50] sm:$0xf] %vm637, %v593
      %659 = vst.msk [vmem:[%s172 + $0x54] sm:$0xf] %vm637, %v594
      %660 = vst.msk [vmem:[%s172 + $0x58] sm:$0xf] %vm637, %v595
      %661 = vst.msk [vmem:[%s172 + $0x5c] sm:$0xf] %vm637, %v596
      %662 = vst.msk [vmem:[%s172 + $0x60] sm:$0xf] %vm637, %v597
      %663 = vst.msk [vmem:[%s172 + $0x64] sm:$0xf] %vm637, %v598
      %664 = vst.msk [vmem:[%s172 + $0x68] sm:$0xf] %vm637, %v599
      %665 = vst.msk [vmem:[%s172 + $0x6c] sm:$0xf] %vm637, %v600
      %666 = vst.msk [vmem:[%s172 + $0x70] sm:$0xf] %vm637, %v601
      %667 = vst.msk [vmem:[%s172 + $0x74] sm:$0xf] %vm637, %v602
      %668 = vst.msk [vmem:[%s172 + $0x78] sm:$0xf] %vm637, %v603
      %669 = vst.msk [vmem:[%s172 + $0x7c] sm:$0xf] %vm637, %v604
      %s670 = smul.u32 32, %s14
      %p671 = scmp.lt.s32.totalorder %s670, 63
      %s672 = scalar_select %p671, %s670, 63
      %s673 = smul.addr %s672, 4
      %s674 = scalar_lea.vmem %s3, %s673
      // Predicated region
      $region33: #{pspnet_forward.16} parent=31 // pred_check
        %p675 = pneg %p100
      $region34: #{pspnet_forward.16} parent=31 // pred_check_branch
        %677 = sbr.rel (%p675) target = $region36
      $region35: #{pspnet_forward.16} parent=31 // pred_region
        %s678 = smul.u32 32, %s14
      $region36: #{pspnet_forward.16} parent=31 // pred_fallthru
        _
    $region32: #{pspnet_forward.16} parent=5 // pred_fallthru
      _
    %p679 = scmp.le.s32.totalorder 2, %s9
    // Predicated region
    $region37: #{pspnet_forward.16} parent=5 // pred_check
      %p680 = pneg %p679
    $region38: #{pspnet_forward.16} parent=5 // pred_check_branch
      %682 = sbr.rel (%p680) target = $region40
    $region39: #{pspnet_forward.16} parent=5 // pred_region
      %s683 = ssub.s32 %s9, 2
      // Predicated region
      $region41: #{pspnet_forward.16} parent=39 // pred_check
        %p684 = pneg %p106
      $region42: #{pspnet_forward.16} parent=39 // pred_check_branch
        %686 = sbr.rel (%p684) target = $region44
      $region43: #{pspnet_forward.16} parent=39 // pred_region
        %s687 = smul.u32 32, %s15
        %p688 = scmp.lt.s32.totalorder %s687, 63
        %s689 = scalar_select %p688, %s687, 63
        %s690 = smul.addr %s689, 4
        %s691 = scalar_lea.vmem %s3, %s690
      $region44: #{pspnet_forward.16} parent=39 // pred_fallthru
        _
    $region40: #{pspnet_forward.16} parent=5 // pred_fallthru
      _
  $region6: #{pspnet_forward.16} parent=0 // loop_footer
    %s13 = sadd.s32 1, %s9
  $region7: #{pspnet_forward.16} parent=0 // loop_footer_branch
    %8 = sbr.rel target = $region3
  $region8: #{pspnet_forward.16} parent=0 // loop_exit
    _

// kernel: pspnet_forward.17
$region0: #{pspnet_forward.17}
  #allocation0 [shape = 'u32[]', space=smem, size = 0x4, offset = 0x4, fixed_abs, tag = 'smem constant byte address 0x4 - core index']
  #allocation1 [shape = 'u32[144,128]{1,0:T(1,128)}', space=vmem, size = 0x12000, scoped, tag = 'internal scratch']
  %s0 = inlined_call_operand.vmem [shape: bf16[256,256], index: 0, kind: input, shape index: {}]
  %s1 = inlined_call_operand.vmem [shape: bf16[2,256,5], index: 1, kind: input, shape index: {}]
  %s2 = inlined_call_operand.vmem [shape: f32[2,256,5], index: 2, kind: output, shape index: {}]
  %s3 = sld [smem:[#allocation0]]
  $region41: #{pspnet_forward.17} parent=0
    _
  %s5 = ssub.s32 1, %s3
  %s6 = scalar_select 0, %s5, %s3
  loop: start=0, step=1, limit=4
  $region2: #{pspnet_forward.17} parent=0 // loop_pre_header
    _
  $region3: #{pspnet_forward.17} parent=0 // loop_header
    %s8 = sphi 0, %s12
    %p9 = scmp.ge.s32.totalorder %s8, 4
    %s16 = sphi 0, %s16
    %s18 = sphi 0, %s16
    %s19 = sphi 0, %s18
    %s33 = sphi 0, %s19
    %s39 = sphi 0, %s41
    %s42 = sphi 0, %s39
    %s43 = sphi 0, %s42
    %s59 = sphi 0, %s43
    %s65 = sphi 0, %s67
    %s68 = sphi 0, %s65
    %s69 = sphi 0, %s68
    %s85 = sphi 0, %s69
  $region4: #{pspnet_forward.17} parent=0 // loop_header_branch
    %11 = sbr.rel (%p9) target = $region8
  $region5: #{pspnet_forward.17} parent=0 // loop_body
    %s13 = ssub.s32 %s8, 1
    %s14 = ssub.s32 %s8, 2
    %s15 = sadd.s32 %s8, 1
    %s17 = sadd.s32 %s16, 1
    %p20 = scmp.eq.s32.totalorder %s8, 1
    %p21 = scmp.ne.s32.totalorder %s16, %s18
    %p22 = scmp.eq.s32.totalorder %s8, 0
    %p23 = por %p21, %p22
    %p24 = scmp.ne.s32.totalorder %s16, %s18
    %p25 = scmp.eq.s32.totalorder %s13, 1
    %p26 = por %p24, %p25
    %p27 = scmp.ne.s32.totalorder %s18, %s19
    %p28 = scmp.eq.s32.totalorder %s13, 0
    %p29 = por %p27, %p28
    %p30 = scmp.ne.s32.totalorder %s18, %s19
    %p31 = scmp.eq.s32.totalorder %s14, 1
    %p32 = por %p30, %p31
    %p34 = scmp.ne.s32.totalorder %s19, %s33
    %p35 = scmp.eq.s32.totalorder %s14, 0
    %p36 = por %p34, %p35
    %s37 = ssub.s32 %s8, %s15
    %p38 = scmp.eq.s32.totalorder %s37, 0
    %s40 = sadd.s32 %s39, 1
    %s41 = scalar_select %p38, %s39, %s40
    %p44 = pneg %p38
    %p45 = scmp.eq.s32.totalorder %s8, 1
    %p46 = por %p44, %p45
    %p47 = scmp.ne.s32.totalorder %s39, %s42
    %p48 = scmp.eq.s32.totalorder %s8, 0
    %p49 = por %p47, %p48
    %p50 = scmp.ne.s32.totalorder %s39, %s42
    %p51 = scmp.eq.s32.totalorder %s13, 1
    %p52 = por %p50, %p51
    %p53 = scmp.ne.s32.totalorder %s42, %s43
    %p54 = scmp.eq.s32.totalorder %s13, 0
    %p55 = por %p53, %p54
    %p56 = scmp.ne.s32.totalorder %s42, %s43
    %p57 = scmp.eq.s32.totalorder %s14, 1
    %p58 = por %p56, %p57
    %p60 = scmp.ne.s32.totalorder %s43, %s59
    %p61 = scmp.eq.s32.totalorder %s14, 0
    %p62 = por %p60, %p61
    %s63 = ssub.s32 %s8, %s15
    %p64 = scmp.eq.s32.totalorder %s63, 0
    %s66 = sadd.s32 %s65, 1
    %s67 = scalar_select %p64, %s65, %s66
    %p70 = pneg %p64
    %p71 = scmp.eq.s32.totalorder %s8, 1
    %p72 = por %p70, %p71
    %p73 = scmp.ne.s32.totalorder %s65, %s68
    %p74 = scmp.eq.s32.totalorder %s8, 0
    %p75 = por %p73, %p74
    %p76 = scmp.ne.s32.totalorder %s65, %s68
    %p77 = scmp.eq.s32.totalorder %s13, 1
    %p78 = por %p76, %p77
    %p79 = scmp.ne.s32.totalorder %s68, %s69
    %p80 = scmp.eq.s32.totalorder %s13, 0
    %p81 = por %p79, %p80
    %p82 = scmp.ne.s32.totalorder %s68, %s69
    %p83 = scmp.eq.s32.totalorder %s14, 1
    %p84 = por %p82, %p83
    %p86 = scmp.ne.s32.totalorder %s69, %s85
    %p87 = scmp.eq.s32.totalorder %s14, 0
    %p88 = por %p86, %p87
    %p89 = scmp.le.s32.totalorder 1, %s8
    %p90 = scmp.lt.s32.totalorder %s8, 3
    %p91 = pnand %p89, %p90
    %p92 = pneg %p91
    // Predicated region
    $region9: #{pspnet_forward.17} parent=5 // pred_check
      _
    $region10: #{pspnet_forward.17} parent=5 // pred_check_branch
      %94 = sbr.rel (%p91) target = $region12
    $region11: #{pspnet_forward.17} parent=5 // pred_region
      %s95 = ssub.s32 %s8, 1
      // Predicated region
      $region13: #{pspnet_forward.17} parent=11 // pred_check
        %p96 = pneg %p29
      $region14: #{pspnet_forward.17} parent=11 // pred_check_branch
        %98 = sbr.rel (%p96) target = $region16
      $region15: #{pspnet_forward.17} parent=11 // pred_region
        _
      $region16: #{pspnet_forward.17} parent=11 // pred_fallthru
        _
    $region12: #{pspnet_forward.17} parent=5 // pred_fallthru
      _
    %p99 = scmp.lt.s32.totalorder %s8, 2
    // Predicated region
    $region17: #{pspnet_forward.17} parent=5 // pred_check
      %p100 = pneg %p99
    $region18: #{pspnet_forward.17} parent=5 // pred_check_branch
      %102 = sbr.rel (%p100) target = $region20
    $region19: #{pspnet_forward.17} parent=5 // pred_region
      // Predicated region
      $region21: #{pspnet_forward.17} parent=19 // pred_check
        %p103 = pneg %p49
      $region22: #{pspnet_forward.17} parent=19 // pred_check_branch
        %105 = sbr.rel (%p103) target = $region24
      $region23: #{pspnet_forward.17} parent=19 // pred_region
        %p106 = scmp.lt.s32.totalorder %s8, 1
        %s107 = scalar_select %p106, %s8, 1
        %s108 = smul.addr %s107, 32
        %s109 = smul.addr %s108, 4
        %s110 = scalar_lea.vmem %s1, %s109
      $region24: #{pspnet_forward.17} parent=19 // pred_fallthru
        _
    $region20: #{pspnet_forward.17} parent=5 // pred_fallthru
      _
    %p111 = scmp.le.s32.totalorder 1, %s8
    %p112 = scmp.lt.s32.totalorder %s8, 3
    %p113 = pnand %p111, %p112
    %p114 = pneg %p113
    // Predicated region
    $region25: #{pspnet_forward.17} parent=5 // pred_check
      _
    $region26: #{pspnet_forward.17} parent=5 // pred_check_branch
      %116 = sbr.rel (%p113) target = $region28
    $region27: #{pspnet_forward.17} parent=5 // pred_region
      %s117 = ssub.s32 %s8, 1
      %p118 = pneg %p29
      %p119 = pneg %p26
      %p120 = scmp.lt.s32.totalorder %s13, 1
      %s121 = scalar_select %p120, %s13, 1
      %s122 = smul.addr %s121, 32
      %s123 = smul.addr %s122, 4
      %s124 = scalar_lea.vmem %s1, %s123
      %p125 = pneg %p55
      %p126 = pneg %p52
      %p127 = pneg %p81
      %p128 = pneg %p78
      %p129 = scmp.lt.s32.totalorder %s13, 1
      %s130 = scalar_select %p129, %s13, 1
      %s131 = smul.addr %s130, 32
      %s132 = smul.addr %s131, 8
      %s133 = scalar_lea.vmem %s2, %s132
      %p134 = scmp.lt.s32.totalorder %s13, 1
      %s135 = scalar_select %p134, %s13, 1
      %s136 = smul.addr %s135, 32
      %s137 = smul.addr %s136, 4
      %s138 = scalar_lea.vmem %s1, %s137
      %p139 = scmp.lt.s32.totalorder %s13, 1
      %s140 = scalar_select %p139, %s13, 1
      %s141 = smul.addr %s140, 32
      %s142 = smul.addr %s141, 8
      %s143 = scalar_lea.vmem %s2, %s142
      %v145 = vld [vmem:[%s0] sm:$0xff]
      %v146 = vld [vmem:[%s0 + $0x8] sm:$0xff]
      %v147 = vld [vmem:[%s0 + $0x10] sm:$0xff]
      %v148 = vld [vmem:[%s0 + $0x18] sm:$0xff]
      %v149 = vld [vmem:[%s0 + $0x20] sm:$0xff]
      %v150 = vld [vmem:[%s0 + $0x28] sm:$0xff]
      %v151 = vld [vmem:[%s0 + $0x30] sm:$0xff]
      %v152 = vld [vmem:[%s0 + $0x38] sm:$0xff]
      %v153 = vld [vmem:[%s0 + $0x40] sm:$0xff]
      %v154 = vld [vmem:[%s0 + $0x48] sm:$0xff]
      %v155 = vld [vmem:[%s0 + $0x50] sm:$0xff]
      %v156 = vld [vmem:[%s0 + $0x58] sm:$0xff]
      %v157 = vld [vmem:[%s0 + $0x60] sm:$0xff]
      %v158 = vld [vmem:[%s0 + $0x68] sm:$0xff]
      %v159 = vld [vmem:[%s0 + $0x70] sm:$0xff]
      %v160 = vld [vmem:[%s0 + $0x78] sm:$0xff]
      %v161 = vld [vmem:[%s0 + $0x80] sm:$0xff]
      %v162 = vld [vmem:[%s0 + $0x88] sm:$0xff]
      %v163 = vld [vmem:[%s0 + $0x90] sm:$0xff]
      %v164 = vld [vmem:[%s0 + $0x98] sm:$0xff]
      %v165 = vld [vmem:[%s0 + $0xa0] sm:$0xff]
      %v166 = vld [vmem:[%s0 + $0xa8] sm:$0xff]
      %v167 = vld [vmem:[%s0 + $0xb0] sm:$0xff]
      %v168 = vld [vmem:[%s0 + $0xb8] sm:$0xff]
      %v169 = vld [vmem:[%s0 + $0xc0] sm:$0xff]
      %v170 = vld [vmem:[%s0 + $0xc8] sm:$0xff]
      %v171 = vld [vmem:[%s0 + $0xd0] sm:$0xff]
      %v172 = vld [vmem:[%s0 + $0xd8] sm:$0xff]
      %v173 = vld [vmem:[%s0 + $0xe0] sm:$0xff]
      %v174 = vld [vmem:[%s0 + $0xe8] sm:$0xff]
      %v175 = vld [vmem:[%s0 + $0xf0] sm:$0xff]
      %v176 = vld [vmem:[%s0 + $0xf8] sm:$0xff]
      %v177 = vld [vmem:[%s138] sm:$0xf]
      %v178 = vld [vmem:[%s138 + $0x4] sm:$0xf]
      %v179 = vld [vmem:[%s138 + $0x8] sm:$0xf]
      %v180 = vld [vmem:[%s138 + $0xc] sm:$0xf]
      %v181 = vld [vmem:[%s138 + $0x10] sm:$0xf]
      %v182 = vld [vmem:[%s138 + $0x14] sm:$0xf]
      %v183 = vld [vmem:[%s138 + $0x18] sm:$0xf]
      %v184 = vld [vmem:[%s138 + $0x1c] sm:$0xf]
      %v185 = vld [vmem:[%s138 + $0x20] sm:$0xf]
      %v186 = vld [vmem:[%s138 + $0x24] sm:$0xf]
      %v187 = vld [vmem:[%s138 + $0x28] sm:$0xf]
      %v188 = vld [vmem:[%s138 + $0x2c] sm:$0xf]
      %v189 = vld [vmem:[%s138 + $0x30] sm:$0xf]
      %v190 = vld [vmem:[%s138 + $0x34] sm:$0xf]
      %v191 = vld [vmem:[%s138 + $0x38] sm:$0xf]
      %v192 = vld [vmem:[%s138 + $0x3c] sm:$0xf]
      %v193 = vld [vmem:[%s138 + $0x40] sm:$0xf]
      %v194 = vld [vmem:[%s138 + $0x44] sm:$0xf]
      %v195 = vld [vmem:[%s138 + $0x48] sm:$0xf]
      %v196 = vld [vmem:[%s138 + $0x4c] sm:$0xf]
      %v197 = vld [vmem:[%s138 + $0x50] sm:$0xf]
      %v198 = vld [vmem:[%s138 + $0x54] sm:$0xf]
      %v199 = vld [vmem:[%s138 + $0x58] sm:$0xf]
      %v200 = vld [vmem:[%s138 + $0x5c] sm:$0xf]
      %v201 = vld [vmem:[%s138 + $0x60] sm:$0xf]
      %v202 = vld [vmem:[%s138 + $0x64] sm:$0xf]
      %v203 = vld [vmem:[%s138 + $0x68] sm:$0xf]
      %v204 = vld [vmem:[%s138 + $0x6c] sm:$0xf]
      %v205 = vld [vmem:[%s138 + $0x70] sm:$0xf]
      %v206 = vld [vmem:[%s138 + $0x74] sm:$0xf]
      %v207 = vld [vmem:[%s138 + $0x78] sm:$0xf]
      %v208 = vld [vmem:[%s138 + $0x7c] sm:$0xf]
      %v241 = vunpack.c.l.b16 %v145
      %v242 = vunpack.c.h.b16 %v145
      %v243 = vunpack.c.l.b16 %v146
      %v244 = vunpack.c.h.b16 %v146
      %v245 = vunpack.c.l.b16 %v147
      %v246 = vunpack.c.h.b16 %v147
      %v247 = vunpack.c.l.b16 %v148
      %v248 = vunpack.c.h.b16 %v148
      %v249 = vunpack.c.l.b16 %v149
      %v250 = vunpack.c.h.b16 %v149
      %v251 = vunpack.c.l.b16 %v150
      %v252 = vunpack.c.h.b16 %v150
      %v253 = vunpack.c.l.b16 %v151
      %v254 = vunpack.c.h.b16 %v151
      %v255 = vunpack.c.l.b16 %v152
      %v256 = vunpack.c.h.b16 %v152
      %v257 = vunpack.c.l.b16 %v153
      %v258 = vunpack.c.h.b16 %v153
      %v259 = vunpack.c.l.b16 %v154
      %v260 = vunpack.c.h.b16 %v154
      %v261 = vunpack.c.l.b16 %v155
      %v262 = vunpack.c.h.b16 %v155
      %v263 = vunpack.c.l.b16 %v156
      %v264 = vunpack.c.h.b16 %v156
      %v265 = vunpack.c.l.b16 %v157
      %v266 = vunpack.c.h.b16 %v157
      %v267 = vunpack.c.l.b16 %v158
      %v268 = vunpack.c.h.b16 %v158
      %v269 = vunpack.c.l.b16 %v159
      %v270 = vunpack.c.h.b16 %v159
      %v271 = vunpack.c.l.b16 %v160
      %v272 = vunpack.c.h.b16 %v160
      %v273 = vunpack.c.l.b16 %v161
      %v274 = vunpack.c.h.b16 %v161
      %v275 = vunpack.c.l.b16 %v162
      %v276 = vunpack.c.h.b16 %v162
      %v277 = vunpack.c.l.b16 %v163
      %v278 = vunpack.c.h.b16 %v163
      %v279 = vunpack.c.l.b16 %v164
      %v280 = vunpack.c.h.b16 %v164
      %v281 = vunpack.c.l.b16 %v165
      %v282 = vunpack.c.h.b16 %v165
      %v283 = vunpack.c.l.b16 %v166
      %v284 = vunpack.c.h.b16 %v166
      %v285 = vunpack.c.l.b16 %v167
      %v286 = vunpack.c.h.b16 %v167
      %v287 = vunpack.c.l.b16 %v168
      %v288 = vunpack.c.h.b16 %v168
      %v289 = vunpack.c.l.b16 %v169
      %v290 = vunpack.c.h.b16 %v169
      %v291 = vunpack.c.l.b16 %v170
      %v292 = vunpack.c.h.b16 %v170
      %v293 = vunpack.c.l.b16 %v171
      %v294 = vunpack.c.h.b16 %v171
      %v295 = vunpack.c.l.b16 %v172
      %v296 = vunpack.c.h.b16 %v172
      %v297 = vunpack.c.l.b16 %v173
      %v298 = vunpack.c.h.b16 %v173
      %v299 = vunpack.c.l.b16 %v174
      %v300 = vunpack.c.h.b16 %v174
      %v301 = vunpack.c.l.b16 %v175
      %v302 = vunpack.c.h.b16 %v175
      %v303 = vunpack.c.l.b16 %v176
      %v304 = vunpack.c.h.b16 %v176
      %v305 = vpack.c.b16 %v243, %v241
      %v306 = vpack.c.b16 %v244, %v242
      %v307 = vpack.c.b16 %v247, %v245
      %v308 = vpack.c.b16 %v248, %v246
      %v309 = vpack.c.b16 %v251, %v249
      %v310 = vpack.c.b16 %v252, %v250
      %v311 = vpack.c.b16 %v255, %v253
      %v312 = vpack.c.b16 %v256, %v254
      %v313 = vpack.c.b16 %v259, %v257
      %v314 = vpack.c.b16 %v260, %v258
      %v315 = vpack.c.b16 %v263, %v261
      %v316 = vpack.c.b16 %v264, %v262
      %v317 = vpack.c.b16 %v267, %v265
      %v318 = vpack.c.b16 %v268, %v266
      %v319 = vpack.c.b16 %v271, %v269
      %v320 = vpack.c.b16 %v272, %v270
      %v321 = vpack.c.b16 %v275, %v273
      %v322 = vpack.c.b16 %v276, %v274
      %v323 = vpack.c.b16 %v279, %v277
      %v324 = vpack.c.b16 %v280, %v278
      %v325 = vpack.c.b16 %v283, %v281
      %v326 = vpack.c.b16 %v284, %v282
      %v327 = vpack.c.b16 %v287, %v285
      %v328 = vpack.c.b16 %v288, %v286
      %v329 = vpack.c.b16 %v291, %v289
      %v330 = vpack.c.b16 %v292, %v290
      %v331 = vpack.c.b16 %v295, %v293
      %v332 = vpack.c.b16 %v296, %v294
      %v333 = vpack.c.b16 %v299, %v297
      %v334 = vpack.c.b16 %v300, %v298
      %v335 = vpack.c.b16 %v303, %v301
      %v336 = vpack.c.b16 %v304, %v302
      %v401 = vunpack.c.l.b16 %v177
      %v402 = vunpack.c.l.b16 %v178
      %v403 = vunpack.c.l.b16 %v179
      %v404 = vunpack.c.l.b16 %v180
      %v405 = vunpack.c.l.b16 %v181
      %v406 = vunpack.c.l.b16 %v182
      %v407 = vunpack.c.l.b16 %v183
      %v408 = vunpack.c.l.b16 %v184
      %v409 = vunpack.c.l.b16 %v185
      %v410 = vunpack.c.l.b16 %v186
      %v411 = vunpack.c.l.b16 %v187
      %v412 = vunpack.c.l.b16 %v188
      %v413 = vunpack.c.l.b16 %v189
      %v414 = vunpack.c.l.b16 %v190
      %v415 = vunpack.c.l.b16 %v191
      %v416 = vunpack.c.l.b16 %v192
      %v417 = vunpack.c.l.b16 %v193
      %v418 = vunpack.c.l.b16 %v194
      %v419 = vunpack.c.l.b16 %v195
      %v420 = vunpack.c.l.b16 %v196
      %v421 = vunpack.c.l.b16 %v197
      %v422 = vunpack.c.l.b16 %v198
      %v423 = vunpack.c.l.b16 %v199
      %v424 = vunpack.c.l.b16 %v200
      %v425 = vunpack.c.l.b16 %v201
      %v426 = vunpack.c.l.b16 %v202
      %v427 = vunpack.c.l.b16 %v203
      %v428 = vunpack.c.l.b16 %v204
      %v429 = vunpack.c.l.b16 %v205
      %v430 = vunpack.c.l.b16 %v206
      %v431 = vunpack.c.l.b16 %v207
      %v432 = vunpack.c.l.b16 %v208
      %v433 = vpack.c.b16 %v402, %v401
      %v434 = vpack.c.b16 %v404, %v403
      %v435 = vpack.c.b16 %v406, %v405
      %v436 = vpack.c.b16 %v408, %v407
      %v437 = vpack.c.b16 %v410, %v409
      %v438 = vpack.c.b16 %v412, %v411
      %v439 = vpack.c.b16 %v414, %v413
      %v440 = vpack.c.b16 %v416, %v415
      %v441 = vpack.c.b16 %v418, %v417
      %v442 = vpack.c.b16 %v420, %v419
      %v443 = vpack.c.b16 %v422, %v421
      %v444 = vpack.c.b16 %v424, %v423
      %v445 = vpack.c.b16 %v426, %v425
      %v446 = vpack.c.b16 %v428, %v427
      %v447 = vpack.c.b16 %v430, %v429
      %v448 = vpack.c.b16 %v432, %v431
      %465 = vmatprep.subr.bf16.mxu0 0
      %466 = vmatpush1.bf16.msra.mxu0 %v433
      %467 = vmatprep.subr.bf16.mxu0 0
      %468 = vmatpush1.bf16.msra.mxu0 %v434
      %469 = vmatprep.subr.bf16.mxu0 0
      %470 = vmatpush1.bf16.msra.mxu0 %v435
      %471 = vmatprep.subr.bf16.mxu0 0
      %472 = vmatpush1.bf16.msra.mxu0 %v436
      %473 = vmatprep.subr.bf16.mxu0 0
      %474 = vmatpush1.bf16.msra.mxu0 %v437
      %475 = vmatprep.subr.bf16.mxu0 0
      %476 = vmatpush1.bf16.msra.mxu0 %v438
      %477 = vmatprep.subr.bf16.mxu0 0
      %478 = vmatpush1.bf16.msra.mxu0 %v439
      %479 = vmatprep.subr.bf16.mxu0 0
      %480 = vmatpush1.bf16.msra.mxu0 %v440
      %481 = vmatprep.subr.bf16.mxu0 0
      %482 = vmatpush1.bf16.msra.mxu0 %v441
      %483 = vmatprep.subr.bf16.mxu0 0
      %484 = vmatpush1.bf16.msra.mxu0 %v442
      %485 = vmatprep.subr.bf16.mxu0 0
      %486 = vmatpush1.bf16.msra.mxu0 %v443
      %487 = vmatprep.subr.bf16.mxu0 0
      %488 = vmatpush1.bf16.msra.mxu0 %v444
      %489 = vmatprep.subr.bf16.mxu0 0
      %490 = vmatpush1.bf16.msra.mxu0 %v445
      %491 = vmatprep.subr.bf16.mxu0 0
      %492 = vmatpush1.bf16.msra.mxu0 %v446
      %493 = vmatprep.subr.bf16.mxu0 0
      %494 = vmatpush1.bf16.msra.mxu0 %v447
      %495 = vmatprep.subr.bf16.mxu0 0
      %496 = vmatpush1.bf16.msra.mxu0 %v448
      %497 = vmatprep.mubr.bf16.mxu0 %v306
      %498 = vmatmul.mubr.bf16.gmra.mrb[0].mxu0 %v305
      %v499 = vpop.f32.mrb[0].mxu0
      %v500 = vadd.f32 0.0, %v499
      %v501 = vpop.f32.mrb[0].mxu0
      %v502 = vpop.f32.mrb[0].mxu0
      %v503 = vadd.f32 0.0, %v502
      %v504 = vpop.f32.mrb[0].mxu0
      %505 = vmatprep.mubr.bf16.mxu0 %v308
      %506 = vmatmul.mubr.bf16.gmra.mrb[0].mxu0 %v307
      %v507 = vpop.f32.mrb[0].mxu0
      %v508 = vadd.f32 0.0, %v507
      %v509 = vpop.f32.mrb[0].mxu0
      %v510 = vpop.f32.mrb[0].mxu0
      %v511 = vadd.f32 0.0, %v510
      %v512 = vpop.f32.mrb[0].mxu0
      %513 = vmatprep.mubr.bf16.mxu0 %v310
      %514 = vmatmul.mubr.bf16.gmra.mrb[0].mxu0 %v309
      %v515 = vpop.f32.mrb[0].mxu0
      %v516 = vadd.f32 0.0, %v515
      %v517 = vpop.f32.mrb[0].mxu0
      %v518 = vpop.f32.mrb[0].mxu0
      %v519 = vadd.f32 0.0, %v518
      %v520 = vpop.f32.mrb[0].mxu0
      %521 = vmatprep.mubr.bf16.mxu0 %v312
      %522 = vmatmul.mubr.bf16.gmra.mrb[0].mxu0 %v311
      %v523 = vpop.f32.mrb[0].mxu0
      %v524 = vadd.f32 0.0, %v523
      %v525 = vpop.f32.mrb[0].mxu0
      %v526 = vpop.f32.mrb[0].mxu0
      %v527 = vadd.f32 0.0, %v526
      %v528 = vpop.f32.mrb[0].mxu0
      %529 = vmatprep.mubr.bf16.mxu0 %v314
      %530 = vmatmul.mubr.bf16.gmra.mrb[0].mxu0 %v313
      %v531 = vpop.f32.mrb[0].mxu0
      %v532 = vadd.f32 0.0, %v531
      %v533 = vpop.f32.mrb[0].mxu0
      %v534 = vpop.f32.mrb[0].mxu0
      %v535 = vadd.f32 0.0, %v534
      %v536 = vpop.f32.mrb[0].mxu0
      %537 = vmatprep.mubr.bf16.mxu0 %v316
      %538 = vmatmul.mubr.bf16.gmra.mrb[0].mxu0 %v315
      %v539 = vpop.f32.mrb[0].mxu0
      %v540 = vadd.f32 0.0, %v539
      %v541 = vpop.f32.mrb[0].mxu0
      %v542 = vpop.f32.mrb[0].mxu0
      %v543 = vadd.f32 0.0, %v542
      %v544 = vpop.f32.mrb[0].mxu0
      %545 = vmatprep.mubr.bf16.mxu0 %v318
      %546 = vmatmul.mubr.bf16.gmra.mrb[0].mxu0 %v317
      %v547 = vpop.f32.mrb[0].mxu0
      %v548 = vadd.f32 0.0, %v547
      %v549 = vpop.f32.mrb[0].mxu0
      %v550 = vpop.f32.mrb[0].mxu0
      %v551 = vadd.f32 0.0, %v550
      %v552 = vpop.f32.mrb[0].mxu0
      %553 = vmatprep.mubr.bf16.mxu0 %v320
      %554 = vmatmul.mubr.bf16.gmra.mrb[0].mxu0 %v319
      %v555 = vpop.f32.mrb[0].mxu0
      %v556 = vadd.f32 0.0, %v555
      %v557 = vpop.f32.mrb[0].mxu0
      %v558 = vpop.f32.mrb[0].mxu0
      %v559 = vadd.f32 0.0, %v558
      %v560 = vpop.f32.mrb[0].mxu0
      %561 = vmatprep.mubr.bf16.mxu0 %v322
      %562 = vmatmul.mubr.bf16.gmra.mrb[0].mxu0 %v321
      %v563 = vpop.f32.mrb[0].mxu0
      %v564 = vadd.f32 0.0, %v563
      %v565 = vpop.f32.mrb[0].mxu0
      %v566 = vpop.f32.mrb[0].mxu0
      %v567 = vadd.f32 0.0, %v566
      %v568 = vpop.f32.mrb[0].mxu0
      %569 = vmatprep.mubr.bf16.mxu0 %v324
      %570 = vmatmul.mubr.bf16.gmra.mrb[0].mxu0 %v323
      %v571 = vpop.f32.mrb[0].mxu0
      %v572 = vadd.f32 0.0, %v571
      %v573 = vpop.f32.mrb[0].mxu0
      %v574 = vpop.f32.mrb[0].mxu0
      %v575 = vadd.f32 0.0, %v574
      %v576 = vpop.f32.mrb[0].mxu0
      %577 = vmatprep.mubr.bf16.mxu0 %v326
      %578 = vmatmul.mubr.bf16.gmra.mrb[0].mxu0 %v325
      %v579 = vpop.f32.mrb[0].mxu0
      %v580 = vadd.f32 0.0, %v579
      %v581 = vpop.f32.mrb[0].mxu0
      %v582 = vpop.f32.mrb[0].mxu0
      %v583 = vadd.f32 0.0, %v582
      %v584 = vpop.f32.mrb[0].mxu0
      %585 = vmatprep.mubr.bf16.mxu0 %v328
      %586 = vmatmul.mubr.bf16.gmra.mrb[0].mxu0 %v327
      %v587 = vpop.f32.mrb[0].mxu0
      %v588 = vadd.f32 0.0, %v587
      %v589 = vpop.f32.mrb[0].mxu0
      %v590 = vpop.f32.mrb[0].mxu0
      %v591 = vadd.f32 0.0, %v590
      %v592 = vpop.f32.mrb[0].mxu0
      %593 = vmatprep.mubr.bf16.mxu0 %v330
      %594 = vmatmul.mubr.bf16.gmra.mrb[0].mxu0 %v329
      %v595 = vpop.f32.mrb[0].mxu0
      %v596 = vadd.f32 0.0, %v595
      %v597 = vpop.f32.mrb[0].mxu0
      %v598 = vpop.f32.mrb[0].mxu0
      %v599 = vadd.f32 0.0, %v598
      %v600 = vpop.f32.mrb[0].mxu0
      %601 = vmatprep.mubr.bf16.mxu0 %v332
      %602 = vmatmul.mubr.bf16.gmra.mrb[0].mxu0 %v331
      %v603 = vpop.f32.mrb[0].mxu0
      %v604 = vadd.f32 0.0, %v603
      %v605 = vpop.f32.mrb[0].mxu0
      %v606 = vpop.f32.mrb[0].mxu0
      %v607 = vadd.f32 0.0, %v606
      %v608 = vpop.f32.mrb[0].mxu0
      %609 = vmatprep.mubr.bf16.mxu0 %v334
      %610 = vmatmul.mubr.bf16.gmra.mrb[0].mxu0 %v333
      %v611 = vpop.f32.mrb[0].mxu0
      %v612 = vadd.f32 0.0, %v611
      %v613 = vpop.f32.mrb[0].mxu0
      %v614 = vpop.f32.mrb[0].mxu0
      %v615 = vadd.f32 0.0, %v614
      %v616 = vpop.f32.mrb[0].mxu0
      %617 = vmatprep.mubr.bf16.mxu0 %v336
      %618 = vmatmul.mubr.bf16.gmra.mrb[0].mxu0 %v335
      %v619 = vpop.f32.mrb[0].mxu0
      %v620 = vadd.f32 0.0, %v619
      %v621 = vpop.f32.mrb[0].mxu0
      %v622 = vpop.f32.mrb[0].mxu0
      %v623 = vadd.f32 0.0, %v622
      %v624 = vpop.f32.mrb[0].mxu0
      %625 = vdwg.mxu0
      %vm626 = vcmask 39936
      %627 = vst.msk [vmem:[%s143] sm:$0xff] %vm626, %v500
      %628 = vst.msk [vmem:[%s143 + $0x8] sm:$0xff] %vm626, %v503
      %629 = vst.msk [vmem:[%s143 + $0x10] sm:$0xff] %vm626, %v508
      %630 = vst.msk [vmem:[%s143 + $0x18] sm:$0xff] %vm626, %v511
      %631 = vst.msk [vmem:[%s143 + $0x20] sm:$0xff] %vm626, %v516
      %632 = vst.msk [vmem:[%s143 + $0x28] sm:$0xff] %vm626, %v519
      %633 = vst.msk [vmem:[%s143 + $0x30] sm:$0xff] %vm626, %v524
      %634 = vst.msk [vmem:[%s143 + $0x38] sm:$0xff] %vm626, %v527
      %635 = vst.msk [vmem:[%s143 + $0x40] sm:$0xff] %vm626, %v532
      %636 = vst.msk [vmem:[%s143 + $0x48] sm:$0xff] %vm626, %v535
      %637 = vst.msk [vmem:[%s143 + $0x50] sm:$0xff] %vm626, %v540
      %638 = vst.msk [vmem:[%s143 + $0x58] sm:$0xff] %vm626, %v543
      %639 = vst.msk [vmem:[%s143 + $0x60] sm:$0xff] %vm626, %v548
      %640 = vst.msk [vmem:[%s143 + $0x68] sm:$0xff] %vm626, %v551
      %641 = vst.msk [vmem:[%s143 + $0x70] sm:$0xff] %vm626, %v556
      %642 = vst.msk [vmem:[%s143 + $0x78] sm:$0xff] %vm626, %v559
      %643 = vst.msk [vmem:[%s143 + $0x80] sm:$0xff] %vm626, %v564
      %644 = vst.msk [vmem:[%s143 + $0x88] sm:$0xff] %vm626, %v567
      %645 = vst.msk [vmem:[%s143 + $0x90] sm:$0xff] %vm626, %v572
      %646 = vst.msk [vmem:[%s143 + $0x98] sm:$0xff] %vm626, %v575
      %647 = vst.msk [vmem:[%s143 + $0xa0] sm:$0xff] %vm626, %v580
      %648 = vst.msk [vmem:[%s143 + $0xa8] sm:$0xff] %vm626, %v583
      %649 = vst.msk [vmem:[%s143 + $0xb0] sm:$0xff] %vm626, %v588
      %650 = vst.msk [vmem:[%s143 + $0xb8] sm:$0xff] %vm626, %v591
      %651 = vst.msk [vmem:[%s143 + $0xc0] sm:$0xff] %vm626, %v596
      %652 = vst.msk [vmem:[%s143 + $0xc8] sm:$0xff] %vm626, %v599
      %653 = vst.msk [vmem:[%s143 + $0xd0] sm:$0xff] %vm626, %v604
      %654 = vst.msk [vmem:[%s143 + $0xd8] sm:$0xff] %vm626, %v607
      %655 = vst.msk [vmem:[%s143 + $0xe0] sm:$0xff] %vm626, %v612
      %656 = vst.msk [vmem:[%s143 + $0xe8] sm:$0xff] %vm626, %v615
      %657 = vst.msk [vmem:[%s143 + $0xf0] sm:$0xff] %vm626, %v620
      %658 = vst.msk [vmem:[%s143 + $0xf8] sm:$0xff] %vm626, %v623
      %p659 = scmp.lt.s32.totalorder %s13, 1
      %s660 = scalar_select %p659, %s13, 1
      %s661 = smul.addr %s660, 32
      %s662 = smul.addr %s661, 8
      %s663 = scalar_lea.vmem %s2, %s662
      // Predicated region
      $region29: #{pspnet_forward.17} parent=27 // pred_check
        %p664 = pneg %p78
      $region30: #{pspnet_forward.17} parent=27 // pred_check_branch
        %666 = sbr.rel (%p664) target = $region32
      $region31: #{pspnet_forward.17} parent=27 // pred_region
        _
      $region32: #{pspnet_forward.17} parent=27 // pred_fallthru
        _
    $region28: #{pspnet_forward.17} parent=5 // pred_fallthru
      _
    %p667 = scmp.le.s32.totalorder 2, %s8
    // Predicated region
    $region33: #{pspnet_forward.17} parent=5 // pred_check
      %p668 = pneg %p667
    $region34: #{pspnet_forward.17} parent=5 // pred_check_branch
      %670 = sbr.rel (%p668) target = $region36
    $region35: #{pspnet_forward.17} parent=5 // pred_region
      %s671 = ssub.s32 %s8, 2
      // Predicated region
      $region37: #{pspnet_forward.17} parent=35 // pred_check
        %p672 = pneg %p84
      $region38: #{pspnet_forward.17} parent=35 // pred_check_branch
        %674 = sbr.rel (%p672) target = $region40
      $region39: #{pspnet_forward.17} parent=35 // pred_region
        %p675 = scmp.lt.s32.totalorder %s14, 1
        %s676 = scalar_select %p675, %s14, 1
        %s677 = smul.addr %s676, 32
        %s678 = smul.addr %s677, 8
        %s679 = scalar_lea.vmem %s2, %s678
      $region40: #{pspnet_forward.17} parent=35 // pred_fallthru
        _
    $region36: #{pspnet_forward.17} parent=5 // pred_fallthru
      _
  $region6: #{pspnet_forward.17} parent=0 // loop_footer
    %s12 = sadd.s32 1, %s8
  $region7: #{pspnet_forward.17} parent=0 // loop_footer_branch
    %7 = sbr.rel target = $region3
  $region8: #{pspnet_forward.17} parent=0 // loop_exit
    _

</llo_original>
